<compile_context>
chip_gen: v7x
topology: tpu7x:2x2x1
jax: 0.10.0
libtpu: 0.0.40
codegen_flags: <defaults>
</compile_context>

<pallas_src>
import functools
import math

import jax
import jax.numpy as jnp
from jax.experimental import pallas as pl
from jax.experimental.pallas import tpu as pltpu

IN_DIM = 784          # 28 * 28
OUT_DIM = 784
PAD_DIM = 896         # 7 * 128: lane-dense padding of the 784-wide feature dim

# Original (unfused) layer dims, matching the PyTorch module exactly.
LAYER_DIMS = [
    (784, 128), (128, 64), (64, 12), (12, 3),      # encoder
    (3, 12), (12, 64), (64, 128), (128, 784),      # decoder
]
N_LAYERS = len(LAYER_DIMS)

_HI = jax.lax.Precision.HIGHEST


def init_params(key):
    """PyTorch-default-style init: U(-1/sqrt(fan_in), +1/sqrt(fan_in)). Deterministic."""
    params = []
    for (fan_in, fan_out) in LAYER_DIMS:
        key, kw, kb = jax.random.split(key, 3)
        bound = 1.0 / math.sqrt(fan_in)
        w = jax.random.uniform(kw, (fan_in, fan_out), jnp.float32, -bound, bound)
        b = jax.random.uniform(kb, (1, fan_out), jnp.float32, -bound, bound)
        params.append((w, b))
    return params


def prepare_params(params, matmul_dtype=jnp.bfloat16):
    """One-time host-side weight prep (call once, NOT per forward).

    1) Fuse the linear 12->3 / 3->12 pair (no nonlinearity between them in the
       original module): W34 = W3 @ W4, b34 = b3 @ W4 + b4 — exact algebra; the
       ReLU that followed decoder layer 0 is applied after the fused layer.
    2) Lane-dense padding: W0's rows 784->896 with zeros (matches the padded
       input columns), last layer's cols + bias 784->896 with zeros (the 112
       extra output columns are sliced off in the wrapper). Exact math.
    3) Cast weights to `matmul_dtype` (bf16 MXU inputs, f32 accumulation in the
       kernel); biases stay f32.
    """
    (w3, b3), (w4, b4) = params[3], params[4]
    w34 = jnp.matmul(w3, w4, precision=_HI)          # (12, 12)
    b34 = jnp.matmul(b3, w4, precision=_HI) + b4     # (1, 12)
    fused = list(params[:3]) + [(w34, b34)] + list(params[5:])

    w0, b0 = fused[0]
    fused[0] = (jnp.pad(w0, ((0, PAD_DIM - IN_DIM), (0, 0))), b0)      # (896,128)
    wl, bl = fused[-1]
    fused[-1] = (jnp.pad(wl, ((0, 0), (0, PAD_DIM - OUT_DIM))),        # (128,896)
                 jnp.pad(bl, ((0, 0), (0, PAD_DIM - OUT_DIM))))        # (1,896)

    return [(w.astype(matmul_dtype), b.astype(jnp.float32)) for (w, b) in fused]


def _ae_kernel(x_ref, *refs, approx_sigmoid):
    """refs = (w0, b0, w1, b1, ..., w6, b6, out_ref) for the 7 fused layers."""
    param_refs = refs[:-1]
    out_ref = refs[-1]
    n_layers = len(param_refs) // 2

    h = x_ref[...].astype(jnp.float32)
    for li in range(n_layers):
        w = param_refs[2 * li][...]
        b = param_refs[2 * li + 1][...]
        # bf16 (or f32) MXU inputs, f32 accumulation; bias add + nonlinearity in f32.
        h = jnp.dot(h.astype(w.dtype), w, preferred_element_type=jnp.float32) + b
        if li != n_layers - 1:
            h = jnp.maximum(h, 0.0)   # ReLU after every fused layer except the last
    if approx_sigmoid:
        # sigmoid(h) = 1 / (1 + exp(-h)); exp and the approx reciprocal both run
        # on the EUP slot -> no full-precision VALU divide in the epilogue.
        out = pl.reciprocal(1.0 + jnp.exp(-h), approx=True)
    else:
        out = jax.nn.sigmoid(h)
    out_ref[...] = out.astype(out_ref.dtype)


def make_forward(params, *, batch_tile=512, matmul_dtype=jnp.bfloat16,
                 out_dtype=jnp.bfloat16, approx_sigmoid=None):
    """Prepare weights once and return a jitted forward(x) closure."""
    if approx_sigmoid is None:
        approx_sigmoid = (matmul_dtype != jnp.float32)
    prepared = prepare_params(params, matmul_dtype)

    weight_specs = []
    flat_params = []
    for (w, b) in prepared:
        # Weights/biases are small (~0.5 MiB total in bf16): keep the full
        # tensors resident in VMEM for every batch tile (constant index_map).
        weight_specs.append(pl.BlockSpec(w.shape, lambda i: (0, 0)))
        weight_specs.append(pl.BlockSpec(b.shape, lambda i: (0, 0)))
        flat_params += [w, b]

    kernel = functools.partial(_ae_kernel, approx_sigmoid=approx_sigmoid)

    @jax.jit
    def forward(x):
        B, D = x.shape
        assert D == IN_DIM
        # Sublane-aligned batch tile; capped at ceil(B/2) so there are always
        # >= 2 grid steps (lets v7x split the "parallel" axis across its 2 TCs).
        bt = max(8, min(batch_tile, -(-B // 2)))
        bt = ((bt + 7) // 8) * 8
        n_blocks = -(-B // bt)
        b_pad = n_blocks * bt
        # Single fused pad: batch -> tile multiple, features 784 -> 896 (zeros).
        xp = jnp.pad(x, ((0, b_pad - B), (0, PAD_DIM - IN_DIM)))

        in_specs = [pl.BlockSpec((bt, PAD_DIM), lambda i: (i, 0))] + weight_specs
        out = pl.pallas_call(
            kernel,
            out_shape=jax.ShapeDtypeStruct((b_pad, PAD_DIM), out_dtype),
            grid=(n_blocks,),
            in_specs=in_specs,
            out_specs=pl.BlockSpec((bt, PAD_DIM), lambda i: (i, 0)),
            compiler_params=pltpu.CompilerParams(
                dimension_semantics=("parallel",),
                vmem_limit_bytes=32 * 1024 * 1024),
        )(xp, *flat_params)
        # Drop batch padding and the 112 zero-padded output lanes.
        return out[:B, :OUT_DIM]

    return forward


def _reference_forward(x, params):
    """Pure-JAX reference matching the PyTorch module (unfused, f32)."""
    h = x
    for li, (w, b) in enumerate(params):
        h = jnp.matmul(h, w, precision=_HI) + b
        if li != 3 and li != N_LAYERS - 1:
            h = jnp.maximum(h, 0.0)
    return jax.nn.sigmoid(h)


if __name__ == "__main__":
    key = jax.random.PRNGKey(0)
    k_params, k_x = jax.random.split(key)

    params = init_params(k_params)

    B = 512                      # 2 grid steps of 256 -> both v7x TensorCores get work
    x = jax.random.uniform(k_x, (B, IN_DIM), jnp.float32)

    ref = _reference_forward(x, params)

    # Near-exact check: f32 matmuls, f32 output, exact sigmoid (fusion only
    # reassociates the tiny 12->3->12 pair; padding adds exact zeros).
    fwd_f32 = make_forward(params, matmul_dtype=jnp.float32,
                           out_dtype=jnp.float32, approx_sigmoid=False)
    out_f32 = jax.block_until_ready(fwd_f32(x))
    assert out_f32.shape == (B, OUT_DIM)
    assert jnp.allclose(out_f32, ref, atol=1e-3, rtol=1e-3)

    # Fast path: bf16 MXU inputs / bf16 output / EUP approx-reciprocal sigmoid.
    fwd_fast = make_forward(params)
    out_fast = jax.block_until_ready(fwd_fast(x))
    assert out_fast.shape == (B, OUT_DIM)
    assert jnp.allclose(out_fast.astype(jnp.float32), ref, atol=5e-2, rtol=0)

    # Ragged batch exercises the pad + slice path (retraces at the new shape).
    out_ragged = jax.block_until_ready(fwd_fast(x[:13]))
    assert out_ragged.shape == (13, OUT_DIM)
    assert jnp.allclose(out_ragged.astype(jnp.float32), ref[:13], atol=5e-2, rtol=0)

    print("KERNEL_OK")
</pallas_src>

<mosaic_0001>
module attributes {stable_mosaic.version = 11 : i64} {
  func.func @_ae_kernel(%arg0: i32, %arg1: memref<256x896xf32, #tpu.memory_space<vmem>>, %arg2: memref<896x128xf32, #tpu.memory_space<vmem>>, %arg3: memref<1x128xf32, #tpu.memory_space<vmem>>, %arg4: memref<128x64xf32, #tpu.memory_space<vmem>>, %arg5: memref<1x64xf32, #tpu.memory_space<vmem>>, %arg6: memref<64x12xf32, #tpu.memory_space<vmem>>, %arg7: memref<1x12xf32, #tpu.memory_space<vmem>>, %arg8: memref<12x12xf32, #tpu.memory_space<vmem>>, %arg9: memref<1x12xf32, #tpu.memory_space<vmem>>, %arg10: memref<12x64xf32, #tpu.memory_space<vmem>>, %arg11: memref<1x64xf32, #tpu.memory_space<vmem>>, %arg12: memref<64x128xf32, #tpu.memory_space<vmem>>, %arg13: memref<1x128xf32, #tpu.memory_space<vmem>>, %arg14: memref<128x896xf32, #tpu.memory_space<vmem>>, %arg15: memref<1x896xf32, #tpu.memory_space<vmem>>, %arg16: memref<256x896xf32, #tpu.memory_space<vmem>>) attributes {dimension_semantics = [#tpu.dimension_semantics<parallel>], iteration_bounds = array<i64: 2>, scalar_prefetch = 0 : i64, scratch_operands = 0 : i64, tpu.core_type = #tpu.core_type<tc>, window_params = [{transform_indices = @transform_0, window_bounds = array<i64: 256, 896>}, {pipeline_mode = #tpu.pipeline_mode<synchronous>, transform_indices = @transform_1, window_bounds = array<i64: 896, 128>}, {pipeline_mode = #tpu.pipeline_mode<synchronous>, transform_indices = @transform_2, window_bounds = array<i64: 1, 128>}, {pipeline_mode = #tpu.pipeline_mode<synchronous>, transform_indices = @transform_3, window_bounds = array<i64: 128, 64>}, {pipeline_mode = #tpu.pipeline_mode<synchronous>, transform_indices = @transform_4, window_bounds = array<i64: 1, 64>}, {pipeline_mode = #tpu.pipeline_mode<synchronous>, transform_indices = @transform_5, window_bounds = array<i64: 64, 12>}, {pipeline_mode = #tpu.pipeline_mode<synchronous>, transform_indices = @transform_6, window_bounds = array<i64: 1, 12>}, {pipeline_mode = #tpu.pipeline_mode<synchronous>, transform_indices = @transform_7, window_bounds = array<i64: 12, 12>}, {pipeline_mode = #tpu.pipeline_mode<synchronous>, transform_indices = @transform_8, window_bounds = array<i64: 1, 12>}, {pipeline_mode = #tpu.pipeline_mode<synchronous>, transform_indices = @transform_9, window_bounds = array<i64: 12, 64>}, {pipeline_mode = #tpu.pipeline_mode<synchronous>, transform_indices = @transform_10, window_bounds = array<i64: 1, 64>}, {pipeline_mode = #tpu.pipeline_mode<synchronous>, transform_indices = @transform_11, window_bounds = array<i64: 64, 128>}, {pipeline_mode = #tpu.pipeline_mode<synchronous>, transform_indices = @transform_12, window_bounds = array<i64: 1, 128>}, {pipeline_mode = #tpu.pipeline_mode<synchronous>, transform_indices = @transform_13, window_bounds = array<i64: 128, 896>}, {pipeline_mode = #tpu.pipeline_mode<synchronous>, transform_indices = @transform_14, window_bounds = array<i64: 1, 896>}, {transform_indices = @transform_15, window_bounds = array<i64: 256, 896>}]} {
    %c0 = arith.constant 0 : index
    %c0_0 = arith.constant 0 : index
    %0 = vector.load %arg1[%c0, %c0_0] : memref<256x896xf32, #tpu.memory_space<vmem>>, vector<256x896xf32>
    %c0_1 = arith.constant 0 : index
    %c0_2 = arith.constant 0 : index
    %1 = vector.load %arg2[%c0_1, %c0_2] : memref<896x128xf32, #tpu.memory_space<vmem>>, vector<896x128xf32>
    %c0_3 = arith.constant 0 : index
    %c0_4 = arith.constant 0 : index
    %2 = vector.load %arg3[%c0_3, %c0_4] : memref<1x128xf32, #tpu.memory_space<vmem>>, vector<1x128xf32>
    %cst = arith.constant dense<0.000000e+00> : vector<256x128xf32>
    %3 = tpu.matmul %0, %1, %cst {dimension_numbers = #tpu.dot_dimension_numbers<[1], [0], [0], [1], [0, 0, 1, 1], [], []>} : vector<256x896xf32>, vector<896x128xf32>, vector<256x128xf32> -> vector<256x128xf32>
    %4 = vector.broadcast %2 : vector<1x128xf32> to vector<256x128xf32>
    %5 = arith.addf %3, %4 : vector<256x128xf32>
    %cst_5 = arith.constant 0.000000e+00 : f32
    %6 = vector.broadcast %cst_5 : f32 to vector<256x128xf32>
    %7 = arith.maximumf %5, %6 : vector<256x128xf32>
    %c0_6 = arith.constant 0 : index
    %c0_7 = arith.constant 0 : index
    %8 = vector.load %arg4[%c0_6, %c0_7] : memref<128x64xf32, #tpu.memory_space<vmem>>, vector<128x64xf32>
    %c0_8 = arith.constant 0 : index
    %c0_9 = arith.constant 0 : index
    %9 = vector.load %arg5[%c0_8, %c0_9] : memref<1x64xf32, #tpu.memory_space<vmem>>, vector<1x64xf32>
    %cst_10 = arith.constant dense<0.000000e+00> : vector<256x64xf32>
    %10 = tpu.matmul %7, %8, %cst_10 {dimension_numbers = #tpu.dot_dimension_numbers<[1], [0], [0], [1], [0, 0, 1, 1], [], []>} : vector<256x128xf32>, vector<128x64xf32>, vector<256x64xf32> -> vector<256x64xf32>
    %11 = vector.broadcast %9 : vector<1x64xf32> to vector<256x64xf32>
    %12 = arith.addf %10, %11 : vector<256x64xf32>
    %cst_11 = arith.constant 0.000000e+00 : f32
    %13 = vector.broadcast %cst_11 : f32 to vector<256x64xf32>
    %14 = arith.maximumf %12, %13 : vector<256x64xf32>
    %c0_12 = arith.constant 0 : index
    %c0_13 = arith.constant 0 : index
    %15 = vector.load %arg6[%c0_12, %c0_13] : memref<64x12xf32, #tpu.memory_space<vmem>>, vector<64x12xf32>
    %c0_14 = arith.constant 0 : index
    %c0_15 = arith.constant 0 : index
    %16 = vector.load %arg7[%c0_14, %c0_15] : memref<1x12xf32, #tpu.memory_space<vmem>>, vector<1x12xf32>
    %cst_16 = arith.constant dense<0.000000e+00> : vector<256x12xf32>
    %17 = tpu.matmul %14, %15, %cst_16 {dimension_numbers = #tpu.dot_dimension_numbers<[1], [0], [0], [1], [0, 0, 1, 1], [], []>} : vector<256x64xf32>, vector<64x12xf32>, vector<256x12xf32> -> vector<256x12xf32>
    %18 = vector.broadcast %16 : vector<1x12xf32> to vector<256x12xf32>
    %19 = arith.addf %17, %18 : vector<256x12xf32>
    %cst_17 = arith.constant 0.000000e+00 : f32
    %20 = vector.broadcast %cst_17 : f32 to vector<256x12xf32>
    %21 = arith.maximumf %19, %20 : vector<256x12xf32>
    %c0_18 = arith.constant 0 : index
    %c0_19 = arith.constant 0 : index
    %22 = vector.load %arg8[%c0_18, %c0_19] : memref<12x12xf32, #tpu.memory_space<vmem>>, vector<12x12xf32>
    %c0_20 = arith.constant 0 : index
    %c0_21 = arith.constant 0 : index
    %23 = vector.load %arg9[%c0_20, %c0_21] : memref<1x12xf32, #tpu.memory_space<vmem>>, vector<1x12xf32>
    %cst_22 = arith.constant dense<0.000000e+00> : vector<256x12xf32>
    %24 = tpu.matmul %21, %22, %cst_22 {dimension_numbers = #tpu.dot_dimension_numbers<[1], [0], [0], [1], [0, 0, 1, 1], [], []>} : vector<256x12xf32>, vector<12x12xf32>, vector<256x12xf32> -> vector<256x12xf32>
    %25 = vector.broadcast %23 : vector<1x12xf32> to vector<256x12xf32>
    %26 = arith.addf %24, %25 : vector<256x12xf32>
    %cst_23 = arith.constant 0.000000e+00 : f32
    %27 = vector.broadcast %cst_23 : f32 to vector<256x12xf32>
    %28 = arith.maximumf %26, %27 : vector<256x12xf32>
    %c0_24 = arith.constant 0 : index
    %c0_25 = arith.constant 0 : index
    %29 = vector.load %arg10[%c0_24, %c0_25] : memref<12x64xf32, #tpu.memory_space<vmem>>, vector<12x64xf32>
    %c0_26 = arith.constant 0 : index
    %c0_27 = arith.constant 0 : index
    %30 = vector.load %arg11[%c0_26, %c0_27] : memref<1x64xf32, #tpu.memory_space<vmem>>, vector<1x64xf32>
    %cst_28 = arith.constant dense<0.000000e+00> : vector<256x64xf32>
    %31 = tpu.matmul %28, %29, %cst_28 {dimension_numbers = #tpu.dot_dimension_numbers<[1], [0], [0], [1], [0, 0, 1, 1], [], []>} : vector<256x12xf32>, vector<12x64xf32>, vector<256x64xf32> -> vector<256x64xf32>
    %32 = vector.broadcast %30 : vector<1x64xf32> to vector<256x64xf32>
    %33 = arith.addf %31, %32 : vector<256x64xf32>
    %cst_29 = arith.constant 0.000000e+00 : f32
    %34 = vector.broadcast %cst_29 : f32 to vector<256x64xf32>
    %35 = arith.maximumf %33, %34 : vector<256x64xf32>
    %c0_30 = arith.constant 0 : index
    %c0_31 = arith.constant 0 : index
    %36 = vector.load %arg12[%c0_30, %c0_31] : memref<64x128xf32, #tpu.memory_space<vmem>>, vector<64x128xf32>
    %c0_32 = arith.constant 0 : index
    %c0_33 = arith.constant 0 : index
    %37 = vector.load %arg13[%c0_32, %c0_33] : memref<1x128xf32, #tpu.memory_space<vmem>>, vector<1x128xf32>
    %cst_34 = arith.constant dense<0.000000e+00> : vector<256x128xf32>
    %38 = tpu.matmul %35, %36, %cst_34 {dimension_numbers = #tpu.dot_dimension_numbers<[1], [0], [0], [1], [0, 0, 1, 1], [], []>} : vector<256x64xf32>, vector<64x128xf32>, vector<256x128xf32> -> vector<256x128xf32>
    %39 = vector.broadcast %37 : vector<1x128xf32> to vector<256x128xf32>
    %40 = arith.addf %38, %39 : vector<256x128xf32>
    %cst_35 = arith.constant 0.000000e+00 : f32
    %41 = vector.broadcast %cst_35 : f32 to vector<256x128xf32>
    %42 = arith.maximumf %40, %41 : vector<256x128xf32>
    %c0_36 = arith.constant 0 : index
    %c0_37 = arith.constant 0 : index
    %43 = vector.load %arg14[%c0_36, %c0_37] : memref<128x896xf32, #tpu.memory_space<vmem>>, vector<128x896xf32>
    %c0_38 = arith.constant 0 : index
    %c0_39 = arith.constant 0 : index
    %44 = vector.load %arg15[%c0_38, %c0_39] : memref<1x896xf32, #tpu.memory_space<vmem>>, vector<1x896xf32>
    %cst_40 = arith.constant dense<0.000000e+00> : vector<256x896xf32>
    %45 = tpu.matmul %42, %43, %cst_40 {dimension_numbers = #tpu.dot_dimension_numbers<[1], [0], [0], [1], [0, 0, 1, 1], [], []>} : vector<256x128xf32>, vector<128x896xf32>, vector<256x896xf32> -> vector<256x896xf32>
    %46 = vector.broadcast %44 : vector<1x896xf32> to vector<256x896xf32>
    %47 = arith.addf %45, %46 : vector<256x896xf32>
    %48 = arith.negf %47 : vector<256x896xf32>
    %49 = math.exp %48 : vector<256x896xf32>
    %cst_41 = arith.constant 1.000000e+00 : f32
    %50 = vector.broadcast %cst_41 : f32 to vector<256x896xf32>
    %51 = arith.addf %50, %49 : vector<256x896xf32>
    %52 = arith.divf %50, %51 : vector<256x896xf32>
    %c0_42 = arith.constant 0 : index
    %c0_43 = arith.constant 0 : index
    %53 = vector.load %arg16[%c0_42, %c0_43] : memref<256x896xf32, #tpu.memory_space<vmem>>, vector<256x896xf32>
    tpu.vector_store %arg16[%c0_42, %c0_43], %52 {strides = array<i32>} : memref<256x896xf32, #tpu.memory_space<vmem>>, vector<256x896xf32>,
    return
  }
  func.func @transform_0(%arg0: i32) -> (i32, i32) {
    %c0_i32 = arith.constant 0 : i32
    %c0_i32_0 = arith.constant 0 : i32
    return %arg0, %c0_i32 : i32, i32
  }
  func.func @transform_1(%arg0: i32) -> (i32, i32) {
    %c0_i32 = arith.constant 0 : i32
    %c0_i32_0 = arith.constant 0 : i32
    %c0_i32_1 = arith.constant 0 : i32
    return %c0_i32, %c0_i32_0 : i32, i32
  }
  func.func @transform_2(%arg0: i32) -> (i32, i32) {
    %c0_i32 = arith.constant 0 : i32
    %c0_i32_0 = arith.constant 0 : i32
    %c0_i32_1 = arith.constant 0 : i32
    return %c0_i32, %c0_i32_0 : i32, i32
  }
  func.func @transform_3(%arg0: i32) -> (i32, i32) {
    %c0_i32 = arith.constant 0 : i32
    %c0_i32_0 = arith.constant 0 : i32
    %c0_i32_1 = arith.constant 0 : i32
    return %c0_i32, %c0_i32_0 : i32, i32
  }
  func.func @transform_4(%arg0: i32) -> (i32, i32) {
    %c0_i32 = arith.constant 0 : i32
    %c0_i32_0 = arith.constant 0 : i32
    %c0_i32_1 = arith.constant 0 : i32
    return %c0_i32, %c0_i32_0 : i32, i32
  }
  func.func @transform_5(%arg0: i32) -> (i32, i32) {
    %c0_i32 = arith.constant 0 : i32
    %c0_i32_0 = arith.constant 0 : i32
    %c0_i32_1 = arith.constant 0 : i32
    return %c0_i32, %c0_i32_0 : i32, i32
  }
  func.func @transform_6(%arg0: i32) -> (i32, i32) {
    %c0_i32 = arith.constant 0 : i32
    %c0_i32_0 = arith.constant 0 : i32
    %c0_i32_1 = arith.constant 0 : i32
    return %c0_i32, %c0_i32_0 : i32, i32
  }
  func.func @transform_7(%arg0: i32) -> (i32, i32) {
    %c0_i32 = arith.constant 0 : i32
    %c0_i32_0 = arith.constant 0 : i32
    %c0_i32_1 = arith.constant 0 : i32
    return %c0_i32, %c0_i32_0 : i32, i32
  }
  func.func @transform_8(%arg0: i32) -> (i32, i32) {
    %c0_i32 = arith.constant 0 : i32
    %c0_i32_0 = arith.constant 0 : i32
    %c0_i32_1 = arith.constant 0 : i32
    return %c0_i32, %c0_i32_0 : i32, i32
  }
  func.func @transform_9(%arg0: i32) -> (i32, i32) {
    %c0_i32 = arith.constant 0 : i32
    %c0_i32_0 = arith.constant 0 : i32
    %c0_i32_1 = arith.constant 0 : i32
    return %c0_i32, %c0_i32_0 : i32, i32
  }
  func.func @transform_10(%arg0: i32) -> (i32, i32) {
    %c0_i32 = arith.constant 0 : i32
    %c0_i32_0 = arith.constant 0 : i32
    %c0_i32_1 = arith.constant 0 : i32
    return %c0_i32, %c0_i32_0 : i32, i32
  }
  func.func @transform_11(%arg0: i32) -> (i32, i32) {
    %c0_i32 = arith.constant 0 : i32
    %c0_i32_0 = arith.constant 0 : i32
    %c0_i32_1 = arith.constant 0 : i32
    return %c0_i32, %c0_i32_0 : i32, i32
  }
  func.func @transform_12(%arg0: i32) -> (i32, i32) {
    %c0_i32 = arith.constant 0 : i32
    %c0_i32_0 = arith.constant 0 : i32
    %c0_i32_1 = arith.constant 0 : i32
    return %c0_i32, %c0_i32_0 : i32, i32
  }
  func.func @transform_13(%arg0: i32) -> (i32, i32) {
    %c0_i32 = arith.constant 0 : i32
    %c0_i32_0 = arith.constant 0 : i32
    %c0_i32_1 = arith.constant 0 : i32
    return %c0_i32, %c0_i32_0 : i32, i32
  }
  func.func @transform_14(%arg0: i32) -> (i32, i32) {
    %c0_i32 = arith.constant 0 : i32
    %c0_i32_0 = arith.constant 0 : i32
    %c0_i32_1 = arith.constant 0 : i32
    return %c0_i32, %c0_i32_0 : i32, i32
  }
  func.func @transform_15(%arg0: i32) -> (i32, i32) {
    %c0_i32 = arith.constant 0 : i32
    %c0_i32_0 = arith.constant 0 : i32
    return %arg0, %c0_i32 : i32, i32
  }
}

</mosaic_0001>

<llo_original>
// kernel: forward.1
$region0: #{forward.1}
  #allocation0 [shape = 'u32[]', space=smem, size = 0x4, offset = 0x4, fixed_abs, tag = 'smem constant byte address 0x4 - core index']
  #allocation1 [shape = 'u32[144,128]{1,0:T(1,128)}', space=vmem, size = 0x12000, scoped, tag = 'internal scratch']
  %s0 = inlined_call_operand.vmem [shape: f32[512,896], index: 0, kind: input, shape index: {}]
  %s1 = inlined_call_operand.vmem [shape: f32[896,128], index: 1, kind: input, shape index: {}]
  %s2 = inlined_call_operand.vmem [shape: f32[1,128], index: 2, kind: input, shape index: {}]
  %s3 = inlined_call_operand.vmem [shape: f32[128,64], index: 3, kind: input, shape index: {}]
  %s4 = inlined_call_operand.vmem [shape: f32[1,64], index: 4, kind: input, shape index: {}]
  %s5 = inlined_call_operand.vmem [shape: f32[64,12], index: 5, kind: input, shape index: {}]
  %s6 = inlined_call_operand.vmem [shape: f32[1,12], index: 6, kind: input, shape index: {}]
  %s7 = inlined_call_operand.vmem [shape: f32[12,12], index: 7, kind: input, shape index: {}]
  %s8 = inlined_call_operand.vmem [shape: f32[1,12], index: 8, kind: input, shape index: {}]
  %s9 = inlined_call_operand.vmem [shape: f32[12,64], index: 9, kind: input, shape index: {}]
  %s10 = inlined_call_operand.vmem [shape: f32[1,64], index: 10, kind: input, shape index: {}]
  %s11 = inlined_call_operand.vmem [shape: f32[64,128], index: 11, kind: input, shape index: {}]
  %s12 = inlined_call_operand.vmem [shape: f32[1,128], index: 12, kind: input, shape index: {}]
  %s13 = inlined_call_operand.vmem [shape: f32[128,896], index: 13, kind: input, shape index: {}]
  %s14 = inlined_call_operand.vmem [shape: f32[1,896], index: 14, kind: input, shape index: {}]
  %s15 = inlined_call_operand.vmem [shape: f32[512,896], index: 15, kind: output, shape index: {}]
  %s16 = sld [smem:[#allocation0]]
  $region93: #{forward.1} parent=0
    _
  %s18 = ssub.s32 1, %s16
  %s19 = scalar_select 0, %s18, %s16
  loop: start=0, step=1, limit=4
  $region2: #{forward.1} parent=0 // loop_pre_header
    _
  $region3: #{forward.1} parent=0 // loop_header
    %s21 = sphi 0, %s25
    %p22 = scmp.ge.s32.totalorder %s21, 4
    %s31 = sphi 0, %s33
    %s34 = sphi 0, %s31
    %s35 = sphi 0, %s34
    %s51 = sphi 0, %s35
    %s55 = sphi 0, %s55
    %s57 = sphi 0, %s55
    %s58 = sphi 0, %s57
    %s72 = sphi 0, %s58
    %s76 = sphi 0, %s76
    %s78 = sphi 0, %s76
    %s79 = sphi 0, %s78
    %s93 = sphi 0, %s79
    %s97 = sphi 0, %s97
    %s99 = sphi 0, %s97
    %s100 = sphi 0, %s99
    %s114 = sphi 0, %s100
    %s118 = sphi 0, %s118
    %s120 = sphi 0, %s118
    %s121 = sphi 0, %s120
    %s135 = sphi 0, %s121
    %s139 = sphi 0, %s139
    %s141 = sphi 0, %s139
    %s142 = sphi 0, %s141
    %s156 = sphi 0, %s142
    %s160 = sphi 0, %s160
    %s162 = sphi 0, %s160
    %s163 = sphi 0, %s162
    %s177 = sphi 0, %s163
    %s181 = sphi 0, %s181
    %s183 = sphi 0, %s181
    %s184 = sphi 0, %s183
    %s198 = sphi 0, %s184
    %s202 = sphi 0, %s202
    %s204 = sphi 0, %s202
    %s205 = sphi 0, %s204
    %s219 = sphi 0, %s205
    %s223 = sphi 0, %s223
    %s225 = sphi 0, %s223
    %s226 = sphi 0, %s225
    %s240 = sphi 0, %s226
    %s244 = sphi 0, %s244
    %s246 = sphi 0, %s244
    %s247 = sphi 0, %s246
    %s261 = sphi 0, %s247
    %s265 = sphi 0, %s265
    %s267 = sphi 0, %s265
    %s268 = sphi 0, %s267
    %s282 = sphi 0, %s268
    %s286 = sphi 0, %s286
    %s288 = sphi 0, %s286
    %s289 = sphi 0, %s288
    %s303 = sphi 0, %s289
    %s307 = sphi 0, %s307
    %s309 = sphi 0, %s307
    %s310 = sphi 0, %s309
    %s324 = sphi 0, %s310
    %s328 = sphi 0, %s328
    %s330 = sphi 0, %s328
    %s331 = sphi 0, %s330
    %s345 = sphi 0, %s331
    %s351 = sphi 0, %s353
    %s354 = sphi 0, %s351
    %s355 = sphi 0, %s354
    %s371 = sphi 0, %s355
  $region4: #{forward.1} parent=0 // loop_header_branch
    %24 = sbr.rel (%p22) target = $region8
  $region5: #{forward.1} parent=0 // loop_body
    %s26 = ssub.s32 %s21, 1
    %s27 = ssub.s32 %s21, 2
    %s28 = sadd.s32 %s21, 1
    %s29 = ssub.s32 %s21, %s28
    %p30 = scmp.eq.s32.totalorder %s29, 0
    %s32 = sadd.s32 %s31, 1
    %s33 = scalar_select %p30, %s31, %s32
    %p36 = pneg %p30
    %p37 = scmp.eq.s32.totalorder %s21, 1
    %p38 = por %p36, %p37
    %p39 = scmp.ne.s32.totalorder %s31, %s34
    %p40 = scmp.eq.s32.totalorder %s21, 0
    %p41 = por %p39, %p40
    %p42 = scmp.ne.s32.totalorder %s31, %s34
    %p43 = scmp.eq.s32.totalorder %s26, 1
    %p44 = por %p42, %p43
    %p45 = scmp.ne.s32.totalorder %s34, %s35
    %p46 = scmp.eq.s32.totalorder %s26, 0
    %p47 = por %p45, %p46
    %p48 = scmp.ne.s32.totalorder %s34, %s35
    %p49 = scmp.eq.s32.totalorder %s27, 1
    %p50 = por %p48, %p49
    %p52 = scmp.ne.s32.totalorder %s35, %s51
    %p53 = scmp.eq.s32.totalorder %s27, 0
    %p54 = por %p52, %p53
    %s56 = sadd.s32 %s55, 1
    %p59 = scmp.eq.s32.totalorder %s21, 1
    %p60 = scmp.ne.s32.totalorder %s55, %s57
    %p61 = scmp.eq.s32.totalorder %s21, 0
    %p62 = por %p60, %p61
    %p63 = scmp.ne.s32.totalorder %s55, %s57
    %p64 = scmp.eq.s32.totalorder %s26, 1
    %p65 = por %p63, %p64
    %p66 = scmp.ne.s32.totalorder %s57, %s58
    %p67 = scmp.eq.s32.totalorder %s26, 0
    %p68 = por %p66, %p67
    %p69 = scmp.ne.s32.totalorder %s57, %s58
    %p70 = scmp.eq.s32.totalorder %s27, 1
    %p71 = por %p69, %p70
    %p73 = scmp.ne.s32.totalorder %s58, %s72
    %p74 = scmp.eq.s32.totalorder %s27, 0
    %p75 = por %p73, %p74
    %s77 = sadd.s32 %s76, 1
    %p80 = scmp.eq.s32.totalorder %s21, 1
    %p81 = scmp.ne.s32.totalorder %s76, %s78
    %p82 = scmp.eq.s32.totalorder %s21, 0
    %p83 = por %p81, %p82
    %p84 = scmp.ne.s32.totalorder %s76, %s78
    %p85 = scmp.eq.s32.totalorder %s26, 1
    %p86 = por %p84, %p85
    %p87 = scmp.ne.s32.totalorder %s78, %s79
    %p88 = scmp.eq.s32.totalorder %s26, 0
    %p89 = por %p87, %p88
    %p90 = scmp.ne.s32.totalorder %s78, %s79
    %p91 = scmp.eq.s32.totalorder %s27, 1
    %p92 = por %p90, %p91
    %p94 = scmp.ne.s32.totalorder %s79, %s93
    %p95 = scmp.eq.s32.totalorder %s27, 0
    %p96 = por %p94, %p95
    %s98 = sadd.s32 %s97, 1
    %p101 = scmp.eq.s32.totalorder %s21, 1
    %p102 = scmp.ne.s32.totalorder %s97, %s99
    %p103 = scmp.eq.s32.totalorder %s21, 0
    %p104 = por %p102, %p103
    %p105 = scmp.ne.s32.totalorder %s97, %s99
    %p106 = scmp.eq.s32.totalorder %s26, 1
    %p107 = por %p105, %p106
    %p108 = scmp.ne.s32.totalorder %s99, %s100
    %p109 = scmp.eq.s32.totalorder %s26, 0
    %p110 = por %p108, %p109
    %p111 = scmp.ne.s32.totalorder %s99, %s100
    %p112 = scmp.eq.s32.totalorder %s27, 1
    %p113 = por %p111, %p112
    %p115 = scmp.ne.s32.totalorder %s100, %s114
    %p116 = scmp.eq.s32.totalorder %s27, 0
    %p117 = por %p115, %p116
    %s119 = sadd.s32 %s118, 1
    %p122 = scmp.eq.s32.totalorder %s21, 1
    %p123 = scmp.ne.s32.totalorder %s118, %s120
    %p124 = scmp.eq.s32.totalorder %s21, 0
    %p125 = por %p123, %p124
    %p126 = scmp.ne.s32.totalorder %s118, %s120
    %p127 = scmp.eq.s32.totalorder %s26, 1
    %p128 = por %p126, %p127
    %p129 = scmp.ne.s32.totalorder %s120, %s121
    %p130 = scmp.eq.s32.totalorder %s26, 0
    %p131 = por %p129, %p130
    %p132 = scmp.ne.s32.totalorder %s120, %s121
    %p133 = scmp.eq.s32.totalorder %s27, 1
    %p134 = por %p132, %p133
    %p136 = scmp.ne.s32.totalorder %s121, %s135
    %p137 = scmp.eq.s32.totalorder %s27, 0
    %p138 = por %p136, %p137
    %s140 = sadd.s32 %s139, 1
    %p143 = scmp.eq.s32.totalorder %s21, 1
    %p144 = scmp.ne.s32.totalorder %s139, %s141
    %p145 = scmp.eq.s32.totalorder %s21, 0
    %p146 = por %p144, %p145
    %p147 = scmp.ne.s32.totalorder %s139, %s141
    %p148 = scmp.eq.s32.totalorder %s26, 1
    %p149 = por %p147, %p148
    %p150 = scmp.ne.s32.totalorder %s141, %s142
    %p151 = scmp.eq.s32.totalorder %s26, 0
    %p152 = por %p150, %p151
    %p153 = scmp.ne.s32.totalorder %s141, %s142
    %p154 = scmp.eq.s32.totalorder %s27, 1
    %p155 = por %p153, %p154
    %p157 = scmp.ne.s32.totalorder %s142, %s156
    %p158 = scmp.eq.s32.totalorder %s27, 0
    %p159 = por %p157, %p158
    %s161 = sadd.s32 %s160, 1
    %p164 = scmp.eq.s32.totalorder %s21, 1
    %p165 = scmp.ne.s32.totalorder %s160, %s162
    %p166 = scmp.eq.s32.totalorder %s21, 0
    %p167 = por %p165, %p166
    %p168 = scmp.ne.s32.totalorder %s160, %s162
    %p169 = scmp.eq.s32.totalorder %s26, 1
    %p170 = por %p168, %p169
    %p171 = scmp.ne.s32.totalorder %s162, %s163
    %p172 = scmp.eq.s32.totalorder %s26, 0
    %p173 = por %p171, %p172
    %p174 = scmp.ne.s32.totalorder %s162, %s163
    %p175 = scmp.eq.s32.totalorder %s27, 1
    %p176 = por %p174, %p175
    %p178 = scmp.ne.s32.totalorder %s163, %s177
    %p179 = scmp.eq.s32.totalorder %s27, 0
    %p180 = por %p178, %p179
    %s182 = sadd.s32 %s181, 1
    %p185 = scmp.eq.s32.totalorder %s21, 1
    %p186 = scmp.ne.s32.totalorder %s181, %s183
    %p187 = scmp.eq.s32.totalorder %s21, 0
    %p188 = por %p186, %p187
    %p189 = scmp.ne.s32.totalorder %s181, %s183
    %p190 = scmp.eq.s32.totalorder %s26, 1
    %p191 = por %p189, %p190
    %p192 = scmp.ne.s32.totalorder %s183, %s184
    %p193 = scmp.eq.s32.totalorder %s26, 0
    %p194 = por %p192, %p193
    %p195 = scmp.ne.s32.totalorder %s183, %s184
    %p196 = scmp.eq.s32.totalorder %s27, 1
    %p197 = por %p195, %p196
    %p199 = scmp.ne.s32.totalorder %s184, %s198
    %p200 = scmp.eq.s32.totalorder %s27, 0
    %p201 = por %p199, %p200
    %s203 = sadd.s32 %s202, 1
    %p206 = scmp.eq.s32.totalorder %s21, 1
    %p207 = scmp.ne.s32.totalorder %s202, %s204
    %p208 = scmp.eq.s32.totalorder %s21, 0
    %p209 = por %p207, %p208
    %p210 = scmp.ne.s32.totalorder %s202, %s204
    %p211 = scmp.eq.s32.totalorder %s26, 1
    %p212 = por %p210, %p211
    %p213 = scmp.ne.s32.totalorder %s204, %s205
    %p214 = scmp.eq.s32.totalorder %s26, 0
    %p215 = por %p213, %p214
    %p216 = scmp.ne.s32.totalorder %s204, %s205
    %p217 = scmp.eq.s32.totalorder %s27, 1
    %p218 = por %p216, %p217
    %p220 = scmp.ne.s32.totalorder %s205, %s219
    %p221 = scmp.eq.s32.totalorder %s27, 0
    %p222 = por %p220, %p221
    %s224 = sadd.s32 %s223, 1
    %p227 = scmp.eq.s32.totalorder %s21, 1
    %p228 = scmp.ne.s32.totalorder %s223, %s225
    %p229 = scmp.eq.s32.totalorder %s21, 0
    %p230 = por %p228, %p229
    %p231 = scmp.ne.s32.totalorder %s223, %s225
    %p232 = scmp.eq.s32.totalorder %s26, 1
    %p233 = por %p231, %p232
    %p234 = scmp.ne.s32.totalorder %s225, %s226
    %p235 = scmp.eq.s32.totalorder %s26, 0
    %p236 = por %p234, %p235
    %p237 = scmp.ne.s32.totalorder %s225, %s226
    %p238 = scmp.eq.s32.totalorder %s27, 1
    %p239 = por %p237, %p238
    %p241 = scmp.ne.s32.totalorder %s226, %s240
    %p242 = scmp.eq.s32.totalorder %s27, 0
    %p243 = por %p241, %p242
    %s245 = sadd.s32 %s244, 1
    %p248 = scmp.eq.s32.totalorder %s21, 1
    %p249 = scmp.ne.s32.totalorder %s244, %s246
    %p250 = scmp.eq.s32.totalorder %s21, 0
    %p251 = por %p249, %p250
    %p252 = scmp.ne.s32.totalorder %s244, %s246
    %p253 = scmp.eq.s32.totalorder %s26, 1
    %p254 = por %p252, %p253
    %p255 = scmp.ne.s32.totalorder %s246, %s247
    %p256 = scmp.eq.s32.totalorder %s26, 0
    %p257 = por %p255, %p256
    %p258 = scmp.ne.s32.totalorder %s246, %s247
    %p259 = scmp.eq.s32.totalorder %s27, 1
    %p260 = por %p258, %p259
    %p262 = scmp.ne.s32.totalorder %s247, %s261
    %p263 = scmp.eq.s32.totalorder %s27, 0
    %p264 = por %p262, %p263
    %s266 = sadd.s32 %s265, 1
    %p269 = scmp.eq.s32.totalorder %s21, 1
    %p270 = scmp.ne.s32.totalorder %s265, %s267
    %p271 = scmp.eq.s32.totalorder %s21, 0
    %p272 = por %p270, %p271
    %p273 = scmp.ne.s32.totalorder %s265, %s267
    %p274 = scmp.eq.s32.totalorder %s26, 1
    %p275 = por %p273, %p274
    %p276 = scmp.ne.s32.totalorder %s267, %s268
    %p277 = scmp.eq.s32.totalorder %s26, 0
    %p278 = por %p276, %p277
    %p279 = scmp.ne.s32.totalorder %s267, %s268
    %p280 = scmp.eq.s32.totalorder %s27, 1
    %p281 = por %p279, %p280
    %p283 = scmp.ne.s32.totalorder %s268, %s282
    %p284 = scmp.eq.s32.totalorder %s27, 0
    %p285 = por %p283, %p284
    %s287 = sadd.s32 %s286, 1
    %p290 = scmp.eq.s32.totalorder %s21, 1
    %p291 = scmp.ne.s32.totalorder %s286, %s288
    %p292 = scmp.eq.s32.totalorder %s21, 0
    %p293 = por %p291, %p292
    %p294 = scmp.ne.s32.totalorder %s286, %s288
    %p295 = scmp.eq.s32.totalorder %s26, 1
    %p296 = por %p294, %p295
    %p297 = scmp.ne.s32.totalorder %s288, %s289
    %p298 = scmp.eq.s32.totalorder %s26, 0
    %p299 = por %p297, %p298
    %p300 = scmp.ne.s32.totalorder %s288, %s289
    %p301 = scmp.eq.s32.totalorder %s27, 1
    %p302 = por %p300, %p301
    %p304 = scmp.ne.s32.totalorder %s289, %s303
    %p305 = scmp.eq.s32.totalorder %s27, 0
    %p306 = por %p304, %p305
    %s308 = sadd.s32 %s307, 1
    %p311 = scmp.eq.s32.totalorder %s21, 1
    %p312 = scmp.ne.s32.totalorder %s307, %s309
    %p313 = scmp.eq.s32.totalorder %s21, 0
    %p314 = por %p312, %p313
    %p315 = scmp.ne.s32.totalorder %s307, %s309
    %p316 = scmp.eq.s32.totalorder %s26, 1
    %p317 = por %p315, %p316
    %p318 = scmp.ne.s32.totalorder %s309, %s310
    %p319 = scmp.eq.s32.totalorder %s26, 0
    %p320 = por %p318, %p319
    %p321 = scmp.ne.s32.totalorder %s309, %s310
    %p322 = scmp.eq.s32.totalorder %s27, 1
    %p323 = por %p321, %p322
    %p325 = scmp.ne.s32.totalorder %s310, %s324
    %p326 = scmp.eq.s32.totalorder %s27, 0
    %p327 = por %p325, %p326
    %s329 = sadd.s32 %s328, 1
    %p332 = scmp.eq.s32.totalorder %s21, 1
    %p333 = scmp.ne.s32.totalorder %s328, %s330
    %p334 = scmp.eq.s32.totalorder %s21, 0
    %p335 = por %p333, %p334
    %p336 = scmp.ne.s32.totalorder %s328, %s330
    %p337 = scmp.eq.s32.totalorder %s26, 1
    %p338 = por %p336, %p337
    %p339 = scmp.ne.s32.totalorder %s330, %s331
    %p340 = scmp.eq.s32.totalorder %s26, 0
    %p341 = por %p339, %p340
    %p342 = scmp.ne.s32.totalorder %s330, %s331
    %p343 = scmp.eq.s32.totalorder %s27, 1
    %p344 = por %p342, %p343
    %p346 = scmp.ne.s32.totalorder %s331, %s345
    %p347 = scmp.eq.s32.totalorder %s27, 0
    %p348 = por %p346, %p347
    %s349 = ssub.s32 %s21, %s28
    %p350 = scmp.eq.s32.totalorder %s349, 0
    %s352 = sadd.s32 %s351, 1
    %s353 = scalar_select %p350, %s351, %s352
    %p356 = pneg %p350
    %p357 = scmp.eq.s32.totalorder %s21, 1
    %p358 = por %p356, %p357
    %p359 = scmp.ne.s32.totalorder %s351, %s354
    %p360 = scmp.eq.s32.totalorder %s21, 0
    %p361 = por %p359, %p360
    %p362 = scmp.ne.s32.totalorder %s351, %s354
    %p363 = scmp.eq.s32.totalorder %s26, 1
    %p364 = por %p362, %p363
    %p365 = scmp.ne.s32.totalorder %s354, %s355
    %p366 = scmp.eq.s32.totalorder %s26, 0
    %p367 = por %p365, %p366
    %p368 = scmp.ne.s32.totalorder %s354, %s355
    %p369 = scmp.eq.s32.totalorder %s27, 1
    %p370 = por %p368, %p369
    %p372 = scmp.ne.s32.totalorder %s355, %s371
    %p373 = scmp.eq.s32.totalorder %s27, 0
    %p374 = por %p372, %p373
    %p375 = scmp.le.s32.totalorder 1, %s21
    %p376 = scmp.lt.s32.totalorder %s21, 3
    %p377 = pnand %p375, %p376
    %p378 = pneg %p377
    // Predicated region
    $region9: #{forward.1} parent=5 // pred_check
      _
    $region10: #{forward.1} parent=5 // pred_check_branch
      %380 = sbr.rel (%p377) target = $region12
    $region11: #{forward.1} parent=5 // pred_region
      %s381 = ssub.s32 %s21, 1
      // Predicated region
      $region13: #{forward.1} parent=11 // pred_check
        %p382 = pneg %p68
      $region14: #{forward.1} parent=11 // pred_check_branch
        %384 = sbr.rel (%p382) target = $region16
      $region15: #{forward.1} parent=11 // pred_region
        _
      $region16: #{forward.1} parent=11 // pred_fallthru
        _
      // Predicated region
      $region17: #{forward.1} parent=11 // pred_check
        %p385 = pneg %p89
      $region18: #{forward.1} parent=11 // pred_check_branch
        %387 = sbr.rel (%p385) target = $region20
      $region19: #{forward.1} parent=11 // pred_region
        _
      $region20: #{forward.1} parent=11 // pred_fallthru
        _
      // Predicated region
      $region21: #{forward.1} parent=11 // pred_check
        %p388 = pneg %p110
      $region22: #{forward.1} parent=11 // pred_check_branch
        %390 = sbr.rel (%p388) target = $region24
      $region23: #{forward.1} parent=11 // pred_region
        _
      $region24: #{forward.1} parent=11 // pred_fallthru
        _
      // Predicated region
      $region25: #{forward.1} parent=11 // pred_check
        %p391 = pneg %p131
      $region26: #{forward.1} parent=11 // pred_check_branch
        %393 = sbr.rel (%p391) target = $region28
      $region27: #{forward.1} parent=11 // pred_region
        _
      $region28: #{forward.1} parent=11 // pred_fallthru
        _
      // Predicated region
      $region29: #{forward.1} parent=11 // pred_check
        %p394 = pneg %p152
      $region30: #{forward.1} parent=11 // pred_check_branch
        %396 = sbr.rel (%p394) target = $region32
      $region31: #{forward.1} parent=11 // pred_region
        _
      $region32: #{forward.1} parent=11 // pred_fallthru
        _
      // Predicated region
      $region33: #{forward.1} parent=11 // pred_check
        %p397 = pneg %p173
      $region34: #{forward.1} parent=11 // pred_check_branch
        %399 = sbr.rel (%p397) target = $region36
      $region35: #{forward.1} parent=11 // pred_region
        _
      $region36: #{forward.1} parent=11 // pred_fallthru
        _
      // Predicated region
      $region37: #{forward.1} parent=11 // pred_check
        %p400 = pneg %p194
      $region38: #{forward.1} parent=11 // pred_check_branch
        %402 = sbr.rel (%p400) target = $region40
      $region39: #{forward.1} parent=11 // pred_region
        _
      $region40: #{forward.1} parent=11 // pred_fallthru
        _
      // Predicated region
      $region41: #{forward.1} parent=11 // pred_check
        %p403 = pneg %p215
      $region42: #{forward.1} parent=11 // pred_check_branch
        %405 = sbr.rel (%p403) target = $region44
      $region43: #{forward.1} parent=11 // pred_region
        _
      $region44: #{forward.1} parent=11 // pred_fallthru
        _
      // Predicated region
      $region45: #{forward.1} parent=11 // pred_check
        %p406 = pneg %p236
      $region46: #{forward.1} parent=11 // pred_check_branch
        %408 = sbr.rel (%p406) target = $region48
      $region47: #{forward.1} parent=11 // pred_region
        _
      $region48: #{forward.1} parent=11 // pred_fallthru
        _
      // Predicated region
      $region49: #{forward.1} parent=11 // pred_check
        %p409 = pneg %p257
      $region50: #{forward.1} parent=11 // pred_check_branch
        %411 = sbr.rel (%p409) target = $region52
      $region51: #{forward.1} parent=11 // pred_region
        _
      $region52: #{forward.1} parent=11 // pred_fallthru
        _
      // Predicated region
      $region53: #{forward.1} parent=11 // pred_check
        %p412 = pneg %p278
      $region54: #{forward.1} parent=11 // pred_check_branch
        %414 = sbr.rel (%p412) target = $region56
      $region55: #{forward.1} parent=11 // pred_region
        _
      $region56: #{forward.1} parent=11 // pred_fallthru
        _
      // Predicated region
      $region57: #{forward.1} parent=11 // pred_check
        %p415 = pneg %p299
      $region58: #{forward.1} parent=11 // pred_check_branch
        %417 = sbr.rel (%p415) target = $region60
      $region59: #{forward.1} parent=11 // pred_region
        _
      $region60: #{forward.1} parent=11 // pred_fallthru
        _
      // Predicated region
      $region61: #{forward.1} parent=11 // pred_check
        %p418 = pneg %p320
      $region62: #{forward.1} parent=11 // pred_check_branch
        %420 = sbr.rel (%p418) target = $region64
      $region63: #{forward.1} parent=11 // pred_region
        _
      $region64: #{forward.1} parent=11 // pred_fallthru
        _
      // Predicated region
      $region65: #{forward.1} parent=11 // pred_check
        %p421 = pneg %p341
      $region66: #{forward.1} parent=11 // pred_check_branch
        %423 = sbr.rel (%p421) target = $region68
      $region67: #{forward.1} parent=11 // pred_region
        _
      $region68: #{forward.1} parent=11 // pred_fallthru
        _
    $region12: #{forward.1} parent=5 // pred_fallthru
      _
    %p424 = scmp.lt.s32.totalorder %s21, 2
    // Predicated region
    $region69: #{forward.1} parent=5 // pred_check
      %p425 = pneg %p424
    $region70: #{forward.1} parent=5 // pred_check_branch
      %427 = sbr.rel (%p425) target = $region72
    $region71: #{forward.1} parent=5 // pred_region
      // Predicated region
      $region73: #{forward.1} parent=71 // pred_check
        %p428 = pneg %p41
      $region74: #{forward.1} parent=71 // pred_check_branch
        %430 = sbr.rel (%p428) target = $region76
      $region75: #{forward.1} parent=71 // pred_region
        %s431 = smul.u32 32, %s21
        %p432 = scmp.lt.s32.totalorder %s431, 63
        %s433 = scalar_select %p432, %s431, 63
        %s434 = smul.addr %s433, 7
        %s435 = smul.addr %s434, 8
        %s436 = scalar_lea.vmem %s0, %s435
        %s437 = smul.u32 32, %s21
      $region76: #{forward.1} parent=71 // pred_fallthru
        _
    $region72: #{forward.1} parent=5 // pred_fallthru
      _
    %p438 = scmp.le.s32.totalorder 1, %s21
    %p439 = scmp.lt.s32.totalorder %s21, 3
    %p440 = pnand %p438, %p439
    %p441 = pneg %p440
    // Predicated region
    $region77: #{forward.1} parent=5 // pred_check
      _
    $region78: #{forward.1} parent=5 // pred_check_branch
      %443 = sbr.rel (%p440) target = $region80
    $region79: #{forward.1} parent=5 // pred_region
      %s444 = ssub.s32 %s21, 1
      %s445 = smul.u32 32, %s26
      %p446 = scmp.lt.s32.totalorder %s445, 63
      %s447 = scalar_select %p446, %s445, 63
      %s448 = smul.addr %s447, 7
      %s449 = smul.addr %s448, 8
      %s450 = scalar_lea.vmem %s0, %s449
      %p451 = pneg %p47
      %p452 = pneg %p44
      %p453 = pneg %p68
      %p454 = pneg %p65
      %p455 = pneg %p89
      %p456 = pneg %p86
      %p457 = pneg %p110
      %p458 = pneg %p107
      %p459 = pneg %p131
      %p460 = pneg %p128
      %p461 = pneg %p152
      %p462 = pneg %p149
      %p463 = pneg %p173
      %p464 = pneg %p170
      %p465 = pneg %p194
      %p466 = pneg %p191
      %p467 = pneg %p215
      %p468 = pneg %p212
      %p469 = pneg %p236
      %p470 = pneg %p233
      %p471 = pneg %p257
      %p472 = pneg %p254
      %p473 = pneg %p278
      %p474 = pneg %p275
      %p475 = pneg %p299
      %p476 = pneg %p296
      %p477 = pneg %p320
      %p478 = pneg %p317
      %p479 = pneg %p341
      %p480 = pneg %p338
      %p481 = pneg %p367
      %p482 = pneg %p364
      %s483 = smul.u32 32, %s26
      %p484 = scmp.lt.s32.totalorder %s483, 63
      %s485 = scalar_select %p484, %s483, 63
      %s486 = smul.addr %s485, 7
      %s487 = smul.addr %s486, 8
      %s488 = scalar_lea.vmem %s15, %s487
      %s489 = smul.u32 32, %s26
      %p490 = scmp.lt.s32.totalorder %s489, 63
      %s491 = scalar_select %p490, %s489, 63
      %s492 = smul.addr %s491, 7
      %s493 = smul.addr %s492, 8
      %s494 = scalar_lea.vmem %s0, %s493
      %s495 = smul.u32 32, %s26
      %s496 = smul.u32 32, %s26
      %p497 = scmp.lt.s32.totalorder %s496, 63
      %s498 = scalar_select %p497, %s496, 63
      %s499 = smul.addr %s498, 7
      %s500 = smul.addr %s499, 8
      %s501 = scalar_lea.vmem %s15, %s500
      %s502 = smul.u32 32, %s26
      %v503 = vld [vmem:[%s494] sm:$0xff]
      %v504 = vld [vmem:[%s494 + $0x8] sm:$0xff]
      %v505 = vld [vmem:[%s494 + $0x10] sm:$0xff]
      %v506 = vld [vmem:[%s494 + $0x18] sm:$0xff]
      %v507 = vld [vmem:[%s494 + $0x20] sm:$0xff]
      %v508 = vld [vmem:[%s494 + $0x28] sm:$0xff]
      %v509 = vld [vmem:[%s494 + $0x30] sm:$0xff]
      %v510 = vld [vmem:[%s494 + $0x38] sm:$0xff]
      %v511 = vld [vmem:[%s494 + $0x40] sm:$0xff]
      %v512 = vld [vmem:[%s494 + $0x48] sm:$0xff]
      %v513 = vld [vmem:[%s494 + $0x50] sm:$0xff]
      %v514 = vld [vmem:[%s494 + $0x58] sm:$0xff]
      %v515 = vld [vmem:[%s494 + $0x60] sm:$0xff]
      %v516 = vld [vmem:[%s494 + $0x68] sm:$0xff]
      %v517 = vld [vmem:[%s494 + $0x70] sm:$0xff]
      %v518 = vld [vmem:[%s494 + $0x78] sm:$0xff]
      %v519 = vld [vmem:[%s494 + $0x80] sm:$0xff]
      %v520 = vld [vmem:[%s494 + $0x88] sm:$0xff]
      %v521 = vld [vmem:[%s494 + $0x90] sm:$0xff]
      %v522 = vld [vmem:[%s494 + $0x98] sm:$0xff]
      %v523 = vld [vmem:[%s494 + $0xa0] sm:$0xff]
      %v524 = vld [vmem:[%s494 + $0xa8] sm:$0xff]
      %v525 = vld [vmem:[%s494 + $0xb0] sm:$0xff]
      %v526 = vld [vmem:[%s494 + $0xb8] sm:$0xff]
      %v527 = vld [vmem:[%s494 + $0xc0] sm:$0xff]
      %v528 = vld [vmem:[%s494 + $0xc8] sm:$0xff]
      %v529 = vld [vmem:[%s494 + $0xd0] sm:$0xff]
      %v530 = vld [vmem:[%s494 + $0xd8] sm:$0xff]
      %v531 = vld [vmem:[%s494 + $0xe0] sm:$0xff]
      %v532 = vld [vmem:[%s494 + $0xe8] sm:$0xff]
      %v533 = vld [vmem:[%s494 + $0xf0] sm:$0xff]
      %v534 = vld [vmem:[%s494 + $0xf8] sm:$0xff]
      %v535 = vld [vmem:[%s494 + $0x100] sm:$0xff]
      %v536 = vld [vmem:[%s494 + $0x108] sm:$0xff]
      %v537 = vld [vmem:[%s494 + $0x110] sm:$0xff]
      %v538 = vld [vmem:[%s494 + $0x118] sm:$0xff]
      %v539 = vld [vmem:[%s494 + $0x120] sm:$0xff]
      %v540 = vld [vmem:[%s494 + $0x128] sm:$0xff]
      %v541 = vld [vmem:[%s494 + $0x130] sm:$0xff]
      %v542 = vld [vmem:[%s494 + $0x138] sm:$0xff]
      %v543 = vld [vmem:[%s494 + $0x140] sm:$0xff]
      %v544 = vld [vmem:[%s494 + $0x148] sm:$0xff]
      %v545 = vld [vmem:[%s494 + $0x150] sm:$0xff]
      %v546 = vld [vmem:[%s494 + $0x158] sm:$0xff]
      %v547 = vld [vmem:[%s494 + $0x160] sm:$0xff]
      %v548 = vld [vmem:[%s494 + $0x168] sm:$0xff]
      %v549 = vld [vmem:[%s494 + $0x170] sm:$0xff]
      %v550 = vld [vmem:[%s494 + $0x178] sm:$0xff]
      %v551 = vld [vmem:[%s494 + $0x180] sm:$0xff]
      %v552 = vld [vmem:[%s494 + $0x188] sm:$0xff]
      %v553 = vld [vmem:[%s494 + $0x190] sm:$0xff]
      %v554 = vld [vmem:[%s494 + $0x198] sm:$0xff]
      %v555 = vld [vmem:[%s494 + $0x1a0] sm:$0xff]
      %v556 = vld [vmem:[%s494 + $0x1a8] sm:$0xff]
      %v557 = vld [vmem:[%s494 + $0x1b0] sm:$0xff]
      %v558 = vld [vmem:[%s494 + $0x1b8] sm:$0xff]
      %v559 = vld [vmem:[%s494 + $0x1c0] sm:$0xff]
      %v560 = vld [vmem:[%s494 + $0x1c8] sm:$0xff]
      %v561 = vld [vmem:[%s494 + $0x1d0] sm:$0xff]
      %v562 = vld [vmem:[%s494 + $0x1d8] sm:$0xff]
      %v563 = vld [vmem:[%s494 + $0x1e0] sm:$0xff]
      %v564 = vld [vmem:[%s494 + $0x1e8] sm:$0xff]
      %v565 = vld [vmem:[%s494 + $0x1f0] sm:$0xff]
      %v566 = vld [vmem:[%s494 + $0x1f8] sm:$0xff]
      %v567 = vld [vmem:[%s494 + $0x200] sm:$0xff]
      %v568 = vld [vmem:[%s494 + $0x208] sm:$0xff]
      %v569 = vld [vmem:[%s494 + $0x210] sm:$0xff]
      %v570 = vld [vmem:[%s494 + $0x218] sm:$0xff]
      %v571 = vld [vmem:[%s494 + $0x220] sm:$0xff]
      %v572 = vld [vmem:[%s494 + $0x228] sm:$0xff]
      %v573 = vld [vmem:[%s494 + $0x230] sm:$0xff]
      %v574 = vld [vmem:[%s494 + $0x238] sm:$0xff]
      %v575 = vld [vmem:[%s494 + $0x240] sm:$0xff]
      %v576 = vld [vmem:[%s494 + $0x248] sm:$0xff]
      %v577 = vld [vmem:[%s494 + $0x250] sm:$0xff]
      %v578 = vld [vmem:[%s494 + $0x258] sm:$0xff]
      %v579 = vld [vmem:[%s494 + $0x260] sm:$0xff]
      %v580 = vld [vmem:[%s494 + $0x268] sm:$0xff]
      %v581 = vld [vmem:[%s494 + $0x270] sm:$0xff]
      %v582 = vld [vmem:[%s494 + $0x278] sm:$0xff]
      %v583 = vld [vmem:[%s494 + $0x280] sm:$0xff]
      %v584 = vld [vmem:[%s494 + $0x288] sm:$0xff]
      %v585 = vld [vmem:[%s494 + $0x290] sm:$0xff]
      %v586 = vld [vmem:[%s494 + $0x298] sm:$0xff]
      %v587 = vld [vmem:[%s494 + $0x2a0] sm:$0xff]
      %v588 = vld [vmem:[%s494 + $0x2a8] sm:$0xff]
      %v589 = vld [vmem:[%s494 + $0x2b0] sm:$0xff]
      %v590 = vld [vmem:[%s494 + $0x2b8] sm:$0xff]
      %v591 = vld [vmem:[%s494 + $0x2c0] sm:$0xff]
      %v592 = vld [vmem:[%s494 + $0x2c8] sm:$0xff]
      %v593 = vld [vmem:[%s494 + $0x2d0] sm:$0xff]
      %v594 = vld [vmem:[%s494 + $0x2d8] sm:$0xff]
      %v595 = vld [vmem:[%s494 + $0x2e0] sm:$0xff]
      %v596 = vld [vmem:[%s494 + $0x2e8] sm:$0xff]
      %v597 = vld [vmem:[%s494 + $0x2f0] sm:$0xff]
      %v598 = vld [vmem:[%s494 + $0x2f8] sm:$0xff]
      %v599 = vld [vmem:[%s494 + $0x300] sm:$0xff]
      %v600 = vld [vmem:[%s494 + $0x308] sm:$0xff]
      %v601 = vld [vmem:[%s494 + $0x310] sm:$0xff]
      %v602 = vld [vmem:[%s494 + $0x318] sm:$0xff]
      %v603 = vld [vmem:[%s494 + $0x320] sm:$0xff]
      %v604 = vld [vmem:[%s494 + $0x328] sm:$0xff]
      %v605 = vld [vmem:[%s494 + $0x330] sm:$0xff]
      %v606 = vld [vmem:[%s494 + $0x338] sm:$0xff]
      %v607 = vld [vmem:[%s494 + $0x340] sm:$0xff]
      %v608 = vld [vmem:[%s494 + $0x348] sm:$0xff]
      %v609 = vld [vmem:[%s494 + $0x350] sm:$0xff]
      %v610 = vld [vmem:[%s494 + $0x358] sm:$0xff]
      %v611 = vld [vmem:[%s494 + $0x360] sm:$0xff]
      %v612 = vld [vmem:[%s494 + $0x368] sm:$0xff]
      %v613 = vld [vmem:[%s494 + $0x370] sm:$0xff]
      %v614 = vld [vmem:[%s494 + $0x378] sm:$0xff]
      %v615 = vld [vmem:[%s494 + $0x380] sm:$0xff]
      %v616 = vld [vmem:[%s494 + $0x388] sm:$0xff]
      %v617 = vld [vmem:[%s494 + $0x390] sm:$0xff]
      %v618 = vld [vmem:[%s494 + $0x398] sm:$0xff]
      %v619 = vld [vmem:[%s494 + $0x3a0] sm:$0xff]
      %v620 = vld [vmem:[%s494 + $0x3a8] sm:$0xff]
      %v621 = vld [vmem:[%s494 + $0x3b0] sm:$0xff]
      %v622 = vld [vmem:[%s494 + $0x3b8] sm:$0xff]
      %v623 = vld [vmem:[%s494 + $0x3c0] sm:$0xff]
      %v624 = vld [vmem:[%s494 + $0x3c8] sm:$0xff]
      %v625 = vld [vmem:[%s494 + $0x3d0] sm:$0xff]
      %v626 = vld [vmem:[%s494 + $0x3d8] sm:$0xff]
      %v627 = vld [vmem:[%s494 + $0x3e0] sm:$0xff]
      %v628 = vld [vmem:[%s494 + $0x3e8] sm:$0xff]
      %v629 = vld [vmem:[%s494 + $0x3f0] sm:$0xff]
      %v630 = vld [vmem:[%s494 + $0x3f8] sm:$0xff]
      %v631 = vld [vmem:[%s494 + $0x400] sm:$0xff]
      %v632 = vld [vmem:[%s494 + $0x408] sm:$0xff]
      %v633 = vld [vmem:[%s494 + $0x410] sm:$0xff]
      %v634 = vld [vmem:[%s494 + $0x418] sm:$0xff]
      %v635 = vld [vmem:[%s494 + $0x420] sm:$0xff]
      %v636 = vld [vmem:[%s494 + $0x428] sm:$0xff]
      %v637 = vld [vmem:[%s494 + $0x430] sm:$0xff]
      %v638 = vld [vmem:[%s494 + $0x438] sm:$0xff]
      %v639 = vld [vmem:[%s494 + $0x440] sm:$0xff]
      %v640 = vld [vmem:[%s494 + $0x448] sm:$0xff]
      %v641 = vld [vmem:[%s494 + $0x450] sm:$0xff]
      %v642 = vld [vmem:[%s494 + $0x458] sm:$0xff]
      %v643 = vld [vmem:[%s494 + $0x460] sm:$0xff]
      %v644 = vld [vmem:[%s494 + $0x468] sm:$0xff]
      %v645 = vld [vmem:[%s494 + $0x470] sm:$0xff]
      %v646 = vld [vmem:[%s494 + $0x478] sm:$0xff]
      %v647 = vld [vmem:[%s494 + $0x480] sm:$0xff]
      %v648 = vld [vmem:[%s494 + $0x488] sm:$0xff]
      %v649 = vld [vmem:[%s494 + $0x490] sm:$0xff]
      %v650 = vld [vmem:[%s494 + $0x498] sm:$0xff]
      %v651 = vld [vmem:[%s494 + $0x4a0] sm:$0xff]
      %v652 = vld [vmem:[%s494 + $0x4a8] sm:$0xff]
      %v653 = vld [vmem:[%s494 + $0x4b0] sm:$0xff]
      %v654 = vld [vmem:[%s494 + $0x4b8] sm:$0xff]
      %v655 = vld [vmem:[%s494 + $0x4c0] sm:$0xff]
      %v656 = vld [vmem:[%s494 + $0x4c8] sm:$0xff]
      %v657 = vld [vmem:[%s494 + $0x4d0] sm:$0xff]
      %v658 = vld [vmem:[%s494 + $0x4d8] sm:$0xff]
      %v659 = vld [vmem:[%s494 + $0x4e0] sm:$0xff]
      %v660 = vld [vmem:[%s494 + $0x4e8] sm:$0xff]
      %v661 = vld [vmem:[%s494 + $0x4f0] sm:$0xff]
      %v662 = vld [vmem:[%s494 + $0x4f8] sm:$0xff]
      %v663 = vld [vmem:[%s494 + $0x500] sm:$0xff]
      %v664 = vld [vmem:[%s494 + $0x508] sm:$0xff]
      %v665 = vld [vmem:[%s494 + $0x510] sm:$0xff]
      %v666 = vld [vmem:[%s494 + $0x518] sm:$0xff]
      %v667 = vld [vmem:[%s494 + $0x520] sm:$0xff]
      %v668 = vld [vmem:[%s494 + $0x528] sm:$0xff]
      %v669 = vld [vmem:[%s494 + $0x530] sm:$0xff]
      %v670 = vld [vmem:[%s494 + $0x538] sm:$0xff]
      %v671 = vld [vmem:[%s494 + $0x540] sm:$0xff]
      %v672 = vld [vmem:[%s494 + $0x548] sm:$0xff]
      %v673 = vld [vmem:[%s494 + $0x550] sm:$0xff]
      %v674 = vld [vmem:[%s494 + $0x558] sm:$0xff]
      %v675 = vld [vmem:[%s494 + $0x560] sm:$0xff]
      %v676 = vld [vmem:[%s494 + $0x568] sm:$0xff]
      %v677 = vld [vmem:[%s494 + $0x570] sm:$0xff]
      %v678 = vld [vmem:[%s494 + $0x578] sm:$0xff]
      %v679 = vld [vmem:[%s494 + $0x580] sm:$0xff]
      %v680 = vld [vmem:[%s494 + $0x588] sm:$0xff]
      %v681 = vld [vmem:[%s494 + $0x590] sm:$0xff]
      %v682 = vld [vmem:[%s494 + $0x598] sm:$0xff]
      %v683 = vld [vmem:[%s494 + $0x5a0] sm:$0xff]
      %v684 = vld [vmem:[%s494 + $0x5a8] sm:$0xff]
      %v685 = vld [vmem:[%s494 + $0x5b0] sm:$0xff]
      %v686 = vld [vmem:[%s494 + $0x5b8] sm:$0xff]
      %v687 = vld [vmem:[%s494 + $0x5c0] sm:$0xff]
      %v688 = vld [vmem:[%s494 + $0x5c8] sm:$0xff]
      %v689 = vld [vmem:[%s494 + $0x5d0] sm:$0xff]
      %v690 = vld [vmem:[%s494 + $0x5d8] sm:$0xff]
      %v691 = vld [vmem:[%s494 + $0x5e0] sm:$0xff]
      %v692 = vld [vmem:[%s494 + $0x5e8] sm:$0xff]
      %v693 = vld [vmem:[%s494 + $0x5f0] sm:$0xff]
      %v694 = vld [vmem:[%s494 + $0x5f8] sm:$0xff]
      %v695 = vld [vmem:[%s494 + $0x600] sm:$0xff]
      %v696 = vld [vmem:[%s494 + $0x608] sm:$0xff]
      %v697 = vld [vmem:[%s494 + $0x610] sm:$0xff]
      %v698 = vld [vmem:[%s494 + $0x618] sm:$0xff]
      %v699 = vld [vmem:[%s494 + $0x620] sm:$0xff]
      %v700 = vld [vmem:[%s494 + $0x628] sm:$0xff]
      %v701 = vld [vmem:[%s494 + $0x630] sm:$0xff]
      %v702 = vld [vmem:[%s494 + $0x638] sm:$0xff]
      %v703 = vld [vmem:[%s494 + $0x640] sm:$0xff]
      %v704 = vld [vmem:[%s494 + $0x648] sm:$0xff]
      %v705 = vld [vmem:[%s494 + $0x650] sm:$0xff]
      %v706 = vld [vmem:[%s494 + $0x658] sm:$0xff]
      %v707 = vld [vmem:[%s494 + $0x660] sm:$0xff]
      %v708 = vld [vmem:[%s494 + $0x668] sm:$0xff]
      %v709 = vld [vmem:[%s494 + $0x670] sm:$0xff]
      %v710 = vld [vmem:[%s494 + $0x678] sm:$0xff]
      %v711 = vld [vmem:[%s494 + $0x680] sm:$0xff]
      %v712 = vld [vmem:[%s494 + $0x688] sm:$0xff]
      %v713 = vld [vmem:[%s494 + $0x690] sm:$0xff]
      %v714 = vld [vmem:[%s494 + $0x698] sm:$0xff]
      %v715 = vld [vmem:[%s494 + $0x6a0] sm:$0xff]
      %v716 = vld [vmem:[%s494 + $0x6a8] sm:$0xff]
      %v717 = vld [vmem:[%s494 + $0x6b0] sm:$0xff]
      %v718 = vld [vmem:[%s494 + $0x6b8] sm:$0xff]
      %v719 = vld [vmem:[%s494 + $0x6c0] sm:$0xff]
      %v720 = vld [vmem:[%s494 + $0x6c8] sm:$0xff]
      %v721 = vld [vmem:[%s494 + $0x6d0] sm:$0xff]
      %v722 = vld [vmem:[%s494 + $0x6d8] sm:$0xff]
      %v723 = vld [vmem:[%s494 + $0x6e0] sm:$0xff]
      %v724 = vld [vmem:[%s494 + $0x6e8] sm:$0xff]
      %v725 = vld [vmem:[%s494 + $0x6f0] sm:$0xff]
      %v726 = vld [vmem:[%s494 + $0x6f8] sm:$0xff]
      %v727 = vld [vmem:[%s1] sm:$0xff]
      %v728 = vld [vmem:[%s1 + $0x8] sm:$0xff]
      %v729 = vld [vmem:[%s1 + $0x10] sm:$0xff]
      %v730 = vld [vmem:[%s1 + $0x18] sm:$0xff]
      %v731 = vld [vmem:[%s1 + $0x20] sm:$0xff]
      %v732 = vld [vmem:[%s1 + $0x28] sm:$0xff]
      %v733 = vld [vmem:[%s1 + $0x30] sm:$0xff]
      %v734 = vld [vmem:[%s1 + $0x38] sm:$0xff]
      %v735 = vld [vmem:[%s1 + $0x40] sm:$0xff]
      %v736 = vld [vmem:[%s1 + $0x48] sm:$0xff]
      %v737 = vld [vmem:[%s1 + $0x50] sm:$0xff]
      %v738 = vld [vmem:[%s1 + $0x58] sm:$0xff]
      %v739 = vld [vmem:[%s1 + $0x60] sm:$0xff]
      %v740 = vld [vmem:[%s1 + $0x68] sm:$0xff]
      %v741 = vld [vmem:[%s1 + $0x70] sm:$0xff]
      %v742 = vld [vmem:[%s1 + $0x78] sm:$0xff]
      %v743 = vld [vmem:[%s1 + $0x80] sm:$0xff]
      %v744 = vld [vmem:[%s1 + $0x88] sm:$0xff]
      %v745 = vld [vmem:[%s1 + $0x90] sm:$0xff]
      %v746 = vld [vmem:[%s1 + $0x98] sm:$0xff]
      %v747 = vld [vmem:[%s1 + $0xa0] sm:$0xff]
      %v748 = vld [vmem:[%s1 + $0xa8] sm:$0xff]
      %v749 = vld [vmem:[%s1 + $0xb0] sm:$0xff]
      %v750 = vld [vmem:[%s1 + $0xb8] sm:$0xff]
      %v751 = vld [vmem:[%s1 + $0xc0] sm:$0xff]
      %v752 = vld [vmem:[%s1 + $0xc8] sm:$0xff]
      %v753 = vld [vmem:[%s1 + $0xd0] sm:$0xff]
      %v754 = vld [vmem:[%s1 + $0xd8] sm:$0xff]
      %v755 = vld [vmem:[%s1 + $0xe0] sm:$0xff]
      %v756 = vld [vmem:[%s1 + $0xe8] sm:$0xff]
      %v757 = vld [vmem:[%s1 + $0xf0] sm:$0xff]
      %v758 = vld [vmem:[%s1 + $0xf8] sm:$0xff]
      %v759 = vld [vmem:[%s1 + $0x100] sm:$0xff]
      %v760 = vld [vmem:[%s1 + $0x108] sm:$0xff]
      %v761 = vld [vmem:[%s1 + $0x110] sm:$0xff]
      %v762 = vld [vmem:[%s1 + $0x118] sm:$0xff]
      %v763 = vld [vmem:[%s1 + $0x120] sm:$0xff]
      %v764 = vld [vmem:[%s1 + $0x128] sm:$0xff]
      %v765 = vld [vmem:[%s1 + $0x130] sm:$0xff]
      %v766 = vld [vmem:[%s1 + $0x138] sm:$0xff]
      %v767 = vld [vmem:[%s1 + $0x140] sm:$0xff]
      %v768 = vld [vmem:[%s1 + $0x148] sm:$0xff]
      %v769 = vld [vmem:[%s1 + $0x150] sm:$0xff]
      %v770 = vld [vmem:[%s1 + $0x158] sm:$0xff]
      %v771 = vld [vmem:[%s1 + $0x160] sm:$0xff]
      %v772 = vld [vmem:[%s1 + $0x168] sm:$0xff]
      %v773 = vld [vmem:[%s1 + $0x170] sm:$0xff]
      %v774 = vld [vmem:[%s1 + $0x178] sm:$0xff]
      %v775 = vld [vmem:[%s1 + $0x180] sm:$0xff]
      %v776 = vld [vmem:[%s1 + $0x188] sm:$0xff]
      %v777 = vld [vmem:[%s1 + $0x190] sm:$0xff]
      %v778 = vld [vmem:[%s1 + $0x198] sm:$0xff]
      %v779 = vld [vmem:[%s1 + $0x1a0] sm:$0xff]
      %v780 = vld [vmem:[%s1 + $0x1a8] sm:$0xff]
      %v781 = vld [vmem:[%s1 + $0x1b0] sm:$0xff]
      %v782 = vld [vmem:[%s1 + $0x1b8] sm:$0xff]
      %v783 = vld [vmem:[%s1 + $0x1c0] sm:$0xff]
      %v784 = vld [vmem:[%s1 + $0x1c8] sm:$0xff]
      %v785 = vld [vmem:[%s1 + $0x1d0] sm:$0xff]
      %v786 = vld [vmem:[%s1 + $0x1d8] sm:$0xff]
      %v787 = vld [vmem:[%s1 + $0x1e0] sm:$0xff]
      %v788 = vld [vmem:[%s1 + $0x1e8] sm:$0xff]
      %v789 = vld [vmem:[%s1 + $0x1f0] sm:$0xff]
      %v790 = vld [vmem:[%s1 + $0x1f8] sm:$0xff]
      %v791 = vld [vmem:[%s1 + $0x200] sm:$0xff]
      %v792 = vld [vmem:[%s1 + $0x208] sm:$0xff]
      %v793 = vld [vmem:[%s1 + $0x210] sm:$0xff]
      %v794 = vld [vmem:[%s1 + $0x218] sm:$0xff]
      %v795 = vld [vmem:[%s1 + $0x220] sm:$0xff]
      %v796 = vld [vmem:[%s1 + $0x228] sm:$0xff]
      %v797 = vld [vmem:[%s1 + $0x230] sm:$0xff]
      %v798 = vld [vmem:[%s1 + $0x238] sm:$0xff]
      %v799 = vld [vmem:[%s1 + $0x240] sm:$0xff]
      %v800 = vld [vmem:[%s1 + $0x248] sm:$0xff]
      %v801 = vld [vmem:[%s1 + $0x250] sm:$0xff]
      %v802 = vld [vmem:[%s1 + $0x258] sm:$0xff]
      %v803 = vld [vmem:[%s1 + $0x260] sm:$0xff]
      %v804 = vld [vmem:[%s1 + $0x268] sm:$0xff]
      %v805 = vld [vmem:[%s1 + $0x270] sm:$0xff]
      %v806 = vld [vmem:[%s1 + $0x278] sm:$0xff]
      %v807 = vld [vmem:[%s1 + $0x280] sm:$0xff]
      %v808 = vld [vmem:[%s1 + $0x288] sm:$0xff]
      %v809 = vld [vmem:[%s1 + $0x290] sm:$0xff]
      %v810 = vld [vmem:[%s1 + $0x298] sm:$0xff]
      %v811 = vld [vmem:[%s1 + $0x2a0] sm:$0xff]
      %v812 = vld [vmem:[%s1 + $0x2a8] sm:$0xff]
      %v813 = vld [vmem:[%s1 + $0x2b0] sm:$0xff]
      %v814 = vld [vmem:[%s1 + $0x2b8] sm:$0xff]
      %v815 = vld [vmem:[%s1 + $0x2c0] sm:$0xff]
      %v816 = vld [vmem:[%s1 + $0x2c8] sm:$0xff]
      %v817 = vld [vmem:[%s1 + $0x2d0] sm:$0xff]
      %v818 = vld [vmem:[%s1 + $0x2d8] sm:$0xff]
      %v819 = vld [vmem:[%s1 + $0x2e0] sm:$0xff]
      %v820 = vld [vmem:[%s1 + $0x2e8] sm:$0xff]
      %v821 = vld [vmem:[%s1 + $0x2f0] sm:$0xff]
      %v822 = vld [vmem:[%s1 + $0x2f8] sm:$0xff]
      %v823 = vld [vmem:[%s1 + $0x300] sm:$0xff]
      %v824 = vld [vmem:[%s1 + $0x308] sm:$0xff]
      %v825 = vld [vmem:[%s1 + $0x310] sm:$0xff]
      %v826 = vld [vmem:[%s1 + $0x318] sm:$0xff]
      %v827 = vld [vmem:[%s1 + $0x320] sm:$0xff]
      %v828 = vld [vmem:[%s1 + $0x328] sm:$0xff]
      %v829 = vld [vmem:[%s1 + $0x330] sm:$0xff]
      %v830 = vld [vmem:[%s1 + $0x338] sm:$0xff]
      %v831 = vld [vmem:[%s1 + $0x340] sm:$0xff]
      %v832 = vld [vmem:[%s1 + $0x348] sm:$0xff]
      %v833 = vld [vmem:[%s1 + $0x350] sm:$0xff]
      %v834 = vld [vmem:[%s1 + $0x358] sm:$0xff]
      %v835 = vld [vmem:[%s1 + $0x360] sm:$0xff]
      %v836 = vld [vmem:[%s1 + $0x368] sm:$0xff]
      %v837 = vld [vmem:[%s1 + $0x370] sm:$0xff]
      %v838 = vld [vmem:[%s1 + $0x378] sm:$0xff]
      %v839 = vld [vmem:[%s2] sm:$0x1]
      %v841 = vlaneseq
      %v842 = vshrl.u32 %v841, 7
      %v843 = vsub.s32 0, %v842
      %v844 = vrot.slane %v839, %v843
      %846 = vmatprep.subr.mxu0 0.0
      %847 = vmatpush1.msra.mxu0 %v727
      %848 = vmatprep.subr.mxu0 0.0
      %849 = vmatpush1.msra.mxu0 %v728
      %850 = vmatprep.subr.mxu0 0.0
      %851 = vmatpush1.msra.mxu0 %v729
      %852 = vmatprep.subr.mxu0 0.0
      %853 = vmatpush1.msra.mxu0 %v730
      %854 = vmatprep.subr.mxu0 0.0
      %855 = vmatpush1.msra.mxu0 %v731
      %856 = vmatprep.subr.mxu0 0.0
      %857 = vmatpush1.msra.mxu0 %v732
      %858 = vmatprep.subr.mxu0 0.0
      %859 = vmatpush1.msra.mxu0 %v733
      %860 = vmatprep.subr.mxu0 0.0
      %861 = vmatpush1.msra.mxu0 %v734
      %862 = vmatprep.subr.mxu0 0.0
      %863 = vmatpush1.msra.mxu0 %v735
      %864 = vmatprep.subr.mxu0 0.0
      %865 = vmatpush1.msra.mxu0 %v736
      %866 = vmatprep.subr.mxu0 0.0
      %867 = vmatpush1.msra.mxu0 %v737
      %868 = vmatprep.subr.mxu0 0.0
      %869 = vmatpush1.msra.mxu0 %v738
      %870 = vmatprep.subr.mxu0 0.0
      %871 = vmatpush1.msra.mxu0 %v739
      %872 = vmatprep.subr.mxu0 0.0
      %873 = vmatpush1.msra.mxu0 %v740
      %874 = vmatprep.subr.mxu0 0.0
      %875 = vmatpush1.msra.mxu0 %v741
      %876 = vmatprep.subr.mxu0 0.0
      %877 = vmatpush1.msra.mxu0 %v742
      %878 = vmatprep.subr.mxu0 0.0
      %879 = vmatpush1.msra.mxu0 %v743
      %880 = vmatprep.subr.mxu0 0.0
      %881 = vmatpush1.msra.mxu0 %v744
      %882 = vmatprep.subr.mxu0 0.0
      %883 = vmatpush1.msra.mxu0 %v745
      %884 = vmatprep.subr.mxu0 0.0
      %885 = vmatpush1.msra.mxu0 %v746
      %886 = vmatprep.subr.mxu0 0.0
      %887 = vmatpush1.msra.mxu0 %v747
      %888 = vmatprep.subr.mxu0 0.0
      %889 = vmatpush1.msra.mxu0 %v748
      %890 = vmatprep.subr.mxu0 0.0
      %891 = vmatpush1.msra.mxu0 %v749
      %892 = vmatprep.subr.mxu0 0.0
      %893 = vmatpush1.msra.mxu0 %v750
      %894 = vmatprep.subr.mxu0 0.0
      %895 = vmatpush1.msra.mxu0 %v751
      %896 = vmatprep.subr.mxu0 0.0
      %897 = vmatpush1.msra.mxu0 %v752
      %898 = vmatprep.subr.mxu0 0.0
      %899 = vmatpush1.msra.mxu0 %v753
      %900 = vmatprep.subr.mxu0 0.0
      %901 = vmatpush1.msra.mxu0 %v754
      %902 = vmatprep.subr.mxu0 0.0
      %903 = vmatpush1.msra.mxu0 %v755
      %904 = vmatprep.subr.mxu0 0.0
      %905 = vmatpush1.msra.mxu0 %v756
      %906 = vmatprep.subr.mxu0 0.0
      %907 = vmatpush1.msra.mxu0 %v757
      %908 = vmatprep.subr.mxu0 0.0
      %909 = vmatpush1.msra.mxu0 %v758
      %910 = vmatprep.mubr.f32.mxu0 %v504
      %911 = vmatmul.mubr.f32.gmra.mrb[0].mxu0 %v503
      %v912 = vpop.f32.mrb[0].mxu0
      %v913 = vadd.f32 %v844, %v912
      %v914 = vpop.f32.mrb[0].mxu0
      %915 = vmatprep.mubr.f32.mxu0 %v511
      %916 = vmatmul.mubr.f32.gmra.mrb[0].mxu0 %v510
      %v917 = vpop.f32.mrb[0].mxu0
      %v918 = vadd.f32 %v844, %v917
      %v919 = vpop.f32.mrb[0].mxu0
      %920 = vmatprep.mubr.f32.mxu0 %v518
      %921 = vmatmul.mubr.f32.gmra.mrb[0].mxu0 %v517
      %v922 = vpop.f32.mrb[0].mxu0
      %v923 = vadd.f32 %v844, %v922
      %v924 = vpop.f32.mrb[0].mxu0
      %925 = vmatprep.mubr.f32.mxu0 %v525
      %926 = vmatmul.mubr.f32.gmra.mrb[0].mxu0 %v524
      %v927 = vpop.f32.mrb[0].mxu0
      %v928 = vadd.f32 %v844, %v927
      %v929 = vpop.f32.mrb[0].mxu0
      %930 = vmatprep.mubr.f32.mxu0 %v532
      %931 = vmatmul.mubr.f32.gmra.mrb[0].mxu0 %v531
      %v932 = vpop.f32.mrb[0].mxu0
      %v933 = vadd.f32 %v844, %v932
      %v934 = vpop.f32.mrb[0].mxu0
      %935 = vmatprep.mubr.f32.mxu0 %v539
      %936 = vmatmul.mubr.f32.gmra.mrb[0].mxu0 %v538
      %v937 = vpop.f32.mrb[0].mxu0
      %v938 = vadd.f32 %v844, %v937
      %v939 = vpop.f32.mrb[0].mxu0
      %940 = vmatprep.mubr.f32.mxu0 %v546
      %941 = vmatmul.mubr.f32.gmra.mrb[0].mxu0 %v545
      %v942 = vpop.f32.mrb[0].mxu0
      %v943 = vadd.f32 %v844, %v942
      %v944 = vpop.f32.mrb[0].mxu0
      %945 = vmatprep.mubr.f32.mxu0 %v553
      %946 = vmatmul.mubr.f32.gmra.mrb[0].mxu0 %v552
      %v947 = vpop.f32.mrb[0].mxu0
      %v948 = vadd.f32 %v844, %v947
      %v949 = vpop.f32.mrb[0].mxu0
      %950 = vmatprep.mubr.f32.mxu0 %v560
      %951 = vmatmul.mubr.f32.gmra.mrb[0].mxu0 %v559
      %v952 = vpop.f32.mrb[0].mxu0
      %v953 = vadd.f32 %v844, %v952
      %v954 = vpop.f32.mrb[0].mxu0
      %955 = vmatprep.mubr.f32.mxu0 %v567
      %956 = vmatmul.mubr.f32.gmra.mrb[0].mxu0 %v566
      %v957 = vpop.f32.mrb[0].mxu0
      %v958 = vadd.f32 %v844, %v957
      %v959 = vpop.f32.mrb[0].mxu0
      %960 = vmatprep.mubr.f32.mxu0 %v574
      %961 = vmatmul.mubr.f32.gmra.mrb[0].mxu0 %v573
      %v962 = vpop.f32.mrb[0].mxu0
      %v963 = vadd.f32 %v844, %v962
      %v964 = vpop.f32.mrb[0].mxu0
      %965 = vmatprep.mubr.f32.mxu0 %v581
      %966 = vmatmul.mubr.f32.gmra.mrb[0].mxu0 %v580
      %v967 = vpop.f32.mrb[0].mxu0
      %v968 = vadd.f32 %v844, %v967
      %v969 = vpop.f32.mrb[0].mxu0
      %970 = vmatprep.mubr.f32.mxu0 %v588
      %971 = vmatmul.mubr.f32.gmra.mrb[0].mxu0 %v587
      %v972 = vpop.f32.mrb[0].mxu0
      %v973 = vadd.f32 %v844, %v972
      %v974 = vpop.f32.mrb[0].mxu0
      %975 = vmatprep.mubr.f32.mxu0 %v595
      %976 = vmatmul.mubr.f32.gmra.mrb[0].mxu0 %v594
      %v977 = vpop.f32.mrb[0].mxu0
      %v978 = vadd.f32 %v844, %v977
      %v979 = vpop.f32.mrb[0].mxu0
      %980 = vmatprep.mubr.f32.mxu0 %v602
      %981 = vmatmul.mubr.f32.gmra.mrb[0].mxu0 %v601
      %v982 = vpop.f32.mrb[0].mxu0
      %v983 = vadd.f32 %v844, %v982
      %v984 = vpop.f32.mrb[0].mxu0
      %985 = vmatprep.mubr.f32.mxu0 %v609
      %986 = vmatmul.mubr.f32.gmra.mrb[0].mxu0 %v608
      %v987 = vpop.f32.mrb[0].mxu0
      %v988 = vadd.f32 %v844, %v987
      %v989 = vpop.f32.mrb[0].mxu0
      %990 = vmatprep.mubr.f32.mxu0 %v616
      %991 = vmatmul.mubr.f32.gmra.mrb[0].mxu0 %v615
      %v992 = vpop.f32.mrb[0].mxu0
      %v993 = vadd.f32 %v844, %v992
      %v994 = vpop.f32.mrb[0].mxu0
      %995 = vmatprep.mubr.f32.mxu0 %v623
      %996 = vmatmul.mubr.f32.gmra.mrb[0].mxu0 %v622
      %v997 = vpop.f32.mrb[0].mxu0
      %v998 = vadd.f32 %v844, %v997
      %v999 = vpop.f32.mrb[0].mxu0
      %1000 = vmatprep.mubr.f32.mxu0 %v630
      %1001 = vmatmul.mubr.f32.gmra.mrb[0].mxu0 %v629
      %v1002 = vpop.f32.mrb[0].mxu0
      %v1003 = vadd.f32 %v844, %v1002
      %v1004 = vpop.f32.mrb[0].mxu0
      %1005 = vmatprep.mubr.f32.mxu0 %v637
      %1006 = vmatmul.mubr.f32.gmra.mrb[0].mxu0 %v636
      %v1007 = vpop.f32.mrb[0].mxu0
      %v1008 = vadd.f32 %v844, %v1007
      %v1009 = vpop.f32.mrb[0].mxu0
      %1010 = vmatprep.mubr.f32.mxu0 %v644
      %1011 = vmatmul.mubr.f32.gmra.mrb[0].mxu0 %v643
      %v1012 = vpop.f32.mrb[0].mxu0
      %v1013 = vadd.f32 %v844, %v1012
      %v1014 = vpop.f32.mrb[0].mxu0
      %1015 = vmatprep.mubr.f32.mxu0 %v651
      %1016 = vmatmul.mubr.f32.gmra.mrb[0].mxu0 %v650
      %v1017 = vpop.f32.mrb[0].mxu0
      %v1018 = vadd.f32 %v844, %v1017
      %v1019 = vpop.f32.mrb[0].mxu0
      %1020 = vmatprep.mubr.f32.mxu0 %v658
      %1021 = vmatmul.mubr.f32.gmra.mrb[0].mxu0 %v657
      %v1022 = vpop.f32.mrb[0].mxu0
      %v1023 = vadd.f32 %v844, %v1022
      %v1024 = vpop.f32.mrb[0].mxu0
      %1025 = vmatprep.mubr.f32.mxu0 %v665
      %1026 = vmatmul.mubr.f32.gmra.mrb[0].mxu0 %v664
      %v1027 = vpop.f32.mrb[0].mxu0
      %v1028 = vadd.f32 %v844, %v1027
      %v1029 = vpop.f32.mrb[0].mxu0
      %1030 = vmatprep.mubr.f32.mxu0 %v672
      %1031 = vmatmul.mubr.f32.gmra.mrb[0].mxu0 %v671
      %v1032 = vpop.f32.mrb[0].mxu0
      %v1033 = vadd.f32 %v844, %v1032
      %v1034 = vpop.f32.mrb[0].mxu0
      %1035 = vmatprep.mubr.f32.mxu0 %v679
      %1036 = vmatmul.mubr.f32.gmra.mrb[0].mxu0 %v678
      %v1037 = vpop.f32.mrb[0].mxu0
      %v1038 = vadd.f32 %v844, %v1037
      %v1039 = vpop.f32.mrb[0].mxu0
      %1040 = vmatprep.mubr.f32.mxu0 %v686
      %1041 = vmatmul.mubr.f32.gmra.mrb[0].mxu0 %v685
      %v1042 = vpop.f32.mrb[0].mxu0
      %v1043 = vadd.f32 %v844, %v1042
      %v1044 = vpop.f32.mrb[0].mxu0
      %1045 = vmatprep.mubr.f32.mxu0 %v693
      %1046 = vmatmul.mubr.f32.gmra.mrb[0].mxu0 %v692
      %v1047 = vpop.f32.mrb[0].mxu0
      %v1048 = vadd.f32 %v844, %v1047
      %v1049 = vpop.f32.mrb[0].mxu0
      %1050 = vmatprep.mubr.f32.mxu0 %v700
      %1051 = vmatmul.mubr.f32.gmra.mrb[0].mxu0 %v699
      %v1052 = vpop.f32.mrb[0].mxu0
      %v1053 = vadd.f32 %v844, %v1052
      %v1054 = vpop.f32.mrb[0].mxu0
      %1055 = vmatprep.mubr.f32.mxu0 %v707
      %1056 = vmatmul.mubr.f32.gmra.mrb[0].mxu0 %v706
      %v1057 = vpop.f32.mrb[0].mxu0
      %v1058 = vadd.f32 %v844, %v1057
      %v1059 = vpop.f32.mrb[0].mxu0
      %1060 = vmatprep.mubr.f32.mxu0 %v714
      %1061 = vmatmul.mubr.f32.gmra.mrb[0].mxu0 %v713
      %v1062 = vpop.f32.mrb[0].mxu0
      %v1063 = vadd.f32 %v844, %v1062
      %v1064 = vpop.f32.mrb[0].mxu0
      %1065 = vmatprep.mubr.f32.mxu0 %v721
      %1066 = vmatmul.mubr.f32.gmra.mrb[0].mxu0 %v720
      %v1067 = vpop.f32.mrb[0].mxu0
      %v1068 = vadd.f32 %v844, %v1067
      %v1069 = vpop.f32.mrb[0].mxu0
      %1070 = vdwg.mxu0
      %1071 = vmatprep.subr.mxu0 0.0
      %1072 = vmatpush1.msra.mxu0 %v759
      %1073 = vmatprep.subr.mxu0 0.0
      %1074 = vmatpush1.msra.mxu0 %v760
      %1075 = vmatprep.subr.mxu0 0.0
      %1076 = vmatpush1.msra.mxu0 %v761
      %1077 = vmatprep.subr.mxu0 0.0
      %1078 = vmatpush1.msra.mxu0 %v762
      %1079 = vmatprep.subr.mxu0 0.0
      %1080 = vmatpush1.msra.mxu0 %v763
      %1081 = vmatprep.subr.mxu0 0.0
      %1082 = vmatpush1.msra.mxu0 %v764
      %1083 = vmatprep.subr.mxu0 0.0
      %1084 = vmatpush1.msra.mxu0 %v765
      %1085 = vmatprep.subr.mxu0 0.0
      %1086 = vmatpush1.msra.mxu0 %v766
      %1087 = vmatprep.subr.mxu0 0.0
      %1088 = vmatpush1.msra.mxu0 %v767
      %1089 = vmatprep.subr.mxu0 0.0
      %1090 = vmatpush1.msra.mxu0 %v768
      %1091 = vmatprep.subr.mxu0 0.0
      %1092 = vmatpush1.msra.mxu0 %v769
      %1093 = vmatprep.subr.mxu0 0.0
      %1094 = vmatpush1.msra.mxu0 %v770
      %1095 = vmatprep.subr.mxu0 0.0
      %1096 = vmatpush1.msra.mxu0 %v771
      %1097 = vmatprep.subr.mxu0 0.0
      %1098 = vmatpush1.msra.mxu0 %v772
      %1099 = vmatprep.subr.mxu0 0.0
      %1100 = vmatpush1.msra.mxu0 %v773
      %1101 = vmatprep.subr.mxu0 0.0
      %1102 = vmatpush1.msra.mxu0 %v774
      %1103 = vmatprep.subr.mxu0 0.0
      %1104 = vmatpush1.msra.mxu0 %v775
      %1105 = vmatprep.subr.mxu0 0.0
      %1106 = vmatpush1.msra.mxu0 %v776
      %1107 = vmatprep.subr.mxu0 0.0
      %1108 = vmatpush1.msra.mxu0 %v777
      %1109 = vmatprep.subr.mxu0 0.0
      %1110 = vmatpush1.msra.mxu0 %v778
      %1111 = vmatprep.subr.mxu0 0.0
      %1112 = vmatpush1.msra.mxu0 %v779
      %1113 = vmatprep.subr.mxu0 0.0
      %1114 = vmatpush1.msra.mxu0 %v780
      %1115 = vmatprep.subr.mxu0 0.0
      %1116 = vmatpush1.msra.mxu0 %v781
      %1117 = vmatprep.subr.mxu0 0.0
      %1118 = vmatpush1.msra.mxu0 %v782
      %1119 = vmatprep.subr.mxu0 0.0
      %1120 = vmatpush1.msra.mxu0 %v783
      %1121 = vmatprep.subr.mxu0 0.0
      %1122 = vmatpush1.msra.mxu0 %v784
      %1123 = vmatprep.subr.mxu0 0.0
      %1124 = vmatpush1.msra.mxu0 %v785
      %1125 = vmatprep.subr.mxu0 0.0
      %1126 = vmatpush1.msra.mxu0 %v786
      %1127 = vmatprep.subr.mxu0 0.0
      %1128 = vmatpush1.msra.mxu0 %v787
      %1129 = vmatprep.subr.mxu0 0.0
      %1130 = vmatpush1.msra.mxu0 %v788
      %1131 = vmatprep.subr.mxu0 0.0
      %1132 = vmatpush1.msra.mxu0 %v789
      %1133 = vmatprep.subr.mxu0 0.0
      %1134 = vmatpush1.msra.mxu0 %v790
      %1135 = vmatprep.mubr.f32.mxu0 %v506
      %1136 = vmatmul.mubr.f32.gmra.mrb[0].mxu0 %v505
      %v1137 = vpop.f32.mrb[0].mxu0
      %v1138 = vadd.f32 %v913, %v1137
      %v1139 = vpop.f32.mrb[0].mxu0
      %1140 = vmatprep.mubr.f32.mxu0 %v513
      %1141 = vmatmul.mubr.f32.gmra.mrb[0].mxu0 %v512
      %v1142 = vpop.f32.mrb[0].mxu0
      %v1143 = vadd.f32 %v918, %v1142
      %v1144 = vpop.f32.mrb[0].mxu0
      %1145 = vmatprep.mubr.f32.mxu0 %v520
      %1146 = vmatmul.mubr.f32.gmra.mrb[0].mxu0 %v519
      %v1147 = vpop.f32.mrb[0].mxu0
      %v1148 = vadd.f32 %v923, %v1147
      %v1149 = vpop.f32.mrb[0].mxu0
      %1150 = vmatprep.mubr.f32.mxu0 %v527
      %1151 = vmatmul.mubr.f32.gmra.mrb[0].mxu0 %v526
      %v1152 = vpop.f32.mrb[0].mxu0
      %v1153 = vadd.f32 %v928, %v1152
      %v1154 = vpop.f32.mrb[0].mxu0
      %1155 = vmatprep.mubr.f32.mxu0 %v534
      %1156 = vmatmul.mubr.f32.gmra.mrb[0].mxu0 %v533
      %v1157 = vpop.f32.mrb[0].mxu0
      %v1158 = vadd.f32 %v933, %v1157
      %v1159 = vpop.f32.mrb[0].mxu0
      %1160 = vmatprep.mubr.f32.mxu0 %v541
      %1161 = vmatmul.mubr.f32.gmra.mrb[0].mxu0 %v540
      %v1162 = vpop.f32.mrb[0].mxu0
      %v1163 = vadd.f32 %v938, %v1162
      %v1164 = vpop.f32.mrb[0].mxu0
      %1165 = vmatprep.mubr.f32.mxu0 %v548
      %1166 = vmatmul.mubr.f32.gmra.mrb[0].mxu0 %v547
      %v1167 = vpop.f32.mrb[0].mxu0
      %v1168 = vadd.f32 %v943, %v1167
      %v1169 = vpop.f32.mrb[0].mxu0
      %1170 = vmatprep.mubr.f32.mxu0 %v555
      %1171 = vmatmul.mubr.f32.gmra.mrb[0].mxu0 %v554
      %v1172 = vpop.f32.mrb[0].mxu0
      %v1173 = vadd.f32 %v948, %v1172
      %v1174 = vpop.f32.mrb[0].mxu0
      %1175 = vmatprep.mubr.f32.mxu0 %v562
      %1176 = vmatmul.mubr.f32.gmra.mrb[0].mxu0 %v561
      %v1177 = vpop.f32.mrb[0].mxu0
      %v1178 = vadd.f32 %v953, %v1177
      %v1179 = vpop.f32.mrb[0].mxu0
      %1180 = vmatprep.mubr.f32.mxu0 %v569
      %1181 = vmatmul.mubr.f32.gmra.mrb[0].mxu0 %v568
      %v1182 = vpop.f32.mrb[0].mxu0
      %v1183 = vadd.f32 %v958, %v1182
      %v1184 = vpop.f32.mrb[0].mxu0
      %1185 = vmatprep.mubr.f32.mxu0 %v576
      %1186 = vmatmul.mubr.f32.gmra.mrb[0].mxu0 %v575
      %v1187 = vpop.f32.mrb[0].mxu0
      %v1188 = vadd.f32 %v963, %v1187
      %v1189 = vpop.f32.mrb[0].mxu0
      %1190 = vmatprep.mubr.f32.mxu0 %v583
      %1191 = vmatmul.mubr.f32.gmra.mrb[0].mxu0 %v582
      %v1192 = vpop.f32.mrb[0].mxu0
      %v1193 = vadd.f32 %v968, %v1192
      %v1194 = vpop.f32.mrb[0].mxu0
      %1195 = vmatprep.mubr.f32.mxu0 %v590
      %1196 = vmatmul.mubr.f32.gmra.mrb[0].mxu0 %v589
      %v1197 = vpop.f32.mrb[0].mxu0
      %v1198 = vadd.f32 %v973, %v1197
      %v1199 = vpop.f32.mrb[0].mxu0
      %1200 = vmatprep.mubr.f32.mxu0 %v597
      %1201 = vmatmul.mubr.f32.gmra.mrb[0].mxu0 %v596
      %v1202 = vpop.f32.mrb[0].mxu0
      %v1203 = vadd.f32 %v978, %v1202
      %v1204 = vpop.f32.mrb[0].mxu0
      %1205 = vmatprep.mubr.f32.mxu0 %v604
      %1206 = vmatmul.mubr.f32.gmra.mrb[0].mxu0 %v603
      %v1207 = vpop.f32.mrb[0].mxu0
      %v1208 = vadd.f32 %v983, %v1207
      %v1209 = vpop.f32.mrb[0].mxu0
      %1210 = vmatprep.mubr.f32.mxu0 %v611
      %1211 = vmatmul.mubr.f32.gmra.mrb[0].mxu0 %v610
      %v1212 = vpop.f32.mrb[0].mxu0
      %v1213 = vadd.f32 %v988, %v1212
      %v1214 = vpop.f32.mrb[0].mxu0
      %1215 = vmatprep.mubr.f32.mxu0 %v618
      %1216 = vmatmul.mubr.f32.gmra.mrb[0].mxu0 %v617
      %v1217 = vpop.f32.mrb[0].mxu0
      %v1218 = vadd.f32 %v993, %v1217
      %v1219 = vpop.f32.mrb[0].mxu0
      %1220 = vmatprep.mubr.f32.mxu0 %v625
      %1221 = vmatmul.mubr.f32.gmra.mrb[0].mxu0 %v624
      %v1222 = vpop.f32.mrb[0].mxu0
      %v1223 = vadd.f32 %v998, %v1222
      %v1224 = vpop.f32.mrb[0].mxu0
      %1225 = vmatprep.mubr.f32.mxu0 %v632
      %1226 = vmatmul.mubr.f32.gmra.mrb[0].mxu0 %v631
      %v1227 = vpop.f32.mrb[0].mxu0
      %v1228 = vadd.f32 %v1003, %v1227
      %v1229 = vpop.f32.mrb[0].mxu0
      %1230 = vmatprep.mubr.f32.mxu0 %v639
      %1231 = vmatmul.mubr.f32.gmra.mrb[0].mxu0 %v638
      %v1232 = vpop.f32.mrb[0].mxu0
      %v1233 = vadd.f32 %v1008, %v1232
      %v1234 = vpop.f32.mrb[0].mxu0
      %1235 = vmatprep.mubr.f32.mxu0 %v646
      %1236 = vmatmul.mubr.f32.gmra.mrb[0].mxu0 %v645
      %v1237 = vpop.f32.mrb[0].mxu0
      %v1238 = vadd.f32 %v1013, %v1237
      %v1239 = vpop.f32.mrb[0].mxu0
      %1240 = vmatprep.mubr.f32.mxu0 %v653
      %1241 = vmatmul.mubr.f32.gmra.mrb[0].mxu0 %v652
      %v1242 = vpop.f32.mrb[0].mxu0
      %v1243 = vadd.f32 %v1018, %v1242
      %v1244 = vpop.f32.mrb[0].mxu0
      %1245 = vmatprep.mubr.f32.mxu0 %v660
      %1246 = vmatmul.mubr.f32.gmra.mrb[0].mxu0 %v659
      %v1247 = vpop.f32.mrb[0].mxu0
      %v1248 = vadd.f32 %v1023, %v1247
      %v1249 = vpop.f32.mrb[0].mxu0
      %1250 = vmatprep.mubr.f32.mxu0 %v667
      %1251 = vmatmul.mubr.f32.gmra.mrb[0].mxu0 %v666
      %v1252 = vpop.f32.mrb[0].mxu0
      %v1253 = vadd.f32 %v1028, %v1252
      %v1254 = vpop.f32.mrb[0].mxu0
      %1255 = vmatprep.mubr.f32.mxu0 %v674
      %1256 = vmatmul.mubr.f32.gmra.mrb[0].mxu0 %v673
      %v1257 = vpop.f32.mrb[0].mxu0
      %v1258 = vadd.f32 %v1033, %v1257
      %v1259 = vpop.f32.mrb[0].mxu0
      %1260 = vmatprep.mubr.f32.mxu0 %v681
      %1261 = vmatmul.mubr.f32.gmra.mrb[0].mxu0 %v680
      %v1262 = vpop.f32.mrb[0].mxu0
      %v1263 = vadd.f32 %v1038, %v1262
      %v1264 = vpop.f32.mrb[0].mxu0
      %1265 = vmatprep.mubr.f32.mxu0 %v688
      %1266 = vmatmul.mubr.f32.gmra.mrb[0].mxu0 %v687
      %v1267 = vpop.f32.mrb[0].mxu0
      %v1268 = vadd.f32 %v1043, %v1267
      %v1269 = vpop.f32.mrb[0].mxu0
      %1270 = vmatprep.mubr.f32.mxu0 %v695
      %1271 = vmatmul.mubr.f32.gmra.mrb[0].mxu0 %v694
      %v1272 = vpop.f32.mrb[0].mxu0
      %v1273 = vadd.f32 %v1048, %v1272
      %v1274 = vpop.f32.mrb[0].mxu0
      %1275 = vmatprep.mubr.f32.mxu0 %v702
      %1276 = vmatmul.mubr.f32.gmra.mrb[0].mxu0 %v701
      %v1277 = vpop.f32.mrb[0].mxu0
      %v1278 = vadd.f32 %v1053, %v1277
      %v1279 = vpop.f32.mrb[0].mxu0
      %1280 = vmatprep.mubr.f32.mxu0 %v709
      %1281 = vmatmul.mubr.f32.gmra.mrb[0].mxu0 %v708
      %v1282 = vpop.f32.mrb[0].mxu0
      %v1283 = vadd.f32 %v1058, %v1282
      %v1284 = vpop.f32.mrb[0].mxu0
      %1285 = vmatprep.mubr.f32.mxu0 %v716
      %1286 = vmatmul.mubr.f32.gmra.mrb[0].mxu0 %v715
      %v1287 = vpop.f32.mrb[0].mxu0
      %v1288 = vadd.f32 %v1063, %v1287
      %v1289 = vpop.f32.mrb[0].mxu0
      %1290 = vmatprep.mubr.f32.mxu0 %v723
      %1291 = vmatmul.mubr.f32.gmra.mrb[0].mxu0 %v722
      %v1292 = vpop.f32.mrb[0].mxu0
      %v1293 = vadd.f32 %v1068, %v1292
      %v1294 = vpop.f32.mrb[0].mxu0
      %1295 = vdwg.mxu0
      %1296 = vmatprep.subr.mxu0 0.0
      %1297 = vmatpush1.msra.mxu0 %v791
      %1298 = vmatprep.subr.mxu0 0.0
      %1299 = vmatpush1.msra.mxu0 %v792
      %1300 = vmatprep.subr.mxu0 0.0
      %1301 = vmatpush1.msra.mxu0 %v793
      %1302 = vmatprep.subr.mxu0 0.0
      %1303 = vmatpush1.msra.mxu0 %v794
      %1304 = vmatprep.subr.mxu0 0.0
      %1305 = vmatpush1.msra.mxu0 %v795
      %1306 = vmatprep.subr.mxu0 0.0
      %1307 = vmatpush1.msra.mxu0 %v796
      %1308 = vmatprep.subr.mxu0 0.0
      %1309 = vmatpush1.msra.mxu0 %v797
      %1310 = vmatprep.subr.mxu0 0.0
      %1311 = vmatpush1.msra.mxu0 %v798
      %1312 = vmatprep.subr.mxu0 0.0
      %1313 = vmatpush1.msra.mxu0 %v799
      %1314 = vmatprep.subr.mxu0 0.0
      %1315 = vmatpush1.msra.mxu0 %v800
      %1316 = vmatprep.subr.mxu0 0.0
      %1317 = vmatpush1.msra.mxu0 %v801
      %1318 = vmatprep.subr.mxu0 0.0
      %1319 = vmatpush1.msra.mxu0 %v802
      %1320 = vmatprep.subr.mxu0 0.0
      %1321 = vmatpush1.msra.mxu0 %v803
      %1322 = vmatprep.subr.mxu0 0.0
      %1323 = vmatpush1.msra.mxu0 %v804
      %1324 = vmatprep.subr.mxu0 0.0
      %1325 = vmatpush1.msra.mxu0 %v805
      %1326 = vmatprep.subr.mxu0 0.0
      %1327 = vmatpush1.msra.mxu0 %v806
      %1328 = vmatprep.subr.mxu0 0.0
      %1329 = vmatpush1.msra.mxu0 %v807
      %1330 = vmatprep.subr.mxu0 0.0
      %1331 = vmatpush1.msra.mxu0 %v808
      %1332 = vmatprep.subr.mxu0 0.0
      %1333 = vmatpush1.msra.mxu0 %v809
      %1334 = vmatprep.subr.mxu0 0.0
      %1335 = vmatpush1.msra.mxu0 %v810
      %1336 = vmatprep.subr.mxu0 0.0
      %1337 = vmatpush1.msra.mxu0 %v811
      %1338 = vmatprep.subr.mxu0 0.0
      %1339 = vmatpush1.msra.mxu0 %v812
      %1340 = vmatprep.subr.mxu0 0.0
      %1341 = vmatpush1.msra.mxu0 %v813
      %1342 = vmatprep.subr.mxu0 0.0
      %1343 = vmatpush1.msra.mxu0 %v814
      %1344 = vmatprep.subr.mxu0 0.0
      %1345 = vmatpush1.msra.mxu0 %v815
      %1346 = vmatprep.subr.mxu0 0.0
      %1347 = vmatpush1.msra.mxu0 %v816
      %1348 = vmatprep.subr.mxu0 0.0
      %1349 = vmatpush1.msra.mxu0 %v817
      %1350 = vmatprep.subr.mxu0 0.0
      %1351 = vmatpush1.msra.mxu0 %v818
      %1352 = vmatprep.subr.mxu0 0.0
      %1353 = vmatpush1.msra.mxu0 %v819
      %1354 = vmatprep.subr.mxu0 0.0
      %1355 = vmatpush1.msra.mxu0 %v820
      %1356 = vmatprep.subr.mxu0 0.0
      %1357 = vmatpush1.msra.mxu0 %v821
      %1358 = vmatprep.subr.mxu0 0.0
      %1359 = vmatpush1.msra.mxu0 %v822
      %1360 = vmatprep.mubr.f32.mxu0 %v508
      %1361 = vmatmul.mubr.f32.gmra.mrb[0].mxu0 %v507
      %v1362 = vpop.f32.mrb[0].mxu0
      %v1363 = vadd.f32 %v1138, %v1362
      %v1364 = vpop.f32.mrb[0].mxu0
      %1365 = vmatprep.mubr.f32.mxu0 %v515
      %1366 = vmatmul.mubr.f32.gmra.mrb[0].mxu0 %v514
      %v1367 = vpop.f32.mrb[0].mxu0
      %v1368 = vadd.f32 %v1143, %v1367
      %v1369 = vpop.f32.mrb[0].mxu0
      %1370 = vmatprep.mubr.f32.mxu0 %v522
      %1371 = vmatmul.mubr.f32.gmra.mrb[0].mxu0 %v521
      %v1372 = vpop.f32.mrb[0].mxu0
      %v1373 = vadd.f32 %v1148, %v1372
      %v1374 = vpop.f32.mrb[0].mxu0
      %1375 = vmatprep.mubr.f32.mxu0 %v529
      %1376 = vmatmul.mubr.f32.gmra.mrb[0].mxu0 %v528
      %v1377 = vpop.f32.mrb[0].mxu0
      %v1378 = vadd.f32 %v1153, %v1377
      %v1379 = vpop.f32.mrb[0].mxu0
      %1380 = vmatprep.mubr.f32.mxu0 %v536
      %1381 = vmatmul.mubr.f32.gmra.mrb[0].mxu0 %v535
      %v1382 = vpop.f32.mrb[0].mxu0
      %v1383 = vadd.f32 %v1158, %v1382
      %v1384 = vpop.f32.mrb[0].mxu0
      %1385 = vmatprep.mubr.f32.mxu0 %v543
      %1386 = vmatmul.mubr.f32.gmra.mrb[0].mxu0 %v542
      %v1387 = vpop.f32.mrb[0].mxu0
      %v1388 = vadd.f32 %v1163, %v1387
      %v1389 = vpop.f32.mrb[0].mxu0
      %1390 = vmatprep.mubr.f32.mxu0 %v550
      %1391 = vmatmul.mubr.f32.gmra.mrb[0].mxu0 %v549
      %v1392 = vpop.f32.mrb[0].mxu0
      %v1393 = vadd.f32 %v1168, %v1392
      %v1394 = vpop.f32.mrb[0].mxu0
      %1395 = vmatprep.mubr.f32.mxu0 %v557
      %1396 = vmatmul.mubr.f32.gmra.mrb[0].mxu0 %v556
      %v1397 = vpop.f32.mrb[0].mxu0
      %v1398 = vadd.f32 %v1173, %v1397
      %v1399 = vpop.f32.mrb[0].mxu0
      %1400 = vmatprep.mubr.f32.mxu0 %v564
      %1401 = vmatmul.mubr.f32.gmra.mrb[0].mxu0 %v563
      %v1402 = vpop.f32.mrb[0].mxu0
      %v1403 = vadd.f32 %v1178, %v1402
      %v1404 = vpop.f32.mrb[0].mxu0
      %1405 = vmatprep.mubr.f32.mxu0 %v571
      %1406 = vmatmul.mubr.f32.gmra.mrb[0].mxu0 %v570
      %v1407 = vpop.f32.mrb[0].mxu0
      %v1408 = vadd.f32 %v1183, %v1407
      %v1409 = vpop.f32.mrb[0].mxu0
      %1410 = vmatprep.mubr.f32.mxu0 %v578
      %1411 = vmatmul.mubr.f32.gmra.mrb[0].mxu0 %v577
      %v1412 = vpop.f32.mrb[0].mxu0
      %v1413 = vadd.f32 %v1188, %v1412
      %v1414 = vpop.f32.mrb[0].mxu0
      %1415 = vmatprep.mubr.f32.mxu0 %v585
      %1416 = vmatmul.mubr.f32.gmra.mrb[0].mxu0 %v584
      %v1417 = vpop.f32.mrb[0].mxu0
      %v1418 = vadd.f32 %v1193, %v1417
      %v1419 = vpop.f32.mrb[0].mxu0
      %1420 = vmatprep.mubr.f32.mxu0 %v592
      %1421 = vmatmul.mubr.f32.gmra.mrb[0].mxu0 %v591
      %v1422 = vpop.f32.mrb[0].mxu0
      %v1423 = vadd.f32 %v1198, %v1422
      %v1424 = vpop.f32.mrb[0].mxu0
      %1425 = vmatprep.mubr.f32.mxu0 %v599
      %1426 = vmatmul.mubr.f32.gmra.mrb[0].mxu0 %v598
      %v1427 = vpop.f32.mrb[0].mxu0
      %v1428 = vadd.f32 %v1203, %v1427
      %v1429 = vpop.f32.mrb[0].mxu0
      %1430 = vmatprep.mubr.f32.mxu0 %v606
      %1431 = vmatmul.mubr.f32.gmra.mrb[0].mxu0 %v605
      %v1432 = vpop.f32.mrb[0].mxu0
      %v1433 = vadd.f32 %v1208, %v1432
      %v1434 = vpop.f32.mrb[0].mxu0
      %1435 = vmatprep.mubr.f32.mxu0 %v613
      %1436 = vmatmul.mubr.f32.gmra.mrb[0].mxu0 %v612
      %v1437 = vpop.f32.mrb[0].mxu0
      %v1438 = vadd.f32 %v1213, %v1437
      %v1439 = vpop.f32.mrb[0].mxu0
      %1440 = vmatprep.mubr.f32.mxu0 %v620
      %1441 = vmatmul.mubr.f32.gmra.mrb[0].mxu0 %v619
      %v1442 = vpop.f32.mrb[0].mxu0
      %v1443 = vadd.f32 %v1218, %v1442
      %v1444 = vpop.f32.mrb[0].mxu0
      %1445 = vmatprep.mubr.f32.mxu0 %v627
      %1446 = vmatmul.mubr.f32.gmra.mrb[0].mxu0 %v626
      %v1447 = vpop.f32.mrb[0].mxu0
      %v1448 = vadd.f32 %v1223, %v1447
      %v1449 = vpop.f32.mrb[0].mxu0
      %1450 = vmatprep.mubr.f32.mxu0 %v634
      %1451 = vmatmul.mubr.f32.gmra.mrb[0].mxu0 %v633
      %v1452 = vpop.f32.mrb[0].mxu0
      %v1453 = vadd.f32 %v1228, %v1452
      %v1454 = vpop.f32.mrb[0].mxu0
      %1455 = vmatprep.mubr.f32.mxu0 %v641
      %1456 = vmatmul.mubr.f32.gmra.mrb[0].mxu0 %v640
      %v1457 = vpop.f32.mrb[0].mxu0
      %v1458 = vadd.f32 %v1233, %v1457
      %v1459 = vpop.f32.mrb[0].mxu0
      %1460 = vmatprep.mubr.f32.mxu0 %v648
      %1461 = vmatmul.mubr.f32.gmra.mrb[0].mxu0 %v647
      %v1462 = vpop.f32.mrb[0].mxu0
      %v1463 = vadd.f32 %v1238, %v1462
      %v1464 = vpop.f32.mrb[0].mxu0
      %1465 = vmatprep.mubr.f32.mxu0 %v655
      %1466 = vmatmul.mubr.f32.gmra.mrb[0].mxu0 %v654
      %v1467 = vpop.f32.mrb[0].mxu0
      %v1468 = vadd.f32 %v1243, %v1467
      %v1469 = vpop.f32.mrb[0].mxu0
      %1470 = vmatprep.mubr.f32.mxu0 %v662
      %1471 = vmatmul.mubr.f32.gmra.mrb[0].mxu0 %v661
      %v1472 = vpop.f32.mrb[0].mxu0
      %v1473 = vadd.f32 %v1248, %v1472
      %v1474 = vpop.f32.mrb[0].mxu0
      %1475 = vmatprep.mubr.f32.mxu0 %v669
      %1476 = vmatmul.mubr.f32.gmra.mrb[0].mxu0 %v668
      %v1477 = vpop.f32.mrb[0].mxu0
      %v1478 = vadd.f32 %v1253, %v1477
      %v1479 = vpop.f32.mrb[0].mxu0
      %1480 = vmatprep.mubr.f32.mxu0 %v676
      %1481 = vmatmul.mubr.f32.gmra.mrb[0].mxu0 %v675
      %v1482 = vpop.f32.mrb[0].mxu0
      %v1483 = vadd.f32 %v1258, %v1482
      %v1484 = vpop.f32.mrb[0].mxu0
      %1485 = vmatprep.mubr.f32.mxu0 %v683
      %1486 = vmatmul.mubr.f32.gmra.mrb[0].mxu0 %v682
      %v1487 = vpop.f32.mrb[0].mxu0
      %v1488 = vadd.f32 %v1263, %v1487
      %v1489 = vpop.f32.mrb[0].mxu0
      %1490 = vmatprep.mubr.f32.mxu0 %v690
      %1491 = vmatmul.mubr.f32.gmra.mrb[0].mxu0 %v689
      %v1492 = vpop.f32.mrb[0].mxu0
      %v1493 = vadd.f32 %v1268, %v1492
      %v1494 = vpop.f32.mrb[0].mxu0
      %1495 = vmatprep.mubr.f32.mxu0 %v697
      %1496 = vmatmul.mubr.f32.gmra.mrb[0].mxu0 %v696
      %v1497 = vpop.f32.mrb[0].mxu0
      %v1498 = vadd.f32 %v1273, %v1497
      %v1499 = vpop.f32.mrb[0].mxu0
      %1500 = vmatprep.mubr.f32.mxu0 %v704
      %1501 = vmatmul.mubr.f32.gmra.mrb[0].mxu0 %v703
      %v1502 = vpop.f32.mrb[0].mxu0
      %v1503 = vadd.f32 %v1278, %v1502
      %v1504 = vpop.f32.mrb[0].mxu0
      %1505 = vmatprep.mubr.f32.mxu0 %v711
      %1506 = vmatmul.mubr.f32.gmra.mrb[0].mxu0 %v710
      %v1507 = vpop.f32.mrb[0].mxu0
      %v1508 = vadd.f32 %v1283, %v1507
      %v1509 = vpop.f32.mrb[0].mxu0
      %1510 = vmatprep.mubr.f32.mxu0 %v718
      %1511 = vmatmul.mubr.f32.gmra.mrb[0].mxu0 %v717
      %v1512 = vpop.f32.mrb[0].mxu0
      %v1513 = vadd.f32 %v1288, %v1512
      %v1514 = vpop.f32.mrb[0].mxu0
      %1515 = vmatprep.mubr.f32.mxu0 %v725
      %1516 = vmatmul.mubr.f32.gmra.mrb[0].mxu0 %v724
      %v1517 = vpop.f32.mrb[0].mxu0
      %v1518 = vadd.f32 %v1293, %v1517
      %v1519 = vpop.f32.mrb[0].mxu0
      %1520 = vdwg.mxu0
      %1521 = vmatprep.subr.mxu0 0.0
      %1522 = vmatpush1.msra.mxu0 %v823
      %1523 = vmatprep.subr.mxu0 0.0
      %1524 = vmatpush1.msra.mxu0 %v824
      %1525 = vmatprep.subr.mxu0 0.0
      %1526 = vmatpush1.msra.mxu0 %v825
      %1527 = vmatprep.subr.mxu0 0.0
      %1528 = vmatpush1.msra.mxu0 %v826
      %1529 = vmatprep.subr.mxu0 0.0
      %1530 = vmatpush1.msra.mxu0 %v827
      %1531 = vmatprep.subr.mxu0 0.0
      %1532 = vmatpush1.msra.mxu0 %v828
      %1533 = vmatprep.subr.mxu0 0.0
      %1534 = vmatpush1.msra.mxu0 %v829
      %1535 = vmatprep.subr.mxu0 0.0
      %1536 = vmatpush1.msra.mxu0 %v830
      %1537 = vmatprep.subr.mxu0 0.0
      %1538 = vmatpush1.msra.mxu0 %v831
      %1539 = vmatprep.subr.mxu0 0.0
      %1540 = vmatpush1.msra.mxu0 %v832
      %1541 = vmatprep.subr.mxu0 0.0
      %1542 = vmatpush1.msra.mxu0 %v833
      %1543 = vmatprep.subr.mxu0 0.0
      %1544 = vmatpush1.msra.mxu0 %v834
      %1545 = vmatprep.subr.mxu0 0.0
      %1546 = vmatpush1.msra.mxu0 %v835
      %1547 = vmatprep.subr.mxu0 0.0
      %1548 = vmatpush1.msra.mxu0 %v836
      %1549 = vmatprep.subr.mxu0 0.0
      %1550 = vmatpush1.msra.mxu0 %v837
      %1551 = vmatprep.subr.mxu0 0.0
      %1552 = vmatpush1.msra.mxu0 %v838
      %1553 = vmatprep.subr.mxu0 0.0
      %1554 = vmatpush1.msra.mxu0 0.0
      %1555 = vmatprep.subr.mxu0 0.0
      %1556 = vmatpush1.msra.mxu0 0.0
      %1557 = vmatprep.subr.mxu0 0.0
      %1558 = vmatpush1.msra.mxu0 0.0
      %1559 = vmatprep.subr.mxu0 0.0
      %1560 = vmatpush1.msra.mxu0 0.0
      %1561 = vmatprep.subr.mxu0 0.0
      %1562 = vmatpush1.msra.mxu0 0.0
      %1563 = vmatprep.subr.mxu0 0.0
      %1564 = vmatpush1.msra.mxu0 0.0
      %1565 = vmatprep.subr.mxu0 0.0
      %1566 = vmatpush1.msra.mxu0 0.0
      %1567 = vmatprep.subr.mxu0 0.0
      %1568 = vmatpush1.msra.mxu0 0.0
      %1569 = vmatprep.subr.mxu0 0.0
      %1570 = vmatpush1.msra.mxu0 0.0
      %1571 = vmatprep.subr.mxu0 0.0
      %1572 = vmatpush1.msra.mxu0 0.0
      %1573 = vmatprep.subr.mxu0 0.0
      %1574 = vmatpush1.msra.mxu0 0.0
      %1575 = vmatprep.subr.mxu0 0.0
      %1576 = vmatpush1.msra.mxu0 0.0
      %1577 = vmatprep.subr.mxu0 0.0
      %1578 = vmatpush1.msra.mxu0 0.0
      %1579 = vmatprep.subr.mxu0 0.0
      %1580 = vmatpush1.msra.mxu0 0.0
      %1581 = vmatprep.subr.mxu0 0.0
      %1582 = vmatpush1.msra.mxu0 0.0
      %1583 = vmatprep.subr.mxu0 0.0
      %1584 = vmatpush1.msra.mxu0 0.0
      %1585 = vmatprep.mubr.f32.mxu0 0.0
      %1586 = vmatmul.mubr.f32.gmra.mrb[0].mxu0 %v509
      %v1587 = vpop.f32.mrb[0].mxu0
      %v1588 = vadd.f32 %v1363, %v1587
      %v1589 = vpop.f32.mrb[0].mxu0
      %1590 = vmatprep.mubr.f32.mxu0 0.0
      %1591 = vmatmul.mubr.f32.gmra.mrb[0].mxu0 %v516
      %v1592 = vpop.f32.mrb[0].mxu0
      %v1593 = vadd.f32 %v1368, %v1592
      %v1594 = vpop.f32.mrb[0].mxu0
      %1595 = vmatprep.mubr.f32.mxu0 0.0
      %1596 = vmatmul.mubr.f32.gmra.mrb[0].mxu0 %v523
      %v1597 = vpop.f32.mrb[0].mxu0
      %v1598 = vadd.f32 %v1373, %v1597
      %v1599 = vpop.f32.mrb[0].mxu0
      %1600 = vmatprep.mubr.f32.mxu0 0.0
      %1601 = vmatmul.mubr.f32.gmra.mrb[0].mxu0 %v530
      %v1602 = vpop.f32.mrb[0].mxu0
      %v1603 = vadd.f32 %v1378, %v1602
      %v1604 = vpop.f32.mrb[0].mxu0
      %1605 = vmatprep.mubr.f32.mxu0 0.0
      %1606 = vmatmul.mubr.f32.gmra.mrb[0].mxu0 %v537
      %v1607 = vpop.f32.mrb[0].mxu0
      %v1608 = vadd.f32 %v1383, %v1607
      %v1609 = vpop.f32.mrb[0].mxu0
      %1610 = vmatprep.mubr.f32.mxu0 0.0
      %1611 = vmatmul.mubr.f32.gmra.mrb[0].mxu0 %v544
      %v1612 = vpop.f32.mrb[0].mxu0
      %v1613 = vadd.f32 %v1388, %v1612
      %v1614 = vpop.f32.mrb[0].mxu0
      %1615 = vmatprep.mubr.f32.mxu0 0.0
      %1616 = vmatmul.mubr.f32.gmra.mrb[0].mxu0 %v551
      %v1617 = vpop.f32.mrb[0].mxu0
      %v1618 = vadd.f32 %v1393, %v1617
      %v1619 = vpop.f32.mrb[0].mxu0
      %1620 = vmatprep.mubr.f32.mxu0 0.0
      %1621 = vmatmul.mubr.f32.gmra.mrb[0].mxu0 %v558
      %v1622 = vpop.f32.mrb[0].mxu0
      %v1623 = vadd.f32 %v1398, %v1622
      %v1624 = vpop.f32.mrb[0].mxu0
      %1625 = vmatprep.mubr.f32.mxu0 0.0
      %1626 = vmatmul.mubr.f32.gmra.mrb[0].mxu0 %v565
      %v1627 = vpop.f32.mrb[0].mxu0
      %v1628 = vadd.f32 %v1403, %v1627
      %v1629 = vpop.f32.mrb[0].mxu0
      %1630 = vmatprep.mubr.f32.mxu0 0.0
      %1631 = vmatmul.mubr.f32.gmra.mrb[0].mxu0 %v572
      %v1632 = vpop.f32.mrb[0].mxu0
      %v1633 = vadd.f32 %v1408, %v1632
      %v1634 = vpop.f32.mrb[0].mxu0
      %1635 = vmatprep.mubr.f32.mxu0 0.0
      %1636 = vmatmul.mubr.f32.gmra.mrb[0].mxu0 %v579
      %v1637 = vpop.f32.mrb[0].mxu0
      %v1638 = vadd.f32 %v1413, %v1637
      %v1639 = vpop.f32.mrb[0].mxu0
      %1640 = vmatprep.mubr.f32.mxu0 0.0
      %1641 = vmatmul.mubr.f32.gmra.mrb[0].mxu0 %v586
      %v1642 = vpop.f32.mrb[0].mxu0
      %v1643 = vadd.f32 %v1418, %v1642
      %v1644 = vpop.f32.mrb[0].mxu0
      %1645 = vmatprep.mubr.f32.mxu0 0.0
      %1646 = vmatmul.mubr.f32.gmra.mrb[0].mxu0 %v593
      %v1647 = vpop.f32.mrb[0].mxu0
      %v1648 = vadd.f32 %v1423, %v1647
      %v1649 = vpop.f32.mrb[0].mxu0
      %1650 = vmatprep.mubr.f32.mxu0 0.0
      %1651 = vmatmul.mubr.f32.gmra.mrb[0].mxu0 %v600
      %v1652 = vpop.f32.mrb[0].mxu0
      %v1653 = vadd.f32 %v1428, %v1652
      %v1654 = vpop.f32.mrb[0].mxu0
      %1655 = vmatprep.mubr.f32.mxu0 0.0
      %1656 = vmatmul.mubr.f32.gmra.mrb[0].mxu0 %v607
      %v1657 = vpop.f32.mrb[0].mxu0
      %v1658 = vadd.f32 %v1433, %v1657
      %v1659 = vpop.f32.mrb[0].mxu0
      %1660 = vmatprep.mubr.f32.mxu0 0.0
      %1661 = vmatmul.mubr.f32.gmra.mrb[0].mxu0 %v614
      %v1662 = vpop.f32.mrb[0].mxu0
      %v1663 = vadd.f32 %v1438, %v1662
      %v1664 = vpop.f32.mrb[0].mxu0
      %1665 = vmatprep.mubr.f32.mxu0 0.0
      %1666 = vmatmul.mubr.f32.gmra.mrb[0].mxu0 %v621
      %v1667 = vpop.f32.mrb[0].mxu0
      %v1668 = vadd.f32 %v1443, %v1667
      %v1669 = vpop.f32.mrb[0].mxu0
      %1670 = vmatprep.mubr.f32.mxu0 0.0
      %1671 = vmatmul.mubr.f32.gmra.mrb[0].mxu0 %v628
      %v1672 = vpop.f32.mrb[0].mxu0
      %v1673 = vadd.f32 %v1448, %v1672
      %v1674 = vpop.f32.mrb[0].mxu0
      %1675 = vmatprep.mubr.f32.mxu0 0.0
      %1676 = vmatmul.mubr.f32.gmra.mrb[0].mxu0 %v635
      %v1677 = vpop.f32.mrb[0].mxu0
      %v1678 = vadd.f32 %v1453, %v1677
      %v1679 = vpop.f32.mrb[0].mxu0
      %1680 = vmatprep.mubr.f32.mxu0 0.0
      %1681 = vmatmul.mubr.f32.gmra.mrb[0].mxu0 %v642
      %v1682 = vpop.f32.mrb[0].mxu0
      %v1683 = vadd.f32 %v1458, %v1682
      %v1684 = vpop.f32.mrb[0].mxu0
      %1685 = vmatprep.mubr.f32.mxu0 0.0
      %1686 = vmatmul.mubr.f32.gmra.mrb[0].mxu0 %v649
      %v1687 = vpop.f32.mrb[0].mxu0
      %v1688 = vadd.f32 %v1463, %v1687
      %v1689 = vpop.f32.mrb[0].mxu0
      %1690 = vmatprep.mubr.f32.mxu0 0.0
      %1691 = vmatmul.mubr.f32.gmra.mrb[0].mxu0 %v656
      %v1692 = vpop.f32.mrb[0].mxu0
      %v1693 = vadd.f32 %v1468, %v1692
      %v1694 = vpop.f32.mrb[0].mxu0
      %1695 = vmatprep.mubr.f32.mxu0 0.0
      %1696 = vmatmul.mubr.f32.gmra.mrb[0].mxu0 %v663
      %v1697 = vpop.f32.mrb[0].mxu0
      %v1698 = vadd.f32 %v1473, %v1697
      %v1699 = vpop.f32.mrb[0].mxu0
      %1700 = vmatprep.mubr.f32.mxu0 0.0
      %1701 = vmatmul.mubr.f32.gmra.mrb[0].mxu0 %v670
      %v1702 = vpop.f32.mrb[0].mxu0
      %v1703 = vadd.f32 %v1478, %v1702
      %v1704 = vpop.f32.mrb[0].mxu0
      %1705 = vmatprep.mubr.f32.mxu0 0.0
      %1706 = vmatmul.mubr.f32.gmra.mrb[0].mxu0 %v677
      %v1707 = vpop.f32.mrb[0].mxu0
      %v1708 = vadd.f32 %v1483, %v1707
      %v1709 = vpop.f32.mrb[0].mxu0
      %1710 = vmatprep.mubr.f32.mxu0 0.0
      %1711 = vmatmul.mubr.f32.gmra.mrb[0].mxu0 %v684
      %v1712 = vpop.f32.mrb[0].mxu0
      %v1713 = vadd.f32 %v1488, %v1712
      %v1714 = vpop.f32.mrb[0].mxu0
      %1715 = vmatprep.mubr.f32.mxu0 0.0
      %1716 = vmatmul.mubr.f32.gmra.mrb[0].mxu0 %v691
      %v1717 = vpop.f32.mrb[0].mxu0
      %v1718 = vadd.f32 %v1493, %v1717
      %v1719 = vpop.f32.mrb[0].mxu0
      %1720 = vmatprep.mubr.f32.mxu0 0.0
      %1721 = vmatmul.mubr.f32.gmra.mrb[0].mxu0 %v698
      %v1722 = vpop.f32.mrb[0].mxu0
      %v1723 = vadd.f32 %v1498, %v1722
      %v1724 = vpop.f32.mrb[0].mxu0
      %1725 = vmatprep.mubr.f32.mxu0 0.0
      %1726 = vmatmul.mubr.f32.gmra.mrb[0].mxu0 %v705
      %v1727 = vpop.f32.mrb[0].mxu0
      %v1728 = vadd.f32 %v1503, %v1727
      %v1729 = vpop.f32.mrb[0].mxu0
      %1730 = vmatprep.mubr.f32.mxu0 0.0
      %1731 = vmatmul.mubr.f32.gmra.mrb[0].mxu0 %v712
      %v1732 = vpop.f32.mrb[0].mxu0
      %v1733 = vadd.f32 %v1508, %v1732
      %v1734 = vpop.f32.mrb[0].mxu0
      %1735 = vmatprep.mubr.f32.mxu0 0.0
      %1736 = vmatmul.mubr.f32.gmra.mrb[0].mxu0 %v719
      %v1737 = vpop.f32.mrb[0].mxu0
      %v1738 = vadd.f32 %v1513, %v1737
      %v1739 = vpop.f32.mrb[0].mxu0
      %1740 = vmatprep.mubr.f32.mxu0 0.0
      %1741 = vmatmul.mubr.f32.gmra.mrb[0].mxu0 %v726
      %v1742 = vpop.f32.mrb[0].mxu0
      %v1743 = vadd.f32 %v1518, %v1742
      %v1744 = vpop.f32.mrb[0].mxu0
      %1745 = vdwg.mxu0
      %v1746 = vmax.f32 %v1588, 0.0
      %v1747 = vmax.f32 %v1593, 0.0
      %v1748 = vmax.f32 %v1598, 0.0
      %v1749 = vmax.f32 %v1603, 0.0
      %v1750 = vmax.f32 %v1608, 0.0
      %v1751 = vmax.f32 %v1613, 0.0
      %v1752 = vmax.f32 %v1618, 0.0
      %v1753 = vmax.f32 %v1623, 0.0
      %v1754 = vmax.f32 %v1628, 0.0
      %v1755 = vmax.f32 %v1633, 0.0
      %v1756 = vmax.f32 %v1638, 0.0
      %v1757 = vmax.f32 %v1643, 0.0
      %v1758 = vmax.f32 %v1648, 0.0
      %v1759 = vmax.f32 %v1653, 0.0
      %v1760 = vmax.f32 %v1658, 0.0
      %v1761 = vmax.f32 %v1663, 0.0
      %v1762 = vmax.f32 %v1668, 0.0
      %v1763 = vmax.f32 %v1673, 0.0
      %v1764 = vmax.f32 %v1678, 0.0
      %v1765 = vmax.f32 %v1683, 0.0
      %v1766 = vmax.f32 %v1688, 0.0
      %v1767 = vmax.f32 %v1693, 0.0
      %v1768 = vmax.f32 %v1698, 0.0
      %v1769 = vmax.f32 %v1703, 0.0
      %v1770 = vmax.f32 %v1708, 0.0
      %v1771 = vmax.f32 %v1713, 0.0
      %v1772 = vmax.f32 %v1718, 0.0
      %v1773 = vmax.f32 %v1723, 0.0
      %v1774 = vmax.f32 %v1728, 0.0
      %v1775 = vmax.f32 %v1733, 0.0
      %v1776 = vmax.f32 %v1738, 0.0
      %v1777 = vmax.f32 %v1743, 0.0
      %v1778 = vld [vmem:[%s3] sm:$0xff]
      %v1779 = vld [vmem:[%s3 + $0x8] sm:$0xff]
      %v1780 = vld [vmem:[%s3 + $0x10] sm:$0xff]
      %v1781 = vld [vmem:[%s3 + $0x18] sm:$0xff]
      %v1782 = vld [vmem:[%s3 + $0x20] sm:$0xff]
      %v1783 = vld [vmem:[%s3 + $0x28] sm:$0xff]
      %v1784 = vld [vmem:[%s3 + $0x30] sm:$0xff]
      %v1785 = vld [vmem:[%s3 + $0x38] sm:$0xff]
      %v1786 = vld [vmem:[%s3 + $0x40] sm:$0xff]
      %v1787 = vld [vmem:[%s3 + $0x48] sm:$0xff]
      %v1788 = vld [vmem:[%s3 + $0x50] sm:$0xff]
      %v1789 = vld [vmem:[%s3 + $0x58] sm:$0xff]
      %v1790 = vld [vmem:[%s3 + $0x60] sm:$0xff]
      %v1791 = vld [vmem:[%s3 + $0x68] sm:$0xff]
      %v1792 = vld [vmem:[%s3 + $0x70] sm:$0xff]
      %v1793 = vld [vmem:[%s3 + $0x78] sm:$0xff]
      %v1794 = vld [vmem:[%s4] sm:$0x1]
      %v1796 = vlaneseq
      %v1797 = vshrl.u32 %v1796, 7
      %v1798 = vsub.s32 0, %v1797
      %v1799 = vrot.slane %v1794, %v1798
      %1801 = vmatprep.subr.mxu0 0.0
      %1802 = vmatpush1.msra.mxu0 %v1778
      %1803 = vmatprep.subr.mxu0 0.0
      %1804 = vmatpush1.msra.mxu0 %v1779
      %1805 = vmatprep.subr.mxu0 0.0
      %1806 = vmatpush1.msra.mxu0 %v1780
      %1807 = vmatprep.subr.mxu0 0.0
      %1808 = vmatpush1.msra.mxu0 %v1781
      %1809 = vmatprep.subr.mxu0 0.0
      %1810 = vmatpush1.msra.mxu0 %v1782
      %1811 = vmatprep.subr.mxu0 0.0
      %1812 = vmatpush1.msra.mxu0 %v1783
      %1813 = vmatprep.subr.mxu0 0.0
      %1814 = vmatpush1.msra.mxu0 %v1784
      %1815 = vmatprep.subr.mxu0 0.0
      %1816 = vmatpush1.msra.mxu0 %v1785
      %1817 = vmatprep.subr.mxu0 0.0
      %1818 = vmatpush1.msra.mxu0 %v1786
      %1819 = vmatprep.subr.mxu0 0.0
      %1820 = vmatpush1.msra.mxu0 %v1787
      %1821 = vmatprep.subr.mxu0 0.0
      %1822 = vmatpush1.msra.mxu0 %v1788
      %1823 = vmatprep.subr.mxu0 0.0
      %1824 = vmatpush1.msra.mxu0 %v1789
      %1825 = vmatprep.subr.mxu0 0.0
      %1826 = vmatpush1.msra.mxu0 %v1790
      %1827 = vmatprep.subr.mxu0 0.0
      %1828 = vmatpush1.msra.mxu0 %v1791
      %1829 = vmatprep.subr.mxu0 0.0
      %1830 = vmatpush1.msra.mxu0 %v1792
      %1831 = vmatprep.subr.mxu0 0.0
      %1832 = vmatpush1.msra.mxu0 %v1793
      %1833 = vmatprep.subr.mxu0 0.0
      %1834 = vmatpush1.msra.mxu0 0.0
      %1835 = vmatprep.subr.mxu0 0.0
      %1836 = vmatpush1.msra.mxu0 0.0
      %1837 = vmatprep.subr.mxu0 0.0
      %1838 = vmatpush1.msra.mxu0 0.0
      %1839 = vmatprep.subr.mxu0 0.0
      %1840 = vmatpush1.msra.mxu0 0.0
      %1841 = vmatprep.subr.mxu0 0.0
      %1842 = vmatpush1.msra.mxu0 0.0
      %1843 = vmatprep.subr.mxu0 0.0
      %1844 = vmatpush1.msra.mxu0 0.0
      %1845 = vmatprep.subr.mxu0 0.0
      %1846 = vmatpush1.msra.mxu0 0.0
      %1847 = vmatprep.subr.mxu0 0.0
      %1848 = vmatpush1.msra.mxu0 0.0
      %1849 = vmatprep.subr.mxu0 0.0
      %1850 = vmatpush1.msra.mxu0 0.0
      %1851 = vmatprep.subr.mxu0 0.0
      %1852 = vmatpush1.msra.mxu0 0.0
      %1853 = vmatprep.subr.mxu0 0.0
      %1854 = vmatpush1.msra.mxu0 0.0
      %1855 = vmatprep.subr.mxu0 0.0
      %1856 = vmatpush1.msra.mxu0 0.0
      %1857 = vmatprep.subr.mxu0 0.0
      %1858 = vmatpush1.msra.mxu0 0.0
      %1859 = vmatprep.subr.mxu0 0.0
      %1860 = vmatpush1.msra.mxu0 0.0
      %1861 = vmatprep.subr.mxu0 0.0
      %1862 = vmatpush1.msra.mxu0 0.0
      %1863 = vmatprep.subr.mxu0 0.0
      %1864 = vmatpush1.msra.mxu0 0.0
      %1865 = vmatprep.mubr.f32.mxu0 0.0
      %1866 = vmatmul.mubr.f32.gmra.mrb[0].mxu0 %v1746
      %v1867 = vpop.f32.mrb[0].mxu0
      %v1868 = vadd.f32 %v1799, %v1867
      %v1869 = vpop.f32.mrb[0].mxu0
      %1870 = vmatprep.mubr.f32.mxu0 0.0
      %1871 = vmatmul.mubr.f32.gmra.mrb[0].mxu0 %v1747
      %v1872 = vpop.f32.mrb[0].mxu0
      %v1873 = vadd.f32 %v1799, %v1872
      %v1874 = vpop.f32.mrb[0].mxu0
      %1875 = vmatprep.mubr.f32.mxu0 0.0
      %1876 = vmatmul.mubr.f32.gmra.mrb[0].mxu0 %v1748
      %v1877 = vpop.f32.mrb[0].mxu0
      %v1878 = vadd.f32 %v1799, %v1877
      %v1879 = vpop.f32.mrb[0].mxu0
      %1880 = vmatprep.mubr.f32.mxu0 0.0
      %1881 = vmatmul.mubr.f32.gmra.mrb[0].mxu0 %v1749
      %v1882 = vpop.f32.mrb[0].mxu0
      %v1883 = vadd.f32 %v1799, %v1882
      %v1884 = vpop.f32.mrb[0].mxu0
      %1885 = vmatprep.mubr.f32.mxu0 0.0
      %1886 = vmatmul.mubr.f32.gmra.mrb[0].mxu0 %v1750
      %v1887 = vpop.f32.mrb[0].mxu0
      %v1888 = vadd.f32 %v1799, %v1887
      %v1889 = vpop.f32.mrb[0].mxu0
      %1890 = vmatprep.mubr.f32.mxu0 0.0
      %1891 = vmatmul.mubr.f32.gmra.mrb[0].mxu0 %v1751
      %v1892 = vpop.f32.mrb[0].mxu0
      %v1893 = vadd.f32 %v1799, %v1892
      %v1894 = vpop.f32.mrb[0].mxu0
      %1895 = vmatprep.mubr.f32.mxu0 0.0
      %1896 = vmatmul.mubr.f32.gmra.mrb[0].mxu0 %v1752
      %v1897 = vpop.f32.mrb[0].mxu0
      %v1898 = vadd.f32 %v1799, %v1897
      %v1899 = vpop.f32.mrb[0].mxu0
      %1900 = vmatprep.mubr.f32.mxu0 0.0
      %1901 = vmatmul.mubr.f32.gmra.mrb[0].mxu0 %v1753
      %v1902 = vpop.f32.mrb[0].mxu0
      %v1903 = vadd.f32 %v1799, %v1902
      %v1904 = vpop.f32.mrb[0].mxu0
      %1905 = vmatprep.mubr.f32.mxu0 0.0
      %1906 = vmatmul.mubr.f32.gmra.mrb[0].mxu0 %v1754
      %v1907 = vpop.f32.mrb[0].mxu0
      %v1908 = vadd.f32 %v1799, %v1907
      %v1909 = vpop.f32.mrb[0].mxu0
      %1910 = vmatprep.mubr.f32.mxu0 0.0
      %1911 = vmatmul.mubr.f32.gmra.mrb[0].mxu0 %v1755
      %v1912 = vpop.f32.mrb[0].mxu0
      %v1913 = vadd.f32 %v1799, %v1912
      %v1914 = vpop.f32.mrb[0].mxu0
      %1915 = vmatprep.mubr.f32.mxu0 0.0
      %1916 = vmatmul.mubr.f32.gmra.mrb[0].mxu0 %v1756
      %v1917 = vpop.f32.mrb[0].mxu0
      %v1918 = vadd.f32 %v1799, %v1917
      %v1919 = vpop.f32.mrb[0].mxu0
      %1920 = vmatprep.mubr.f32.mxu0 0.0
      %1921 = vmatmul.mubr.f32.gmra.mrb[0].mxu0 %v1757
      %v1922 = vpop.f32.mrb[0].mxu0
      %v1923 = vadd.f32 %v1799, %v1922
      %v1924 = vpop.f32.mrb[0].mxu0
      %1925 = vmatprep.mubr.f32.mxu0 0.0
      %1926 = vmatmul.mubr.f32.gmra.mrb[0].mxu0 %v1758
      %v1927 = vpop.f32.mrb[0].mxu0
      %v1928 = vadd.f32 %v1799, %v1927
      %v1929 = vpop.f32.mrb[0].mxu0
      %1930 = vmatprep.mubr.f32.mxu0 0.0
      %1931 = vmatmul.mubr.f32.gmra.mrb[0].mxu0 %v1759
      %v1932 = vpop.f32.mrb[0].mxu0
      %v1933 = vadd.f32 %v1799, %v1932
      %v1934 = vpop.f32.mrb[0].mxu0
      %1935 = vmatprep.mubr.f32.mxu0 0.0
      %1936 = vmatmul.mubr.f32.gmra.mrb[0].mxu0 %v1760
      %v1937 = vpop.f32.mrb[0].mxu0
      %v1938 = vadd.f32 %v1799, %v1937
      %v1939 = vpop.f32.mrb[0].mxu0
      %1940 = vmatprep.mubr.f32.mxu0 0.0
      %1941 = vmatmul.mubr.f32.gmra.mrb[0].mxu0 %v1761
      %v1942 = vpop.f32.mrb[0].mxu0
      %v1943 = vadd.f32 %v1799, %v1942
      %v1944 = vpop.f32.mrb[0].mxu0
      %1945 = vmatprep.mubr.f32.mxu0 0.0
      %1946 = vmatmul.mubr.f32.gmra.mrb[0].mxu0 %v1762
      %v1947 = vpop.f32.mrb[0].mxu0
      %v1948 = vadd.f32 %v1799, %v1947
      %v1949 = vpop.f32.mrb[0].mxu0
      %1950 = vmatprep.mubr.f32.mxu0 0.0
      %1951 = vmatmul.mubr.f32.gmra.mrb[0].mxu0 %v1763
      %v1952 = vpop.f32.mrb[0].mxu0
      %v1953 = vadd.f32 %v1799, %v1952
      %v1954 = vpop.f32.mrb[0].mxu0
      %1955 = vmatprep.mubr.f32.mxu0 0.0
      %1956 = vmatmul.mubr.f32.gmra.mrb[0].mxu0 %v1764
      %v1957 = vpop.f32.mrb[0].mxu0
      %v1958 = vadd.f32 %v1799, %v1957
      %v1959 = vpop.f32.mrb[0].mxu0
      %1960 = vmatprep.mubr.f32.mxu0 0.0
      %1961 = vmatmul.mubr.f32.gmra.mrb[0].mxu0 %v1765
      %v1962 = vpop.f32.mrb[0].mxu0
      %v1963 = vadd.f32 %v1799, %v1962
      %v1964 = vpop.f32.mrb[0].mxu0
      %1965 = vmatprep.mubr.f32.mxu0 0.0
      %1966 = vmatmul.mubr.f32.gmra.mrb[0].mxu0 %v1766
      %v1967 = vpop.f32.mrb[0].mxu0
      %v1968 = vadd.f32 %v1799, %v1967
      %v1969 = vpop.f32.mrb[0].mxu0
      %1970 = vmatprep.mubr.f32.mxu0 0.0
      %1971 = vmatmul.mubr.f32.gmra.mrb[0].mxu0 %v1767
      %v1972 = vpop.f32.mrb[0].mxu0
      %v1973 = vadd.f32 %v1799, %v1972
      %v1974 = vpop.f32.mrb[0].mxu0
      %1975 = vmatprep.mubr.f32.mxu0 0.0
      %1976 = vmatmul.mubr.f32.gmra.mrb[0].mxu0 %v1768
      %v1977 = vpop.f32.mrb[0].mxu0
      %v1978 = vadd.f32 %v1799, %v1977
      %v1979 = vpop.f32.mrb[0].mxu0
      %1980 = vmatprep.mubr.f32.mxu0 0.0
      %1981 = vmatmul.mubr.f32.gmra.mrb[0].mxu0 %v1769
      %v1982 = vpop.f32.mrb[0].mxu0
      %v1983 = vadd.f32 %v1799, %v1982
      %v1984 = vpop.f32.mrb[0].mxu0
      %1985 = vmatprep.mubr.f32.mxu0 0.0
      %1986 = vmatmul.mubr.f32.gmra.mrb[0].mxu0 %v1770
      %v1987 = vpop.f32.mrb[0].mxu0
      %v1988 = vadd.f32 %v1799, %v1987
      %v1989 = vpop.f32.mrb[0].mxu0
      %1990 = vmatprep.mubr.f32.mxu0 0.0
      %1991 = vmatmul.mubr.f32.gmra.mrb[0].mxu0 %v1771
      %v1992 = vpop.f32.mrb[0].mxu0
      %v1993 = vadd.f32 %v1799, %v1992
      %v1994 = vpop.f32.mrb[0].mxu0
      %1995 = vmatprep.mubr.f32.mxu0 0.0
      %1996 = vmatmul.mubr.f32.gmra.mrb[0].mxu0 %v1772
      %v1997 = vpop.f32.mrb[0].mxu0
      %v1998 = vadd.f32 %v1799, %v1997
      %v1999 = vpop.f32.mrb[0].mxu0
      %2000 = vmatprep.mubr.f32.mxu0 0.0
      %2001 = vmatmul.mubr.f32.gmra.mrb[0].mxu0 %v1773
      %v2002 = vpop.f32.mrb[0].mxu0
      %v2003 = vadd.f32 %v1799, %v2002
      %v2004 = vpop.f32.mrb[0].mxu0
      %2005 = vmatprep.mubr.f32.mxu0 0.0
      %2006 = vmatmul.mubr.f32.gmra.mrb[0].mxu0 %v1774
      %v2007 = vpop.f32.mrb[0].mxu0
      %v2008 = vadd.f32 %v1799, %v2007
      %v2009 = vpop.f32.mrb[0].mxu0
      %2010 = vmatprep.mubr.f32.mxu0 0.0
      %2011 = vmatmul.mubr.f32.gmra.mrb[0].mxu0 %v1775
      %v2012 = vpop.f32.mrb[0].mxu0
      %v2013 = vadd.f32 %v1799, %v2012
      %v2014 = vpop.f32.mrb[0].mxu0
      %2015 = vmatprep.mubr.f32.mxu0 0.0
      %2016 = vmatmul.mubr.f32.gmra.mrb[0].mxu0 %v1776
      %v2017 = vpop.f32.mrb[0].mxu0
      %v2018 = vadd.f32 %v1799, %v2017
      %v2019 = vpop.f32.mrb[0].mxu0
      %2020 = vmatprep.mubr.f32.mxu0 0.0
      %2021 = vmatmul.mubr.f32.gmra.mrb[0].mxu0 %v1777
      %v2022 = vpop.f32.mrb[0].mxu0
      %v2023 = vadd.f32 %v1799, %v2022
      %v2024 = vpop.f32.mrb[0].mxu0
      %2025 = vdwg.mxu0
      %v2026 = vmax.f32 %v1868, 0.0
      %v2027 = vmax.f32 %v1873, 0.0
      %v2028 = vmax.f32 %v1878, 0.0
      %v2029 = vmax.f32 %v1883, 0.0
      %v2030 = vmax.f32 %v1888, 0.0
      %v2031 = vmax.f32 %v1893, 0.0
      %v2032 = vmax.f32 %v1898, 0.0
      %v2033 = vmax.f32 %v1903, 0.0
      %v2034 = vmax.f32 %v1908, 0.0
      %v2035 = vmax.f32 %v1913, 0.0
      %v2036 = vmax.f32 %v1918, 0.0
      %v2037 = vmax.f32 %v1923, 0.0
      %v2038 = vmax.f32 %v1928, 0.0
      %v2039 = vmax.f32 %v1933, 0.0
      %v2040 = vmax.f32 %v1938, 0.0
      %v2041 = vmax.f32 %v1943, 0.0
      %v2042 = vmax.f32 %v1948, 0.0
      %v2043 = vmax.f32 %v1953, 0.0
      %v2044 = vmax.f32 %v1958, 0.0
      %v2045 = vmax.f32 %v1963, 0.0
      %v2046 = vmax.f32 %v1968, 0.0
      %v2047 = vmax.f32 %v1973, 0.0
      %v2048 = vmax.f32 %v1978, 0.0
      %v2049 = vmax.f32 %v1983, 0.0
      %v2050 = vmax.f32 %v1988, 0.0
      %v2051 = vmax.f32 %v1993, 0.0
      %v2052 = vmax.f32 %v1998, 0.0
      %v2053 = vmax.f32 %v2003, 0.0
      %v2054 = vmax.f32 %v2008, 0.0
      %v2055 = vmax.f32 %v2013, 0.0
      %v2056 = vmax.f32 %v2018, 0.0
      %v2057 = vmax.f32 %v2023, 0.0
      %v2058 = vld [vmem:[%s5] sm:$0xff]
      %v2059 = vld [vmem:[%s5 + $0x8] sm:$0xff]
      %v2060 = vld [vmem:[%s5 + $0x10] sm:$0xff]
      %v2061 = vld [vmem:[%s5 + $0x18] sm:$0xff]
      %v2062 = vld [vmem:[%s5 + $0x20] sm:$0xff]
      %v2063 = vld [vmem:[%s5 + $0x28] sm:$0xff]
      %v2064 = vld [vmem:[%s5 + $0x30] sm:$0xff]
      %v2065 = vld [vmem:[%s5 + $0x38] sm:$0xff]
      %v2066 = vld [vmem:[%s6] sm:$0x1]
      %v2068 = vlaneseq
      %v2069 = vshrl.u32 %v2068, 7
      %v2070 = vsub.s32 0, %v2069
      %v2071 = vrot.slane %v2066, %v2070
      %vm2073 = vcmask 523264
      %v2075 = vsel %vm2073, %v2026, 0
      %v2078 = vsel %vm2073, %v2027, 0
      %v2081 = vsel %vm2073, %v2028, 0
      %v2084 = vsel %vm2073, %v2029, 0
      %v2087 = vsel %vm2073, %v2030, 0
      %v2090 = vsel %vm2073, %v2031, 0
      %v2093 = vsel %vm2073, %v2032, 0
      %v2096 = vsel %vm2073, %v2033, 0
      %v2099 = vsel %vm2073, %v2034, 0
      %v2102 = vsel %vm2073, %v2035, 0
      %v2105 = vsel %vm2073, %v2036, 0
      %v2108 = vsel %vm2073, %v2037, 0
      %v2111 = vsel %vm2073, %v2038, 0
      %v2114 = vsel %vm2073, %v2039, 0
      %v2117 = vsel %vm2073, %v2040, 0
      %v2120 = vsel %vm2073, %v2041, 0
      %v2123 = vsel %vm2073, %v2042, 0
      %v2126 = vsel %vm2073, %v2043, 0
      %v2129 = vsel %vm2073, %v2044, 0
      %v2132 = vsel %vm2073, %v2045, 0
      %v2135 = vsel %vm2073, %v2046, 0
      %v2138 = vsel %vm2073, %v2047, 0
      %v2141 = vsel %vm2073, %v2048, 0
      %v2144 = vsel %vm2073, %v2049, 0
      %v2147 = vsel %vm2073, %v2050, 0
      %v2150 = vsel %vm2073, %v2051, 0
      %v2153 = vsel %vm2073, %v2052, 0
      %v2156 = vsel %vm2073, %v2053, 0
      %v2159 = vsel %vm2073, %v2054, 0
      %v2162 = vsel %vm2073, %v2055, 0
      %v2165 = vsel %vm2073, %v2056, 0
      %v2168 = vsel %vm2073, %v2057, 0
      %2170 = vmatprep.subr.mxu0 0.0
      %2171 = vmatpush1.msra.mxu0 %v2058
      %2172 = vmatprep.subr.mxu0 0.0
      %2173 = vmatpush1.msra.mxu0 %v2059
      %2174 = vmatprep.subr.mxu0 0.0
      %2175 = vmatpush1.msra.mxu0 %v2060
      %2176 = vmatprep.subr.mxu0 0.0
      %2177 = vmatpush1.msra.mxu0 %v2061
      %2178 = vmatprep.subr.mxu0 0.0
      %2179 = vmatpush1.msra.mxu0 %v2062
      %2180 = vmatprep.subr.mxu0 0.0
      %2181 = vmatpush1.msra.mxu0 %v2063
      %2182 = vmatprep.subr.mxu0 0.0
      %2183 = vmatpush1.msra.mxu0 %v2064
      %2184 = vmatprep.subr.mxu0 0.0
      %2185 = vmatpush1.msra.mxu0 %v2065
      %2186 = vmatprep.subr.mxu0 0.0
      %2187 = vmatpush1.msra.mxu0 0.0
      %2188 = vmatprep.subr.mxu0 0.0
      %2189 = vmatpush1.msra.mxu0 0.0
      %2190 = vmatprep.subr.mxu0 0.0
      %2191 = vmatpush1.msra.mxu0 0.0
      %2192 = vmatprep.subr.mxu0 0.0
      %2193 = vmatpush1.msra.mxu0 0.0
      %2194 = vmatprep.subr.mxu0 0.0
      %2195 = vmatpush1.msra.mxu0 0.0
      %2196 = vmatprep.subr.mxu0 0.0
      %2197 = vmatpush1.msra.mxu0 0.0
      %2198 = vmatprep.subr.mxu0 0.0
      %2199 = vmatpush1.msra.mxu0 0.0
      %2200 = vmatprep.subr.mxu0 0.0
      %2201 = vmatpush1.msra.mxu0 0.0
      %2202 = vmatprep.subr.mxu0 0.0
      %2203 = vmatpush1.msra.mxu0 0.0
      %2204 = vmatprep.subr.mxu0 0.0
      %2205 = vmatpush1.msra.mxu0 0.0
      %2206 = vmatprep.subr.mxu0 0.0
      %2207 = vmatpush1.msra.mxu0 0.0
      %2208 = vmatprep.subr.mxu0 0.0
      %2209 = vmatpush1.msra.mxu0 0.0
      %2210 = vmatprep.subr.mxu0 0.0
      %2211 = vmatpush1.msra.mxu0 0.0
      %2212 = vmatprep.subr.mxu0 0.0
      %2213 = vmatpush1.msra.mxu0 0.0
      %2214 = vmatprep.subr.mxu0 0.0
      %2215 = vmatpush1.msra.mxu0 0.0
      %2216 = vmatprep.subr.mxu0 0.0
      %2217 = vmatpush1.msra.mxu0 0.0
      %2218 = vmatprep.subr.mxu0 0.0
      %2219 = vmatpush1.msra.mxu0 0.0
      %2220 = vmatprep.subr.mxu0 0.0
      %2221 = vmatpush1.msra.mxu0 0.0
      %2222 = vmatprep.subr.mxu0 0.0
      %2223 = vmatpush1.msra.mxu0 0.0
      %2224 = vmatprep.subr.mxu0 0.0
      %2225 = vmatpush1.msra.mxu0 0.0
      %2226 = vmatprep.subr.mxu0 0.0
      %2227 = vmatpush1.msra.mxu0 0.0
      %2228 = vmatprep.subr.mxu0 0.0
      %2229 = vmatpush1.msra.mxu0 0.0
      %2230 = vmatprep.subr.mxu0 0.0
      %2231 = vmatpush1.msra.mxu0 0.0
      %2232 = vmatprep.subr.mxu0 0.0
      %2233 = vmatpush1.msra.mxu0 0.0
      %2234 = vmatprep.mubr.f32.mxu0 0.0
      %2235 = vmatmul.mubr.f32.gmra.mrb[0].mxu0 %v2075
      %v2236 = vpop.f32.mrb[0].mxu0
      %v2237 = vadd.f32 %v2071, %v2236
      %v2238 = vpop.f32.mrb[0].mxu0
      %2239 = vmatprep.mubr.f32.mxu0 0.0
      %2240 = vmatmul.mubr.f32.gmra.mrb[0].mxu0 %v2078
      %v2241 = vpop.f32.mrb[0].mxu0
      %v2242 = vadd.f32 %v2071, %v2241
      %v2243 = vpop.f32.mrb[0].mxu0
      %2244 = vmatprep.mubr.f32.mxu0 0.0
      %2245 = vmatmul.mubr.f32.gmra.mrb[0].mxu0 %v2081
      %v2246 = vpop.f32.mrb[0].mxu0
      %v2247 = vadd.f32 %v2071, %v2246
      %v2248 = vpop.f32.mrb[0].mxu0
      %2249 = vmatprep.mubr.f32.mxu0 0.0
      %2250 = vmatmul.mubr.f32.gmra.mrb[0].mxu0 %v2084
      %v2251 = vpop.f32.mrb[0].mxu0
      %v2252 = vadd.f32 %v2071, %v2251
      %v2253 = vpop.f32.mrb[0].mxu0
      %2254 = vmatprep.mubr.f32.mxu0 0.0
      %2255 = vmatmul.mubr.f32.gmra.mrb[0].mxu0 %v2087
      %v2256 = vpop.f32.mrb[0].mxu0
      %v2257 = vadd.f32 %v2071, %v2256
      %v2258 = vpop.f32.mrb[0].mxu0
      %2259 = vmatprep.mubr.f32.mxu0 0.0
      %2260 = vmatmul.mubr.f32.gmra.mrb[0].mxu0 %v2090
      %v2261 = vpop.f32.mrb[0].mxu0
      %v2262 = vadd.f32 %v2071, %v2261
      %v2263 = vpop.f32.mrb[0].mxu0
      %2264 = vmatprep.mubr.f32.mxu0 0.0
      %2265 = vmatmul.mubr.f32.gmra.mrb[0].mxu0 %v2093
      %v2266 = vpop.f32.mrb[0].mxu0
      %v2267 = vadd.f32 %v2071, %v2266
      %v2268 = vpop.f32.mrb[0].mxu0
      %2269 = vmatprep.mubr.f32.mxu0 0.0
      %2270 = vmatmul.mubr.f32.gmra.mrb[0].mxu0 %v2096
      %v2271 = vpop.f32.mrb[0].mxu0
      %v2272 = vadd.f32 %v2071, %v2271
      %v2273 = vpop.f32.mrb[0].mxu0
      %2274 = vmatprep.mubr.f32.mxu0 0.0
      %2275 = vmatmul.mubr.f32.gmra.mrb[0].mxu0 %v2099
      %v2276 = vpop.f32.mrb[0].mxu0
      %v2277 = vadd.f32 %v2071, %v2276
      %v2278 = vpop.f32.mrb[0].mxu0
      %2279 = vmatprep.mubr.f32.mxu0 0.0
      %2280 = vmatmul.mubr.f32.gmra.mrb[0].mxu0 %v2102
      %v2281 = vpop.f32.mrb[0].mxu0
      %v2282 = vadd.f32 %v2071, %v2281
      %v2283 = vpop.f32.mrb[0].mxu0
      %2284 = vmatprep.mubr.f32.mxu0 0.0
      %2285 = vmatmul.mubr.f32.gmra.mrb[0].mxu0 %v2105
      %v2286 = vpop.f32.mrb[0].mxu0
      %v2287 = vadd.f32 %v2071, %v2286
      %v2288 = vpop.f32.mrb[0].mxu0
      %2289 = vmatprep.mubr.f32.mxu0 0.0
      %2290 = vmatmul.mubr.f32.gmra.mrb[0].mxu0 %v2108
      %v2291 = vpop.f32.mrb[0].mxu0
      %v2292 = vadd.f32 %v2071, %v2291
      %v2293 = vpop.f32.mrb[0].mxu0
      %2294 = vmatprep.mubr.f32.mxu0 0.0
      %2295 = vmatmul.mubr.f32.gmra.mrb[0].mxu0 %v2111
      %v2296 = vpop.f32.mrb[0].mxu0
      %v2297 = vadd.f32 %v2071, %v2296
      %v2298 = vpop.f32.mrb[0].mxu0
      %2299 = vmatprep.mubr.f32.mxu0 0.0
      %2300 = vmatmul.mubr.f32.gmra.mrb[0].mxu0 %v2114
      %v2301 = vpop.f32.mrb[0].mxu0
      %v2302 = vadd.f32 %v2071, %v2301
      %v2303 = vpop.f32.mrb[0].mxu0
      %2304 = vmatprep.mubr.f32.mxu0 0.0
      %2305 = vmatmul.mubr.f32.gmra.mrb[0].mxu0 %v2117
      %v2306 = vpop.f32.mrb[0].mxu0
      %v2307 = vadd.f32 %v2071, %v2306
      %v2308 = vpop.f32.mrb[0].mxu0
      %2309 = vmatprep.mubr.f32.mxu0 0.0
      %2310 = vmatmul.mubr.f32.gmra.mrb[0].mxu0 %v2120
      %v2311 = vpop.f32.mrb[0].mxu0
      %v2312 = vadd.f32 %v2071, %v2311
      %v2313 = vpop.f32.mrb[0].mxu0
      %2314 = vmatprep.mubr.f32.mxu0 0.0
      %2315 = vmatmul.mubr.f32.gmra.mrb[0].mxu0 %v2123
      %v2316 = vpop.f32.mrb[0].mxu0
      %v2317 = vadd.f32 %v2071, %v2316
      %v2318 = vpop.f32.mrb[0].mxu0
      %2319 = vmatprep.mubr.f32.mxu0 0.0
      %2320 = vmatmul.mubr.f32.gmra.mrb[0].mxu0 %v2126
      %v2321 = vpop.f32.mrb[0].mxu0
      %v2322 = vadd.f32 %v2071, %v2321
      %v2323 = vpop.f32.mrb[0].mxu0
      %2324 = vmatprep.mubr.f32.mxu0 0.0
      %2325 = vmatmul.mubr.f32.gmra.mrb[0].mxu0 %v2129
      %v2326 = vpop.f32.mrb[0].mxu0
      %v2327 = vadd.f32 %v2071, %v2326
      %v2328 = vpop.f32.mrb[0].mxu0
      %2329 = vmatprep.mubr.f32.mxu0 0.0
      %2330 = vmatmul.mubr.f32.gmra.mrb[0].mxu0 %v2132
      %v2331 = vpop.f32.mrb[0].mxu0
      %v2332 = vadd.f32 %v2071, %v2331
      %v2333 = vpop.f32.mrb[0].mxu0
      %2334 = vmatprep.mubr.f32.mxu0 0.0
      %2335 = vmatmul.mubr.f32.gmra.mrb[0].mxu0 %v2135
      %v2336 = vpop.f32.mrb[0].mxu0
      %v2337 = vadd.f32 %v2071, %v2336
      %v2338 = vpop.f32.mrb[0].mxu0
      %2339 = vmatprep.mubr.f32.mxu0 0.0
      %2340 = vmatmul.mubr.f32.gmra.mrb[0].mxu0 %v2138
      %v2341 = vpop.f32.mrb[0].mxu0
      %v2342 = vadd.f32 %v2071, %v2341
      %v2343 = vpop.f32.mrb[0].mxu0
      %2344 = vmatprep.mubr.f32.mxu0 0.0
      %2345 = vmatmul.mubr.f32.gmra.mrb[0].mxu0 %v2141
      %v2346 = vpop.f32.mrb[0].mxu0
      %v2347 = vadd.f32 %v2071, %v2346
      %v2348 = vpop.f32.mrb[0].mxu0
      %2349 = vmatprep.mubr.f32.mxu0 0.0
      %2350 = vmatmul.mubr.f32.gmra.mrb[0].mxu0 %v2144
      %v2351 = vpop.f32.mrb[0].mxu0
      %v2352 = vadd.f32 %v2071, %v2351
      %v2353 = vpop.f32.mrb[0].mxu0
      %2354 = vmatprep.mubr.f32.mxu0 0.0
      %2355 = vmatmul.mubr.f32.gmra.mrb[0].mxu0 %v2147
      %v2356 = vpop.f32.mrb[0].mxu0
      %v2357 = vadd.f32 %v2071, %v2356
      %v2358 = vpop.f32.mrb[0].mxu0
      %2359 = vmatprep.mubr.f32.mxu0 0.0
      %2360 = vmatmul.mubr.f32.gmra.mrb[0].mxu0 %v2150
      %v2361 = vpop.f32.mrb[0].mxu0
      %v2362 = vadd.f32 %v2071, %v2361
      %v2363 = vpop.f32.mrb[0].mxu0
      %2364 = vmatprep.mubr.f32.mxu0 0.0
      %2365 = vmatmul.mubr.f32.gmra.mrb[0].mxu0 %v2153
      %v2366 = vpop.f32.mrb[0].mxu0
      %v2367 = vadd.f32 %v2071, %v2366
      %v2368 = vpop.f32.mrb[0].mxu0
      %2369 = vmatprep.mubr.f32.mxu0 0.0
      %2370 = vmatmul.mubr.f32.gmra.mrb[0].mxu0 %v2156
      %v2371 = vpop.f32.mrb[0].mxu0
      %v2372 = vadd.f32 %v2071, %v2371
      %v2373 = vpop.f32.mrb[0].mxu0
      %2374 = vmatprep.mubr.f32.mxu0 0.0
      %2375 = vmatmul.mubr.f32.gmra.mrb[0].mxu0 %v2159
      %v2376 = vpop.f32.mrb[0].mxu0
      %v2377 = vadd.f32 %v2071, %v2376
      %v2378 = vpop.f32.mrb[0].mxu0
      %2379 = vmatprep.mubr.f32.mxu0 0.0
      %2380 = vmatmul.mubr.f32.gmra.mrb[0].mxu0 %v2162
      %v2381 = vpop.f32.mrb[0].mxu0
      %v2382 = vadd.f32 %v2071, %v2381
      %v2383 = vpop.f32.mrb[0].mxu0
      %2384 = vmatprep.mubr.f32.mxu0 0.0
      %2385 = vmatmul.mubr.f32.gmra.mrb[0].mxu0 %v2165
      %v2386 = vpop.f32.mrb[0].mxu0
      %v2387 = vadd.f32 %v2071, %v2386
      %v2388 = vpop.f32.mrb[0].mxu0
      %2389 = vmatprep.mubr.f32.mxu0 0.0
      %2390 = vmatmul.mubr.f32.gmra.mrb[0].mxu0 %v2168
      %v2391 = vpop.f32.mrb[0].mxu0
      %v2392 = vadd.f32 %v2071, %v2391
      %v2393 = vpop.f32.mrb[0].mxu0
      %2394 = vdwg.mxu0
      %v2395 = vmax.f32 %v2237, 0.0
      %v2396 = vmax.f32 %v2242, 0.0
      %v2397 = vmax.f32 %v2247, 0.0
      %v2398 = vmax.f32 %v2252, 0.0
      %v2399 = vmax.f32 %v2257, 0.0
      %v2400 = vmax.f32 %v2262, 0.0
      %v2401 = vmax.f32 %v2267, 0.0
      %v2402 = vmax.f32 %v2272, 0.0
      %v2403 = vmax.f32 %v2277, 0.0
      %v2404 = vmax.f32 %v2282, 0.0
      %v2405 = vmax.f32 %v2287, 0.0
      %v2406 = vmax.f32 %v2292, 0.0
      %v2407 = vmax.f32 %v2297, 0.0
      %v2408 = vmax.f32 %v2302, 0.0
      %v2409 = vmax.f32 %v2307, 0.0
      %v2410 = vmax.f32 %v2312, 0.0
      %v2411 = vmax.f32 %v2317, 0.0
      %v2412 = vmax.f32 %v2322, 0.0
      %v2413 = vmax.f32 %v2327, 0.0
      %v2414 = vmax.f32 %v2332, 0.0
      %v2415 = vmax.f32 %v2337, 0.0
      %v2416 = vmax.f32 %v2342, 0.0
      %v2417 = vmax.f32 %v2347, 0.0
      %v2418 = vmax.f32 %v2352, 0.0
      %v2419 = vmax.f32 %v2357, 0.0
      %v2420 = vmax.f32 %v2362, 0.0
      %v2421 = vmax.f32 %v2367, 0.0
      %v2422 = vmax.f32 %v2372, 0.0
      %v2423 = vmax.f32 %v2377, 0.0
      %v2424 = vmax.f32 %v2382, 0.0
      %v2425 = vmax.f32 %v2387, 0.0
      %v2426 = vmax.f32 %v2392, 0.0
      %v2427 = vld [vmem:[%s7] sm:$0xff]
      %v2428 = vld [vmem:[%s7 + $0x8] sm:$0xf]
      %v2429 = vld [vmem:[%s8] sm:$0x1]
      %v2431 = vlaneseq
      %v2432 = vshrl.u32 %v2431, 7
      %v2433 = vsub.s32 0, %v2432
      %v2434 = vrot.slane %v2429, %v2433
      %vm2436 = vcmask 97280
      %v2438 = vsel %vm2436, %v2395, 0
      %v2441 = vsel %vm2436, %v2396, 0
      %v2444 = vsel %vm2436, %v2397, 0
      %v2447 = vsel %vm2436, %v2398, 0
      %v2450 = vsel %vm2436, %v2399, 0
      %v2453 = vsel %vm2436, %v2400, 0
      %v2456 = vsel %vm2436, %v2401, 0
      %v2459 = vsel %vm2436, %v2402, 0
      %v2462 = vsel %vm2436, %v2403, 0
      %v2465 = vsel %vm2436, %v2404, 0
      %v2468 = vsel %vm2436, %v2405, 0
      %v2471 = vsel %vm2436, %v2406, 0
      %v2474 = vsel %vm2436, %v2407, 0
      %v2477 = vsel %vm2436, %v2408, 0
      %v2480 = vsel %vm2436, %v2409, 0
      %v2483 = vsel %vm2436, %v2410, 0
      %v2486 = vsel %vm2436, %v2411, 0
      %v2489 = vsel %vm2436, %v2412, 0
      %v2492 = vsel %vm2436, %v2413, 0
      %v2495 = vsel %vm2436, %v2414, 0
      %v2498 = vsel %vm2436, %v2415, 0
      %v2501 = vsel %vm2436, %v2416, 0
      %v2504 = vsel %vm2436, %v2417, 0
      %v2507 = vsel %vm2436, %v2418, 0
      %v2510 = vsel %vm2436, %v2419, 0
      %v2513 = vsel %vm2436, %v2420, 0
      %v2516 = vsel %vm2436, %v2421, 0
      %v2519 = vsel %vm2436, %v2422, 0
      %v2522 = vsel %vm2436, %v2423, 0
      %v2525 = vsel %vm2436, %v2424, 0
      %v2528 = vsel %vm2436, %v2425, 0
      %v2531 = vsel %vm2436, %v2426, 0
      %vm2533 = vcmask 1043456
      %v2535 = vsel %vm2533, %v2428, 0
      %2537 = vmatprep.subr.mxu0 0.0
      %2538 = vmatpush1.msra.mxu0 %v2427
      %2539 = vmatprep.subr.mxu0 0.0
      %2540 = vmatpush1.msra.mxu0 %v2535
      %2541 = vmatprep.subr.mxu0 0.0
      %2542 = vmatpush1.msra.mxu0 0.0
      %2543 = vmatprep.subr.mxu0 0.0
      %2544 = vmatpush1.msra.mxu0 0.0
      %2545 = vmatprep.subr.mxu0 0.0
      %2546 = vmatpush1.msra.mxu0 0.0
      %2547 = vmatprep.subr.mxu0 0.0
      %2548 = vmatpush1.msra.mxu0 0.0
      %2549 = vmatprep.subr.mxu0 0.0
      %2550 = vmatpush1.msra.mxu0 0.0
      %2551 = vmatprep.subr.mxu0 0.0
      %2552 = vmatpush1.msra.mxu0 0.0
      %2553 = vmatprep.subr.mxu0 0.0
      %2554 = vmatpush1.msra.mxu0 0.0
      %2555 = vmatprep.subr.mxu0 0.0
      %2556 = vmatpush1.msra.mxu0 0.0
      %2557 = vmatprep.subr.mxu0 0.0
      %2558 = vmatpush1.msra.mxu0 0.0
      %2559 = vmatprep.subr.mxu0 0.0
      %2560 = vmatpush1.msra.mxu0 0.0
      %2561 = vmatprep.subr.mxu0 0.0
      %2562 = vmatpush1.msra.mxu0 0.0
      %2563 = vmatprep.subr.mxu0 0.0
      %2564 = vmatpush1.msra.mxu0 0.0
      %2565 = vmatprep.subr.mxu0 0.0
      %2566 = vmatpush1.msra.mxu0 0.0
      %2567 = vmatprep.subr.mxu0 0.0
      %2568 = vmatpush1.msra.mxu0 0.0
      %2569 = vmatprep.subr.mxu0 0.0
      %2570 = vmatpush1.msra.mxu0 0.0
      %2571 = vmatprep.subr.mxu0 0.0
      %2572 = vmatpush1.msra.mxu0 0.0
      %2573 = vmatprep.subr.mxu0 0.0
      %2574 = vmatpush1.msra.mxu0 0.0
      %2575 = vmatprep.subr.mxu0 0.0
      %2576 = vmatpush1.msra.mxu0 0.0
      %2577 = vmatprep.subr.mxu0 0.0
      %2578 = vmatpush1.msra.mxu0 0.0
      %2579 = vmatprep.subr.mxu0 0.0
      %2580 = vmatpush1.msra.mxu0 0.0
      %2581 = vmatprep.subr.mxu0 0.0
      %2582 = vmatpush1.msra.mxu0 0.0
      %2583 = vmatprep.subr.mxu0 0.0
      %2584 = vmatpush1.msra.mxu0 0.0
      %2585 = vmatprep.subr.mxu0 0.0
      %2586 = vmatpush1.msra.mxu0 0.0
      %2587 = vmatprep.subr.mxu0 0.0
      %2588 = vmatpush1.msra.mxu0 0.0
      %2589 = vmatprep.subr.mxu0 0.0
      %2590 = vmatpush1.msra.mxu0 0.0
      %2591 = vmatprep.subr.mxu0 0.0
      %2592 = vmatpush1.msra.mxu0 0.0
      %2593 = vmatprep.subr.mxu0 0.0
      %2594 = vmatpush1.msra.mxu0 0.0
      %2595 = vmatprep.subr.mxu0 0.0
      %2596 = vmatpush1.msra.mxu0 0.0
      %2597 = vmatprep.subr.mxu0 0.0
      %2598 = vmatpush1.msra.mxu0 0.0
      %2599 = vmatprep.subr.mxu0 0.0
      %2600 = vmatpush1.msra.mxu0 0.0
      %2601 = vmatprep.mubr.f32.mxu0 0.0
      %2602 = vmatmul.mubr.f32.gmra.mrb[0].mxu0 %v2438
      %v2603 = vpop.f32.mrb[0].mxu0
      %v2604 = vadd.f32 %v2434, %v2603
      %v2605 = vpop.f32.mrb[0].mxu0
      %2606 = vmatprep.mubr.f32.mxu0 0.0
      %2607 = vmatmul.mubr.f32.gmra.mrb[0].mxu0 %v2441
      %v2608 = vpop.f32.mrb[0].mxu0
      %v2609 = vadd.f32 %v2434, %v2608
      %v2610 = vpop.f32.mrb[0].mxu0
      %2611 = vmatprep.mubr.f32.mxu0 0.0
      %2612 = vmatmul.mubr.f32.gmra.mrb[0].mxu0 %v2444
      %v2613 = vpop.f32.mrb[0].mxu0
      %v2614 = vadd.f32 %v2434, %v2613
      %v2615 = vpop.f32.mrb[0].mxu0
      %2616 = vmatprep.mubr.f32.mxu0 0.0
      %2617 = vmatmul.mubr.f32.gmra.mrb[0].mxu0 %v2447
      %v2618 = vpop.f32.mrb[0].mxu0
      %v2619 = vadd.f32 %v2434, %v2618
      %v2620 = vpop.f32.mrb[0].mxu0
      %2621 = vmatprep.mubr.f32.mxu0 0.0
      %2622 = vmatmul.mubr.f32.gmra.mrb[0].mxu0 %v2450
      %v2623 = vpop.f32.mrb[0].mxu0
      %v2624 = vadd.f32 %v2434, %v2623
      %v2625 = vpop.f32.mrb[0].mxu0
      %2626 = vmatprep.mubr.f32.mxu0 0.0
      %2627 = vmatmul.mubr.f32.gmra.mrb[0].mxu0 %v2453
      %v2628 = vpop.f32.mrb[0].mxu0
      %v2629 = vadd.f32 %v2434, %v2628
      %v2630 = vpop.f32.mrb[0].mxu0
      %2631 = vmatprep.mubr.f32.mxu0 0.0
      %2632 = vmatmul.mubr.f32.gmra.mrb[0].mxu0 %v2456
      %v2633 = vpop.f32.mrb[0].mxu0
      %v2634 = vadd.f32 %v2434, %v2633
      %v2635 = vpop.f32.mrb[0].mxu0
      %2636 = vmatprep.mubr.f32.mxu0 0.0
      %2637 = vmatmul.mubr.f32.gmra.mrb[0].mxu0 %v2459
      %v2638 = vpop.f32.mrb[0].mxu0
      %v2639 = vadd.f32 %v2434, %v2638
      %v2640 = vpop.f32.mrb[0].mxu0
      %2641 = vmatprep.mubr.f32.mxu0 0.0
      %2642 = vmatmul.mubr.f32.gmra.mrb[0].mxu0 %v2462
      %v2643 = vpop.f32.mrb[0].mxu0
      %v2644 = vadd.f32 %v2434, %v2643
      %v2645 = vpop.f32.mrb[0].mxu0
      %2646 = vmatprep.mubr.f32.mxu0 0.0
      %2647 = vmatmul.mubr.f32.gmra.mrb[0].mxu0 %v2465
      %v2648 = vpop.f32.mrb[0].mxu0
      %v2649 = vadd.f32 %v2434, %v2648
      %v2650 = vpop.f32.mrb[0].mxu0
      %2651 = vmatprep.mubr.f32.mxu0 0.0
      %2652 = vmatmul.mubr.f32.gmra.mrb[0].mxu0 %v2468
      %v2653 = vpop.f32.mrb[0].mxu0
      %v2654 = vadd.f32 %v2434, %v2653
      %v2655 = vpop.f32.mrb[0].mxu0
      %2656 = vmatprep.mubr.f32.mxu0 0.0
      %2657 = vmatmul.mubr.f32.gmra.mrb[0].mxu0 %v2471
      %v2658 = vpop.f32.mrb[0].mxu0
      %v2659 = vadd.f32 %v2434, %v2658
      %v2660 = vpop.f32.mrb[0].mxu0
      %2661 = vmatprep.mubr.f32.mxu0 0.0
      %2662 = vmatmul.mubr.f32.gmra.mrb[0].mxu0 %v2474
      %v2663 = vpop.f32.mrb[0].mxu0
      %v2664 = vadd.f32 %v2434, %v2663
      %v2665 = vpop.f32.mrb[0].mxu0
      %2666 = vmatprep.mubr.f32.mxu0 0.0
      %2667 = vmatmul.mubr.f32.gmra.mrb[0].mxu0 %v2477
      %v2668 = vpop.f32.mrb[0].mxu0
      %v2669 = vadd.f32 %v2434, %v2668
      %v2670 = vpop.f32.mrb[0].mxu0
      %2671 = vmatprep.mubr.f32.mxu0 0.0
      %2672 = vmatmul.mubr.f32.gmra.mrb[0].mxu0 %v2480
      %v2673 = vpop.f32.mrb[0].mxu0
      %v2674 = vadd.f32 %v2434, %v2673
      %v2675 = vpop.f32.mrb[0].mxu0
      %2676 = vmatprep.mubr.f32.mxu0 0.0
      %2677 = vmatmul.mubr.f32.gmra.mrb[0].mxu0 %v2483
      %v2678 = vpop.f32.mrb[0].mxu0
      %v2679 = vadd.f32 %v2434, %v2678
      %v2680 = vpop.f32.mrb[0].mxu0
      %2681 = vmatprep.mubr.f32.mxu0 0.0
      %2682 = vmatmul.mubr.f32.gmra.mrb[0].mxu0 %v2486
      %v2683 = vpop.f32.mrb[0].mxu0
      %v2684 = vadd.f32 %v2434, %v2683
      %v2685 = vpop.f32.mrb[0].mxu0
      %2686 = vmatprep.mubr.f32.mxu0 0.0
      %2687 = vmatmul.mubr.f32.gmra.mrb[0].mxu0 %v2489
      %v2688 = vpop.f32.mrb[0].mxu0
      %v2689 = vadd.f32 %v2434, %v2688
      %v2690 = vpop.f32.mrb[0].mxu0
      %2691 = vmatprep.mubr.f32.mxu0 0.0
      %2692 = vmatmul.mubr.f32.gmra.mrb[0].mxu0 %v2492
      %v2693 = vpop.f32.mrb[0].mxu0
      %v2694 = vadd.f32 %v2434, %v2693
      %v2695 = vpop.f32.mrb[0].mxu0
      %2696 = vmatprep.mubr.f32.mxu0 0.0
      %2697 = vmatmul.mubr.f32.gmra.mrb[0].mxu0 %v2495
      %v2698 = vpop.f32.mrb[0].mxu0
      %v2699 = vadd.f32 %v2434, %v2698
      %v2700 = vpop.f32.mrb[0].mxu0
      %2701 = vmatprep.mubr.f32.mxu0 0.0
      %2702 = vmatmul.mubr.f32.gmra.mrb[0].mxu0 %v2498
      %v2703 = vpop.f32.mrb[0].mxu0
      %v2704 = vadd.f32 %v2434, %v2703
      %v2705 = vpop.f32.mrb[0].mxu0
      %2706 = vmatprep.mubr.f32.mxu0 0.0
      %2707 = vmatmul.mubr.f32.gmra.mrb[0].mxu0 %v2501
      %v2708 = vpop.f32.mrb[0].mxu0
      %v2709 = vadd.f32 %v2434, %v2708
      %v2710 = vpop.f32.mrb[0].mxu0
      %2711 = vmatprep.mubr.f32.mxu0 0.0
      %2712 = vmatmul.mubr.f32.gmra.mrb[0].mxu0 %v2504
      %v2713 = vpop.f32.mrb[0].mxu0
      %v2714 = vadd.f32 %v2434, %v2713
      %v2715 = vpop.f32.mrb[0].mxu0
      %2716 = vmatprep.mubr.f32.mxu0 0.0
      %2717 = vmatmul.mubr.f32.gmra.mrb[0].mxu0 %v2507
      %v2718 = vpop.f32.mrb[0].mxu0
      %v2719 = vadd.f32 %v2434, %v2718
      %v2720 = vpop.f32.mrb[0].mxu0
      %2721 = vmatprep.mubr.f32.mxu0 0.0
      %2722 = vmatmul.mubr.f32.gmra.mrb[0].mxu0 %v2510
      %v2723 = vpop.f32.mrb[0].mxu0
      %v2724 = vadd.f32 %v2434, %v2723
      %v2725 = vpop.f32.mrb[0].mxu0
      %2726 = vmatprep.mubr.f32.mxu0 0.0
      %2727 = vmatmul.mubr.f32.gmra.mrb[0].mxu0 %v2513
      %v2728 = vpop.f32.mrb[0].mxu0
      %v2729 = vadd.f32 %v2434, %v2728
      %v2730 = vpop.f32.mrb[0].mxu0
      %2731 = vmatprep.mubr.f32.mxu0 0.0
      %2732 = vmatmul.mubr.f32.gmra.mrb[0].mxu0 %v2516
      %v2733 = vpop.f32.mrb[0].mxu0
      %v2734 = vadd.f32 %v2434, %v2733
      %v2735 = vpop.f32.mrb[0].mxu0
      %2736 = vmatprep.mubr.f32.mxu0 0.0
      %2737 = vmatmul.mubr.f32.gmra.mrb[0].mxu0 %v2519
      %v2738 = vpop.f32.mrb[0].mxu0
      %v2739 = vadd.f32 %v2434, %v2738
      %v2740 = vpop.f32.mrb[0].mxu0
      %2741 = vmatprep.mubr.f32.mxu0 0.0
      %2742 = vmatmul.mubr.f32.gmra.mrb[0].mxu0 %v2522
      %v2743 = vpop.f32.mrb[0].mxu0
      %v2744 = vadd.f32 %v2434, %v2743
      %v2745 = vpop.f32.mrb[0].mxu0
      %2746 = vmatprep.mubr.f32.mxu0 0.0
      %2747 = vmatmul.mubr.f32.gmra.mrb[0].mxu0 %v2525
      %v2748 = vpop.f32.mrb[0].mxu0
      %v2749 = vadd.f32 %v2434, %v2748
      %v2750 = vpop.f32.mrb[0].mxu0
      %2751 = vmatprep.mubr.f32.mxu0 0.0
      %2752 = vmatmul.mubr.f32.gmra.mrb[0].mxu0 %v2528
      %v2753 = vpop.f32.mrb[0].mxu0
      %v2754 = vadd.f32 %v2434, %v2753
      %v2755 = vpop.f32.mrb[0].mxu0
      %2756 = vmatprep.mubr.f32.mxu0 0.0
      %2757 = vmatmul.mubr.f32.gmra.mrb[0].mxu0 %v2531
      %v2758 = vpop.f32.mrb[0].mxu0
      %v2759 = vadd.f32 %v2434, %v2758
      %v2760 = vpop.f32.mrb[0].mxu0
      %2761 = vdwg.mxu0
      %v2762 = vmax.f32 %v2604, 0.0
      %v2763 = vmax.f32 %v2609, 0.0
      %v2764 = vmax.f32 %v2614, 0.0
      %v2765 = vmax.f32 %v2619, 0.0
      %v2766 = vmax.f32 %v2624, 0.0
      %v2767 = vmax.f32 %v2629, 0.0
      %v2768 = vmax.f32 %v2634, 0.0
      %v2769 = vmax.f32 %v2639, 0.0
      %v2770 = vmax.f32 %v2644, 0.0
      %v2771 = vmax.f32 %v2649, 0.0
      %v2772 = vmax.f32 %v2654, 0.0
      %v2773 = vmax.f32 %v2659, 0.0
      %v2774 = vmax.f32 %v2664, 0.0
      %v2775 = vmax.f32 %v2669, 0.0
      %v2776 = vmax.f32 %v2674, 0.0
      %v2777 = vmax.f32 %v2679, 0.0
      %v2778 = vmax.f32 %v2684, 0.0
      %v2779 = vmax.f32 %v2689, 0.0
      %v2780 = vmax.f32 %v2694, 0.0
      %v2781 = vmax.f32 %v2699, 0.0
      %v2782 = vmax.f32 %v2704, 0.0
      %v2783 = vmax.f32 %v2709, 0.0
      %v2784 = vmax.f32 %v2714, 0.0
      %v2785 = vmax.f32 %v2719, 0.0
      %v2786 = vmax.f32 %v2724, 0.0
      %v2787 = vmax.f32 %v2729, 0.0
      %v2788 = vmax.f32 %v2734, 0.0
      %v2789 = vmax.f32 %v2739, 0.0
      %v2790 = vmax.f32 %v2744, 0.0
      %v2791 = vmax.f32 %v2749, 0.0
      %v2792 = vmax.f32 %v2754, 0.0
      %v2793 = vmax.f32 %v2759, 0.0
      %v2794 = vld [vmem:[%s9] sm:$0xff]
      %v2795 = vld [vmem:[%s9 + $0x8] sm:$0xf]
      %v2796 = vld [vmem:[%s10] sm:$0x1]
      %v2798 = vlaneseq
      %v2799 = vshrl.u32 %v2798, 7
      %v2800 = vsub.s32 0, %v2799
      %v2801 = vrot.slane %v2796, %v2800
      %v2804 = vsel %vm2436, %v2762, 0
      %v2807 = vsel %vm2436, %v2763, 0
      %v2810 = vsel %vm2436, %v2764, 0
      %v2813 = vsel %vm2436, %v2765, 0
      %v2816 = vsel %vm2436, %v2766, 0
      %v2819 = vsel %vm2436, %v2767, 0
      %v2822 = vsel %vm2436, %v2768, 0
      %v2825 = vsel %vm2436, %v2769, 0
      %v2828 = vsel %vm2436, %v2770, 0
      %v2831 = vsel %vm2436, %v2771, 0
      %v2834 = vsel %vm2436, %v2772, 0
      %v2837 = vsel %vm2436, %v2773, 0
      %v2840 = vsel %vm2436, %v2774, 0
      %v2843 = vsel %vm2436, %v2775, 0
      %v2846 = vsel %vm2436, %v2776, 0
      %v2849 = vsel %vm2436, %v2777, 0
      %v2852 = vsel %vm2436, %v2778, 0
      %v2855 = vsel %vm2436, %v2779, 0
      %v2858 = vsel %vm2436, %v2780, 0
      %v2861 = vsel %vm2436, %v2781, 0
      %v2864 = vsel %vm2436, %v2782, 0
      %v2867 = vsel %vm2436, %v2783, 0
      %v2870 = vsel %vm2436, %v2784, 0
      %v2873 = vsel %vm2436, %v2785, 0
      %v2876 = vsel %vm2436, %v2786, 0
      %v2879 = vsel %vm2436, %v2787, 0
      %v2882 = vsel %vm2436, %v2788, 0
      %v2885 = vsel %vm2436, %v2789, 0
      %v2888 = vsel %vm2436, %v2790, 0
      %v2891 = vsel %vm2436, %v2791, 0
      %v2894 = vsel %vm2436, %v2792, 0
      %v2897 = vsel %vm2436, %v2793, 0
      %v2900 = vsel %vm2533, %v2795, 0
      %2902 = vmatprep.subr.mxu0 0.0
      %2903 = vmatpush1.msra.mxu0 %v2794
      %2904 = vmatprep.subr.mxu0 0.0
      %2905 = vmatpush1.msra.mxu0 %v2900
      %2906 = vmatprep.subr.mxu0 0.0
      %2907 = vmatpush1.msra.mxu0 0.0
      %2908 = vmatprep.subr.mxu0 0.0
      %2909 = vmatpush1.msra.mxu0 0.0
      %2910 = vmatprep.subr.mxu0 0.0
      %2911 = vmatpush1.msra.mxu0 0.0
      %2912 = vmatprep.subr.mxu0 0.0
      %2913 = vmatpush1.msra.mxu0 0.0
      %2914 = vmatprep.subr.mxu0 0.0
      %2915 = vmatpush1.msra.mxu0 0.0
      %2916 = vmatprep.subr.mxu0 0.0
      %2917 = vmatpush1.msra.mxu0 0.0
      %2918 = vmatprep.subr.mxu0 0.0
      %2919 = vmatpush1.msra.mxu0 0.0
      %2920 = vmatprep.subr.mxu0 0.0
      %2921 = vmatpush1.msra.mxu0 0.0
      %2922 = vmatprep.subr.mxu0 0.0
      %2923 = vmatpush1.msra.mxu0 0.0
      %2924 = vmatprep.subr.mxu0 0.0
      %2925 = vmatpush1.msra.mxu0 0.0
      %2926 = vmatprep.subr.mxu0 0.0
      %2927 = vmatpush1.msra.mxu0 0.0
      %2928 = vmatprep.subr.mxu0 0.0
      %2929 = vmatpush1.msra.mxu0 0.0
      %2930 = vmatprep.subr.mxu0 0.0
      %2931 = vmatpush1.msra.mxu0 0.0
      %2932 = vmatprep.subr.mxu0 0.0
      %2933 = vmatpush1.msra.mxu0 0.0
      %2934 = vmatprep.subr.mxu0 0.0
      %2935 = vmatpush1.msra.mxu0 0.0
      %2936 = vmatprep.subr.mxu0 0.0
      %2937 = vmatpush1.msra.mxu0 0.0
      %2938 = vmatprep.subr.mxu0 0.0
      %2939 = vmatpush1.msra.mxu0 0.0
      %2940 = vmatprep.subr.mxu0 0.0
      %2941 = vmatpush1.msra.mxu0 0.0
      %2942 = vmatprep.subr.mxu0 0.0
      %2943 = vmatpush1.msra.mxu0 0.0
      %2944 = vmatprep.subr.mxu0 0.0
      %2945 = vmatpush1.msra.mxu0 0.0
      %2946 = vmatprep.subr.mxu0 0.0
      %2947 = vmatpush1.msra.mxu0 0.0
      %2948 = vmatprep.subr.mxu0 0.0
      %2949 = vmatpush1.msra.mxu0 0.0
      %2950 = vmatprep.subr.mxu0 0.0
      %2951 = vmatpush1.msra.mxu0 0.0
      %2952 = vmatprep.subr.mxu0 0.0
      %2953 = vmatpush1.msra.mxu0 0.0
      %2954 = vmatprep.subr.mxu0 0.0
      %2955 = vmatpush1.msra.mxu0 0.0
      %2956 = vmatprep.subr.mxu0 0.0
      %2957 = vmatpush1.msra.mxu0 0.0
      %2958 = vmatprep.subr.mxu0 0.0
      %2959 = vmatpush1.msra.mxu0 0.0
      %2960 = vmatprep.subr.mxu0 0.0
      %2961 = vmatpush1.msra.mxu0 0.0
      %2962 = vmatprep.subr.mxu0 0.0
      %2963 = vmatpush1.msra.mxu0 0.0
      %2964 = vmatprep.subr.mxu0 0.0
      %2965 = vmatpush1.msra.mxu0 0.0
      %2966 = vmatprep.mubr.f32.mxu0 0.0
      %2967 = vmatmul.mubr.f32.gmra.mrb[0].mxu0 %v2804
      %v2968 = vpop.f32.mrb[0].mxu0
      %v2969 = vadd.f32 %v2801, %v2968
      %v2970 = vpop.f32.mrb[0].mxu0
      %2971 = vmatprep.mubr.f32.mxu0 0.0
      %2972 = vmatmul.mubr.f32.gmra.mrb[0].mxu0 %v2807
      %v2973 = vpop.f32.mrb[0].mxu0
      %v2974 = vadd.f32 %v2801, %v2973
      %v2975 = vpop.f32.mrb[0].mxu0
      %2976 = vmatprep.mubr.f32.mxu0 0.0
      %2977 = vmatmul.mubr.f32.gmra.mrb[0].mxu0 %v2810
      %v2978 = vpop.f32.mrb[0].mxu0
      %v2979 = vadd.f32 %v2801, %v2978
      %v2980 = vpop.f32.mrb[0].mxu0
      %2981 = vmatprep.mubr.f32.mxu0 0.0
      %2982 = vmatmul.mubr.f32.gmra.mrb[0].mxu0 %v2813
      %v2983 = vpop.f32.mrb[0].mxu0
      %v2984 = vadd.f32 %v2801, %v2983
      %v2985 = vpop.f32.mrb[0].mxu0
      %2986 = vmatprep.mubr.f32.mxu0 0.0
      %2987 = vmatmul.mubr.f32.gmra.mrb[0].mxu0 %v2816
      %v2988 = vpop.f32.mrb[0].mxu0
      %v2989 = vadd.f32 %v2801, %v2988
      %v2990 = vpop.f32.mrb[0].mxu0
      %2991 = vmatprep.mubr.f32.mxu0 0.0
      %2992 = vmatmul.mubr.f32.gmra.mrb[0].mxu0 %v2819
      %v2993 = vpop.f32.mrb[0].mxu0
      %v2994 = vadd.f32 %v2801, %v2993
      %v2995 = vpop.f32.mrb[0].mxu0
      %2996 = vmatprep.mubr.f32.mxu0 0.0
      %2997 = vmatmul.mubr.f32.gmra.mrb[0].mxu0 %v2822
      %v2998 = vpop.f32.mrb[0].mxu0
      %v2999 = vadd.f32 %v2801, %v2998
      %v3000 = vpop.f32.mrb[0].mxu0
      %3001 = vmatprep.mubr.f32.mxu0 0.0
      %3002 = vmatmul.mubr.f32.gmra.mrb[0].mxu0 %v2825
      %v3003 = vpop.f32.mrb[0].mxu0
      %v3004 = vadd.f32 %v2801, %v3003
      %v3005 = vpop.f32.mrb[0].mxu0
      %3006 = vmatprep.mubr.f32.mxu0 0.0
      %3007 = vmatmul.mubr.f32.gmra.mrb[0].mxu0 %v2828
      %v3008 = vpop.f32.mrb[0].mxu0
      %v3009 = vadd.f32 %v2801, %v3008
      %v3010 = vpop.f32.mrb[0].mxu0
      %3011 = vmatprep.mubr.f32.mxu0 0.0
      %3012 = vmatmul.mubr.f32.gmra.mrb[0].mxu0 %v2831
      %v3013 = vpop.f32.mrb[0].mxu0
      %v3014 = vadd.f32 %v2801, %v3013
      %v3015 = vpop.f32.mrb[0].mxu0
      %3016 = vmatprep.mubr.f32.mxu0 0.0
      %3017 = vmatmul.mubr.f32.gmra.mrb[0].mxu0 %v2834
      %v3018 = vpop.f32.mrb[0].mxu0
      %v3019 = vadd.f32 %v2801, %v3018
      %v3020 = vpop.f32.mrb[0].mxu0
      %3021 = vmatprep.mubr.f32.mxu0 0.0
      %3022 = vmatmul.mubr.f32.gmra.mrb[0].mxu0 %v2837
      %v3023 = vpop.f32.mrb[0].mxu0
      %v3024 = vadd.f32 %v2801, %v3023
      %v3025 = vpop.f32.mrb[0].mxu0
      %3026 = vmatprep.mubr.f32.mxu0 0.0
      %3027 = vmatmul.mubr.f32.gmra.mrb[0].mxu0 %v2840
      %v3028 = vpop.f32.mrb[0].mxu0
      %v3029 = vadd.f32 %v2801, %v3028
      %v3030 = vpop.f32.mrb[0].mxu0
      %3031 = vmatprep.mubr.f32.mxu0 0.0
      %3032 = vmatmul.mubr.f32.gmra.mrb[0].mxu0 %v2843
      %v3033 = vpop.f32.mrb[0].mxu0
      %v3034 = vadd.f32 %v2801, %v3033
      %v3035 = vpop.f32.mrb[0].mxu0
      %3036 = vmatprep.mubr.f32.mxu0 0.0
      %3037 = vmatmul.mubr.f32.gmra.mrb[0].mxu0 %v2846
      %v3038 = vpop.f32.mrb[0].mxu0
      %v3039 = vadd.f32 %v2801, %v3038
      %v3040 = vpop.f32.mrb[0].mxu0
      %3041 = vmatprep.mubr.f32.mxu0 0.0
      %3042 = vmatmul.mubr.f32.gmra.mrb[0].mxu0 %v2849
      %v3043 = vpop.f32.mrb[0].mxu0
      %v3044 = vadd.f32 %v2801, %v3043
      %v3045 = vpop.f32.mrb[0].mxu0
      %3046 = vmatprep.mubr.f32.mxu0 0.0
      %3047 = vmatmul.mubr.f32.gmra.mrb[0].mxu0 %v2852
      %v3048 = vpop.f32.mrb[0].mxu0
      %v3049 = vadd.f32 %v2801, %v3048
      %v3050 = vpop.f32.mrb[0].mxu0
      %3051 = vmatprep.mubr.f32.mxu0 0.0
      %3052 = vmatmul.mubr.f32.gmra.mrb[0].mxu0 %v2855
      %v3053 = vpop.f32.mrb[0].mxu0
      %v3054 = vadd.f32 %v2801, %v3053
      %v3055 = vpop.f32.mrb[0].mxu0
      %3056 = vmatprep.mubr.f32.mxu0 0.0
      %3057 = vmatmul.mubr.f32.gmra.mrb[0].mxu0 %v2858
      %v3058 = vpop.f32.mrb[0].mxu0
      %v3059 = vadd.f32 %v2801, %v3058
      %v3060 = vpop.f32.mrb[0].mxu0
      %3061 = vmatprep.mubr.f32.mxu0 0.0
      %3062 = vmatmul.mubr.f32.gmra.mrb[0].mxu0 %v2861
      %v3063 = vpop.f32.mrb[0].mxu0
      %v3064 = vadd.f32 %v2801, %v3063
      %v3065 = vpop.f32.mrb[0].mxu0
      %3066 = vmatprep.mubr.f32.mxu0 0.0
      %3067 = vmatmul.mubr.f32.gmra.mrb[0].mxu0 %v2864
      %v3068 = vpop.f32.mrb[0].mxu0
      %v3069 = vadd.f32 %v2801, %v3068
      %v3070 = vpop.f32.mrb[0].mxu0
      %3071 = vmatprep.mubr.f32.mxu0 0.0
      %3072 = vmatmul.mubr.f32.gmra.mrb[0].mxu0 %v2867
      %v3073 = vpop.f32.mrb[0].mxu0
      %v3074 = vadd.f32 %v2801, %v3073
      %v3075 = vpop.f32.mrb[0].mxu0
      %3076 = vmatprep.mubr.f32.mxu0 0.0
      %3077 = vmatmul.mubr.f32.gmra.mrb[0].mxu0 %v2870
      %v3078 = vpop.f32.mrb[0].mxu0
      %v3079 = vadd.f32 %v2801, %v3078
      %v3080 = vpop.f32.mrb[0].mxu0
      %3081 = vmatprep.mubr.f32.mxu0 0.0
      %3082 = vmatmul.mubr.f32.gmra.mrb[0].mxu0 %v2873
      %v3083 = vpop.f32.mrb[0].mxu0
      %v3084 = vadd.f32 %v2801, %v3083
      %v3085 = vpop.f32.mrb[0].mxu0
      %3086 = vmatprep.mubr.f32.mxu0 0.0
      %3087 = vmatmul.mubr.f32.gmra.mrb[0].mxu0 %v2876
      %v3088 = vpop.f32.mrb[0].mxu0
      %v3089 = vadd.f32 %v2801, %v3088
      %v3090 = vpop.f32.mrb[0].mxu0
      %3091 = vmatprep.mubr.f32.mxu0 0.0
      %3092 = vmatmul.mubr.f32.gmra.mrb[0].mxu0 %v2879
      %v3093 = vpop.f32.mrb[0].mxu0
      %v3094 = vadd.f32 %v2801, %v3093
      %v3095 = vpop.f32.mrb[0].mxu0
      %3096 = vmatprep.mubr.f32.mxu0 0.0
      %3097 = vmatmul.mubr.f32.gmra.mrb[0].mxu0 %v2882
      %v3098 = vpop.f32.mrb[0].mxu0
      %v3099 = vadd.f32 %v2801, %v3098
      %v3100 = vpop.f32.mrb[0].mxu0
      %3101 = vmatprep.mubr.f32.mxu0 0.0
      %3102 = vmatmul.mubr.f32.gmra.mrb[0].mxu0 %v2885
      %v3103 = vpop.f32.mrb[0].mxu0
      %v3104 = vadd.f32 %v2801, %v3103
      %v3105 = vpop.f32.mrb[0].mxu0
      %3106 = vmatprep.mubr.f32.mxu0 0.0
      %3107 = vmatmul.mubr.f32.gmra.mrb[0].mxu0 %v2888
      %v3108 = vpop.f32.mrb[0].mxu0
      %v3109 = vadd.f32 %v2801, %v3108
      %v3110 = vpop.f32.mrb[0].mxu0
      %3111 = vmatprep.mubr.f32.mxu0 0.0
      %3112 = vmatmul.mubr.f32.gmra.mrb[0].mxu0 %v2891
      %v3113 = vpop.f32.mrb[0].mxu0
      %v3114 = vadd.f32 %v2801, %v3113
      %v3115 = vpop.f32.mrb[0].mxu0
      %3116 = vmatprep.mubr.f32.mxu0 0.0
      %3117 = vmatmul.mubr.f32.gmra.mrb[0].mxu0 %v2894
      %v3118 = vpop.f32.mrb[0].mxu0
      %v3119 = vadd.f32 %v2801, %v3118
      %v3120 = vpop.f32.mrb[0].mxu0
      %3121 = vmatprep.mubr.f32.mxu0 0.0
      %3122 = vmatmul.mubr.f32.gmra.mrb[0].mxu0 %v2897
      %v3123 = vpop.f32.mrb[0].mxu0
      %v3124 = vadd.f32 %v2801, %v3123
      %v3125 = vpop.f32.mrb[0].mxu0
      %3126 = vdwg.mxu0
      %v3127 = vmax.f32 %v2969, 0.0
      %v3128 = vmax.f32 %v2974, 0.0
      %v3129 = vmax.f32 %v2979, 0.0
      %v3130 = vmax.f32 %v2984, 0.0
      %v3131 = vmax.f32 %v2989, 0.0
      %v3132 = vmax.f32 %v2994, 0.0
      %v3133 = vmax.f32 %v2999, 0.0
      %v3134 = vmax.f32 %v3004, 0.0
      %v3135 = vmax.f32 %v3009, 0.0
      %v3136 = vmax.f32 %v3014, 0.0
      %v3137 = vmax.f32 %v3019, 0.0
      %v3138 = vmax.f32 %v3024, 0.0
      %v3139 = vmax.f32 %v3029, 0.0
      %v3140 = vmax.f32 %v3034, 0.0
      %v3141 = vmax.f32 %v3039, 0.0
      %v3142 = vmax.f32 %v3044, 0.0
      %v3143 = vmax.f32 %v3049, 0.0
      %v3144 = vmax.f32 %v3054, 0.0
      %v3145 = vmax.f32 %v3059, 0.0
      %v3146 = vmax.f32 %v3064, 0.0
      %v3147 = vmax.f32 %v3069, 0.0
      %v3148 = vmax.f32 %v3074, 0.0
      %v3149 = vmax.f32 %v3079, 0.0
      %v3150 = vmax.f32 %v3084, 0.0
      %v3151 = vmax.f32 %v3089, 0.0
      %v3152 = vmax.f32 %v3094, 0.0
      %v3153 = vmax.f32 %v3099, 0.0
      %v3154 = vmax.f32 %v3104, 0.0
      %v3155 = vmax.f32 %v3109, 0.0
      %v3156 = vmax.f32 %v3114, 0.0
      %v3157 = vmax.f32 %v3119, 0.0
      %v3158 = vmax.f32 %v3124, 0.0
      %v3159 = vld [vmem:[%s11] sm:$0xff]
      %v3160 = vld [vmem:[%s11 + $0x8] sm:$0xff]
      %v3161 = vld [vmem:[%s11 + $0x10] sm:$0xff]
      %v3162 = vld [vmem:[%s11 + $0x18] sm:$0xff]
      %v3163 = vld [vmem:[%s11 + $0x20] sm:$0xff]
      %v3164 = vld [vmem:[%s11 + $0x28] sm:$0xff]
      %v3165 = vld [vmem:[%s11 + $0x30] sm:$0xff]
      %v3166 = vld [vmem:[%s11 + $0x38] sm:$0xff]
      %v3167 = vld [vmem:[%s12] sm:$0x1]
      %v3169 = vlaneseq
      %v3170 = vshrl.u32 %v3169, 7
      %v3171 = vsub.s32 0, %v3170
      %v3172 = vrot.slane %v3167, %v3171
      %v3175 = vsel %vm2073, %v3127, 0
      %v3178 = vsel %vm2073, %v3128, 0
      %v3181 = vsel %vm2073, %v3129, 0
      %v3184 = vsel %vm2073, %v3130, 0
      %v3187 = vsel %vm2073, %v3131, 0
      %v3190 = vsel %vm2073, %v3132, 0
      %v3193 = vsel %vm2073, %v3133, 0
      %v3196 = vsel %vm2073, %v3134, 0
      %v3199 = vsel %vm2073, %v3135, 0
      %v3202 = vsel %vm2073, %v3136, 0
      %v3205 = vsel %vm2073, %v3137, 0
      %v3208 = vsel %vm2073, %v3138, 0
      %v3211 = vsel %vm2073, %v3139, 0
      %v3214 = vsel %vm2073, %v3140, 0
      %v3217 = vsel %vm2073, %v3141, 0
      %v3220 = vsel %vm2073, %v3142, 0
      %v3223 = vsel %vm2073, %v3143, 0
      %v3226 = vsel %vm2073, %v3144, 0
      %v3229 = vsel %vm2073, %v3145, 0
      %v3232 = vsel %vm2073, %v3146, 0
      %v3235 = vsel %vm2073, %v3147, 0
      %v3238 = vsel %vm2073, %v3148, 0
      %v3241 = vsel %vm2073, %v3149, 0
      %v3244 = vsel %vm2073, %v3150, 0
      %v3247 = vsel %vm2073, %v3151, 0
      %v3250 = vsel %vm2073, %v3152, 0
      %v3253 = vsel %vm2073, %v3153, 0
      %v3256 = vsel %vm2073, %v3154, 0
      %v3259 = vsel %vm2073, %v3155, 0
      %v3262 = vsel %vm2073, %v3156, 0
      %v3265 = vsel %vm2073, %v3157, 0
      %v3268 = vsel %vm2073, %v3158, 0
      %3270 = vmatprep.subr.mxu0 0.0
      %3271 = vmatpush1.msra.mxu0 %v3159
      %3272 = vmatprep.subr.mxu0 0.0
      %3273 = vmatpush1.msra.mxu0 %v3160
      %3274 = vmatprep.subr.mxu0 0.0
      %3275 = vmatpush1.msra.mxu0 %v3161
      %3276 = vmatprep.subr.mxu0 0.0
      %3277 = vmatpush1.msra.mxu0 %v3162
      %3278 = vmatprep.subr.mxu0 0.0
      %3279 = vmatpush1.msra.mxu0 %v3163
      %3280 = vmatprep.subr.mxu0 0.0
      %3281 = vmatpush1.msra.mxu0 %v3164
      %3282 = vmatprep.subr.mxu0 0.0
      %3283 = vmatpush1.msra.mxu0 %v3165
      %3284 = vmatprep.subr.mxu0 0.0
      %3285 = vmatpush1.msra.mxu0 %v3166
      %3286 = vmatprep.subr.mxu0 0.0
      %3287 = vmatpush1.msra.mxu0 0.0
      %3288 = vmatprep.subr.mxu0 0.0
      %3289 = vmatpush1.msra.mxu0 0.0
      %3290 = vmatprep.subr.mxu0 0.0
      %3291 = vmatpush1.msra.mxu0 0.0
      %3292 = vmatprep.subr.mxu0 0.0
      %3293 = vmatpush1.msra.mxu0 0.0
      %3294 = vmatprep.subr.mxu0 0.0
      %3295 = vmatpush1.msra.mxu0 0.0
      %3296 = vmatprep.subr.mxu0 0.0
      %3297 = vmatpush1.msra.mxu0 0.0
      %3298 = vmatprep.subr.mxu0 0.0
      %3299 = vmatpush1.msra.mxu0 0.0
      %3300 = vmatprep.subr.mxu0 0.0
      %3301 = vmatpush1.msra.mxu0 0.0
      %3302 = vmatprep.subr.mxu0 0.0
      %3303 = vmatpush1.msra.mxu0 0.0
      %3304 = vmatprep.subr.mxu0 0.0
      %3305 = vmatpush1.msra.mxu0 0.0
      %3306 = vmatprep.subr.mxu0 0.0
      %3307 = vmatpush1.msra.mxu0 0.0
      %3308 = vmatprep.subr.mxu0 0.0
      %3309 = vmatpush1.msra.mxu0 0.0
      %3310 = vmatprep.subr.mxu0 0.0
      %3311 = vmatpush1.msra.mxu0 0.0
      %3312 = vmatprep.subr.mxu0 0.0
      %3313 = vmatpush1.msra.mxu0 0.0
      %3314 = vmatprep.subr.mxu0 0.0
      %3315 = vmatpush1.msra.mxu0 0.0
      %3316 = vmatprep.subr.mxu0 0.0
      %3317 = vmatpush1.msra.mxu0 0.0
      %3318 = vmatprep.subr.mxu0 0.0
      %3319 = vmatpush1.msra.mxu0 0.0
      %3320 = vmatprep.subr.mxu0 0.0
      %3321 = vmatpush1.msra.mxu0 0.0
      %3322 = vmatprep.subr.mxu0 0.0
      %3323 = vmatpush1.msra.mxu0 0.0
      %3324 = vmatprep.subr.mxu0 0.0
      %3325 = vmatpush1.msra.mxu0 0.0
      %3326 = vmatprep.subr.mxu0 0.0
      %3327 = vmatpush1.msra.mxu0 0.0
      %3328 = vmatprep.subr.mxu0 0.0
      %3329 = vmatpush1.msra.mxu0 0.0
      %3330 = vmatprep.subr.mxu0 0.0
      %3331 = vmatpush1.msra.mxu0 0.0
      %3332 = vmatprep.subr.mxu0 0.0
      %3333 = vmatpush1.msra.mxu0 0.0
      %3334 = vmatprep.mubr.f32.mxu0 0.0
      %3335 = vmatmul.mubr.f32.gmra.mrb[0].mxu0 %v3175
      %v3336 = vpop.f32.mrb[0].mxu0
      %v3337 = vadd.f32 %v3172, %v3336
      %v3338 = vpop.f32.mrb[0].mxu0
      %3339 = vmatprep.mubr.f32.mxu0 0.0
      %3340 = vmatmul.mubr.f32.gmra.mrb[0].mxu0 %v3178
      %v3341 = vpop.f32.mrb[0].mxu0
      %v3342 = vadd.f32 %v3172, %v3341
      %v3343 = vpop.f32.mrb[0].mxu0
      %3344 = vmatprep.mubr.f32.mxu0 0.0
      %3345 = vmatmul.mubr.f32.gmra.mrb[0].mxu0 %v3181
      %v3346 = vpop.f32.mrb[0].mxu0
      %v3347 = vadd.f32 %v3172, %v3346
      %v3348 = vpop.f32.mrb[0].mxu0
      %3349 = vmatprep.mubr.f32.mxu0 0.0
      %3350 = vmatmul.mubr.f32.gmra.mrb[0].mxu0 %v3184
      %v3351 = vpop.f32.mrb[0].mxu0
      %v3352 = vadd.f32 %v3172, %v3351
      %v3353 = vpop.f32.mrb[0].mxu0
      %3354 = vmatprep.mubr.f32.mxu0 0.0
      %3355 = vmatmul.mubr.f32.gmra.mrb[0].mxu0 %v3187
      %v3356 = vpop.f32.mrb[0].mxu0
      %v3357 = vadd.f32 %v3172, %v3356
      %v3358 = vpop.f32.mrb[0].mxu0
      %3359 = vmatprep.mubr.f32.mxu0 0.0
      %3360 = vmatmul.mubr.f32.gmra.mrb[0].mxu0 %v3190
      %v3361 = vpop.f32.mrb[0].mxu0
      %v3362 = vadd.f32 %v3172, %v3361
      %v3363 = vpop.f32.mrb[0].mxu0
      %3364 = vmatprep.mubr.f32.mxu0 0.0
      %3365 = vmatmul.mubr.f32.gmra.mrb[0].mxu0 %v3193
      %v3366 = vpop.f32.mrb[0].mxu0
      %v3367 = vadd.f32 %v3172, %v3366
      %v3368 = vpop.f32.mrb[0].mxu0
      %3369 = vmatprep.mubr.f32.mxu0 0.0
      %3370 = vmatmul.mubr.f32.gmra.mrb[0].mxu0 %v3196
      %v3371 = vpop.f32.mrb[0].mxu0
      %v3372 = vadd.f32 %v3172, %v3371
      %v3373 = vpop.f32.mrb[0].mxu0
      %3374 = vmatprep.mubr.f32.mxu0 0.0
      %3375 = vmatmul.mubr.f32.gmra.mrb[0].mxu0 %v3199
      %v3376 = vpop.f32.mrb[0].mxu0
      %v3377 = vadd.f32 %v3172, %v3376
      %v3378 = vpop.f32.mrb[0].mxu0
      %3379 = vmatprep.mubr.f32.mxu0 0.0
      %3380 = vmatmul.mubr.f32.gmra.mrb[0].mxu0 %v3202
      %v3381 = vpop.f32.mrb[0].mxu0
      %v3382 = vadd.f32 %v3172, %v3381
      %v3383 = vpop.f32.mrb[0].mxu0
      %3384 = vmatprep.mubr.f32.mxu0 0.0
      %3385 = vmatmul.mubr.f32.gmra.mrb[0].mxu0 %v3205
      %v3386 = vpop.f32.mrb[0].mxu0
      %v3387 = vadd.f32 %v3172, %v3386
      %v3388 = vpop.f32.mrb[0].mxu0
      %3389 = vmatprep.mubr.f32.mxu0 0.0
      %3390 = vmatmul.mubr.f32.gmra.mrb[0].mxu0 %v3208
      %v3391 = vpop.f32.mrb[0].mxu0
      %v3392 = vadd.f32 %v3172, %v3391
      %v3393 = vpop.f32.mrb[0].mxu0
      %3394 = vmatprep.mubr.f32.mxu0 0.0
      %3395 = vmatmul.mubr.f32.gmra.mrb[0].mxu0 %v3211
      %v3396 = vpop.f32.mrb[0].mxu0
      %v3397 = vadd.f32 %v3172, %v3396
      %v3398 = vpop.f32.mrb[0].mxu0
      %3399 = vmatprep.mubr.f32.mxu0 0.0
      %3400 = vmatmul.mubr.f32.gmra.mrb[0].mxu0 %v3214
      %v3401 = vpop.f32.mrb[0].mxu0
      %v3402 = vadd.f32 %v3172, %v3401
      %v3403 = vpop.f32.mrb[0].mxu0
      %3404 = vmatprep.mubr.f32.mxu0 0.0
      %3405 = vmatmul.mubr.f32.gmra.mrb[0].mxu0 %v3217
      %v3406 = vpop.f32.mrb[0].mxu0
      %v3407 = vadd.f32 %v3172, %v3406
      %v3408 = vpop.f32.mrb[0].mxu0
      %3409 = vmatprep.mubr.f32.mxu0 0.0
      %3410 = vmatmul.mubr.f32.gmra.mrb[0].mxu0 %v3220
      %v3411 = vpop.f32.mrb[0].mxu0
      %v3412 = vadd.f32 %v3172, %v3411
      %v3413 = vpop.f32.mrb[0].mxu0
      %3414 = vmatprep.mubr.f32.mxu0 0.0
      %3415 = vmatmul.mubr.f32.gmra.mrb[0].mxu0 %v3223
      %v3416 = vpop.f32.mrb[0].mxu0
      %v3417 = vadd.f32 %v3172, %v3416
      %v3418 = vpop.f32.mrb[0].mxu0
      %3419 = vmatprep.mubr.f32.mxu0 0.0
      %3420 = vmatmul.mubr.f32.gmra.mrb[0].mxu0 %v3226
      %v3421 = vpop.f32.mrb[0].mxu0
      %v3422 = vadd.f32 %v3172, %v3421
      %v3423 = vpop.f32.mrb[0].mxu0
      %3424 = vmatprep.mubr.f32.mxu0 0.0
      %3425 = vmatmul.mubr.f32.gmra.mrb[0].mxu0 %v3229
      %v3426 = vpop.f32.mrb[0].mxu0
      %v3427 = vadd.f32 %v3172, %v3426
      %v3428 = vpop.f32.mrb[0].mxu0
      %3429 = vmatprep.mubr.f32.mxu0 0.0
      %3430 = vmatmul.mubr.f32.gmra.mrb[0].mxu0 %v3232
      %v3431 = vpop.f32.mrb[0].mxu0
      %v3432 = vadd.f32 %v3172, %v3431
      %v3433 = vpop.f32.mrb[0].mxu0
      %3434 = vmatprep.mubr.f32.mxu0 0.0
      %3435 = vmatmul.mubr.f32.gmra.mrb[0].mxu0 %v3235
      %v3436 = vpop.f32.mrb[0].mxu0
      %v3437 = vadd.f32 %v3172, %v3436
      %v3438 = vpop.f32.mrb[0].mxu0
      %3439 = vmatprep.mubr.f32.mxu0 0.0
      %3440 = vmatmul.mubr.f32.gmra.mrb[0].mxu0 %v3238
      %v3441 = vpop.f32.mrb[0].mxu0
      %v3442 = vadd.f32 %v3172, %v3441
      %v3443 = vpop.f32.mrb[0].mxu0
      %3444 = vmatprep.mubr.f32.mxu0 0.0
      %3445 = vmatmul.mubr.f32.gmra.mrb[0].mxu0 %v3241
      %v3446 = vpop.f32.mrb[0].mxu0
      %v3447 = vadd.f32 %v3172, %v3446
      %v3448 = vpop.f32.mrb[0].mxu0
      %3449 = vmatprep.mubr.f32.mxu0 0.0
      %3450 = vmatmul.mubr.f32.gmra.mrb[0].mxu0 %v3244
      %v3451 = vpop.f32.mrb[0].mxu0
      %v3452 = vadd.f32 %v3172, %v3451
      %v3453 = vpop.f32.mrb[0].mxu0
      %3454 = vmatprep.mubr.f32.mxu0 0.0
      %3455 = vmatmul.mubr.f32.gmra.mrb[0].mxu0 %v3247
      %v3456 = vpop.f32.mrb[0].mxu0
      %v3457 = vadd.f32 %v3172, %v3456
      %v3458 = vpop.f32.mrb[0].mxu0
      %3459 = vmatprep.mubr.f32.mxu0 0.0
      %3460 = vmatmul.mubr.f32.gmra.mrb[0].mxu0 %v3250
      %v3461 = vpop.f32.mrb[0].mxu0
      %v3462 = vadd.f32 %v3172, %v3461
      %v3463 = vpop.f32.mrb[0].mxu0
      %3464 = vmatprep.mubr.f32.mxu0 0.0
      %3465 = vmatmul.mubr.f32.gmra.mrb[0].mxu0 %v3253
      %v3466 = vpop.f32.mrb[0].mxu0
      %v3467 = vadd.f32 %v3172, %v3466
      %v3468 = vpop.f32.mrb[0].mxu0
      %3469 = vmatprep.mubr.f32.mxu0 0.0
      %3470 = vmatmul.mubr.f32.gmra.mrb[0].mxu0 %v3256
      %v3471 = vpop.f32.mrb[0].mxu0
      %v3472 = vadd.f32 %v3172, %v3471
      %v3473 = vpop.f32.mrb[0].mxu0
      %3474 = vmatprep.mubr.f32.mxu0 0.0
      %3475 = vmatmul.mubr.f32.gmra.mrb[0].mxu0 %v3259
      %v3476 = vpop.f32.mrb[0].mxu0
      %v3477 = vadd.f32 %v3172, %v3476
      %v3478 = vpop.f32.mrb[0].mxu0
      %3479 = vmatprep.mubr.f32.mxu0 0.0
      %3480 = vmatmul.mubr.f32.gmra.mrb[0].mxu0 %v3262
      %v3481 = vpop.f32.mrb[0].mxu0
      %v3482 = vadd.f32 %v3172, %v3481
      %v3483 = vpop.f32.mrb[0].mxu0
      %3484 = vmatprep.mubr.f32.mxu0 0.0
      %3485 = vmatmul.mubr.f32.gmra.mrb[0].mxu0 %v3265
      %v3486 = vpop.f32.mrb[0].mxu0
      %v3487 = vadd.f32 %v3172, %v3486
      %v3488 = vpop.f32.mrb[0].mxu0
      %3489 = vmatprep.mubr.f32.mxu0 0.0
      %3490 = vmatmul.mubr.f32.gmra.mrb[0].mxu0 %v3268
      %v3491 = vpop.f32.mrb[0].mxu0
      %v3492 = vadd.f32 %v3172, %v3491
      %v3493 = vpop.f32.mrb[0].mxu0
      %3494 = vdwg.mxu0
      %v3495 = vmax.f32 %v3337, 0.0
      %v3496 = vmax.f32 %v3342, 0.0
      %v3497 = vmax.f32 %v3347, 0.0
      %v3498 = vmax.f32 %v3352, 0.0
      %v3499 = vmax.f32 %v3357, 0.0
      %v3500 = vmax.f32 %v3362, 0.0
      %v3501 = vmax.f32 %v3367, 0.0
      %v3502 = vmax.f32 %v3372, 0.0
      %v3503 = vmax.f32 %v3377, 0.0
      %v3504 = vmax.f32 %v3382, 0.0
      %v3505 = vmax.f32 %v3387, 0.0
      %v3506 = vmax.f32 %v3392, 0.0
      %v3507 = vmax.f32 %v3397, 0.0
      %v3508 = vmax.f32 %v3402, 0.0
      %v3509 = vmax.f32 %v3407, 0.0
      %v3510 = vmax.f32 %v3412, 0.0
      %v3511 = vmax.f32 %v3417, 0.0
      %v3512 = vmax.f32 %v3422, 0.0
      %v3513 = vmax.f32 %v3427, 0.0
      %v3514 = vmax.f32 %v3432, 0.0
      %v3515 = vmax.f32 %v3437, 0.0
      %v3516 = vmax.f32 %v3442, 0.0
      %v3517 = vmax.f32 %v3447, 0.0
      %v3518 = vmax.f32 %v3452, 0.0
      %v3519 = vmax.f32 %v3457, 0.0
      %v3520 = vmax.f32 %v3462, 0.0
      %v3521 = vmax.f32 %v3467, 0.0
      %v3522 = vmax.f32 %v3472, 0.0
      %v3523 = vmax.f32 %v3477, 0.0
      %v3524 = vmax.f32 %v3482, 0.0
      %v3525 = vmax.f32 %v3487, 0.0
      %v3526 = vmax.f32 %v3492, 0.0
      %v3527 = vld [vmem:[%s13] sm:$0xff]
      %v3528 = vld [vmem:[%s13 + $0x8] sm:$0xff]
      %v3529 = vld [vmem:[%s13 + $0x10] sm:$0xff]
      %v3530 = vld [vmem:[%s13 + $0x18] sm:$0xff]
      %v3531 = vld [vmem:[%s13 + $0x20] sm:$0xff]
      %v3532 = vld [vmem:[%s13 + $0x28] sm:$0xff]
      %v3533 = vld [vmem:[%s13 + $0x30] sm:$0xff]
      %v3534 = vld [vmem:[%s13 + $0x38] sm:$0xff]
      %v3535 = vld [vmem:[%s13 + $0x40] sm:$0xff]
      %v3536 = vld [vmem:[%s13 + $0x48] sm:$0xff]
      %v3537 = vld [vmem:[%s13 + $0x50] sm:$0xff]
      %v3538 = vld [vmem:[%s13 + $0x58] sm:$0xff]
      %v3539 = vld [vmem:[%s13 + $0x60] sm:$0xff]
      %v3540 = vld [vmem:[%s13 + $0x68] sm:$0xff]
      %v3541 = vld [vmem:[%s13 + $0x70] sm:$0xff]
      %v3542 = vld [vmem:[%s13 + $0x78] sm:$0xff]
      %v3543 = vld [vmem:[%s13 + $0x80] sm:$0xff]
      %v3544 = vld [vmem:[%s13 + $0x88] sm:$0xff]
      %v3545 = vld [vmem:[%s13 + $0x90] sm:$0xff]
      %v3546 = vld [vmem:[%s13 + $0x98] sm:$0xff]
      %v3547 = vld [vmem:[%s13 + $0xa0] sm:$0xff]
      %v3548 = vld [vmem:[%s13 + $0xa8] sm:$0xff]
      %v3549 = vld [vmem:[%s13 + $0xb0] sm:$0xff]
      %v3550 = vld [vmem:[%s13 + $0xb8] sm:$0xff]
      %v3551 = vld [vmem:[%s13 + $0xc0] sm:$0xff]
      %v3552 = vld [vmem:[%s13 + $0xc8] sm:$0xff]
      %v3553 = vld [vmem:[%s13 + $0xd0] sm:$0xff]
      %v3554 = vld [vmem:[%s13 + $0xd8] sm:$0xff]
      %v3555 = vld [vmem:[%s13 + $0xe0] sm:$0xff]
      %v3556 = vld [vmem:[%s13 + $0xe8] sm:$0xff]
      %v3557 = vld [vmem:[%s13 + $0xf0] sm:$0xff]
      %v3558 = vld [vmem:[%s13 + $0xf8] sm:$0xff]
      %v3559 = vld [vmem:[%s13 + $0x100] sm:$0xff]
      %v3560 = vld [vmem:[%s13 + $0x108] sm:$0xff]
      %v3561 = vld [vmem:[%s13 + $0x110] sm:$0xff]
      %v3562 = vld [vmem:[%s13 + $0x118] sm:$0xff]
      %v3563 = vld [vmem:[%s13 + $0x120] sm:$0xff]
      %v3564 = vld [vmem:[%s13 + $0x128] sm:$0xff]
      %v3565 = vld [vmem:[%s13 + $0x130] sm:$0xff]
      %v3566 = vld [vmem:[%s13 + $0x138] sm:$0xff]
      %v3567 = vld [vmem:[%s13 + $0x140] sm:$0xff]
      %v3568 = vld [vmem:[%s13 + $0x148] sm:$0xff]
      %v3569 = vld [vmem:[%s13 + $0x150] sm:$0xff]
      %v3570 = vld [vmem:[%s13 + $0x158] sm:$0xff]
      %v3571 = vld [vmem:[%s13 + $0x160] sm:$0xff]
      %v3572 = vld [vmem:[%s13 + $0x168] sm:$0xff]
      %v3573 = vld [vmem:[%s13 + $0x170] sm:$0xff]
      %v3574 = vld [vmem:[%s13 + $0x178] sm:$0xff]
      %v3575 = vld [vmem:[%s13 + $0x180] sm:$0xff]
      %v3576 = vld [vmem:[%s13 + $0x188] sm:$0xff]
      %v3577 = vld [vmem:[%s13 + $0x190] sm:$0xff]
      %v3578 = vld [vmem:[%s13 + $0x198] sm:$0xff]
      %v3579 = vld [vmem:[%s13 + $0x1a0] sm:$0xff]
      %v3580 = vld [vmem:[%s13 + $0x1a8] sm:$0xff]
      %v3581 = vld [vmem:[%s13 + $0x1b0] sm:$0xff]
      %v3582 = vld [vmem:[%s13 + $0x1b8] sm:$0xff]
      %v3583 = vld [vmem:[%s13 + $0x1c0] sm:$0xff]
      %v3584 = vld [vmem:[%s13 + $0x1c8] sm:$0xff]
      %v3585 = vld [vmem:[%s13 + $0x1d0] sm:$0xff]
      %v3586 = vld [vmem:[%s13 + $0x1d8] sm:$0xff]
      %v3587 = vld [vmem:[%s13 + $0x1e0] sm:$0xff]
      %v3588 = vld [vmem:[%s13 + $0x1e8] sm:$0xff]
      %v3589 = vld [vmem:[%s13 + $0x1f0] sm:$0xff]
      %v3590 = vld [vmem:[%s13 + $0x1f8] sm:$0xff]
      %v3591 = vld [vmem:[%s13 + $0x200] sm:$0xff]
      %v3592 = vld [vmem:[%s13 + $0x208] sm:$0xff]
      %v3593 = vld [vmem:[%s13 + $0x210] sm:$0xff]
      %v3594 = vld [vmem:[%s13 + $0x218] sm:$0xff]
      %v3595 = vld [vmem:[%s13 + $0x220] sm:$0xff]
      %v3596 = vld [vmem:[%s13 + $0x228] sm:$0xff]
      %v3597 = vld [vmem:[%s13 + $0x230] sm:$0xff]
      %v3598 = vld [vmem:[%s13 + $0x238] sm:$0xff]
      %v3599 = vld [vmem:[%s13 + $0x240] sm:$0xff]
      %v3600 = vld [vmem:[%s13 + $0x248] sm:$0xff]
      %v3601 = vld [vmem:[%s13 + $0x250] sm:$0xff]
      %v3602 = vld [vmem:[%s13 + $0x258] sm:$0xff]
      %v3603 = vld [vmem:[%s13 + $0x260] sm:$0xff]
      %v3604 = vld [vmem:[%s13 + $0x268] sm:$0xff]
      %v3605 = vld [vmem:[%s13 + $0x270] sm:$0xff]
      %v3606 = vld [vmem:[%s13 + $0x278] sm:$0xff]
      %v3607 = vld [vmem:[%s13 + $0x280] sm:$0xff]
      %v3608 = vld [vmem:[%s13 + $0x288] sm:$0xff]
      %v3609 = vld [vmem:[%s13 + $0x290] sm:$0xff]
      %v3610 = vld [vmem:[%s13 + $0x298] sm:$0xff]
      %v3611 = vld [vmem:[%s13 + $0x2a0] sm:$0xff]
      %v3612 = vld [vmem:[%s13 + $0x2a8] sm:$0xff]
      %v3613 = vld [vmem:[%s13 + $0x2b0] sm:$0xff]
      %v3614 = vld [vmem:[%s13 + $0x2b8] sm:$0xff]
      %v3615 = vld [vmem:[%s13 + $0x2c0] sm:$0xff]
      %v3616 = vld [vmem:[%s13 + $0x2c8] sm:$0xff]
      %v3617 = vld [vmem:[%s13 + $0x2d0] sm:$0xff]
      %v3618 = vld [vmem:[%s13 + $0x2d8] sm:$0xff]
      %v3619 = vld [vmem:[%s13 + $0x2e0] sm:$0xff]
      %v3620 = vld [vmem:[%s13 + $0x2e8] sm:$0xff]
      %v3621 = vld [vmem:[%s13 + $0x2f0] sm:$0xff]
      %v3622 = vld [vmem:[%s13 + $0x2f8] sm:$0xff]
      %v3623 = vld [vmem:[%s13 + $0x300] sm:$0xff]
      %v3624 = vld [vmem:[%s13 + $0x308] sm:$0xff]
      %v3625 = vld [vmem:[%s13 + $0x310] sm:$0xff]
      %v3626 = vld [vmem:[%s13 + $0x318] sm:$0xff]
      %v3627 = vld [vmem:[%s13 + $0x320] sm:$0xff]
      %v3628 = vld [vmem:[%s13 + $0x328] sm:$0xff]
      %v3629 = vld [vmem:[%s13 + $0x330] sm:$0xff]
      %v3630 = vld [vmem:[%s13 + $0x338] sm:$0xff]
      %v3631 = vld [vmem:[%s13 + $0x340] sm:$0xff]
      %v3632 = vld [vmem:[%s13 + $0x348] sm:$0xff]
      %v3633 = vld [vmem:[%s13 + $0x350] sm:$0xff]
      %v3634 = vld [vmem:[%s13 + $0x358] sm:$0xff]
      %v3635 = vld [vmem:[%s13 + $0x360] sm:$0xff]
      %v3636 = vld [vmem:[%s13 + $0x368] sm:$0xff]
      %v3637 = vld [vmem:[%s13 + $0x370] sm:$0xff]
      %v3638 = vld [vmem:[%s13 + $0x378] sm:$0xff]
      %v3639 = vld [vmem:[%s14] sm:$0xff]
      %v3641 = vlaneseq
      %v3642 = vshrl.u32 %v3641, 7
      %v3643 = vsub.s32 0, %v3642
      %v3644 = vrot.slane %v3639, %v3643
      %v3645 = vlaneseq
      %v3646 = vshrl.u32 %v3645, 7
      %v3647 = vsub.s32 1, %v3646
      %v3648 = vrot.slane %v3639, %v3647
      %v3649 = vlaneseq
      %v3650 = vshrl.u32 %v3649, 7
      %v3651 = vsub.s32 2, %v3650
      %v3652 = vrot.slane %v3639, %v3651
      %v3653 = vlaneseq
      %v3654 = vshrl.u32 %v3653, 7
      %v3655 = vsub.s32 3, %v3654
      %v3656 = vrot.slane %v3639, %v3655
      %v3657 = vlaneseq
      %v3658 = vshrl.u32 %v3657, 7
      %v3659 = vsub.s32 4, %v3658
      %v3660 = vrot.slane %v3639, %v3659
      %v3661 = vlaneseq
      %v3662 = vshrl.u32 %v3661, 7
      %v3663 = vsub.s32 5, %v3662
      %v3664 = vrot.slane %v3639, %v3663
      %v3665 = vlaneseq
      %v3666 = vshrl.u32 %v3665, 7
      %v3667 = vsub.s32 6, %v3666
      %v3668 = vrot.slane %v3639, %v3667
      %3676 = vmatprep.subr.mxu0 %v3528
      %3677 = vmatpush1.msra.mxu0 %v3527
      %3678 = vmatprep.subr.mxu0 %v3535
      %3679 = vmatpush1.msra.mxu0 %v3534
      %3680 = vmatprep.subr.mxu0 %v3542
      %3681 = vmatpush1.msra.mxu0 %v3541
      %3682 = vmatprep.subr.mxu0 %v3549
      %3683 = vmatpush1.msra.mxu0 %v3548
      %3684 = vmatprep.subr.mxu0 %v3556
      %3685 = vmatpush1.msra.mxu0 %v3555
      %3686 = vmatprep.subr.mxu0 %v3563
      %3687 = vmatpush1.msra.mxu0 %v3562
      %3688 = vmatprep.subr.mxu0 %v3570
      %3689 = vmatpush1.msra.mxu0 %v3569
      %3690 = vmatprep.subr.mxu0 %v3577
      %3691 = vmatpush1.msra.mxu0 %v3576
      %3692 = vmatprep.subr.mxu0 %v3584
      %3693 = vmatpush1.msra.mxu0 %v3583
      %3694 = vmatprep.subr.mxu0 %v3591
      %3695 = vmatpush1.msra.mxu0 %v3590
      %3696 = vmatprep.subr.mxu0 %v3598
      %3697 = vmatpush1.msra.mxu0 %v3597
      %3698 = vmatprep.subr.mxu0 %v3605
      %3699 = vmatpush1.msra.mxu0 %v3604
      %3700 = vmatprep.subr.mxu0 %v3612
      %3701 = vmatpush1.msra.mxu0 %v3611
      %3702 = vmatprep.subr.mxu0 %v3619
      %3703 = vmatpush1.msra.mxu0 %v3618
      %3704 = vmatprep.subr.mxu0 %v3626
      %3705 = vmatpush1.msra.mxu0 %v3625
      %3706 = vmatprep.subr.mxu0 %v3633
      %3707 = vmatpush1.msra.mxu0 %v3632
      %3708 = vmatprep.subr.mxu0 0.0
      %3709 = vmatpush1.msra.mxu0 0.0
      %3710 = vmatprep.subr.mxu0 0.0
      %3711 = vmatpush1.msra.mxu0 0.0
      %3712 = vmatprep.subr.mxu0 0.0
      %3713 = vmatpush1.msra.mxu0 0.0
      %3714 = vmatprep.subr.mxu0 0.0
      %3715 = vmatpush1.msra.mxu0 0.0
      %3716 = vmatprep.subr.mxu0 0.0
      %3717 = vmatpush1.msra.mxu0 0.0
      %3718 = vmatprep.subr.mxu0 0.0
      %3719 = vmatpush1.msra.mxu0 0.0
      %3720 = vmatprep.subr.mxu0 0.0
      %3721 = vmatpush1.msra.mxu0 0.0
      %3722 = vmatprep.subr.mxu0 0.0
      %3723 = vmatpush1.msra.mxu0 0.0
      %3724 = vmatprep.subr.mxu0 0.0
      %3725 = vmatpush1.msra.mxu0 0.0
      %3726 = vmatprep.subr.mxu0 0.0
      %3727 = vmatpush1.msra.mxu0 0.0
      %3728 = vmatprep.subr.mxu0 0.0
      %3729 = vmatpush1.msra.mxu0 0.0
      %3730 = vmatprep.subr.mxu0 0.0
      %3731 = vmatpush1.msra.mxu0 0.0
      %3732 = vmatprep.subr.mxu0 0.0
      %3733 = vmatpush1.msra.mxu0 0.0
      %3734 = vmatprep.subr.mxu0 0.0
      %3735 = vmatpush1.msra.mxu0 0.0
      %3736 = vmatprep.subr.mxu0 0.0
      %3737 = vmatpush1.msra.mxu0 0.0
      %3738 = vmatprep.subr.mxu0 0.0
      %3739 = vmatpush1.msra.mxu0 0.0
      %3740 = vmatprep.mubr.f32.mxu0 0.0
      %3741 = vmatmul.mubr.f32.gmra.mrb[0].mxu0 %v3495
      %v3742 = vpop.f32.mrb[0].mxu0
      %v3743 = vadd.f32 %v3644, %v3742
      %v3744 = vpop.f32.mrb[0].mxu0
      %v3745 = vadd.f32 %v3648, %v3744
      %3746 = vmatprep.mubr.f32.mxu0 0.0
      %3747 = vmatmul.mubr.f32.gmra.mrb[0].mxu0 %v3496
      %v3748 = vpop.f32.mrb[0].mxu0
      %v3749 = vadd.f32 %v3644, %v3748
      %v3750 = vpop.f32.mrb[0].mxu0
      %v3751 = vadd.f32 %v3648, %v3750
      %3752 = vmatprep.mubr.f32.mxu0 0.0
      %3753 = vmatmul.mubr.f32.gmra.mrb[0].mxu0 %v3497
      %v3754 = vpop.f32.mrb[0].mxu0
      %v3755 = vadd.f32 %v3644, %v3754
      %v3756 = vpop.f32.mrb[0].mxu0
      %v3757 = vadd.f32 %v3648, %v3756
      %3758 = vmatprep.mubr.f32.mxu0 0.0
      %3759 = vmatmul.mubr.f32.gmra.mrb[0].mxu0 %v3498
      %v3760 = vpop.f32.mrb[0].mxu0
      %v3761 = vadd.f32 %v3644, %v3760
      %v3762 = vpop.f32.mrb[0].mxu0
      %v3763 = vadd.f32 %v3648, %v3762
      %3764 = vmatprep.mubr.f32.mxu0 0.0
      %3765 = vmatmul.mubr.f32.gmra.mrb[0].mxu0 %v3499
      %v3766 = vpop.f32.mrb[0].mxu0
      %v3767 = vadd.f32 %v3644, %v3766
      %v3768 = vpop.f32.mrb[0].mxu0
      %v3769 = vadd.f32 %v3648, %v3768
      %3770 = vmatprep.mubr.f32.mxu0 0.0
      %3771 = vmatmul.mubr.f32.gmra.mrb[0].mxu0 %v3500
      %v3772 = vpop.f32.mrb[0].mxu0
      %v3773 = vadd.f32 %v3644, %v3772
      %v3774 = vpop.f32.mrb[0].mxu0
      %v3775 = vadd.f32 %v3648, %v3774
      %3776 = vmatprep.mubr.f32.mxu0 0.0
      %3777 = vmatmul.mubr.f32.gmra.mrb[0].mxu0 %v3501
      %v3778 = vpop.f32.mrb[0].mxu0
      %v3779 = vadd.f32 %v3644, %v3778
      %v3780 = vpop.f32.mrb[0].mxu0
      %v3781 = vadd.f32 %v3648, %v3780
      %3782 = vmatprep.mubr.f32.mxu0 0.0
      %3783 = vmatmul.mubr.f32.gmra.mrb[0].mxu0 %v3502
      %v3784 = vpop.f32.mrb[0].mxu0
      %v3785 = vadd.f32 %v3644, %v3784
      %v3786 = vpop.f32.mrb[0].mxu0
      %v3787 = vadd.f32 %v3648, %v3786
      %3788 = vmatprep.mubr.f32.mxu0 0.0
      %3789 = vmatmul.mubr.f32.gmra.mrb[0].mxu0 %v3503
      %v3790 = vpop.f32.mrb[0].mxu0
      %v3791 = vadd.f32 %v3644, %v3790
      %v3792 = vpop.f32.mrb[0].mxu0
      %v3793 = vadd.f32 %v3648, %v3792
      %3794 = vmatprep.mubr.f32.mxu0 0.0
      %3795 = vmatmul.mubr.f32.gmra.mrb[0].mxu0 %v3504
      %v3796 = vpop.f32.mrb[0].mxu0
      %v3797 = vadd.f32 %v3644, %v3796
      %v3798 = vpop.f32.mrb[0].mxu0
      %v3799 = vadd.f32 %v3648, %v3798
      %3800 = vmatprep.mubr.f32.mxu0 0.0
      %3801 = vmatmul.mubr.f32.gmra.mrb[0].mxu0 %v3505
      %v3802 = vpop.f32.mrb[0].mxu0
      %v3803 = vadd.f32 %v3644, %v3802
      %v3804 = vpop.f32.mrb[0].mxu0
      %v3805 = vadd.f32 %v3648, %v3804
      %3806 = vmatprep.mubr.f32.mxu0 0.0
      %3807 = vmatmul.mubr.f32.gmra.mrb[0].mxu0 %v3506
      %v3808 = vpop.f32.mrb[0].mxu0
      %v3809 = vadd.f32 %v3644, %v3808
      %v3810 = vpop.f32.mrb[0].mxu0
      %v3811 = vadd.f32 %v3648, %v3810
      %3812 = vmatprep.mubr.f32.mxu0 0.0
      %3813 = vmatmul.mubr.f32.gmra.mrb[0].mxu0 %v3507
      %v3814 = vpop.f32.mrb[0].mxu0
      %v3815 = vadd.f32 %v3644, %v3814
      %v3816 = vpop.f32.mrb[0].mxu0
      %v3817 = vadd.f32 %v3648, %v3816
      %3818 = vmatprep.mubr.f32.mxu0 0.0
      %3819 = vmatmul.mubr.f32.gmra.mrb[0].mxu0 %v3508
      %v3820 = vpop.f32.mrb[0].mxu0
      %v3821 = vadd.f32 %v3644, %v3820
      %v3822 = vpop.f32.mrb[0].mxu0
      %v3823 = vadd.f32 %v3648, %v3822
      %3824 = vmatprep.mubr.f32.mxu0 0.0
      %3825 = vmatmul.mubr.f32.gmra.mrb[0].mxu0 %v3509
      %v3826 = vpop.f32.mrb[0].mxu0
      %v3827 = vadd.f32 %v3644, %v3826
      %v3828 = vpop.f32.mrb[0].mxu0
      %v3829 = vadd.f32 %v3648, %v3828
      %3830 = vmatprep.mubr.f32.mxu0 0.0
      %3831 = vmatmul.mubr.f32.gmra.mrb[0].mxu0 %v3510
      %v3832 = vpop.f32.mrb[0].mxu0
      %v3833 = vadd.f32 %v3644, %v3832
      %v3834 = vpop.f32.mrb[0].mxu0
      %v3835 = vadd.f32 %v3648, %v3834
      %3836 = vmatprep.mubr.f32.mxu0 0.0
      %3837 = vmatmul.mubr.f32.gmra.mrb[0].mxu0 %v3511
      %v3838 = vpop.f32.mrb[0].mxu0
      %v3839 = vadd.f32 %v3644, %v3838
      %v3840 = vpop.f32.mrb[0].mxu0
      %v3841 = vadd.f32 %v3648, %v3840
      %3842 = vmatprep.mubr.f32.mxu0 0.0
      %3843 = vmatmul.mubr.f32.gmra.mrb[0].mxu0 %v3512
      %v3844 = vpop.f32.mrb[0].mxu0
      %v3845 = vadd.f32 %v3644, %v3844
      %v3846 = vpop.f32.mrb[0].mxu0
      %v3847 = vadd.f32 %v3648, %v3846
      %3848 = vmatprep.mubr.f32.mxu0 0.0
      %3849 = vmatmul.mubr.f32.gmra.mrb[0].mxu0 %v3513
      %v3850 = vpop.f32.mrb[0].mxu0
      %v3851 = vadd.f32 %v3644, %v3850
      %v3852 = vpop.f32.mrb[0].mxu0
      %v3853 = vadd.f32 %v3648, %v3852
      %3854 = vmatprep.mubr.f32.mxu0 0.0
      %3855 = vmatmul.mubr.f32.gmra.mrb[0].mxu0 %v3514
      %v3856 = vpop.f32.mrb[0].mxu0
      %v3857 = vadd.f32 %v3644, %v3856
      %v3858 = vpop.f32.mrb[0].mxu0
      %v3859 = vadd.f32 %v3648, %v3858
      %3860 = vmatprep.mubr.f32.mxu0 0.0
      %3861 = vmatmul.mubr.f32.gmra.mrb[0].mxu0 %v3515
      %v3862 = vpop.f32.mrb[0].mxu0
      %v3863 = vadd.f32 %v3644, %v3862
      %v3864 = vpop.f32.mrb[0].mxu0
      %v3865 = vadd.f32 %v3648, %v3864
      %3866 = vmatprep.mubr.f32.mxu0 0.0
      %3867 = vmatmul.mubr.f32.gmra.mrb[0].mxu0 %v3516
      %v3868 = vpop.f32.mrb[0].mxu0
      %v3869 = vadd.f32 %v3644, %v3868
      %v3870 = vpop.f32.mrb[0].mxu0
      %v3871 = vadd.f32 %v3648, %v3870
      %3872 = vmatprep.mubr.f32.mxu0 0.0
      %3873 = vmatmul.mubr.f32.gmra.mrb[0].mxu0 %v3517
      %v3874 = vpop.f32.mrb[0].mxu0
      %v3875 = vadd.f32 %v3644, %v3874
      %v3876 = vpop.f32.mrb[0].mxu0
      %v3877 = vadd.f32 %v3648, %v3876
      %3878 = vmatprep.mubr.f32.mxu0 0.0
      %3879 = vmatmul.mubr.f32.gmra.mrb[0].mxu0 %v3518
      %v3880 = vpop.f32.mrb[0].mxu0
      %v3881 = vadd.f32 %v3644, %v3880
      %v3882 = vpop.f32.mrb[0].mxu0
      %v3883 = vadd.f32 %v3648, %v3882
      %3884 = vmatprep.mubr.f32.mxu0 0.0
      %3885 = vmatmul.mubr.f32.gmra.mrb[0].mxu0 %v3519
      %v3886 = vpop.f32.mrb[0].mxu0
      %v3887 = vadd.f32 %v3644, %v3886
      %v3888 = vpop.f32.mrb[0].mxu0
      %v3889 = vadd.f32 %v3648, %v3888
      %3890 = vmatprep.mubr.f32.mxu0 0.0
      %3891 = vmatmul.mubr.f32.gmra.mrb[0].mxu0 %v3520
      %v3892 = vpop.f32.mrb[0].mxu0
      %v3893 = vadd.f32 %v3644, %v3892
      %v3894 = vpop.f32.mrb[0].mxu0
      %v3895 = vadd.f32 %v3648, %v3894
      %3896 = vmatprep.mubr.f32.mxu0 0.0
      %3897 = vmatmul.mubr.f32.gmra.mrb[0].mxu0 %v3521
      %v3898 = vpop.f32.mrb[0].mxu0
      %v3899 = vadd.f32 %v3644, %v3898
      %v3900 = vpop.f32.mrb[0].mxu0
      %v3901 = vadd.f32 %v3648, %v3900
      %3902 = vmatprep.mubr.f32.mxu0 0.0
      %3903 = vmatmul.mubr.f32.gmra.mrb[0].mxu0 %v3522
      %v3904 = vpop.f32.mrb[0].mxu0
      %v3905 = vadd.f32 %v3644, %v3904
      %v3906 = vpop.f32.mrb[0].mxu0
      %v3907 = vadd.f32 %v3648, %v3906
      %3908 = vmatprep.mubr.f32.mxu0 0.0
      %3909 = vmatmul.mubr.f32.gmra.mrb[0].mxu0 %v3523
      %v3910 = vpop.f32.mrb[0].mxu0
      %v3911 = vadd.f32 %v3644, %v3910
      %v3912 = vpop.f32.mrb[0].mxu0
      %v3913 = vadd.f32 %v3648, %v3912
      %3914 = vmatprep.mubr.f32.mxu0 0.0
      %3915 = vmatmul.mubr.f32.gmra.mrb[0].mxu0 %v3524
      %v3916 = vpop.f32.mrb[0].mxu0
      %v3917 = vadd.f32 %v3644, %v3916
      %v3918 = vpop.f32.mrb[0].mxu0
      %v3919 = vadd.f32 %v3648, %v3918
      %3920 = vmatprep.mubr.f32.mxu0 0.0
      %3921 = vmatmul.mubr.f32.gmra.mrb[0].mxu0 %v3525
      %v3922 = vpop.f32.mrb[0].mxu0
      %v3923 = vadd.f32 %v3644, %v3922
      %v3924 = vpop.f32.mrb[0].mxu0
      %v3925 = vadd.f32 %v3648, %v3924
      %3926 = vmatprep.mubr.f32.mxu0 0.0
      %3927 = vmatmul.mubr.f32.gmra.mrb[0].mxu0 %v3526
      %v3928 = vpop.f32.mrb[0].mxu0
      %v3929 = vadd.f32 %v3644, %v3928
      %v3930 = vpop.f32.mrb[0].mxu0
      %v3931 = vadd.f32 %v3648, %v3930
      %3932 = vdwg.mxu0
      %3933 = vmatprep.subr.mxu0 %v3530
      %3934 = vmatpush1.msra.mxu0 %v3529
      %3935 = vmatprep.subr.mxu0 %v3537
      %3936 = vmatpush1.msra.mxu0 %v3536
      %3937 = vmatprep.subr.mxu0 %v3544
      %3938 = vmatpush1.msra.mxu0 %v3543
      %3939 = vmatprep.subr.mxu0 %v3551
      %3940 = vmatpush1.msra.mxu0 %v3550
      %3941 = vmatprep.subr.mxu0 %v3558
      %3942 = vmatpush1.msra.mxu0 %v3557
      %3943 = vmatprep.subr.mxu0 %v3565
      %3944 = vmatpush1.msra.mxu0 %v3564
      %3945 = vmatprep.subr.mxu0 %v3572
      %3946 = vmatpush1.msra.mxu0 %v3571
      %3947 = vmatprep.subr.mxu0 %v3579
      %3948 = vmatpush1.msra.mxu0 %v3578
      %3949 = vmatprep.subr.mxu0 %v3586
      %3950 = vmatpush1.msra.mxu0 %v3585
      %3951 = vmatprep.subr.mxu0 %v3593
      %3952 = vmatpush1.msra.mxu0 %v3592
      %3953 = vmatprep.subr.mxu0 %v3600
      %3954 = vmatpush1.msra.mxu0 %v3599
      %3955 = vmatprep.subr.mxu0 %v3607
      %3956 = vmatpush1.msra.mxu0 %v3606
      %3957 = vmatprep.subr.mxu0 %v3614
      %3958 = vmatpush1.msra.mxu0 %v3613
      %3959 = vmatprep.subr.mxu0 %v3621
      %3960 = vmatpush1.msra.mxu0 %v3620
      %3961 = vmatprep.subr.mxu0 %v3628
      %3962 = vmatpush1.msra.mxu0 %v3627
      %3963 = vmatprep.subr.mxu0 %v3635
      %3964 = vmatpush1.msra.mxu0 %v3634
      %3965 = vmatprep.subr.mxu0 0.0
      %3966 = vmatpush1.msra.mxu0 0.0
      %3967 = vmatprep.subr.mxu0 0.0
      %3968 = vmatpush1.msra.mxu0 0.0
      %3969 = vmatprep.subr.mxu0 0.0
      %3970 = vmatpush1.msra.mxu0 0.0
      %3971 = vmatprep.subr.mxu0 0.0
      %3972 = vmatpush1.msra.mxu0 0.0
      %3973 = vmatprep.subr.mxu0 0.0
      %3974 = vmatpush1.msra.mxu0 0.0
      %3975 = vmatprep.subr.mxu0 0.0
      %3976 = vmatpush1.msra.mxu0 0.0
      %3977 = vmatprep.subr.mxu0 0.0
      %3978 = vmatpush1.msra.mxu0 0.0
      %3979 = vmatprep.subr.mxu0 0.0
      %3980 = vmatpush1.msra.mxu0 0.0
      %3981 = vmatprep.subr.mxu0 0.0
      %3982 = vmatpush1.msra.mxu0 0.0
      %3983 = vmatprep.subr.mxu0 0.0
      %3984 = vmatpush1.msra.mxu0 0.0
      %3985 = vmatprep.subr.mxu0 0.0
      %3986 = vmatpush1.msra.mxu0 0.0
      %3987 = vmatprep.subr.mxu0 0.0
      %3988 = vmatpush1.msra.mxu0 0.0
      %3989 = vmatprep.subr.mxu0 0.0
      %3990 = vmatpush1.msra.mxu0 0.0
      %3991 = vmatprep.subr.mxu0 0.0
      %3992 = vmatpush1.msra.mxu0 0.0
      %3993 = vmatprep.subr.mxu0 0.0
      %3994 = vmatpush1.msra.mxu0 0.0
      %3995 = vmatprep.subr.mxu0 0.0
      %3996 = vmatpush1.msra.mxu0 0.0
      %3997 = vmatprep.mubr.f32.mxu0 0.0
      %3998 = vmatmul.mubr.f32.gmra.mrb[0].mxu0 %v3495
      %v3999 = vpop.f32.mrb[0].mxu0
      %v4000 = vadd.f32 %v3652, %v3999
      %v4001 = vpop.f32.mrb[0].mxu0
      %v4002 = vadd.f32 %v3656, %v4001
      %4003 = vmatprep.mubr.f32.mxu0 0.0
      %4004 = vmatmul.mubr.f32.gmra.mrb[0].mxu0 %v3496
      %v4005 = vpop.f32.mrb[0].mxu0
      %v4006 = vadd.f32 %v3652, %v4005
      %v4007 = vpop.f32.mrb[0].mxu0
      %v4008 = vadd.f32 %v3656, %v4007
      %4009 = vmatprep.mubr.f32.mxu0 0.0
      %4010 = vmatmul.mubr.f32.gmra.mrb[0].mxu0 %v3497
      %v4011 = vpop.f32.mrb[0].mxu0
      %v4012 = vadd.f32 %v3652, %v4011
      %v4013 = vpop.f32.mrb[0].mxu0
      %v4014 = vadd.f32 %v3656, %v4013
      %4015 = vmatprep.mubr.f32.mxu0 0.0
      %4016 = vmatmul.mubr.f32.gmra.mrb[0].mxu0 %v3498
      %v4017 = vpop.f32.mrb[0].mxu0
      %v4018 = vadd.f32 %v3652, %v4017
      %v4019 = vpop.f32.mrb[0].mxu0
      %v4020 = vadd.f32 %v3656, %v4019
      %4021 = vmatprep.mubr.f32.mxu0 0.0
      %4022 = vmatmul.mubr.f32.gmra.mrb[0].mxu0 %v3499
      %v4023 = vpop.f32.mrb[0].mxu0
      %v4024 = vadd.f32 %v3652, %v4023
      %v4025 = vpop.f32.mrb[0].mxu0
      %v4026 = vadd.f32 %v3656, %v4025
      %4027 = vmatprep.mubr.f32.mxu0 0.0
      %4028 = vmatmul.mubr.f32.gmra.mrb[0].mxu0 %v3500
      %v4029 = vpop.f32.mrb[0].mxu0
      %v4030 = vadd.f32 %v3652, %v4029
      %v4031 = vpop.f32.mrb[0].mxu0
      %v4032 = vadd.f32 %v3656, %v4031
      %4033 = vmatprep.mubr.f32.mxu0 0.0
      %4034 = vmatmul.mubr.f32.gmra.mrb[0].mxu0 %v3501
      %v4035 = vpop.f32.mrb[0].mxu0
      %v4036 = vadd.f32 %v3652, %v4035
      %v4037 = vpop.f32.mrb[0].mxu0
      %v4038 = vadd.f32 %v3656, %v4037
      %4039 = vmatprep.mubr.f32.mxu0 0.0
      %4040 = vmatmul.mubr.f32.gmra.mrb[0].mxu0 %v3502
      %v4041 = vpop.f32.mrb[0].mxu0
      %v4042 = vadd.f32 %v3652, %v4041
      %v4043 = vpop.f32.mrb[0].mxu0
      %v4044 = vadd.f32 %v3656, %v4043
      %4045 = vmatprep.mubr.f32.mxu0 0.0
      %4046 = vmatmul.mubr.f32.gmra.mrb[0].mxu0 %v3503
      %v4047 = vpop.f32.mrb[0].mxu0
      %v4048 = vadd.f32 %v3652, %v4047
      %v4049 = vpop.f32.mrb[0].mxu0
      %v4050 = vadd.f32 %v3656, %v4049
      %4051 = vmatprep.mubr.f32.mxu0 0.0
      %4052 = vmatmul.mubr.f32.gmra.mrb[0].mxu0 %v3504
      %v4053 = vpop.f32.mrb[0].mxu0
      %v4054 = vadd.f32 %v3652, %v4053
      %v4055 = vpop.f32.mrb[0].mxu0
      %v4056 = vadd.f32 %v3656, %v4055
      %4057 = vmatprep.mubr.f32.mxu0 0.0
      %4058 = vmatmul.mubr.f32.gmra.mrb[0].mxu0 %v3505
      %v4059 = vpop.f32.mrb[0].mxu0
      %v4060 = vadd.f32 %v3652, %v4059
      %v4061 = vpop.f32.mrb[0].mxu0
      %v4062 = vadd.f32 %v3656, %v4061
      %4063 = vmatprep.mubr.f32.mxu0 0.0
      %4064 = vmatmul.mubr.f32.gmra.mrb[0].mxu0 %v3506
      %v4065 = vpop.f32.mrb[0].mxu0
      %v4066 = vadd.f32 %v3652, %v4065
      %v4067 = vpop.f32.mrb[0].mxu0
      %v4068 = vadd.f32 %v3656, %v4067
      %4069 = vmatprep.mubr.f32.mxu0 0.0
      %4070 = vmatmul.mubr.f32.gmra.mrb[0].mxu0 %v3507
      %v4071 = vpop.f32.mrb[0].mxu0
      %v4072 = vadd.f32 %v3652, %v4071
      %v4073 = vpop.f32.mrb[0].mxu0
      %v4074 = vadd.f32 %v3656, %v4073
      %4075 = vmatprep.mubr.f32.mxu0 0.0
      %4076 = vmatmul.mubr.f32.gmra.mrb[0].mxu0 %v3508
      %v4077 = vpop.f32.mrb[0].mxu0
      %v4078 = vadd.f32 %v3652, %v4077
      %v4079 = vpop.f32.mrb[0].mxu0
      %v4080 = vadd.f32 %v3656, %v4079
      %4081 = vmatprep.mubr.f32.mxu0 0.0
      %4082 = vmatmul.mubr.f32.gmra.mrb[0].mxu0 %v3509
      %v4083 = vpop.f32.mrb[0].mxu0
      %v4084 = vadd.f32 %v3652, %v4083
      %v4085 = vpop.f32.mrb[0].mxu0
      %v4086 = vadd.f32 %v3656, %v4085
      %4087 = vmatprep.mubr.f32.mxu0 0.0
      %4088 = vmatmul.mubr.f32.gmra.mrb[0].mxu0 %v3510
      %v4089 = vpop.f32.mrb[0].mxu0
      %v4090 = vadd.f32 %v3652, %v4089
      %v4091 = vpop.f32.mrb[0].mxu0
      %v4092 = vadd.f32 %v3656, %v4091
      %4093 = vmatprep.mubr.f32.mxu0 0.0
      %4094 = vmatmul.mubr.f32.gmra.mrb[0].mxu0 %v3511
      %v4095 = vpop.f32.mrb[0].mxu0
      %v4096 = vadd.f32 %v3652, %v4095
      %v4097 = vpop.f32.mrb[0].mxu0
      %v4098 = vadd.f32 %v3656, %v4097
      %4099 = vmatprep.mubr.f32.mxu0 0.0
      %4100 = vmatmul.mubr.f32.gmra.mrb[0].mxu0 %v3512
      %v4101 = vpop.f32.mrb[0].mxu0
      %v4102 = vadd.f32 %v3652, %v4101
      %v4103 = vpop.f32.mrb[0].mxu0
      %v4104 = vadd.f32 %v3656, %v4103
      %4105 = vmatprep.mubr.f32.mxu0 0.0
      %4106 = vmatmul.mubr.f32.gmra.mrb[0].mxu0 %v3513
      %v4107 = vpop.f32.mrb[0].mxu0
      %v4108 = vadd.f32 %v3652, %v4107
      %v4109 = vpop.f32.mrb[0].mxu0
      %v4110 = vadd.f32 %v3656, %v4109
      %4111 = vmatprep.mubr.f32.mxu0 0.0
      %4112 = vmatmul.mubr.f32.gmra.mrb[0].mxu0 %v3514
      %v4113 = vpop.f32.mrb[0].mxu0
      %v4114 = vadd.f32 %v3652, %v4113
      %v4115 = vpop.f32.mrb[0].mxu0
      %v4116 = vadd.f32 %v3656, %v4115
      %4117 = vmatprep.mubr.f32.mxu0 0.0
      %4118 = vmatmul.mubr.f32.gmra.mrb[0].mxu0 %v3515
      %v4119 = vpop.f32.mrb[0].mxu0
      %v4120 = vadd.f32 %v3652, %v4119
      %v4121 = vpop.f32.mrb[0].mxu0
      %v4122 = vadd.f32 %v3656, %v4121
      %4123 = vmatprep.mubr.f32.mxu0 0.0
      %4124 = vmatmul.mubr.f32.gmra.mrb[0].mxu0 %v3516
      %v4125 = vpop.f32.mrb[0].mxu0
      %v4126 = vadd.f32 %v3652, %v4125
      %v4127 = vpop.f32.mrb[0].mxu0
      %v4128 = vadd.f32 %v3656, %v4127
      %4129 = vmatprep.mubr.f32.mxu0 0.0
      %4130 = vmatmul.mubr.f32.gmra.mrb[0].mxu0 %v3517
      %v4131 = vpop.f32.mrb[0].mxu0
      %v4132 = vadd.f32 %v3652, %v4131
      %v4133 = vpop.f32.mrb[0].mxu0
      %v4134 = vadd.f32 %v3656, %v4133
      %4135 = vmatprep.mubr.f32.mxu0 0.0
      %4136 = vmatmul.mubr.f32.gmra.mrb[0].mxu0 %v3518
      %v4137 = vpop.f32.mrb[0].mxu0
      %v4138 = vadd.f32 %v3652, %v4137
      %v4139 = vpop.f32.mrb[0].mxu0
      %v4140 = vadd.f32 %v3656, %v4139
      %4141 = vmatprep.mubr.f32.mxu0 0.0
      %4142 = vmatmul.mubr.f32.gmra.mrb[0].mxu0 %v3519
      %v4143 = vpop.f32.mrb[0].mxu0
      %v4144 = vadd.f32 %v3652, %v4143
      %v4145 = vpop.f32.mrb[0].mxu0
      %v4146 = vadd.f32 %v3656, %v4145
      %4147 = vmatprep.mubr.f32.mxu0 0.0
      %4148 = vmatmul.mubr.f32.gmra.mrb[0].mxu0 %v3520
      %v4149 = vpop.f32.mrb[0].mxu0
      %v4150 = vadd.f32 %v3652, %v4149
      %v4151 = vpop.f32.mrb[0].mxu0
      %v4152 = vadd.f32 %v3656, %v4151
      %4153 = vmatprep.mubr.f32.mxu0 0.0
      %4154 = vmatmul.mubr.f32.gmra.mrb[0].mxu0 %v3521
      %v4155 = vpop.f32.mrb[0].mxu0
      %v4156 = vadd.f32 %v3652, %v4155
      %v4157 = vpop.f32.mrb[0].mxu0
      %v4158 = vadd.f32 %v3656, %v4157
      %4159 = vmatprep.mubr.f32.mxu0 0.0
      %4160 = vmatmul.mubr.f32.gmra.mrb[0].mxu0 %v3522
      %v4161 = vpop.f32.mrb[0].mxu0
      %v4162 = vadd.f32 %v3652, %v4161
      %v4163 = vpop.f32.mrb[0].mxu0
      %v4164 = vadd.f32 %v3656, %v4163
      %4165 = vmatprep.mubr.f32.mxu0 0.0
      %4166 = vmatmul.mubr.f32.gmra.mrb[0].mxu0 %v3523
      %v4167 = vpop.f32.mrb[0].mxu0
      %v4168 = vadd.f32 %v3652, %v4167
      %v4169 = vpop.f32.mrb[0].mxu0
      %v4170 = vadd.f32 %v3656, %v4169
      %4171 = vmatprep.mubr.f32.mxu0 0.0
      %4172 = vmatmul.mubr.f32.gmra.mrb[0].mxu0 %v3524
      %v4173 = vpop.f32.mrb[0].mxu0
      %v4174 = vadd.f32 %v3652, %v4173
      %v4175 = vpop.f32.mrb[0].mxu0
      %v4176 = vadd.f32 %v3656, %v4175
      %4177 = vmatprep.mubr.f32.mxu0 0.0
      %4178 = vmatmul.mubr.f32.gmra.mrb[0].mxu0 %v3525
      %v4179 = vpop.f32.mrb[0].mxu0
      %v4180 = vadd.f32 %v3652, %v4179
      %v4181 = vpop.f32.mrb[0].mxu0
      %v4182 = vadd.f32 %v3656, %v4181
      %4183 = vmatprep.mubr.f32.mxu0 0.0
      %4184 = vmatmul.mubr.f32.gmra.mrb[0].mxu0 %v3526
      %v4185 = vpop.f32.mrb[0].mxu0
      %v4186 = vadd.f32 %v3652, %v4185
      %v4187 = vpop.f32.mrb[0].mxu0
      %v4188 = vadd.f32 %v3656, %v4187
      %4189 = vdwg.mxu0
      %4190 = vmatprep.subr.mxu0 %v3532
      %4191 = vmatpush1.msra.mxu0 %v3531
      %4192 = vmatprep.subr.mxu0 %v3539
      %4193 = vmatpush1.msra.mxu0 %v3538
      %4194 = vmatprep.subr.mxu0 %v3546
      %4195 = vmatpush1.msra.mxu0 %v3545
      %4196 = vmatprep.subr.mxu0 %v3553
      %4197 = vmatpush1.msra.mxu0 %v3552
      %4198 = vmatprep.subr.mxu0 %v3560
      %4199 = vmatpush1.msra.mxu0 %v3559
      %4200 = vmatprep.subr.mxu0 %v3567
      %4201 = vmatpush1.msra.mxu0 %v3566
      %4202 = vmatprep.subr.mxu0 %v3574
      %4203 = vmatpush1.msra.mxu0 %v3573
      %4204 = vmatprep.subr.mxu0 %v3581
      %4205 = vmatpush1.msra.mxu0 %v3580
      %4206 = vmatprep.subr.mxu0 %v3588
      %4207 = vmatpush1.msra.mxu0 %v3587
      %4208 = vmatprep.subr.mxu0 %v3595
      %4209 = vmatpush1.msra.mxu0 %v3594
      %4210 = vmatprep.subr.mxu0 %v3602
      %4211 = vmatpush1.msra.mxu0 %v3601
      %4212 = vmatprep.subr.mxu0 %v3609
      %4213 = vmatpush1.msra.mxu0 %v3608
      %4214 = vmatprep.subr.mxu0 %v3616
      %4215 = vmatpush1.msra.mxu0 %v3615
      %4216 = vmatprep.subr.mxu0 %v3623
      %4217 = vmatpush1.msra.mxu0 %v3622
      %4218 = vmatprep.subr.mxu0 %v3630
      %4219 = vmatpush1.msra.mxu0 %v3629
      %4220 = vmatprep.subr.mxu0 %v3637
      %4221 = vmatpush1.msra.mxu0 %v3636
      %4222 = vmatprep.subr.mxu0 0.0
      %4223 = vmatpush1.msra.mxu0 0.0
      %4224 = vmatprep.subr.mxu0 0.0
      %4225 = vmatpush1.msra.mxu0 0.0
      %4226 = vmatprep.subr.mxu0 0.0
      %4227 = vmatpush1.msra.mxu0 0.0
      %4228 = vmatprep.subr.mxu0 0.0
      %4229 = vmatpush1.msra.mxu0 0.0
      %4230 = vmatprep.subr.mxu0 0.0
      %4231 = vmatpush1.msra.mxu0 0.0
      %4232 = vmatprep.subr.mxu0 0.0
      %4233 = vmatpush1.msra.mxu0 0.0
      %4234 = vmatprep.subr.mxu0 0.0
      %4235 = vmatpush1.msra.mxu0 0.0
      %4236 = vmatprep.subr.mxu0 0.0
      %4237 = vmatpush1.msra.mxu0 0.0
      %4238 = vmatprep.subr.mxu0 0.0
      %4239 = vmatpush1.msra.mxu0 0.0
      %4240 = vmatprep.subr.mxu0 0.0
      %4241 = vmatpush1.msra.mxu0 0.0
      %4242 = vmatprep.subr.mxu0 0.0
      %4243 = vmatpush1.msra.mxu0 0.0
      %4244 = vmatprep.subr.mxu0 0.0
      %4245 = vmatpush1.msra.mxu0 0.0
      %4246 = vmatprep.subr.mxu0 0.0
      %4247 = vmatpush1.msra.mxu0 0.0
      %4248 = vmatprep.subr.mxu0 0.0
      %4249 = vmatpush1.msra.mxu0 0.0
      %4250 = vmatprep.subr.mxu0 0.0
      %4251 = vmatpush1.msra.mxu0 0.0
      %4252 = vmatprep.subr.mxu0 0.0
      %4253 = vmatpush1.msra.mxu0 0.0
      %4254 = vmatprep.mubr.f32.mxu0 0.0
      %4255 = vmatmul.mubr.f32.gmra.mrb[0].mxu0 %v3495
      %v4256 = vpop.f32.mrb[0].mxu0
      %v4257 = vadd.f32 %v3660, %v4256
      %v4258 = vpop.f32.mrb[0].mxu0
      %v4259 = vadd.f32 %v3664, %v4258
      %4260 = vmatprep.mubr.f32.mxu0 0.0
      %4261 = vmatmul.mubr.f32.gmra.mrb[0].mxu0 %v3496
      %v4262 = vpop.f32.mrb[0].mxu0
      %v4263 = vadd.f32 %v3660, %v4262
      %v4264 = vpop.f32.mrb[0].mxu0
      %v4265 = vadd.f32 %v3664, %v4264
      %4266 = vmatprep.mubr.f32.mxu0 0.0
      %4267 = vmatmul.mubr.f32.gmra.mrb[0].mxu0 %v3497
      %v4268 = vpop.f32.mrb[0].mxu0
      %v4269 = vadd.f32 %v3660, %v4268
      %v4270 = vpop.f32.mrb[0].mxu0
      %v4271 = vadd.f32 %v3664, %v4270
      %4272 = vmatprep.mubr.f32.mxu0 0.0
      %4273 = vmatmul.mubr.f32.gmra.mrb[0].mxu0 %v3498
      %v4274 = vpop.f32.mrb[0].mxu0
      %v4275 = vadd.f32 %v3660, %v4274
      %v4276 = vpop.f32.mrb[0].mxu0
      %v4277 = vadd.f32 %v3664, %v4276
      %4278 = vmatprep.mubr.f32.mxu0 0.0
      %4279 = vmatmul.mubr.f32.gmra.mrb[0].mxu0 %v3499
      %v4280 = vpop.f32.mrb[0].mxu0
      %v4281 = vadd.f32 %v3660, %v4280
      %v4282 = vpop.f32.mrb[0].mxu0
      %v4283 = vadd.f32 %v3664, %v4282
      %4284 = vmatprep.mubr.f32.mxu0 0.0
      %4285 = vmatmul.mubr.f32.gmra.mrb[0].mxu0 %v3500
      %v4286 = vpop.f32.mrb[0].mxu0
      %v4287 = vadd.f32 %v3660, %v4286
      %v4288 = vpop.f32.mrb[0].mxu0
      %v4289 = vadd.f32 %v3664, %v4288
      %4290 = vmatprep.mubr.f32.mxu0 0.0
      %4291 = vmatmul.mubr.f32.gmra.mrb[0].mxu0 %v3501
      %v4292 = vpop.f32.mrb[0].mxu0
      %v4293 = vadd.f32 %v3660, %v4292
      %v4294 = vpop.f32.mrb[0].mxu0
      %v4295 = vadd.f32 %v3664, %v4294
      %4296 = vmatprep.mubr.f32.mxu0 0.0
      %4297 = vmatmul.mubr.f32.gmra.mrb[0].mxu0 %v3502
      %v4298 = vpop.f32.mrb[0].mxu0
      %v4299 = vadd.f32 %v3660, %v4298
      %v4300 = vpop.f32.mrb[0].mxu0
      %v4301 = vadd.f32 %v3664, %v4300
      %4302 = vmatprep.mubr.f32.mxu0 0.0
      %4303 = vmatmul.mubr.f32.gmra.mrb[0].mxu0 %v3503
      %v4304 = vpop.f32.mrb[0].mxu0
      %v4305 = vadd.f32 %v3660, %v4304
      %v4306 = vpop.f32.mrb[0].mxu0
      %v4307 = vadd.f32 %v3664, %v4306
      %4308 = vmatprep.mubr.f32.mxu0 0.0
      %4309 = vmatmul.mubr.f32.gmra.mrb[0].mxu0 %v3504
      %v4310 = vpop.f32.mrb[0].mxu0
      %v4311 = vadd.f32 %v3660, %v4310
      %v4312 = vpop.f32.mrb[0].mxu0
      %v4313 = vadd.f32 %v3664, %v4312
      %4314 = vmatprep.mubr.f32.mxu0 0.0
      %4315 = vmatmul.mubr.f32.gmra.mrb[0].mxu0 %v3505
      %v4316 = vpop.f32.mrb[0].mxu0
      %v4317 = vadd.f32 %v3660, %v4316
      %v4318 = vpop.f32.mrb[0].mxu0
      %v4319 = vadd.f32 %v3664, %v4318
      %4320 = vmatprep.mubr.f32.mxu0 0.0
      %4321 = vmatmul.mubr.f32.gmra.mrb[0].mxu0 %v3506
      %v4322 = vpop.f32.mrb[0].mxu0
      %v4323 = vadd.f32 %v3660, %v4322
      %v4324 = vpop.f32.mrb[0].mxu0
      %v4325 = vadd.f32 %v3664, %v4324
      %4326 = vmatprep.mubr.f32.mxu0 0.0
      %4327 = vmatmul.mubr.f32.gmra.mrb[0].mxu0 %v3507
      %v4328 = vpop.f32.mrb[0].mxu0
      %v4329 = vadd.f32 %v3660, %v4328
      %v4330 = vpop.f32.mrb[0].mxu0
      %v4331 = vadd.f32 %v3664, %v4330
      %4332 = vmatprep.mubr.f32.mxu0 0.0
      %4333 = vmatmul.mubr.f32.gmra.mrb[0].mxu0 %v3508
      %v4334 = vpop.f32.mrb[0].mxu0
      %v4335 = vadd.f32 %v3660, %v4334
      %v4336 = vpop.f32.mrb[0].mxu0
      %v4337 = vadd.f32 %v3664, %v4336
      %4338 = vmatprep.mubr.f32.mxu0 0.0
      %4339 = vmatmul.mubr.f32.gmra.mrb[0].mxu0 %v3509
      %v4340 = vpop.f32.mrb[0].mxu0
      %v4341 = vadd.f32 %v3660, %v4340
      %v4342 = vpop.f32.mrb[0].mxu0
      %v4343 = vadd.f32 %v3664, %v4342
      %4344 = vmatprep.mubr.f32.mxu0 0.0
      %4345 = vmatmul.mubr.f32.gmra.mrb[0].mxu0 %v3510
      %v4346 = vpop.f32.mrb[0].mxu0
      %v4347 = vadd.f32 %v3660, %v4346
      %v4348 = vpop.f32.mrb[0].mxu0
      %v4349 = vadd.f32 %v3664, %v4348
      %4350 = vmatprep.mubr.f32.mxu0 0.0
      %4351 = vmatmul.mubr.f32.gmra.mrb[0].mxu0 %v3511
      %v4352 = vpop.f32.mrb[0].mxu0
      %v4353 = vadd.f32 %v3660, %v4352
      %v4354 = vpop.f32.mrb[0].mxu0
      %v4355 = vadd.f32 %v3664, %v4354
      %4356 = vmatprep.mubr.f32.mxu0 0.0
      %4357 = vmatmul.mubr.f32.gmra.mrb[0].mxu0 %v3512
      %v4358 = vpop.f32.mrb[0].mxu0
      %v4359 = vadd.f32 %v3660, %v4358
      %v4360 = vpop.f32.mrb[0].mxu0
      %v4361 = vadd.f32 %v3664, %v4360
      %4362 = vmatprep.mubr.f32.mxu0 0.0
      %4363 = vmatmul.mubr.f32.gmra.mrb[0].mxu0 %v3513
      %v4364 = vpop.f32.mrb[0].mxu0
      %v4365 = vadd.f32 %v3660, %v4364
      %v4366 = vpop.f32.mrb[0].mxu0
      %v4367 = vadd.f32 %v3664, %v4366
      %4368 = vmatprep.mubr.f32.mxu0 0.0
      %4369 = vmatmul.mubr.f32.gmra.mrb[0].mxu0 %v3514
      %v4370 = vpop.f32.mrb[0].mxu0
      %v4371 = vadd.f32 %v3660, %v4370
      %v4372 = vpop.f32.mrb[0].mxu0
      %v4373 = vadd.f32 %v3664, %v4372
      %4374 = vmatprep.mubr.f32.mxu0 0.0
      %4375 = vmatmul.mubr.f32.gmra.mrb[0].mxu0 %v3515
      %v4376 = vpop.f32.mrb[0].mxu0
      %v4377 = vadd.f32 %v3660, %v4376
      %v4378 = vpop.f32.mrb[0].mxu0
      %v4379 = vadd.f32 %v3664, %v4378
      %4380 = vmatprep.mubr.f32.mxu0 0.0
      %4381 = vmatmul.mubr.f32.gmra.mrb[0].mxu0 %v3516
      %v4382 = vpop.f32.mrb[0].mxu0
      %v4383 = vadd.f32 %v3660, %v4382
      %v4384 = vpop.f32.mrb[0].mxu0
      %v4385 = vadd.f32 %v3664, %v4384
      %4386 = vmatprep.mubr.f32.mxu0 0.0
      %4387 = vmatmul.mubr.f32.gmra.mrb[0].mxu0 %v3517
      %v4388 = vpop.f32.mrb[0].mxu0
      %v4389 = vadd.f32 %v3660, %v4388
      %v4390 = vpop.f32.mrb[0].mxu0
      %v4391 = vadd.f32 %v3664, %v4390
      %4392 = vmatprep.mubr.f32.mxu0 0.0
      %4393 = vmatmul.mubr.f32.gmra.mrb[0].mxu0 %v3518
      %v4394 = vpop.f32.mrb[0].mxu0
      %v4395 = vadd.f32 %v3660, %v4394
      %v4396 = vpop.f32.mrb[0].mxu0
      %v4397 = vadd.f32 %v3664, %v4396
      %4398 = vmatprep.mubr.f32.mxu0 0.0
      %4399 = vmatmul.mubr.f32.gmra.mrb[0].mxu0 %v3519
      %v4400 = vpop.f32.mrb[0].mxu0
      %v4401 = vadd.f32 %v3660, %v4400
      %v4402 = vpop.f32.mrb[0].mxu0
      %v4403 = vadd.f32 %v3664, %v4402
      %4404 = vmatprep.mubr.f32.mxu0 0.0
      %4405 = vmatmul.mubr.f32.gmra.mrb[0].mxu0 %v3520
      %v4406 = vpop.f32.mrb[0].mxu0
      %v4407 = vadd.f32 %v3660, %v4406
      %v4408 = vpop.f32.mrb[0].mxu0
      %v4409 = vadd.f32 %v3664, %v4408
      %4410 = vmatprep.mubr.f32.mxu0 0.0
      %4411 = vmatmul.mubr.f32.gmra.mrb[0].mxu0 %v3521
      %v4412 = vpop.f32.mrb[0].mxu0
      %v4413 = vadd.f32 %v3660, %v4412
      %v4414 = vpop.f32.mrb[0].mxu0
      %v4415 = vadd.f32 %v3664, %v4414
      %4416 = vmatprep.mubr.f32.mxu0 0.0
      %4417 = vmatmul.mubr.f32.gmra.mrb[0].mxu0 %v3522
      %v4418 = vpop.f32.mrb[0].mxu0
      %v4419 = vadd.f32 %v3660, %v4418
      %v4420 = vpop.f32.mrb[0].mxu0
      %v4421 = vadd.f32 %v3664, %v4420
      %4422 = vmatprep.mubr.f32.mxu0 0.0
      %4423 = vmatmul.mubr.f32.gmra.mrb[0].mxu0 %v3523
      %v4424 = vpop.f32.mrb[0].mxu0
      %v4425 = vadd.f32 %v3660, %v4424
      %v4426 = vpop.f32.mrb[0].mxu0
      %v4427 = vadd.f32 %v3664, %v4426
      %4428 = vmatprep.mubr.f32.mxu0 0.0
      %4429 = vmatmul.mubr.f32.gmra.mrb[0].mxu0 %v3524
      %v4430 = vpop.f32.mrb[0].mxu0
      %v4431 = vadd.f32 %v3660, %v4430
      %v4432 = vpop.f32.mrb[0].mxu0
      %v4433 = vadd.f32 %v3664, %v4432
      %4434 = vmatprep.mubr.f32.mxu0 0.0
      %4435 = vmatmul.mubr.f32.gmra.mrb[0].mxu0 %v3525
      %v4436 = vpop.f32.mrb[0].mxu0
      %v4437 = vadd.f32 %v3660, %v4436
      %v4438 = vpop.f32.mrb[0].mxu0
      %v4439 = vadd.f32 %v3664, %v4438
      %4440 = vmatprep.mubr.f32.mxu0 0.0
      %4441 = vmatmul.mubr.f32.gmra.mrb[0].mxu0 %v3526
      %v4442 = vpop.f32.mrb[0].mxu0
      %v4443 = vadd.f32 %v3660, %v4442
      %v4444 = vpop.f32.mrb[0].mxu0
      %v4445 = vadd.f32 %v3664, %v4444
      %4446 = vdwg.mxu0
      %4447 = vmatprep.subr.mxu0 0.0
      %4448 = vmatpush1.msra.mxu0 %v3533
      %4449 = vmatprep.subr.mxu0 0.0
      %4450 = vmatpush1.msra.mxu0 %v3540
      %4451 = vmatprep.subr.mxu0 0.0
      %4452 = vmatpush1.msra.mxu0 %v3547
      %4453 = vmatprep.subr.mxu0 0.0
      %4454 = vmatpush1.msra.mxu0 %v3554
      %4455 = vmatprep.subr.mxu0 0.0
      %4456 = vmatpush1.msra.mxu0 %v3561
      %4457 = vmatprep.subr.mxu0 0.0
      %4458 = vmatpush1.msra.mxu0 %v3568
      %4459 = vmatprep.subr.mxu0 0.0
      %4460 = vmatpush1.msra.mxu0 %v3575
      %4461 = vmatprep.subr.mxu0 0.0
      %4462 = vmatpush1.msra.mxu0 %v3582
      %4463 = vmatprep.subr.mxu0 0.0
      %4464 = vmatpush1.msra.mxu0 %v3589
      %4465 = vmatprep.subr.mxu0 0.0
      %4466 = vmatpush1.msra.mxu0 %v3596
      %4467 = vmatprep.subr.mxu0 0.0
      %4468 = vmatpush1.msra.mxu0 %v3603
      %4469 = vmatprep.subr.mxu0 0.0
      %4470 = vmatpush1.msra.mxu0 %v3610
      %4471 = vmatprep.subr.mxu0 0.0
      %4472 = vmatpush1.msra.mxu0 %v3617
      %4473 = vmatprep.subr.mxu0 0.0
      %4474 = vmatpush1.msra.mxu0 %v3624
      %4475 = vmatprep.subr.mxu0 0.0
      %4476 = vmatpush1.msra.mxu0 %v3631
      %4477 = vmatprep.subr.mxu0 0.0
      %4478 = vmatpush1.msra.mxu0 %v3638
      %4479 = vmatprep.subr.mxu0 0.0
      %4480 = vmatpush1.msra.mxu0 0.0
      %4481 = vmatprep.subr.mxu0 0.0
      %4482 = vmatpush1.msra.mxu0 0.0
      %4483 = vmatprep.subr.mxu0 0.0
      %4484 = vmatpush1.msra.mxu0 0.0
      %4485 = vmatprep.subr.mxu0 0.0
      %4486 = vmatpush1.msra.mxu0 0.0
      %4487 = vmatprep.subr.mxu0 0.0
      %4488 = vmatpush1.msra.mxu0 0.0
      %4489 = vmatprep.subr.mxu0 0.0
      %4490 = vmatpush1.msra.mxu0 0.0
      %4491 = vmatprep.subr.mxu0 0.0
      %4492 = vmatpush1.msra.mxu0 0.0
      %4493 = vmatprep.subr.mxu0 0.0
      %4494 = vmatpush1.msra.mxu0 0.0
      %4495 = vmatprep.subr.mxu0 0.0
      %4496 = vmatpush1.msra.mxu0 0.0
      %4497 = vmatprep.subr.mxu0 0.0
      %4498 = vmatpush1.msra.mxu0 0.0
      %4499 = vmatprep.subr.mxu0 0.0
      %4500 = vmatpush1.msra.mxu0 0.0
      %4501 = vmatprep.subr.mxu0 0.0
      %4502 = vmatpush1.msra.mxu0 0.0
      %4503 = vmatprep.subr.mxu0 0.0
      %4504 = vmatpush1.msra.mxu0 0.0
      %4505 = vmatprep.subr.mxu0 0.0
      %4506 = vmatpush1.msra.mxu0 0.0
      %4507 = vmatprep.subr.mxu0 0.0
      %4508 = vmatpush1.msra.mxu0 0.0
      %4509 = vmatprep.subr.mxu0 0.0
      %4510 = vmatpush1.msra.mxu0 0.0
      %4511 = vmatprep.mubr.f32.mxu0 0.0
      %4512 = vmatmul.mubr.f32.gmra.mrb[0].mxu0 %v3495
      %v4513 = vpop.f32.mrb[0].mxu0
      %v4514 = vadd.f32 %v3668, %v4513
      %v4515 = vpop.f32.mrb[0].mxu0
      %4516 = vmatprep.mubr.f32.mxu0 0.0
      %4517 = vmatmul.mubr.f32.gmra.mrb[0].mxu0 %v3496
      %v4518 = vpop.f32.mrb[0].mxu0
      %v4519 = vadd.f32 %v3668, %v4518
      %v4520 = vpop.f32.mrb[0].mxu0
      %4521 = vmatprep.mubr.f32.mxu0 0.0
      %4522 = vmatmul.mubr.f32.gmra.mrb[0].mxu0 %v3497
      %v4523 = vpop.f32.mrb[0].mxu0
      %v4524 = vadd.f32 %v3668, %v4523
      %v4525 = vpop.f32.mrb[0].mxu0
      %4526 = vmatprep.mubr.f32.mxu0 0.0
      %4527 = vmatmul.mubr.f32.gmra.mrb[0].mxu0 %v3498
      %v4528 = vpop.f32.mrb[0].mxu0
      %v4529 = vadd.f32 %v3668, %v4528
      %v4530 = vpop.f32.mrb[0].mxu0
      %4531 = vmatprep.mubr.f32.mxu0 0.0
      %4532 = vmatmul.mubr.f32.gmra.mrb[0].mxu0 %v3499
      %v4533 = vpop.f32.mrb[0].mxu0
      %v4534 = vadd.f32 %v3668, %v4533
      %v4535 = vpop.f32.mrb[0].mxu0
      %4536 = vmatprep.mubr.f32.mxu0 0.0
      %4537 = vmatmul.mubr.f32.gmra.mrb[0].mxu0 %v3500
      %v4538 = vpop.f32.mrb[0].mxu0
      %v4539 = vadd.f32 %v3668, %v4538
      %v4540 = vpop.f32.mrb[0].mxu0
      %4541 = vmatprep.mubr.f32.mxu0 0.0
      %4542 = vmatmul.mubr.f32.gmra.mrb[0].mxu0 %v3501
      %v4543 = vpop.f32.mrb[0].mxu0
      %v4544 = vadd.f32 %v3668, %v4543
      %v4545 = vpop.f32.mrb[0].mxu0
      %4546 = vmatprep.mubr.f32.mxu0 0.0
      %4547 = vmatmul.mubr.f32.gmra.mrb[0].mxu0 %v3502
      %v4548 = vpop.f32.mrb[0].mxu0
      %v4549 = vadd.f32 %v3668, %v4548
      %v4550 = vpop.f32.mrb[0].mxu0
      %4551 = vmatprep.mubr.f32.mxu0 0.0
      %4552 = vmatmul.mubr.f32.gmra.mrb[0].mxu0 %v3503
      %v4553 = vpop.f32.mrb[0].mxu0
      %v4554 = vadd.f32 %v3668, %v4553
      %v4555 = vpop.f32.mrb[0].mxu0
      %4556 = vmatprep.mubr.f32.mxu0 0.0
      %4557 = vmatmul.mubr.f32.gmra.mrb[0].mxu0 %v3504
      %v4558 = vpop.f32.mrb[0].mxu0
      %v4559 = vadd.f32 %v3668, %v4558
      %v4560 = vpop.f32.mrb[0].mxu0
      %4561 = vmatprep.mubr.f32.mxu0 0.0
      %4562 = vmatmul.mubr.f32.gmra.mrb[0].mxu0 %v3505
      %v4563 = vpop.f32.mrb[0].mxu0
      %v4564 = vadd.f32 %v3668, %v4563
      %v4565 = vpop.f32.mrb[0].mxu0
      %4566 = vmatprep.mubr.f32.mxu0 0.0
      %4567 = vmatmul.mubr.f32.gmra.mrb[0].mxu0 %v3506
      %v4568 = vpop.f32.mrb[0].mxu0
      %v4569 = vadd.f32 %v3668, %v4568
      %v4570 = vpop.f32.mrb[0].mxu0
      %4571 = vmatprep.mubr.f32.mxu0 0.0
      %4572 = vmatmul.mubr.f32.gmra.mrb[0].mxu0 %v3507
      %v4573 = vpop.f32.mrb[0].mxu0
      %v4574 = vadd.f32 %v3668, %v4573
      %v4575 = vpop.f32.mrb[0].mxu0
      %4576 = vmatprep.mubr.f32.mxu0 0.0
      %4577 = vmatmul.mubr.f32.gmra.mrb[0].mxu0 %v3508
      %v4578 = vpop.f32.mrb[0].mxu0
      %v4579 = vadd.f32 %v3668, %v4578
      %v4580 = vpop.f32.mrb[0].mxu0
      %4581 = vmatprep.mubr.f32.mxu0 0.0
      %4582 = vmatmul.mubr.f32.gmra.mrb[0].mxu0 %v3509
      %v4583 = vpop.f32.mrb[0].mxu0
      %v4584 = vadd.f32 %v3668, %v4583
      %v4585 = vpop.f32.mrb[0].mxu0
      %4586 = vmatprep.mubr.f32.mxu0 0.0
      %4587 = vmatmul.mubr.f32.gmra.mrb[0].mxu0 %v3510
      %v4588 = vpop.f32.mrb[0].mxu0
      %v4589 = vadd.f32 %v3668, %v4588
      %v4590 = vpop.f32.mrb[0].mxu0
      %4591 = vmatprep.mubr.f32.mxu0 0.0
      %4592 = vmatmul.mubr.f32.gmra.mrb[0].mxu0 %v3511
      %v4593 = vpop.f32.mrb[0].mxu0
      %v4594 = vadd.f32 %v3668, %v4593
      %v4595 = vpop.f32.mrb[0].mxu0
      %4596 = vmatprep.mubr.f32.mxu0 0.0
      %4597 = vmatmul.mubr.f32.gmra.mrb[0].mxu0 %v3512
      %v4598 = vpop.f32.mrb[0].mxu0
      %v4599 = vadd.f32 %v3668, %v4598
      %v4600 = vpop.f32.mrb[0].mxu0
      %4601 = vmatprep.mubr.f32.mxu0 0.0
      %4602 = vmatmul.mubr.f32.gmra.mrb[0].mxu0 %v3513
      %v4603 = vpop.f32.mrb[0].mxu0
      %v4604 = vadd.f32 %v3668, %v4603
      %v4605 = vpop.f32.mrb[0].mxu0
      %4606 = vmatprep.mubr.f32.mxu0 0.0
      %4607 = vmatmul.mubr.f32.gmra.mrb[0].mxu0 %v3514
      %v4608 = vpop.f32.mrb[0].mxu0
      %v4609 = vadd.f32 %v3668, %v4608
      %v4610 = vpop.f32.mrb[0].mxu0
      %4611 = vmatprep.mubr.f32.mxu0 0.0
      %4612 = vmatmul.mubr.f32.gmra.mrb[0].mxu0 %v3515
      %v4613 = vpop.f32.mrb[0].mxu0
      %v4614 = vadd.f32 %v3668, %v4613
      %v4615 = vpop.f32.mrb[0].mxu0
      %4616 = vmatprep.mubr.f32.mxu0 0.0
      %4617 = vmatmul.mubr.f32.gmra.mrb[0].mxu0 %v3516
      %v4618 = vpop.f32.mrb[0].mxu0
      %v4619 = vadd.f32 %v3668, %v4618
      %v4620 = vpop.f32.mrb[0].mxu0
      %4621 = vmatprep.mubr.f32.mxu0 0.0
      %4622 = vmatmul.mubr.f32.gmra.mrb[0].mxu0 %v3517
      %v4623 = vpop.f32.mrb[0].mxu0
      %v4624 = vadd.f32 %v3668, %v4623
      %v4625 = vpop.f32.mrb[0].mxu0
      %4626 = vmatprep.mubr.f32.mxu0 0.0
      %4627 = vmatmul.mubr.f32.gmra.mrb[0].mxu0 %v3518
      %v4628 = vpop.f32.mrb[0].mxu0
      %v4629 = vadd.f32 %v3668, %v4628
      %v4630 = vpop.f32.mrb[0].mxu0
      %4631 = vmatprep.mubr.f32.mxu0 0.0
      %4632 = vmatmul.mubr.f32.gmra.mrb[0].mxu0 %v3519
      %v4633 = vpop.f32.mrb[0].mxu0
      %v4634 = vadd.f32 %v3668, %v4633
      %v4635 = vpop.f32.mrb[0].mxu0
      %4636 = vmatprep.mubr.f32.mxu0 0.0
      %4637 = vmatmul.mubr.f32.gmra.mrb[0].mxu0 %v3520
      %v4638 = vpop.f32.mrb[0].mxu0
      %v4639 = vadd.f32 %v3668, %v4638
      %v4640 = vpop.f32.mrb[0].mxu0
      %4641 = vmatprep.mubr.f32.mxu0 0.0
      %4642 = vmatmul.mubr.f32.gmra.mrb[0].mxu0 %v3521
      %v4643 = vpop.f32.mrb[0].mxu0
      %v4644 = vadd.f32 %v3668, %v4643
      %v4645 = vpop.f32.mrb[0].mxu0
      %4646 = vmatprep.mubr.f32.mxu0 0.0
      %4647 = vmatmul.mubr.f32.gmra.mrb[0].mxu0 %v3522
      %v4648 = vpop.f32.mrb[0].mxu0
      %v4649 = vadd.f32 %v3668, %v4648
      %v4650 = vpop.f32.mrb[0].mxu0
      %4651 = vmatprep.mubr.f32.mxu0 0.0
      %4652 = vmatmul.mubr.f32.gmra.mrb[0].mxu0 %v3523
      %v4653 = vpop.f32.mrb[0].mxu0
      %v4654 = vadd.f32 %v3668, %v4653
      %v4655 = vpop.f32.mrb[0].mxu0
      %4656 = vmatprep.mubr.f32.mxu0 0.0
      %4657 = vmatmul.mubr.f32.gmra.mrb[0].mxu0 %v3524
      %v4658 = vpop.f32.mrb[0].mxu0
      %v4659 = vadd.f32 %v3668, %v4658
      %v4660 = vpop.f32.mrb[0].mxu0
      %4661 = vmatprep.mubr.f32.mxu0 0.0
      %4662 = vmatmul.mubr.f32.gmra.mrb[0].mxu0 %v3525
      %v4663 = vpop.f32.mrb[0].mxu0
      %v4664 = vadd.f32 %v3668, %v4663
      %v4665 = vpop.f32.mrb[0].mxu0
      %4666 = vmatprep.mubr.f32.mxu0 0.0
      %4667 = vmatmul.mubr.f32.gmra.mrb[0].mxu0 %v3526
      %v4668 = vpop.f32.mrb[0].mxu0
      %v4669 = vadd.f32 %v3668, %v4668
      %v4670 = vpop.f32.mrb[0].mxu0
      %4671 = vdwg.mxu0
      %v4672 = vxor.u32 %v3743, 2147483648
      %v4673 = vxor.u32 %v3745, 2147483648
      %v4674 = vxor.u32 %v4000, 2147483648
      %v4675 = vxor.u32 %v4002, 2147483648
      %v4676 = vxor.u32 %v4257, 2147483648
      %v4677 = vxor.u32 %v4259, 2147483648
      %v4678 = vxor.u32 %v4514, 2147483648
      %v4679 = vxor.u32 %v3749, 2147483648
      %v4680 = vxor.u32 %v3751, 2147483648
      %v4681 = vxor.u32 %v4006, 2147483648
      %v4682 = vxor.u32 %v4008, 2147483648
      %v4683 = vxor.u32 %v4263, 2147483648
      %v4684 = vxor.u32 %v4265, 2147483648
      %v4685 = vxor.u32 %v4519, 2147483648
      %v4686 = vxor.u32 %v3755, 2147483648
      %v4687 = vxor.u32 %v3757, 2147483648
      %v4688 = vxor.u32 %v4012, 2147483648
      %v4689 = vxor.u32 %v4014, 2147483648
      %v4690 = vxor.u32 %v4269, 2147483648
      %v4691 = vxor.u32 %v4271, 2147483648
      %v4692 = vxor.u32 %v4524, 2147483648
      %v4693 = vxor.u32 %v3761, 2147483648
      %v4694 = vxor.u32 %v3763, 2147483648
      %v4695 = vxor.u32 %v4018, 2147483648
      %v4696 = vxor.u32 %v4020, 2147483648
      %v4697 = vxor.u32 %v4275, 2147483648
      %v4698 = vxor.u32 %v4277, 2147483648
      %v4699 = vxor.u32 %v4529, 2147483648
      %v4700 = vxor.u32 %v3767, 2147483648
      %v4701 = vxor.u32 %v3769, 2147483648
      %v4702 = vxor.u32 %v4024, 2147483648
      %v4703 = vxor.u32 %v4026, 2147483648
      %v4704 = vxor.u32 %v4281, 2147483648
      %v4705 = vxor.u32 %v4283, 2147483648
      %v4706 = vxor.u32 %v4534, 2147483648
      %v4707 = vxor.u32 %v3773, 2147483648
      %v4708 = vxor.u32 %v3775, 2147483648
      %v4709 = vxor.u32 %v4030, 2147483648
      %v4710 = vxor.u32 %v4032, 2147483648
      %v4711 = vxor.u32 %v4287, 2147483648
      %v4712 = vxor.u32 %v4289, 2147483648
      %v4713 = vxor.u32 %v4539, 2147483648
      %v4714 = vxor.u32 %v3779, 2147483648
      %v4715 = vxor.u32 %v3781, 2147483648
      %v4716 = vxor.u32 %v4036, 2147483648
      %v4717 = vxor.u32 %v4038, 2147483648
      %v4718 = vxor.u32 %v4293, 2147483648
      %v4719 = vxor.u32 %v4295, 2147483648
      %v4720 = vxor.u32 %v4544, 2147483648
      %v4721 = vxor.u32 %v3785, 2147483648
      %v4722 = vxor.u32 %v3787, 2147483648
      %v4723 = vxor.u32 %v4042, 2147483648
      %v4724 = vxor.u32 %v4044, 2147483648
      %v4725 = vxor.u32 %v4299, 2147483648
      %v4726 = vxor.u32 %v4301, 2147483648
      %v4727 = vxor.u32 %v4549, 2147483648
      %v4728 = vxor.u32 %v3791, 2147483648
      %v4729 = vxor.u32 %v3793, 2147483648
      %v4730 = vxor.u32 %v4048, 2147483648
      %v4731 = vxor.u32 %v4050, 2147483648
      %v4732 = vxor.u32 %v4305, 2147483648
      %v4733 = vxor.u32 %v4307, 2147483648
      %v4734 = vxor.u32 %v4554, 2147483648
      %v4735 = vxor.u32 %v3797, 2147483648
      %v4736 = vxor.u32 %v3799, 2147483648
      %v4737 = vxor.u32 %v4054, 2147483648
      %v4738 = vxor.u32 %v4056, 2147483648
      %v4739 = vxor.u32 %v4311, 2147483648
      %v4740 = vxor.u32 %v4313, 2147483648
      %v4741 = vxor.u32 %v4559, 2147483648
      %v4742 = vxor.u32 %v3803, 2147483648
      %v4743 = vxor.u32 %v3805, 2147483648
      %v4744 = vxor.u32 %v4060, 2147483648
      %v4745 = vxor.u32 %v4062, 2147483648
      %v4746 = vxor.u32 %v4317, 2147483648
      %v4747 = vxor.u32 %v4319, 2147483648
      %v4748 = vxor.u32 %v4564, 2147483648
      %v4749 = vxor.u32 %v3809, 2147483648
      %v4750 = vxor.u32 %v3811, 2147483648
      %v4751 = vxor.u32 %v4066, 2147483648
      %v4752 = vxor.u32 %v4068, 2147483648
      %v4753 = vxor.u32 %v4323, 2147483648
      %v4754 = vxor.u32 %v4325, 2147483648
      %v4755 = vxor.u32 %v4569, 2147483648
      %v4756 = vxor.u32 %v3815, 2147483648
      %v4757 = vxor.u32 %v3817, 2147483648
      %v4758 = vxor.u32 %v4072, 2147483648
      %v4759 = vxor.u32 %v4074, 2147483648
      %v4760 = vxor.u32 %v4329, 2147483648
      %v4761 = vxor.u32 %v4331, 2147483648
      %v4762 = vxor.u32 %v4574, 2147483648
      %v4763 = vxor.u32 %v3821, 2147483648
      %v4764 = vxor.u32 %v3823, 2147483648
      %v4765 = vxor.u32 %v4078, 2147483648
      %v4766 = vxor.u32 %v4080, 2147483648
      %v4767 = vxor.u32 %v4335, 2147483648
      %v4768 = vxor.u32 %v4337, 2147483648
      %v4769 = vxor.u32 %v4579, 2147483648
      %v4770 = vxor.u32 %v3827, 2147483648
      %v4771 = vxor.u32 %v3829, 2147483648
      %v4772 = vxor.u32 %v4084, 2147483648
      %v4773 = vxor.u32 %v4086, 2147483648
      %v4774 = vxor.u32 %v4341, 2147483648
      %v4775 = vxor.u32 %v4343, 2147483648
      %v4776 = vxor.u32 %v4584, 2147483648
      %v4777 = vxor.u32 %v3833, 2147483648
      %v4778 = vxor.u32 %v3835, 2147483648
      %v4779 = vxor.u32 %v4090, 2147483648
      %v4780 = vxor.u32 %v4092, 2147483648
      %v4781 = vxor.u32 %v4347, 2147483648
      %v4782 = vxor.u32 %v4349, 2147483648
      %v4783 = vxor.u32 %v4589, 2147483648
      %v4784 = vxor.u32 %v3839, 2147483648
      %v4785 = vxor.u32 %v3841, 2147483648
      %v4786 = vxor.u32 %v4096, 2147483648
      %v4787 = vxor.u32 %v4098, 2147483648
      %v4788 = vxor.u32 %v4353, 2147483648
      %v4789 = vxor.u32 %v4355, 2147483648
      %v4790 = vxor.u32 %v4594, 2147483648
      %v4791 = vxor.u32 %v3845, 2147483648
      %v4792 = vxor.u32 %v3847, 2147483648
      %v4793 = vxor.u32 %v4102, 2147483648
      %v4794 = vxor.u32 %v4104, 2147483648
      %v4795 = vxor.u32 %v4359, 2147483648
      %v4796 = vxor.u32 %v4361, 2147483648
      %v4797 = vxor.u32 %v4599, 2147483648
      %v4798 = vxor.u32 %v3851, 2147483648
      %v4799 = vxor.u32 %v3853, 2147483648
      %v4800 = vxor.u32 %v4108, 2147483648
      %v4801 = vxor.u32 %v4110, 2147483648
      %v4802 = vxor.u32 %v4365, 2147483648
      %v4803 = vxor.u32 %v4367, 2147483648
      %v4804 = vxor.u32 %v4604, 2147483648
      %v4805 = vxor.u32 %v3857, 2147483648
      %v4806 = vxor.u32 %v3859, 2147483648
      %v4807 = vxor.u32 %v4114, 2147483648
      %v4808 = vxor.u32 %v4116, 2147483648
      %v4809 = vxor.u32 %v4371, 2147483648
      %v4810 = vxor.u32 %v4373, 2147483648
      %v4811 = vxor.u32 %v4609, 2147483648
      %v4812 = vxor.u32 %v3863, 2147483648
      %v4813 = vxor.u32 %v3865, 2147483648
      %v4814 = vxor.u32 %v4120, 2147483648
      %v4815 = vxor.u32 %v4122, 2147483648
      %v4816 = vxor.u32 %v4377, 2147483648
      %v4817 = vxor.u32 %v4379, 2147483648
      %v4818 = vxor.u32 %v4614, 2147483648
      %v4819 = vxor.u32 %v3869, 2147483648
      %v4820 = vxor.u32 %v3871, 2147483648
      %v4821 = vxor.u32 %v4126, 2147483648
      %v4822 = vxor.u32 %v4128, 2147483648
      %v4823 = vxor.u32 %v4383, 2147483648
      %v4824 = vxor.u32 %v4385, 2147483648
      %v4825 = vxor.u32 %v4619, 2147483648
      %v4826 = vxor.u32 %v3875, 2147483648
      %v4827 = vxor.u32 %v3877, 2147483648
      %v4828 = vxor.u32 %v4132, 2147483648
      %v4829 = vxor.u32 %v4134, 2147483648
      %v4830 = vxor.u32 %v4389, 2147483648
      %v4831 = vxor.u32 %v4391, 2147483648
      %v4832 = vxor.u32 %v4624, 2147483648
      %v4833 = vxor.u32 %v3881, 2147483648
      %v4834 = vxor.u32 %v3883, 2147483648
      %v4835 = vxor.u32 %v4138, 2147483648
      %v4836 = vxor.u32 %v4140, 2147483648
      %v4837 = vxor.u32 %v4395, 2147483648
      %v4838 = vxor.u32 %v4397, 2147483648
      %v4839 = vxor.u32 %v4629, 2147483648
      %v4840 = vxor.u32 %v3887, 2147483648
      %v4841 = vxor.u32 %v3889, 2147483648
      %v4842 = vxor.u32 %v4144, 2147483648
      %v4843 = vxor.u32 %v4146, 2147483648
      %v4844 = vxor.u32 %v4401, 2147483648
      %v4845 = vxor.u32 %v4403, 2147483648
      %v4846 = vxor.u32 %v4634, 2147483648
      %v4847 = vxor.u32 %v3893, 2147483648
      %v4848 = vxor.u32 %v3895, 2147483648
      %v4849 = vxor.u32 %v4150, 2147483648
      %v4850 = vxor.u32 %v4152, 2147483648
      %v4851 = vxor.u32 %v4407, 2147483648
      %v4852 = vxor.u32 %v4409, 2147483648
      %v4853 = vxor.u32 %v4639, 2147483648
      %v4854 = vxor.u32 %v3899, 2147483648
      %v4855 = vxor.u32 %v3901, 2147483648
      %v4856 = vxor.u32 %v4156, 2147483648
      %v4857 = vxor.u32 %v4158, 2147483648
      %v4858 = vxor.u32 %v4413, 2147483648
      %v4859 = vxor.u32 %v4415, 2147483648
      %v4860 = vxor.u32 %v4644, 2147483648
      %v4861 = vxor.u32 %v3905, 2147483648
      %v4862 = vxor.u32 %v3907, 2147483648
      %v4863 = vxor.u32 %v4162, 2147483648
      %v4864 = vxor.u32 %v4164, 2147483648
      %v4865 = vxor.u32 %v4419, 2147483648
      %v4866 = vxor.u32 %v4421, 2147483648
      %v4867 = vxor.u32 %v4649, 2147483648
      %v4868 = vxor.u32 %v3911, 2147483648
      %v4869 = vxor.u32 %v3913, 2147483648
      %v4870 = vxor.u32 %v4168, 2147483648
      %v4871 = vxor.u32 %v4170, 2147483648
      %v4872 = vxor.u32 %v4425, 2147483648
      %v4873 = vxor.u32 %v4427, 2147483648
      %v4874 = vxor.u32 %v4654, 2147483648
      %v4875 = vxor.u32 %v3917, 2147483648
      %v4876 = vxor.u32 %v3919, 2147483648
      %v4877 = vxor.u32 %v4174, 2147483648
      %v4878 = vxor.u32 %v4176, 2147483648
      %v4879 = vxor.u32 %v4431, 2147483648
      %v4880 = vxor.u32 %v4433, 2147483648
      %v4881 = vxor.u32 %v4659, 2147483648
      %v4882 = vxor.u32 %v3923, 2147483648
      %v4883 = vxor.u32 %v3925, 2147483648
      %v4884 = vxor.u32 %v4180, 2147483648
      %v4885 = vxor.u32 %v4182, 2147483648
      %v4886 = vxor.u32 %v4437, 2147483648
      %v4887 = vxor.u32 %v4439, 2147483648
      %v4888 = vxor.u32 %v4664, 2147483648
      %v4889 = vxor.u32 %v3929, 2147483648
      %v4890 = vxor.u32 %v3931, 2147483648
      %v4891 = vxor.u32 %v4186, 2147483648
      %v4892 = vxor.u32 %v4188, 2147483648
      %v4893 = vxor.u32 %v4443, 2147483648
      %v4894 = vxor.u32 %v4445, 2147483648
      %v4895 = vxor.u32 %v4669, 2147483648
      %v4896 = vmul.f32 %v4672, 1.442695
      %v4897 = vpow.pop %v4896
      %v4898 = vmul.f32 %v4673, 1.442695
      %v4899 = vpow.pop %v4898
      %v4900 = vmul.f32 %v4674, 1.442695
      %v4901 = vpow.pop %v4900
      %v4902 = vmul.f32 %v4675, 1.442695
      %v4903 = vpow.pop %v4902
      %v4904 = vmul.f32 %v4676, 1.442695
      %v4905 = vpow.pop %v4904
      %v4906 = vmul.f32 %v4677, 1.442695
      %v4907 = vpow.pop %v4906
      %v4908 = vmul.f32 %v4678, 1.442695
      %v4909 = vpow.pop %v4908
      %v4910 = vmul.f32 %v4679, 1.442695
      %v4911 = vpow.pop %v4910
      %v4912 = vmul.f32 %v4680, 1.442695
      %v4913 = vpow.pop %v4912
      %v4914 = vmul.f32 %v4681, 1.442695
      %v4915 = vpow.pop %v4914
      %v4916 = vmul.f32 %v4682, 1.442695
      %v4917 = vpow.pop %v4916
      %v4918 = vmul.f32 %v4683, 1.442695
      %v4919 = vpow.pop %v4918
      %v4920 = vmul.f32 %v4684, 1.442695
      %v4921 = vpow.pop %v4920
      %v4922 = vmul.f32 %v4685, 1.442695
      %v4923 = vpow.pop %v4922
      %v4924 = vmul.f32 %v4686, 1.442695
      %v4925 = vpow.pop %v4924
      %v4926 = vmul.f32 %v4687, 1.442695
      %v4927 = vpow.pop %v4926
      %v4928 = vmul.f32 %v4688, 1.442695
      %v4929 = vpow.pop %v4928
      %v4930 = vmul.f32 %v4689, 1.442695
      %v4931 = vpow.pop %v4930
      %v4932 = vmul.f32 %v4690, 1.442695
      %v4933 = vpow.pop %v4932
      %v4934 = vmul.f32 %v4691, 1.442695
      %v4935 = vpow.pop %v4934
      %v4936 = vmul.f32 %v4692, 1.442695
      %v4937 = vpow.pop %v4936
      %v4938 = vmul.f32 %v4693, 1.442695
      %v4939 = vpow.pop %v4938
      %v4940 = vmul.f32 %v4694, 1.442695
      %v4941 = vpow.pop %v4940
      %v4942 = vmul.f32 %v4695, 1.442695
      %v4943 = vpow.pop %v4942
      %v4944 = vmul.f32 %v4696, 1.442695
      %v4945 = vpow.pop %v4944
      %v4946 = vmul.f32 %v4697, 1.442695
      %v4947 = vpow.pop %v4946
      %v4948 = vmul.f32 %v4698, 1.442695
      %v4949 = vpow.pop %v4948
      %v4950 = vmul.f32 %v4699, 1.442695
      %v4951 = vpow.pop %v4950
      %v4952 = vmul.f32 %v4700, 1.442695
      %v4953 = vpow.pop %v4952
      %v4954 = vmul.f32 %v4701, 1.442695
      %v4955 = vpow.pop %v4954
      %v4956 = vmul.f32 %v4702, 1.442695
      %v4957 = vpow.pop %v4956
      %v4958 = vmul.f32 %v4703, 1.442695
      %v4959 = vpow.pop %v4958
      %v4960 = vmul.f32 %v4704, 1.442695
      %v4961 = vpow.pop %v4960
      %v4962 = vmul.f32 %v4705, 1.442695
      %v4963 = vpow.pop %v4962
      %v4964 = vmul.f32 %v4706, 1.442695
      %v4965 = vpow.pop %v4964
      %v4966 = vmul.f32 %v4707, 1.442695
      %v4967 = vpow.pop %v4966
      %v4968 = vmul.f32 %v4708, 1.442695
      %v4969 = vpow.pop %v4968
      %v4970 = vmul.f32 %v4709, 1.442695
      %v4971 = vpow.pop %v4970
      %v4972 = vmul.f32 %v4710, 1.442695
      %v4973 = vpow.pop %v4972
      %v4974 = vmul.f32 %v4711, 1.442695
      %v4975 = vpow.pop %v4974
      %v4976 = vmul.f32 %v4712, 1.442695
      %v4977 = vpow.pop %v4976
      %v4978 = vmul.f32 %v4713, 1.442695
      %v4979 = vpow.pop %v4978
      %v4980 = vmul.f32 %v4714, 1.442695
      %v4981 = vpow.pop %v4980
      %v4982 = vmul.f32 %v4715, 1.442695
      %v4983 = vpow.pop %v4982
      %v4984 = vmul.f32 %v4716, 1.442695
      %v4985 = vpow.pop %v4984
      %v4986 = vmul.f32 %v4717, 1.442695
      %v4987 = vpow.pop %v4986
      %v4988 = vmul.f32 %v4718, 1.442695
      %v4989 = vpow.pop %v4988
      %v4990 = vmul.f32 %v4719, 1.442695
      %v4991 = vpow.pop %v4990
      %v4992 = vmul.f32 %v4720, 1.442695
      %v4993 = vpow.pop %v4992
      %v4994 = vmul.f32 %v4721, 1.442695
      %v4995 = vpow.pop %v4994
      %v4996 = vmul.f32 %v4722, 1.442695
      %v4997 = vpow.pop %v4996
      %v4998 = vmul.f32 %v4723, 1.442695
      %v4999 = vpow.pop %v4998
      %v5000 = vmul.f32 %v4724, 1.442695
      %v5001 = vpow.pop %v5000
      %v5002 = vmul.f32 %v4725, 1.442695
      %v5003 = vpow.pop %v5002
      %v5004 = vmul.f32 %v4726, 1.442695
      %v5005 = vpow.pop %v5004
      %v5006 = vmul.f32 %v4727, 1.442695
      %v5007 = vpow.pop %v5006
      %v5008 = vmul.f32 %v4728, 1.442695
      %v5009 = vpow.pop %v5008
      %v5010 = vmul.f32 %v4729, 1.442695
      %v5011 = vpow.pop %v5010
      %v5012 = vmul.f32 %v4730, 1.442695
      %v5013 = vpow.pop %v5012
      %v5014 = vmul.f32 %v4731, 1.442695
      %v5015 = vpow.pop %v5014
      %v5016 = vmul.f32 %v4732, 1.442695
      %v5017 = vpow.pop %v5016
      %v5018 = vmul.f32 %v4733, 1.442695
      %v5019 = vpow.pop %v5018
      %v5020 = vmul.f32 %v4734, 1.442695
      %v5021 = vpow.pop %v5020
      %v5022 = vmul.f32 %v4735, 1.442695
      %v5023 = vpow.pop %v5022
      %v5024 = vmul.f32 %v4736, 1.442695
      %v5025 = vpow.pop %v5024
      %v5026 = vmul.f32 %v4737, 1.442695
      %v5027 = vpow.pop %v5026
      %v5028 = vmul.f32 %v4738, 1.442695
      %v5029 = vpow.pop %v5028
      %v5030 = vmul.f32 %v4739, 1.442695
      %v5031 = vpow.pop %v5030
      %v5032 = vmul.f32 %v4740, 1.442695
      %v5033 = vpow.pop %v5032
      %v5034 = vmul.f32 %v4741, 1.442695
      %v5035 = vpow.pop %v5034
      %v5036 = vmul.f32 %v4742, 1.442695
      %v5037 = vpow.pop %v5036
      %v5038 = vmul.f32 %v4743, 1.442695
      %v5039 = vpow.pop %v5038
      %v5040 = vmul.f32 %v4744, 1.442695
      %v5041 = vpow.pop %v5040
      %v5042 = vmul.f32 %v4745, 1.442695
      %v5043 = vpow.pop %v5042
      %v5044 = vmul.f32 %v4746, 1.442695
      %v5045 = vpow.pop %v5044
      %v5046 = vmul.f32 %v4747, 1.442695
      %v5047 = vpow.pop %v5046
      %v5048 = vmul.f32 %v4748, 1.442695
      %v5049 = vpow.pop %v5048
      %v5050 = vmul.f32 %v4749, 1.442695
      %v5051 = vpow.pop %v5050
      %v5052 = vmul.f32 %v4750, 1.442695
      %v5053 = vpow.pop %v5052
      %v5054 = vmul.f32 %v4751, 1.442695
      %v5055 = vpow.pop %v5054
      %v5056 = vmul.f32 %v4752, 1.442695
      %v5057 = vpow.pop %v5056
      %v5058 = vmul.f32 %v4753, 1.442695
      %v5059 = vpow.pop %v5058
      %v5060 = vmul.f32 %v4754, 1.442695
      %v5061 = vpow.pop %v5060
      %v5062 = vmul.f32 %v4755, 1.442695
      %v5063 = vpow.pop %v5062
      %v5064 = vmul.f32 %v4756, 1.442695
      %v5065 = vpow.pop %v5064
      %v5066 = vmul.f32 %v4757, 1.442695
      %v5067 = vpow.pop %v5066
      %v5068 = vmul.f32 %v4758, 1.442695
      %v5069 = vpow.pop %v5068
      %v5070 = vmul.f32 %v4759, 1.442695
      %v5071 = vpow.pop %v5070
      %v5072 = vmul.f32 %v4760, 1.442695
      %v5073 = vpow.pop %v5072
      %v5074 = vmul.f32 %v4761, 1.442695
      %v5075 = vpow.pop %v5074
      %v5076 = vmul.f32 %v4762, 1.442695
      %v5077 = vpow.pop %v5076
      %v5078 = vmul.f32 %v4763, 1.442695
      %v5079 = vpow.pop %v5078
      %v5080 = vmul.f32 %v4764, 1.442695
      %v5081 = vpow.pop %v5080
      %v5082 = vmul.f32 %v4765, 1.442695
      %v5083 = vpow.pop %v5082
      %v5084 = vmul.f32 %v4766, 1.442695
      %v5085 = vpow.pop %v5084
      %v5086 = vmul.f32 %v4767, 1.442695
      %v5087 = vpow.pop %v5086
      %v5088 = vmul.f32 %v4768, 1.442695
      %v5089 = vpow.pop %v5088
      %v5090 = vmul.f32 %v4769, 1.442695
      %v5091 = vpow.pop %v5090
      %v5092 = vmul.f32 %v4770, 1.442695
      %v5093 = vpow.pop %v5092
      %v5094 = vmul.f32 %v4771, 1.442695
      %v5095 = vpow.pop %v5094
      %v5096 = vmul.f32 %v4772, 1.442695
      %v5097 = vpow.pop %v5096
      %v5098 = vmul.f32 %v4773, 1.442695
      %v5099 = vpow.pop %v5098
      %v5100 = vmul.f32 %v4774, 1.442695
      %v5101 = vpow.pop %v5100
      %v5102 = vmul.f32 %v4775, 1.442695
      %v5103 = vpow.pop %v5102
      %v5104 = vmul.f32 %v4776, 1.442695
      %v5105 = vpow.pop %v5104
      %v5106 = vmul.f32 %v4777, 1.442695
      %v5107 = vpow.pop %v5106
      %v5108 = vmul.f32 %v4778, 1.442695
      %v5109 = vpow.pop %v5108
      %v5110 = vmul.f32 %v4779, 1.442695
      %v5111 = vpow.pop %v5110
      %v5112 = vmul.f32 %v4780, 1.442695
      %v5113 = vpow.pop %v5112
      %v5114 = vmul.f32 %v4781, 1.442695
      %v5115 = vpow.pop %v5114
      %v5116 = vmul.f32 %v4782, 1.442695
      %v5117 = vpow.pop %v5116
      %v5118 = vmul.f32 %v4783, 1.442695
      %v5119 = vpow.pop %v5118
      %v5120 = vmul.f32 %v4784, 1.442695
      %v5121 = vpow.pop %v5120
      %v5122 = vmul.f32 %v4785, 1.442695
      %v5123 = vpow.pop %v5122
      %v5124 = vmul.f32 %v4786, 1.442695
      %v5125 = vpow.pop %v5124
      %v5126 = vmul.f32 %v4787, 1.442695
      %v5127 = vpow.pop %v5126
      %v5128 = vmul.f32 %v4788, 1.442695
      %v5129 = vpow.pop %v5128
      %v5130 = vmul.f32 %v4789, 1.442695
      %v5131 = vpow.pop %v5130
      %v5132 = vmul.f32 %v4790, 1.442695
      %v5133 = vpow.pop %v5132
      %v5134 = vmul.f32 %v4791, 1.442695
      %v5135 = vpow.pop %v5134
      %v5136 = vmul.f32 %v4792, 1.442695
      %v5137 = vpow.pop %v5136
      %v5138 = vmul.f32 %v4793, 1.442695
      %v5139 = vpow.pop %v5138
      %v5140 = vmul.f32 %v4794, 1.442695
      %v5141 = vpow.pop %v5140
      %v5142 = vmul.f32 %v4795, 1.442695
      %v5143 = vpow.pop %v5142
      %v5144 = vmul.f32 %v4796, 1.442695
      %v5145 = vpow.pop %v5144
      %v5146 = vmul.f32 %v4797, 1.442695
      %v5147 = vpow.pop %v5146
      %v5148 = vmul.f32 %v4798, 1.442695
      %v5149 = vpow.pop %v5148
      %v5150 = vmul.f32 %v4799, 1.442695
      %v5151 = vpow.pop %v5150
      %v5152 = vmul.f32 %v4800, 1.442695
      %v5153 = vpow.pop %v5152
      %v5154 = vmul.f32 %v4801, 1.442695
      %v5155 = vpow.pop %v5154
      %v5156 = vmul.f32 %v4802, 1.442695
      %v5157 = vpow.pop %v5156
      %v5158 = vmul.f32 %v4803, 1.442695
      %v5159 = vpow.pop %v5158
      %v5160 = vmul.f32 %v4804, 1.442695
      %v5161 = vpow.pop %v5160
      %v5162 = vmul.f32 %v4805, 1.442695
      %v5163 = vpow.pop %v5162
      %v5164 = vmul.f32 %v4806, 1.442695
      %v5165 = vpow.pop %v5164
      %v5166 = vmul.f32 %v4807, 1.442695
      %v5167 = vpow.pop %v5166
      %v5168 = vmul.f32 %v4808, 1.442695
      %v5169 = vpow.pop %v5168
      %v5170 = vmul.f32 %v4809, 1.442695
      %v5171 = vpow.pop %v5170
      %v5172 = vmul.f32 %v4810, 1.442695
      %v5173 = vpow.pop %v5172
      %v5174 = vmul.f32 %v4811, 1.442695
      %v5175 = vpow.pop %v5174
      %v5176 = vmul.f32 %v4812, 1.442695
      %v5177 = vpow.pop %v5176
      %v5178 = vmul.f32 %v4813, 1.442695
      %v5179 = vpow.pop %v5178
      %v5180 = vmul.f32 %v4814, 1.442695
      %v5181 = vpow.pop %v5180
      %v5182 = vmul.f32 %v4815, 1.442695
      %v5183 = vpow.pop %v5182
      %v5184 = vmul.f32 %v4816, 1.442695
      %v5185 = vpow.pop %v5184
      %v5186 = vmul.f32 %v4817, 1.442695
      %v5187 = vpow.pop %v5186
      %v5188 = vmul.f32 %v4818, 1.442695
      %v5189 = vpow.pop %v5188
      %v5190 = vmul.f32 %v4819, 1.442695
      %v5191 = vpow.pop %v5190
      %v5192 = vmul.f32 %v4820, 1.442695
      %v5193 = vpow.pop %v5192
      %v5194 = vmul.f32 %v4821, 1.442695
      %v5195 = vpow.pop %v5194
      %v5196 = vmul.f32 %v4822, 1.442695
      %v5197 = vpow.pop %v5196
      %v5198 = vmul.f32 %v4823, 1.442695
      %v5199 = vpow.pop %v5198
      %v5200 = vmul.f32 %v4824, 1.442695
      %v5201 = vpow.pop %v5200
      %v5202 = vmul.f32 %v4825, 1.442695
      %v5203 = vpow.pop %v5202
      %v5204 = vmul.f32 %v4826, 1.442695
      %v5205 = vpow.pop %v5204
      %v5206 = vmul.f32 %v4827, 1.442695
      %v5207 = vpow.pop %v5206
      %v5208 = vmul.f32 %v4828, 1.442695
      %v5209 = vpow.pop %v5208
      %v5210 = vmul.f32 %v4829, 1.442695
      %v5211 = vpow.pop %v5210
      %v5212 = vmul.f32 %v4830, 1.442695
      %v5213 = vpow.pop %v5212
      %v5214 = vmul.f32 %v4831, 1.442695
      %v5215 = vpow.pop %v5214
      %v5216 = vmul.f32 %v4832, 1.442695
      %v5217 = vpow.pop %v5216
      %v5218 = vmul.f32 %v4833, 1.442695
      %v5219 = vpow.pop %v5218
      %v5220 = vmul.f32 %v4834, 1.442695
      %v5221 = vpow.pop %v5220
      %v5222 = vmul.f32 %v4835, 1.442695
      %v5223 = vpow.pop %v5222
      %v5224 = vmul.f32 %v4836, 1.442695
      %v5225 = vpow.pop %v5224
      %v5226 = vmul.f32 %v4837, 1.442695
      %v5227 = vpow.pop %v5226
      %v5228 = vmul.f32 %v4838, 1.442695
      %v5229 = vpow.pop %v5228
      %v5230 = vmul.f32 %v4839, 1.442695
      %v5231 = vpow.pop %v5230
      %v5232 = vmul.f32 %v4840, 1.442695
      %v5233 = vpow.pop %v5232
      %v5234 = vmul.f32 %v4841, 1.442695
      %v5235 = vpow.pop %v5234
      %v5236 = vmul.f32 %v4842, 1.442695
      %v5237 = vpow.pop %v5236
      %v5238 = vmul.f32 %v4843, 1.442695
      %v5239 = vpow.pop %v5238
      %v5240 = vmul.f32 %v4844, 1.442695
      %v5241 = vpow.pop %v5240
      %v5242 = vmul.f32 %v4845, 1.442695
      %v5243 = vpow.pop %v5242
      %v5244 = vmul.f32 %v4846, 1.442695
      %v5245 = vpow.pop %v5244
      %v5246 = vmul.f32 %v4847, 1.442695
      %v5247 = vpow.pop %v5246
      %v5248 = vmul.f32 %v4848, 1.442695
      %v5249 = vpow.pop %v5248
      %v5250 = vmul.f32 %v4849, 1.442695
      %v5251 = vpow.pop %v5250
      %v5252 = vmul.f32 %v4850, 1.442695
      %v5253 = vpow.pop %v5252
      %v5254 = vmul.f32 %v4851, 1.442695
      %v5255 = vpow.pop %v5254
      %v5256 = vmul.f32 %v4852, 1.442695
      %v5257 = vpow.pop %v5256
      %v5258 = vmul.f32 %v4853, 1.442695
      %v5259 = vpow.pop %v5258
      %v5260 = vmul.f32 %v4854, 1.442695
      %v5261 = vpow.pop %v5260
      %v5262 = vmul.f32 %v4855, 1.442695
      %v5263 = vpow.pop %v5262
      %v5264 = vmul.f32 %v4856, 1.442695
      %v5265 = vpow.pop %v5264
      %v5266 = vmul.f32 %v4857, 1.442695
      %v5267 = vpow.pop %v5266
      %v5268 = vmul.f32 %v4858, 1.442695
      %v5269 = vpow.pop %v5268
      %v5270 = vmul.f32 %v4859, 1.442695
      %v5271 = vpow.pop %v5270
      %v5272 = vmul.f32 %v4860, 1.442695
      %v5273 = vpow.pop %v5272
      %v5274 = vmul.f32 %v4861, 1.442695
      %v5275 = vpow.pop %v5274
      %v5276 = vmul.f32 %v4862, 1.442695
      %v5277 = vpow.pop %v5276
      %v5278 = vmul.f32 %v4863, 1.442695
      %v5279 = vpow.pop %v5278
      %v5280 = vmul.f32 %v4864, 1.442695
      %v5281 = vpow.pop %v5280
      %v5282 = vmul.f32 %v4865, 1.442695
      %v5283 = vpow.pop %v5282
      %v5284 = vmul.f32 %v4866, 1.442695
      %v5285 = vpow.pop %v5284
      %v5286 = vmul.f32 %v4867, 1.442695
      %v5287 = vpow.pop %v5286
      %v5288 = vmul.f32 %v4868, 1.442695
      %v5289 = vpow.pop %v5288
      %v5290 = vmul.f32 %v4869, 1.442695
      %v5291 = vpow.pop %v5290
      %v5292 = vmul.f32 %v4870, 1.442695
      %v5293 = vpow.pop %v5292
      %v5294 = vmul.f32 %v4871, 1.442695
      %v5295 = vpow.pop %v5294
      %v5296 = vmul.f32 %v4872, 1.442695
      %v5297 = vpow.pop %v5296
      %v5298 = vmul.f32 %v4873, 1.442695
      %v5299 = vpow.pop %v5298
      %v5300 = vmul.f32 %v4874, 1.442695
      %v5301 = vpow.pop %v5300
      %v5302 = vmul.f32 %v4875, 1.442695
      %v5303 = vpow.pop %v5302
      %v5304 = vmul.f32 %v4876, 1.442695
      %v5305 = vpow.pop %v5304
      %v5306 = vmul.f32 %v4877, 1.442695
      %v5307 = vpow.pop %v5306
      %v5308 = vmul.f32 %v4878, 1.442695
      %v5309 = vpow.pop %v5308
      %v5310 = vmul.f32 %v4879, 1.442695
      %v5311 = vpow.pop %v5310
      %v5312 = vmul.f32 %v4880, 1.442695
      %v5313 = vpow.pop %v5312
      %v5314 = vmul.f32 %v4881, 1.442695
      %v5315 = vpow.pop %v5314
      %v5316 = vmul.f32 %v4882, 1.442695
      %v5317 = vpow.pop %v5316
      %v5318 = vmul.f32 %v4883, 1.442695
      %v5319 = vpow.pop %v5318
      %v5320 = vmul.f32 %v4884, 1.442695
      %v5321 = vpow.pop %v5320
      %v5322 = vmul.f32 %v4885, 1.442695
      %v5323 = vpow.pop %v5322
      %v5324 = vmul.f32 %v4886, 1.442695
      %v5325 = vpow.pop %v5324
      %v5326 = vmul.f32 %v4887, 1.442695
      %v5327 = vpow.pop %v5326
      %v5328 = vmul.f32 %v4888, 1.442695
      %v5329 = vpow.pop %v5328
      %v5330 = vmul.f32 %v4889, 1.442695
      %v5331 = vpow.pop %v5330
      %v5332 = vmul.f32 %v4890, 1.442695
      %v5333 = vpow.pop %v5332
      %v5334 = vmul.f32 %v4891, 1.442695
      %v5335 = vpow.pop %v5334
      %v5336 = vmul.f32 %v4892, 1.442695
      %v5337 = vpow.pop %v5336
      %v5338 = vmul.f32 %v4893, 1.442695
      %v5339 = vpow.pop %v5338
      %v5340 = vmul.f32 %v4894, 1.442695
      %v5341 = vpow.pop %v5340
      %v5342 = vmul.f32 %v4895, 1.442695
      %v5343 = vpow.pop %v5342
      %v5344 = vadd.f32 %v4897, 1.0
      %v5345 = vadd.f32 %v4899, 1.0
      %v5346 = vadd.f32 %v4901, 1.0
      %v5347 = vadd.f32 %v4903, 1.0
      %v5348 = vadd.f32 %v4905, 1.0
      %v5349 = vadd.f32 %v4907, 1.0
      %v5350 = vadd.f32 %v4909, 1.0
      %v5351 = vadd.f32 %v4911, 1.0
      %v5352 = vadd.f32 %v4913, 1.0
      %v5353 = vadd.f32 %v4915, 1.0
      %v5354 = vadd.f32 %v4917, 1.0
      %v5355 = vadd.f32 %v4919, 1.0
      %v5356 = vadd.f32 %v4921, 1.0
      %v5357 = vadd.f32 %v4923, 1.0
      %v5358 = vadd.f32 %v4925, 1.0
      %v5359 = vadd.f32 %v4927, 1.0
      %v5360 = vadd.f32 %v4929, 1.0
      %v5361 = vadd.f32 %v4931, 1.0
      %v5362 = vadd.f32 %v4933, 1.0
      %v5363 = vadd.f32 %v4935, 1.0
      %v5364 = vadd.f32 %v4937, 1.0
      %v5365 = vadd.f32 %v4939, 1.0
      %v5366 = vadd.f32 %v4941, 1.0
      %v5367 = vadd.f32 %v4943, 1.0
      %v5368 = vadd.f32 %v4945, 1.0
      %v5369 = vadd.f32 %v4947, 1.0
      %v5370 = vadd.f32 %v4949, 1.0
      %v5371 = vadd.f32 %v4951, 1.0
      %v5372 = vadd.f32 %v4953, 1.0
      %v5373 = vadd.f32 %v4955, 1.0
      %v5374 = vadd.f32 %v4957, 1.0
      %v5375 = vadd.f32 %v4959, 1.0
      %v5376 = vadd.f32 %v4961, 1.0
      %v5377 = vadd.f32 %v4963, 1.0
      %v5378 = vadd.f32 %v4965, 1.0
      %v5379 = vadd.f32 %v4967, 1.0
      %v5380 = vadd.f32 %v4969, 1.0
      %v5381 = vadd.f32 %v4971, 1.0
      %v5382 = vadd.f32 %v4973, 1.0
      %v5383 = vadd.f32 %v4975, 1.0
      %v5384 = vadd.f32 %v4977, 1.0
      %v5385 = vadd.f32 %v4979, 1.0
      %v5386 = vadd.f32 %v4981, 1.0
      %v5387 = vadd.f32 %v4983, 1.0
      %v5388 = vadd.f32 %v4985, 1.0
      %v5389 = vadd.f32 %v4987, 1.0
      %v5390 = vadd.f32 %v4989, 1.0
      %v5391 = vadd.f32 %v4991, 1.0
      %v5392 = vadd.f32 %v4993, 1.0
      %v5393 = vadd.f32 %v4995, 1.0
      %v5394 = vadd.f32 %v4997, 1.0
      %v5395 = vadd.f32 %v4999, 1.0
      %v5396 = vadd.f32 %v5001, 1.0
      %v5397 = vadd.f32 %v5003, 1.0
      %v5398 = vadd.f32 %v5005, 1.0
      %v5399 = vadd.f32 %v5007, 1.0
      %v5400 = vadd.f32 %v5009, 1.0
      %v5401 = vadd.f32 %v5011, 1.0
      %v5402 = vadd.f32 %v5013, 1.0
      %v5403 = vadd.f32 %v5015, 1.0
      %v5404 = vadd.f32 %v5017, 1.0
      %v5405 = vadd.f32 %v5019, 1.0
      %v5406 = vadd.f32 %v5021, 1.0
      %v5407 = vadd.f32 %v5023, 1.0
      %v5408 = vadd.f32 %v5025, 1.0
      %v5409 = vadd.f32 %v5027, 1.0
      %v5410 = vadd.f32 %v5029, 1.0
      %v5411 = vadd.f32 %v5031, 1.0
      %v5412 = vadd.f32 %v5033, 1.0
      %v5413 = vadd.f32 %v5035, 1.0
      %v5414 = vadd.f32 %v5037, 1.0
      %v5415 = vadd.f32 %v5039, 1.0
      %v5416 = vadd.f32 %v5041, 1.0
      %v5417 = vadd.f32 %v5043, 1.0
      %v5418 = vadd.f32 %v5045, 1.0
      %v5419 = vadd.f32 %v5047, 1.0
      %v5420 = vadd.f32 %v5049, 1.0
      %v5421 = vadd.f32 %v5051, 1.0
      %v5422 = vadd.f32 %v5053, 1.0
      %v5423 = vadd.f32 %v5055, 1.0
      %v5424 = vadd.f32 %v5057, 1.0
      %v5425 = vadd.f32 %v5059, 1.0
      %v5426 = vadd.f32 %v5061, 1.0
      %v5427 = vadd.f32 %v5063, 1.0
      %v5428 = vadd.f32 %v5065, 1.0
      %v5429 = vadd.f32 %v5067, 1.0
      %v5430 = vadd.f32 %v5069, 1.0
      %v5431 = vadd.f32 %v5071, 1.0
      %v5432 = vadd.f32 %v5073, 1.0
      %v5433 = vadd.f32 %v5075, 1.0
      %v5434 = vadd.f32 %v5077, 1.0
      %v5435 = vadd.f32 %v5079, 1.0
      %v5436 = vadd.f32 %v5081, 1.0
      %v5437 = vadd.f32 %v5083, 1.0
      %v5438 = vadd.f32 %v5085, 1.0
      %v5439 = vadd.f32 %v5087, 1.0
      %v5440 = vadd.f32 %v5089, 1.0
      %v5441 = vadd.f32 %v5091, 1.0
      %v5442 = vadd.f32 %v5093, 1.0
      %v5443 = vadd.f32 %v5095, 1.0
      %v5444 = vadd.f32 %v5097, 1.0
      %v5445 = vadd.f32 %v5099, 1.0
      %v5446 = vadd.f32 %v5101, 1.0
      %v5447 = vadd.f32 %v5103, 1.0
      %v5448 = vadd.f32 %v5105, 1.0
      %v5449 = vadd.f32 %v5107, 1.0
      %v5450 = vadd.f32 %v5109, 1.0
      %v5451 = vadd.f32 %v5111, 1.0
      %v5452 = vadd.f32 %v5113, 1.0
      %v5453 = vadd.f32 %v5115, 1.0
      %v5454 = vadd.f32 %v5117, 1.0
      %v5455 = vadd.f32 %v5119, 1.0
      %v5456 = vadd.f32 %v5121, 1.0
      %v5457 = vadd.f32 %v5123, 1.0
      %v5458 = vadd.f32 %v5125, 1.0
      %v5459 = vadd.f32 %v5127, 1.0
      %v5460 = vadd.f32 %v5129, 1.0
      %v5461 = vadd.f32 %v5131, 1.0
      %v5462 = vadd.f32 %v5133, 1.0
      %v5463 = vadd.f32 %v5135, 1.0
      %v5464 = vadd.f32 %v5137, 1.0
      %v5465 = vadd.f32 %v5139, 1.0
      %v5466 = vadd.f32 %v5141, 1.0
      %v5467 = vadd.f32 %v5143, 1.0
      %v5468 = vadd.f32 %v5145, 1.0
      %v5469 = vadd.f32 %v5147, 1.0
      %v5470 = vadd.f32 %v5149, 1.0
      %v5471 = vadd.f32 %v5151, 1.0
      %v5472 = vadd.f32 %v5153, 1.0
      %v5473 = vadd.f32 %v5155, 1.0
      %v5474 = vadd.f32 %v5157, 1.0
      %v5475 = vadd.f32 %v5159, 1.0
      %v5476 = vadd.f32 %v5161, 1.0
      %v5477 = vadd.f32 %v5163, 1.0
      %v5478 = vadd.f32 %v5165, 1.0
      %v5479 = vadd.f32 %v5167, 1.0
      %v5480 = vadd.f32 %v5169, 1.0
      %v5481 = vadd.f32 %v5171, 1.0
      %v5482 = vadd.f32 %v5173, 1.0
      %v5483 = vadd.f32 %v5175, 1.0
      %v5484 = vadd.f32 %v5177, 1.0
      %v5485 = vadd.f32 %v5179, 1.0
      %v5486 = vadd.f32 %v5181, 1.0
      %v5487 = vadd.f32 %v5183, 1.0
      %v5488 = vadd.f32 %v5185, 1.0
      %v5489 = vadd.f32 %v5187, 1.0
      %v5490 = vadd.f32 %v5189, 1.0
      %v5491 = vadd.f32 %v5191, 1.0
      %v5492 = vadd.f32 %v5193, 1.0
      %v5493 = vadd.f32 %v5195, 1.0
      %v5494 = vadd.f32 %v5197, 1.0
      %v5495 = vadd.f32 %v5199, 1.0
      %v5496 = vadd.f32 %v5201, 1.0
      %v5497 = vadd.f32 %v5203, 1.0
      %v5498 = vadd.f32 %v5205, 1.0
      %v5499 = vadd.f32 %v5207, 1.0
      %v5500 = vadd.f32 %v5209, 1.0
      %v5501 = vadd.f32 %v5211, 1.0
      %v5502 = vadd.f32 %v5213, 1.0
      %v5503 = vadd.f32 %v5215, 1.0
      %v5504 = vadd.f32 %v5217, 1.0
      %v5505 = vadd.f32 %v5219, 1.0
      %v5506 = vadd.f32 %v5221, 1.0
      %v5507 = vadd.f32 %v5223, 1.0
      %v5508 = vadd.f32 %v5225, 1.0
      %v5509 = vadd.f32 %v5227, 1.0
      %v5510 = vadd.f32 %v5229, 1.0
      %v5511 = vadd.f32 %v5231, 1.0
      %v5512 = vadd.f32 %v5233, 1.0
      %v5513 = vadd.f32 %v5235, 1.0
      %v5514 = vadd.f32 %v5237, 1.0
      %v5515 = vadd.f32 %v5239, 1.0
      %v5516 = vadd.f32 %v5241, 1.0
      %v5517 = vadd.f32 %v5243, 1.0
      %v5518 = vadd.f32 %v5245, 1.0
      %v5519 = vadd.f32 %v5247, 1.0
      %v5520 = vadd.f32 %v5249, 1.0
      %v5521 = vadd.f32 %v5251, 1.0
      %v5522 = vadd.f32 %v5253, 1.0
      %v5523 = vadd.f32 %v5255, 1.0
      %v5524 = vadd.f32 %v5257, 1.0
      %v5525 = vadd.f32 %v5259, 1.0
      %v5526 = vadd.f32 %v5261, 1.0
      %v5527 = vadd.f32 %v5263, 1.0
      %v5528 = vadd.f32 %v5265, 1.0
      %v5529 = vadd.f32 %v5267, 1.0
      %v5530 = vadd.f32 %v5269, 1.0
      %v5531 = vadd.f32 %v5271, 1.0
      %v5532 = vadd.f32 %v5273, 1.0
      %v5533 = vadd.f32 %v5275, 1.0
      %v5534 = vadd.f32 %v5277, 1.0
      %v5535 = vadd.f32 %v5279, 1.0
      %v5536 = vadd.f32 %v5281, 1.0
      %v5537 = vadd.f32 %v5283, 1.0
      %v5538 = vadd.f32 %v5285, 1.0
      %v5539 = vadd.f32 %v5287, 1.0
      %v5540 = vadd.f32 %v5289, 1.0
      %v5541 = vadd.f32 %v5291, 1.0
      %v5542 = vadd.f32 %v5293, 1.0
      %v5543 = vadd.f32 %v5295, 1.0
      %v5544 = vadd.f32 %v5297, 1.0
      %v5545 = vadd.f32 %v5299, 1.0
      %v5546 = vadd.f32 %v5301, 1.0
      %v5547 = vadd.f32 %v5303, 1.0
      %v5548 = vadd.f32 %v5305, 1.0
      %v5549 = vadd.f32 %v5307, 1.0
      %v5550 = vadd.f32 %v5309, 1.0
      %v5551 = vadd.f32 %v5311, 1.0
      %v5552 = vadd.f32 %v5313, 1.0
      %v5553 = vadd.f32 %v5315, 1.0
      %v5554 = vadd.f32 %v5317, 1.0
      %v5555 = vadd.f32 %v5319, 1.0
      %v5556 = vadd.f32 %v5321, 1.0
      %v5557 = vadd.f32 %v5323, 1.0
      %v5558 = vadd.f32 %v5325, 1.0
      %v5559 = vadd.f32 %v5327, 1.0
      %v5560 = vadd.f32 %v5329, 1.0
      %v5561 = vadd.f32 %v5331, 1.0
      %v5562 = vadd.f32 %v5333, 1.0
      %v5563 = vadd.f32 %v5335, 1.0
      %v5564 = vadd.f32 %v5337, 1.0
      %v5565 = vadd.f32 %v5339, 1.0
      %v5566 = vadd.f32 %v5341, 1.0
      %v5567 = vadd.f32 %v5343, 1.0
      %v5568 = vrcp.pop %v5344
      %v5569 = vmul.f32 1.0, %v5568
      %v5570 = vrcp.pop %v5345
      %v5571 = vmul.f32 1.0, %v5570
      %v5572 = vrcp.pop %v5346
      %v5573 = vmul.f32 1.0, %v5572
      %v5574 = vrcp.pop %v5347
      %v5575 = vmul.f32 1.0, %v5574
      %v5576 = vrcp.pop %v5348
      %v5577 = vmul.f32 1.0, %v5576
      %v5578 = vrcp.pop %v5349
      %v5579 = vmul.f32 1.0, %v5578
      %v5580 = vrcp.pop %v5350
      %v5581 = vmul.f32 1.0, %v5580
      %v5582 = vrcp.pop %v5351
      %v5583 = vmul.f32 1.0, %v5582
      %v5584 = vrcp.pop %v5352
      %v5585 = vmul.f32 1.0, %v5584
      %v5586 = vrcp.pop %v5353
      %v5587 = vmul.f32 1.0, %v5586
      %v5588 = vrcp.pop %v5354
      %v5589 = vmul.f32 1.0, %v5588
      %v5590 = vrcp.pop %v5355
      %v5591 = vmul.f32 1.0, %v5590
      %v5592 = vrcp.pop %v5356
      %v5593 = vmul.f32 1.0, %v5592
      %v5594 = vrcp.pop %v5357
      %v5595 = vmul.f32 1.0, %v5594
      %v5596 = vrcp.pop %v5358
      %v5597 = vmul.f32 1.0, %v5596
      %v5598 = vrcp.pop %v5359
      %v5599 = vmul.f32 1.0, %v5598
      %v5600 = vrcp.pop %v5360
      %v5601 = vmul.f32 1.0, %v5600
      %v5602 = vrcp.pop %v5361
      %v5603 = vmul.f32 1.0, %v5602
      %v5604 = vrcp.pop %v5362
      %v5605 = vmul.f32 1.0, %v5604
      %v5606 = vrcp.pop %v5363
      %v5607 = vmul.f32 1.0, %v5606
      %v5608 = vrcp.pop %v5364
      %v5609 = vmul.f32 1.0, %v5608
      %v5610 = vrcp.pop %v5365
      %v5611 = vmul.f32 1.0, %v5610
      %v5612 = vrcp.pop %v5366
      %v5613 = vmul.f32 1.0, %v5612
      %v5614 = vrcp.pop %v5367
      %v5615 = vmul.f32 1.0, %v5614
      %v5616 = vrcp.pop %v5368
      %v5617 = vmul.f32 1.0, %v5616
      %v5618 = vrcp.pop %v5369
      %v5619 = vmul.f32 1.0, %v5618
      %v5620 = vrcp.pop %v5370
      %v5621 = vmul.f32 1.0, %v5620
      %v5622 = vrcp.pop %v5371
      %v5623 = vmul.f32 1.0, %v5622
      %v5624 = vrcp.pop %v5372
      %v5625 = vmul.f32 1.0, %v5624
      %v5626 = vrcp.pop %v5373
      %v5627 = vmul.f32 1.0, %v5626
      %v5628 = vrcp.pop %v5374
      %v5629 = vmul.f32 1.0, %v5628
      %v5630 = vrcp.pop %v5375
      %v5631 = vmul.f32 1.0, %v5630
      %v5632 = vrcp.pop %v5376
      %v5633 = vmul.f32 1.0, %v5632
      %v5634 = vrcp.pop %v5377
      %v5635 = vmul.f32 1.0, %v5634
      %v5636 = vrcp.pop %v5378
      %v5637 = vmul.f32 1.0, %v5636
      %v5638 = vrcp.pop %v5379
      %v5639 = vmul.f32 1.0, %v5638
      %v5640 = vrcp.pop %v5380
      %v5641 = vmul.f32 1.0, %v5640
      %v5642 = vrcp.pop %v5381
      %v5643 = vmul.f32 1.0, %v5642
      %v5644 = vrcp.pop %v5382
      %v5645 = vmul.f32 1.0, %v5644
      %v5646 = vrcp.pop %v5383
      %v5647 = vmul.f32 1.0, %v5646
      %v5648 = vrcp.pop %v5384
      %v5649 = vmul.f32 1.0, %v5648
      %v5650 = vrcp.pop %v5385
      %v5651 = vmul.f32 1.0, %v5650
      %v5652 = vrcp.pop %v5386
      %v5653 = vmul.f32 1.0, %v5652
      %v5654 = vrcp.pop %v5387
      %v5655 = vmul.f32 1.0, %v5654
      %v5656 = vrcp.pop %v5388
      %v5657 = vmul.f32 1.0, %v5656
      %v5658 = vrcp.pop %v5389
      %v5659 = vmul.f32 1.0, %v5658
      %v5660 = vrcp.pop %v5390
      %v5661 = vmul.f32 1.0, %v5660
      %v5662 = vrcp.pop %v5391
      %v5663 = vmul.f32 1.0, %v5662
      %v5664 = vrcp.pop %v5392
      %v5665 = vmul.f32 1.0, %v5664
      %v5666 = vrcp.pop %v5393
      %v5667 = vmul.f32 1.0, %v5666
      %v5668 = vrcp.pop %v5394
      %v5669 = vmul.f32 1.0, %v5668
      %v5670 = vrcp.pop %v5395
      %v5671 = vmul.f32 1.0, %v5670
      %v5672 = vrcp.pop %v5396
      %v5673 = vmul.f32 1.0, %v5672
      %v5674 = vrcp.pop %v5397
      %v5675 = vmul.f32 1.0, %v5674
      %v5676 = vrcp.pop %v5398
      %v5677 = vmul.f32 1.0, %v5676
      %v5678 = vrcp.pop %v5399
      %v5679 = vmul.f32 1.0, %v5678
      %v5680 = vrcp.pop %v5400
      %v5681 = vmul.f32 1.0, %v5680
      %v5682 = vrcp.pop %v5401
      %v5683 = vmul.f32 1.0, %v5682
      %v5684 = vrcp.pop %v5402
      %v5685 = vmul.f32 1.0, %v5684
      %v5686 = vrcp.pop %v5403
      %v5687 = vmul.f32 1.0, %v5686
      %v5688 = vrcp.pop %v5404
      %v5689 = vmul.f32 1.0, %v5688
      %v5690 = vrcp.pop %v5405
      %v5691 = vmul.f32 1.0, %v5690
      %v5692 = vrcp.pop %v5406
      %v5693 = vmul.f32 1.0, %v5692
      %v5694 = vrcp.pop %v5407
      %v5695 = vmul.f32 1.0, %v5694
      %v5696 = vrcp.pop %v5408
      %v5697 = vmul.f32 1.0, %v5696
      %v5698 = vrcp.pop %v5409
      %v5699 = vmul.f32 1.0, %v5698
      %v5700 = vrcp.pop %v5410
      %v5701 = vmul.f32 1.0, %v5700
      %v5702 = vrcp.pop %v5411
      %v5703 = vmul.f32 1.0, %v5702
      %v5704 = vrcp.pop %v5412
      %v5705 = vmul.f32 1.0, %v5704
      %v5706 = vrcp.pop %v5413
      %v5707 = vmul.f32 1.0, %v5706
      %v5708 = vrcp.pop %v5414
      %v5709 = vmul.f32 1.0, %v5708
      %v5710 = vrcp.pop %v5415
      %v5711 = vmul.f32 1.0, %v5710
      %v5712 = vrcp.pop %v5416
      %v5713 = vmul.f32 1.0, %v5712
      %v5714 = vrcp.pop %v5417
      %v5715 = vmul.f32 1.0, %v5714
      %v5716 = vrcp.pop %v5418
      %v5717 = vmul.f32 1.0, %v5716
      %v5718 = vrcp.pop %v5419
      %v5719 = vmul.f32 1.0, %v5718
      %v5720 = vrcp.pop %v5420
      %v5721 = vmul.f32 1.0, %v5720
      %v5722 = vrcp.pop %v5421
      %v5723 = vmul.f32 1.0, %v5722
      %v5724 = vrcp.pop %v5422
      %v5725 = vmul.f32 1.0, %v5724
      %v5726 = vrcp.pop %v5423
      %v5727 = vmul.f32 1.0, %v5726
      %v5728 = vrcp.pop %v5424
      %v5729 = vmul.f32 1.0, %v5728
      %v5730 = vrcp.pop %v5425
      %v5731 = vmul.f32 1.0, %v5730
      %v5732 = vrcp.pop %v5426
      %v5733 = vmul.f32 1.0, %v5732
      %v5734 = vrcp.pop %v5427
      %v5735 = vmul.f32 1.0, %v5734
      %v5736 = vrcp.pop %v5428
      %v5737 = vmul.f32 1.0, %v5736
      %v5738 = vrcp.pop %v5429
      %v5739 = vmul.f32 1.0, %v5738
      %v5740 = vrcp.pop %v5430
      %v5741 = vmul.f32 1.0, %v5740
      %v5742 = vrcp.pop %v5431
      %v5743 = vmul.f32 1.0, %v5742
      %v5744 = vrcp.pop %v5432
      %v5745 = vmul.f32 1.0, %v5744
      %v5746 = vrcp.pop %v5433
      %v5747 = vmul.f32 1.0, %v5746
      %v5748 = vrcp.pop %v5434
      %v5749 = vmul.f32 1.0, %v5748
      %v5750 = vrcp.pop %v5435
      %v5751 = vmul.f32 1.0, %v5750
      %v5752 = vrcp.pop %v5436
      %v5753 = vmul.f32 1.0, %v5752
      %v5754 = vrcp.pop %v5437
      %v5755 = vmul.f32 1.0, %v5754
      %v5756 = vrcp.pop %v5438
      %v5757 = vmul.f32 1.0, %v5756
      %v5758 = vrcp.pop %v5439
      %v5759 = vmul.f32 1.0, %v5758
      %v5760 = vrcp.pop %v5440
      %v5761 = vmul.f32 1.0, %v5760
      %v5762 = vrcp.pop %v5441
      %v5763 = vmul.f32 1.0, %v5762
      %v5764 = vrcp.pop %v5442
      %v5765 = vmul.f32 1.0, %v5764
      %v5766 = vrcp.pop %v5443
      %v5767 = vmul.f32 1.0, %v5766
      %v5768 = vrcp.pop %v5444
      %v5769 = vmul.f32 1.0, %v5768
      %v5770 = vrcp.pop %v5445
      %v5771 = vmul.f32 1.0, %v5770
      %v5772 = vrcp.pop %v5446
      %v5773 = vmul.f32 1.0, %v5772
      %v5774 = vrcp.pop %v5447
      %v5775 = vmul.f32 1.0, %v5774
      %v5776 = vrcp.pop %v5448
      %v5777 = vmul.f32 1.0, %v5776
      %v5778 = vrcp.pop %v5449
      %v5779 = vmul.f32 1.0, %v5778
      %v5780 = vrcp.pop %v5450
      %v5781 = vmul.f32 1.0, %v5780
      %v5782 = vrcp.pop %v5451
      %v5783 = vmul.f32 1.0, %v5782
      %v5784 = vrcp.pop %v5452
      %v5785 = vmul.f32 1.0, %v5784
      %v5786 = vrcp.pop %v5453
      %v5787 = vmul.f32 1.0, %v5786
      %v5788 = vrcp.pop %v5454
      %v5789 = vmul.f32 1.0, %v5788
      %v5790 = vrcp.pop %v5455
      %v5791 = vmul.f32 1.0, %v5790
      %v5792 = vrcp.pop %v5456
      %v5793 = vmul.f32 1.0, %v5792
      %v5794 = vrcp.pop %v5457
      %v5795 = vmul.f32 1.0, %v5794
      %v5796 = vrcp.pop %v5458
      %v5797 = vmul.f32 1.0, %v5796
      %v5798 = vrcp.pop %v5459
      %v5799 = vmul.f32 1.0, %v5798
      %v5800 = vrcp.pop %v5460
      %v5801 = vmul.f32 1.0, %v5800
      %v5802 = vrcp.pop %v5461
      %v5803 = vmul.f32 1.0, %v5802
      %v5804 = vrcp.pop %v5462
      %v5805 = vmul.f32 1.0, %v5804
      %v5806 = vrcp.pop %v5463
      %v5807 = vmul.f32 1.0, %v5806
      %v5808 = vrcp.pop %v5464
      %v5809 = vmul.f32 1.0, %v5808
      %v5810 = vrcp.pop %v5465
      %v5811 = vmul.f32 1.0, %v5810
      %v5812 = vrcp.pop %v5466
      %v5813 = vmul.f32 1.0, %v5812
      %v5814 = vrcp.pop %v5467
      %v5815 = vmul.f32 1.0, %v5814
      %v5816 = vrcp.pop %v5468
      %v5817 = vmul.f32 1.0, %v5816
      %v5818 = vrcp.pop %v5469
      %v5819 = vmul.f32 1.0, %v5818
      %v5820 = vrcp.pop %v5470
      %v5821 = vmul.f32 1.0, %v5820
      %v5822 = vrcp.pop %v5471
      %v5823 = vmul.f32 1.0, %v5822
      %v5824 = vrcp.pop %v5472
      %v5825 = vmul.f32 1.0, %v5824
      %v5826 = vrcp.pop %v5473
      %v5827 = vmul.f32 1.0, %v5826
      %v5828 = vrcp.pop %v5474
      %v5829 = vmul.f32 1.0, %v5828
      %v5830 = vrcp.pop %v5475
      %v5831 = vmul.f32 1.0, %v5830
      %v5832 = vrcp.pop %v5476
      %v5833 = vmul.f32 1.0, %v5832
      %v5834 = vrcp.pop %v5477
      %v5835 = vmul.f32 1.0, %v5834
      %v5836 = vrcp.pop %v5478
      %v5837 = vmul.f32 1.0, %v5836
      %v5838 = vrcp.pop %v5479
      %v5839 = vmul.f32 1.0, %v5838
      %v5840 = vrcp.pop %v5480
      %v5841 = vmul.f32 1.0, %v5840
      %v5842 = vrcp.pop %v5481
      %v5843 = vmul.f32 1.0, %v5842
      %v5844 = vrcp.pop %v5482
      %v5845 = vmul.f32 1.0, %v5844
      %v5846 = vrcp.pop %v5483
      %v5847 = vmul.f32 1.0, %v5846
      %v5848 = vrcp.pop %v5484
      %v5849 = vmul.f32 1.0, %v5848
      %v5850 = vrcp.pop %v5485
      %v5851 = vmul.f32 1.0, %v5850
      %v5852 = vrcp.pop %v5486
      %v5853 = vmul.f32 1.0, %v5852
      %v5854 = vrcp.pop %v5487
      %v5855 = vmul.f32 1.0, %v5854
      %v5856 = vrcp.pop %v5488
      %v5857 = vmul.f32 1.0, %v5856
      %v5858 = vrcp.pop %v5489
      %v5859 = vmul.f32 1.0, %v5858
      %v5860 = vrcp.pop %v5490
      %v5861 = vmul.f32 1.0, %v5860
      %v5862 = vrcp.pop %v5491
      %v5863 = vmul.f32 1.0, %v5862
      %v5864 = vrcp.pop %v5492
      %v5865 = vmul.f32 1.0, %v5864
      %v5866 = vrcp.pop %v5493
      %v5867 = vmul.f32 1.0, %v5866
      %v5868 = vrcp.pop %v5494
      %v5869 = vmul.f32 1.0, %v5868
      %v5870 = vrcp.pop %v5495
      %v5871 = vmul.f32 1.0, %v5870
      %v5872 = vrcp.pop %v5496
      %v5873 = vmul.f32 1.0, %v5872
      %v5874 = vrcp.pop %v5497
      %v5875 = vmul.f32 1.0, %v5874
      %v5876 = vrcp.pop %v5498
      %v5877 = vmul.f32 1.0, %v5876
      %v5878 = vrcp.pop %v5499
      %v5879 = vmul.f32 1.0, %v5878
      %v5880 = vrcp.pop %v5500
      %v5881 = vmul.f32 1.0, %v5880
      %v5882 = vrcp.pop %v5501
      %v5883 = vmul.f32 1.0, %v5882
      %v5884 = vrcp.pop %v5502
      %v5885 = vmul.f32 1.0, %v5884
      %v5886 = vrcp.pop %v5503
      %v5887 = vmul.f32 1.0, %v5886
      %v5888 = vrcp.pop %v5504
      %v5889 = vmul.f32 1.0, %v5888
      %v5890 = vrcp.pop %v5505
      %v5891 = vmul.f32 1.0, %v5890
      %v5892 = vrcp.pop %v5506
      %v5893 = vmul.f32 1.0, %v5892
      %v5894 = vrcp.pop %v5507
      %v5895 = vmul.f32 1.0, %v5894
      %v5896 = vrcp.pop %v5508
      %v5897 = vmul.f32 1.0, %v5896
      %v5898 = vrcp.pop %v5509
      %v5899 = vmul.f32 1.0, %v5898
      %v5900 = vrcp.pop %v5510
      %v5901 = vmul.f32 1.0, %v5900
      %v5902 = vrcp.pop %v5511
      %v5903 = vmul.f32 1.0, %v5902
      %v5904 = vrcp.pop %v5512
      %v5905 = vmul.f32 1.0, %v5904
      %v5906 = vrcp.pop %v5513
      %v5907 = vmul.f32 1.0, %v5906
      %v5908 = vrcp.pop %v5514
      %v5909 = vmul.f32 1.0, %v5908
      %v5910 = vrcp.pop %v5515
      %v5911 = vmul.f32 1.0, %v5910
      %v5912 = vrcp.pop %v5516
      %v5913 = vmul.f32 1.0, %v5912
      %v5914 = vrcp.pop %v5517
      %v5915 = vmul.f32 1.0, %v5914
      %v5916 = vrcp.pop %v5518
      %v5917 = vmul.f32 1.0, %v5916
      %v5918 = vrcp.pop %v5519
      %v5919 = vmul.f32 1.0, %v5918
      %v5920 = vrcp.pop %v5520
      %v5921 = vmul.f32 1.0, %v5920
      %v5922 = vrcp.pop %v5521
      %v5923 = vmul.f32 1.0, %v5922
      %v5924 = vrcp.pop %v5522
      %v5925 = vmul.f32 1.0, %v5924
      %v5926 = vrcp.pop %v5523
      %v5927 = vmul.f32 1.0, %v5926
      %v5928 = vrcp.pop %v5524
      %v5929 = vmul.f32 1.0, %v5928
      %v5930 = vrcp.pop %v5525
      %v5931 = vmul.f32 1.0, %v5930
      %v5932 = vrcp.pop %v5526
      %v5933 = vmul.f32 1.0, %v5932
      %v5934 = vrcp.pop %v5527
      %v5935 = vmul.f32 1.0, %v5934
      %v5936 = vrcp.pop %v5528
      %v5937 = vmul.f32 1.0, %v5936
      %v5938 = vrcp.pop %v5529
      %v5939 = vmul.f32 1.0, %v5938
      %v5940 = vrcp.pop %v5530
      %v5941 = vmul.f32 1.0, %v5940
      %v5942 = vrcp.pop %v5531
      %v5943 = vmul.f32 1.0, %v5942
      %v5944 = vrcp.pop %v5532
      %v5945 = vmul.f32 1.0, %v5944
      %v5946 = vrcp.pop %v5533
      %v5947 = vmul.f32 1.0, %v5946
      %v5948 = vrcp.pop %v5534
      %v5949 = vmul.f32 1.0, %v5948
      %v5950 = vrcp.pop %v5535
      %v5951 = vmul.f32 1.0, %v5950
      %v5952 = vrcp.pop %v5536
      %v5953 = vmul.f32 1.0, %v5952
      %v5954 = vrcp.pop %v5537
      %v5955 = vmul.f32 1.0, %v5954
      %v5956 = vrcp.pop %v5538
      %v5957 = vmul.f32 1.0, %v5956
      %v5958 = vrcp.pop %v5539
      %v5959 = vmul.f32 1.0, %v5958
      %v5960 = vrcp.pop %v5540
      %v5961 = vmul.f32 1.0, %v5960
      %v5962 = vrcp.pop %v5541
      %v5963 = vmul.f32 1.0, %v5962
      %v5964 = vrcp.pop %v5542
      %v5965 = vmul.f32 1.0, %v5964
      %v5966 = vrcp.pop %v5543
      %v5967 = vmul.f32 1.0, %v5966
      %v5968 = vrcp.pop %v5544
      %v5969 = vmul.f32 1.0, %v5968
      %v5970 = vrcp.pop %v5545
      %v5971 = vmul.f32 1.0, %v5970
      %v5972 = vrcp.pop %v5546
      %v5973 = vmul.f32 1.0, %v5972
      %v5974 = vrcp.pop %v5547
      %v5975 = vmul.f32 1.0, %v5974
      %v5976 = vrcp.pop %v5548
      %v5977 = vmul.f32 1.0, %v5976
      %v5978 = vrcp.pop %v5549
      %v5979 = vmul.f32 1.0, %v5978
      %v5980 = vrcp.pop %v5550
      %v5981 = vmul.f32 1.0, %v5980
      %v5982 = vrcp.pop %v5551
      %v5983 = vmul.f32 1.0, %v5982
      %v5984 = vrcp.pop %v5552
      %v5985 = vmul.f32 1.0, %v5984
      %v5986 = vrcp.pop %v5553
      %v5987 = vmul.f32 1.0, %v5986
      %v5988 = vrcp.pop %v5554
      %v5989 = vmul.f32 1.0, %v5988
      %v5990 = vrcp.pop %v5555
      %v5991 = vmul.f32 1.0, %v5990
      %v5992 = vrcp.pop %v5556
      %v5993 = vmul.f32 1.0, %v5992
      %v5994 = vrcp.pop %v5557
      %v5995 = vmul.f32 1.0, %v5994
      %v5996 = vrcp.pop %v5558
      %v5997 = vmul.f32 1.0, %v5996
      %v5998 = vrcp.pop %v5559
      %v5999 = vmul.f32 1.0, %v5998
      %v6000 = vrcp.pop %v5560
      %v6001 = vmul.f32 1.0, %v6000
      %v6002 = vrcp.pop %v5561
      %v6003 = vmul.f32 1.0, %v6002
      %v6004 = vrcp.pop %v5562
      %v6005 = vmul.f32 1.0, %v6004
      %v6006 = vrcp.pop %v5563
      %v6007 = vmul.f32 1.0, %v6006
      %v6008 = vrcp.pop %v5564
      %v6009 = vmul.f32 1.0, %v6008
      %v6010 = vrcp.pop %v5565
      %v6011 = vmul.f32 1.0, %v6010
      %v6012 = vrcp.pop %v5566
      %v6013 = vmul.f32 1.0, %v6012
      %v6014 = vrcp.pop %v5567
      %v6015 = vmul.f32 1.0, %v6014
      %6016 = vst [vmem:[%s501] sm:$0xff] %v5569
      %6017 = vst [vmem:[%s501 + $0x8] sm:$0xff] %v5571
      %6018 = vst [vmem:[%s501 + $0x10] sm:$0xff] %v5573
      %6019 = vst [vmem:[%s501 + $0x18] sm:$0xff] %v5575
      %6020 = vst [vmem:[%s501 + $0x20] sm:$0xff] %v5577
      %6021 = vst [vmem:[%s501 + $0x28] sm:$0xff] %v5579
      %6022 = vst [vmem:[%s501 + $0x30] sm:$0xff] %v5581
      %6023 = vst [vmem:[%s501 + $0x38] sm:$0xff] %v5583
      %6024 = vst [vmem:[%s501 + $0x40] sm:$0xff] %v5585
      %6025 = vst [vmem:[%s501 + $0x48] sm:$0xff] %v5587
      %6026 = vst [vmem:[%s501 + $0x50] sm:$0xff] %v5589
      %6027 = vst [vmem:[%s501 + $0x58] sm:$0xff] %v5591
      %6028 = vst [vmem:[%s501 + $0x60] sm:$0xff] %v5593
      %6029 = vst [vmem:[%s501 + $0x68] sm:$0xff] %v5595
      %6030 = vst [vmem:[%s501 + $0x70] sm:$0xff] %v5597
      %6031 = vst [vmem:[%s501 + $0x78] sm:$0xff] %v5599
      %6032 = vst [vmem:[%s501 + $0x80] sm:$0xff] %v5601
      %6033 = vst [vmem:[%s501 + $0x88] sm:$0xff] %v5603
      %6034 = vst [vmem:[%s501 + $0x90] sm:$0xff] %v5605
      %6035 = vst [vmem:[%s501 + $0x98] sm:$0xff] %v5607
      %6036 = vst [vmem:[%s501 + $0xa0] sm:$0xff] %v5609
      %6037 = vst [vmem:[%s501 + $0xa8] sm:$0xff] %v5611
      %6038 = vst [vmem:[%s501 + $0xb0] sm:$0xff] %v5613
      %6039 = vst [vmem:[%s501 + $0xb8] sm:$0xff] %v5615
      %6040 = vst [vmem:[%s501 + $0xc0] sm:$0xff] %v5617
      %6041 = vst [vmem:[%s501 + $0xc8] sm:$0xff] %v5619
      %6042 = vst [vmem:[%s501 + $0xd0] sm:$0xff] %v5621
      %6043 = vst [vmem:[%s501 + $0xd8] sm:$0xff] %v5623
      %6044 = vst [vmem:[%s501 + $0xe0] sm:$0xff] %v5625
      %6045 = vst [vmem:[%s501 + $0xe8] sm:$0xff] %v5627
      %6046 = vst [vmem:[%s501 + $0xf0] sm:$0xff] %v5629
      %6047 = vst [vmem:[%s501 + $0xf8] sm:$0xff] %v5631
      %6048 = vst [vmem:[%s501 + $0x100] sm:$0xff] %v5633
      %6049 = vst [vmem:[%s501 + $0x108] sm:$0xff] %v5635
      %6050 = vst [vmem:[%s501 + $0x110] sm:$0xff] %v5637
      %6051 = vst [vmem:[%s501 + $0x118] sm:$0xff] %v5639
      %6052 = vst [vmem:[%s501 + $0x120] sm:$0xff] %v5641
      %6053 = vst [vmem:[%s501 + $0x128] sm:$0xff] %v5643
      %6054 = vst [vmem:[%s501 + $0x130] sm:$0xff] %v5645
      %6055 = vst [vmem:[%s501 + $0x138] sm:$0xff] %v5647
      %6056 = vst [vmem:[%s501 + $0x140] sm:$0xff] %v5649
      %6057 = vst [vmem:[%s501 + $0x148] sm:$0xff] %v5651
      %6058 = vst [vmem:[%s501 + $0x150] sm:$0xff] %v5653
      %6059 = vst [vmem:[%s501 + $0x158] sm:$0xff] %v5655
      %6060 = vst [vmem:[%s501 + $0x160] sm:$0xff] %v5657
      %6061 = vst [vmem:[%s501 + $0x168] sm:$0xff] %v5659
      %6062 = vst [vmem:[%s501 + $0x170] sm:$0xff] %v5661
      %6063 = vst [vmem:[%s501 + $0x178] sm:$0xff] %v5663
      %6064 = vst [vmem:[%s501 + $0x180] sm:$0xff] %v5665
      %6065 = vst [vmem:[%s501 + $0x188] sm:$0xff] %v5667
      %6066 = vst [vmem:[%s501 + $0x190] sm:$0xff] %v5669
      %6067 = vst [vmem:[%s501 + $0x198] sm:$0xff] %v5671
      %6068 = vst [vmem:[%s501 + $0x1a0] sm:$0xff] %v5673
      %6069 = vst [vmem:[%s501 + $0x1a8] sm:$0xff] %v5675
      %6070 = vst [vmem:[%s501 + $0x1b0] sm:$0xff] %v5677
      %6071 = vst [vmem:[%s501 + $0x1b8] sm:$0xff] %v5679
      %6072 = vst [vmem:[%s501 + $0x1c0] sm:$0xff] %v5681
      %6073 = vst [vmem:[%s501 + $0x1c8] sm:$0xff] %v5683
      %6074 = vst [vmem:[%s501 + $0x1d0] sm:$0xff] %v5685
      %6075 = vst [vmem:[%s501 + $0x1d8] sm:$0xff] %v5687
      %6076 = vst [vmem:[%s501 + $0x1e0] sm:$0xff] %v5689
      %6077 = vst [vmem:[%s501 + $0x1e8] sm:$0xff] %v5691
      %6078 = vst [vmem:[%s501 + $0x1f0] sm:$0xff] %v5693
      %6079 = vst [vmem:[%s501 + $0x1f8] sm:$0xff] %v5695
      %6080 = vst [vmem:[%s501 + $0x200] sm:$0xff] %v5697
      %6081 = vst [vmem:[%s501 + $0x208] sm:$0xff] %v5699
      %6082 = vst [vmem:[%s501 + $0x210] sm:$0xff] %v5701
      %6083 = vst [vmem:[%s501 + $0x218] sm:$0xff] %v5703
      %6084 = vst [vmem:[%s501 + $0x220] sm:$0xff] %v5705
      %6085 = vst [vmem:[%s501 + $0x228] sm:$0xff] %v5707
      %6086 = vst [vmem:[%s501 + $0x230] sm:$0xff] %v5709
      %6087 = vst [vmem:[%s501 + $0x238] sm:$0xff] %v5711
      %6088 = vst [vmem:[%s501 + $0x240] sm:$0xff] %v5713
      %6089 = vst [vmem:[%s501 + $0x248] sm:$0xff] %v5715
      %6090 = vst [vmem:[%s501 + $0x250] sm:$0xff] %v5717
      %6091 = vst [vmem:[%s501 + $0x258] sm:$0xff] %v5719
      %6092 = vst [vmem:[%s501 + $0x260] sm:$0xff] %v5721
      %6093 = vst [vmem:[%s501 + $0x268] sm:$0xff] %v5723
      %6094 = vst [vmem:[%s501 + $0x270] sm:$0xff] %v5725
      %6095 = vst [vmem:[%s501 + $0x278] sm:$0xff] %v5727
      %6096 = vst [vmem:[%s501 + $0x280] sm:$0xff] %v5729
      %6097 = vst [vmem:[%s501 + $0x288] sm:$0xff] %v5731
      %6098 = vst [vmem:[%s501 + $0x290] sm:$0xff] %v5733
      %6099 = vst [vmem:[%s501 + $0x298] sm:$0xff] %v5735
      %6100 = vst [vmem:[%s501 + $0x2a0] sm:$0xff] %v5737
      %6101 = vst [vmem:[%s501 + $0x2a8] sm:$0xff] %v5739
      %6102 = vst [vmem:[%s501 + $0x2b0] sm:$0xff] %v5741
      %6103 = vst [vmem:[%s501 + $0x2b8] sm:$0xff] %v5743
      %6104 = vst [vmem:[%s501 + $0x2c0] sm:$0xff] %v5745
      %6105 = vst [vmem:[%s501 + $0x2c8] sm:$0xff] %v5747
      %6106 = vst [vmem:[%s501 + $0x2d0] sm:$0xff] %v5749
      %6107 = vst [vmem:[%s501 + $0x2d8] sm:$0xff] %v5751
      %6108 = vst [vmem:[%s501 + $0x2e0] sm:$0xff] %v5753
      %6109 = vst [vmem:[%s501 + $0x2e8] sm:$0xff] %v5755
      %6110 = vst [vmem:[%s501 + $0x2f0] sm:$0xff] %v5757
      %6111 = vst [vmem:[%s501 + $0x2f8] sm:$0xff] %v5759
      %6112 = vst [vmem:[%s501 + $0x300] sm:$0xff] %v5761
      %6113 = vst [vmem:[%s501 + $0x308] sm:$0xff] %v5763
      %6114 = vst [vmem:[%s501 + $0x310] sm:$0xff] %v5765
      %6115 = vst [vmem:[%s501 + $0x318] sm:$0xff] %v5767
      %6116 = vst [vmem:[%s501 + $0x320] sm:$0xff] %v5769
      %6117 = vst [vmem:[%s501 + $0x328] sm:$0xff] %v5771
      %6118 = vst [vmem:[%s501 + $0x330] sm:$0xff] %v5773
      %6119 = vst [vmem:[%s501 + $0x338] sm:$0xff] %v5775
      %6120 = vst [vmem:[%s501 + $0x340] sm:$0xff] %v5777
      %6121 = vst [vmem:[%s501 + $0x348] sm:$0xff] %v5779
      %6122 = vst [vmem:[%s501 + $0x350] sm:$0xff] %v5781
      %6123 = vst [vmem:[%s501 + $0x358] sm:$0xff] %v5783
      %6124 = vst [vmem:[%s501 + $0x360] sm:$0xff] %v5785
      %6125 = vst [vmem:[%s501 + $0x368] sm:$0xff] %v5787
      %6126 = vst [vmem:[%s501 + $0x370] sm:$0xff] %v5789
      %6127 = vst [vmem:[%s501 + $0x378] sm:$0xff] %v5791
      %6128 = vst [vmem:[%s501 + $0x380] sm:$0xff] %v5793
      %6129 = vst [vmem:[%s501 + $0x388] sm:$0xff] %v5795
      %6130 = vst [vmem:[%s501 + $0x390] sm:$0xff] %v5797
      %6131 = vst [vmem:[%s501 + $0x398] sm:$0xff] %v5799
      %6132 = vst [vmem:[%s501 + $0x3a0] sm:$0xff] %v5801
      %6133 = vst [vmem:[%s501 + $0x3a8] sm:$0xff] %v5803
      %6134 = vst [vmem:[%s501 + $0x3b0] sm:$0xff] %v5805
      %6135 = vst [vmem:[%s501 + $0x3b8] sm:$0xff] %v5807
      %6136 = vst [vmem:[%s501 + $0x3c0] sm:$0xff] %v5809
      %6137 = vst [vmem:[%s501 + $0x3c8] sm:$0xff] %v5811
      %6138 = vst [vmem:[%s501 + $0x3d0] sm:$0xff] %v5813
      %6139 = vst [vmem:[%s501 + $0x3d8] sm:$0xff] %v5815
      %6140 = vst [vmem:[%s501 + $0x3e0] sm:$0xff] %v5817
      %6141 = vst [vmem:[%s501 + $0x3e8] sm:$0xff] %v5819
      %6142 = vst [vmem:[%s501 + $0x3f0] sm:$0xff] %v5821
      %6143 = vst [vmem:[%s501 + $0x3f8] sm:$0xff] %v5823
      %6144 = vst [vmem:[%s501 + $0x400] sm:$0xff] %v5825
      %6145 = vst [vmem:[%s501 + $0x408] sm:$0xff] %v5827
      %6146 = vst [vmem:[%s501 + $0x410] sm:$0xff] %v5829
      %6147 = vst [vmem:[%s501 + $0x418] sm:$0xff] %v5831
      %6148 = vst [vmem:[%s501 + $0x420] sm:$0xff] %v5833
      %6149 = vst [vmem:[%s501 + $0x428] sm:$0xff] %v5835
      %6150 = vst [vmem:[%s501 + $0x430] sm:$0xff] %v5837
      %6151 = vst [vmem:[%s501 + $0x438] sm:$0xff] %v5839
      %6152 = vst [vmem:[%s501 + $0x440] sm:$0xff] %v5841
      %6153 = vst [vmem:[%s501 + $0x448] sm:$0xff] %v5843
      %6154 = vst [vmem:[%s501 + $0x450] sm:$0xff] %v5845
      %6155 = vst [vmem:[%s501 + $0x458] sm:$0xff] %v5847
      %6156 = vst [vmem:[%s501 + $0x460] sm:$0xff] %v5849
      %6157 = vst [vmem:[%s501 + $0x468] sm:$0xff] %v5851
      %6158 = vst [vmem:[%s501 + $0x470] sm:$0xff] %v5853
      %6159 = vst [vmem:[%s501 + $0x478] sm:$0xff] %v5855
      %6160 = vst [vmem:[%s501 + $0x480] sm:$0xff] %v5857
      %6161 = vst [vmem:[%s501 + $0x488] sm:$0xff] %v5859
      %6162 = vst [vmem:[%s501 + $0x490] sm:$0xff] %v5861
      %6163 = vst [vmem:[%s501 + $0x498] sm:$0xff] %v5863
      %6164 = vst [vmem:[%s501 + $0x4a0] sm:$0xff] %v5865
      %6165 = vst [vmem:[%s501 + $0x4a8] sm:$0xff] %v5867
      %6166 = vst [vmem:[%s501 + $0x4b0] sm:$0xff] %v5869
      %6167 = vst [vmem:[%s501 + $0x4b8] sm:$0xff] %v5871
      %6168 = vst [vmem:[%s501 + $0x4c0] sm:$0xff] %v5873
      %6169 = vst [vmem:[%s501 + $0x4c8] sm:$0xff] %v5875
      %6170 = vst [vmem:[%s501 + $0x4d0] sm:$0xff] %v5877
      %6171 = vst [vmem:[%s501 + $0x4d8] sm:$0xff] %v5879
      %6172 = vst [vmem:[%s501 + $0x4e0] sm:$0xff] %v5881
      %6173 = vst [vmem:[%s501 + $0x4e8] sm:$0xff] %v5883
      %6174 = vst [vmem:[%s501 + $0x4f0] sm:$0xff] %v5885
      %6175 = vst [vmem:[%s501 + $0x4f8] sm:$0xff] %v5887
      %6176 = vst [vmem:[%s501 + $0x500] sm:$0xff] %v5889
      %6177 = vst [vmem:[%s501 + $0x508] sm:$0xff] %v5891
      %6178 = vst [vmem:[%s501 + $0x510] sm:$0xff] %v5893
      %6179 = vst [vmem:[%s501 + $0x518] sm:$0xff] %v5895
      %6180 = vst [vmem:[%s501 + $0x520] sm:$0xff] %v5897
      %6181 = vst [vmem:[%s501 + $0x528] sm:$0xff] %v5899
      %6182 = vst [vmem:[%s501 + $0x530] sm:$0xff] %v5901
      %6183 = vst [vmem:[%s501 + $0x538] sm:$0xff] %v5903
      %6184 = vst [vmem:[%s501 + $0x540] sm:$0xff] %v5905
      %6185 = vst [vmem:[%s501 + $0x548] sm:$0xff] %v5907
      %6186 = vst [vmem:[%s501 + $0x550] sm:$0xff] %v5909
      %6187 = vst [vmem:[%s501 + $0x558] sm:$0xff] %v5911
      %6188 = vst [vmem:[%s501 + $0x560] sm:$0xff] %v5913
      %6189 = vst [vmem:[%s501 + $0x568] sm:$0xff] %v5915
      %6190 = vst [vmem:[%s501 + $0x570] sm:$0xff] %v5917
      %6191 = vst [vmem:[%s501 + $0x578] sm:$0xff] %v5919
      %6192 = vst [vmem:[%s501 + $0x580] sm:$0xff] %v5921
      %6193 = vst [vmem:[%s501 + $0x588] sm:$0xff] %v5923
      %6194 = vst [vmem:[%s501 + $0x590] sm:$0xff] %v5925
      %6195 = vst [vmem:[%s501 + $0x598] sm:$0xff] %v5927
      %6196 = vst [vmem:[%s501 + $0x5a0] sm:$0xff] %v5929
      %6197 = vst [vmem:[%s501 + $0x5a8] sm:$0xff] %v5931
      %6198 = vst [vmem:[%s501 + $0x5b0] sm:$0xff] %v5933
      %6199 = vst [vmem:[%s501 + $0x5b8] sm:$0xff] %v5935
      %6200 = vst [vmem:[%s501 + $0x5c0] sm:$0xff] %v5937
      %6201 = vst [vmem:[%s501 + $0x5c8] sm:$0xff] %v5939
      %6202 = vst [vmem:[%s501 + $0x5d0] sm:$0xff] %v5941
      %6203 = vst [vmem:[%s501 + $0x5d8] sm:$0xff] %v5943
      %6204 = vst [vmem:[%s501 + $0x5e0] sm:$0xff] %v5945
      %6205 = vst [vmem:[%s501 + $0x5e8] sm:$0xff] %v5947
      %6206 = vst [vmem:[%s501 + $0x5f0] sm:$0xff] %v5949
      %6207 = vst [vmem:[%s501 + $0x5f8] sm:$0xff] %v5951
      %6208 = vst [vmem:[%s501 + $0x600] sm:$0xff] %v5953
      %6209 = vst [vmem:[%s501 + $0x608] sm:$0xff] %v5955
      %6210 = vst [vmem:[%s501 + $0x610] sm:$0xff] %v5957
      %6211 = vst [vmem:[%s501 + $0x618] sm:$0xff] %v5959
      %6212 = vst [vmem:[%s501 + $0x620] sm:$0xff] %v5961
      %6213 = vst [vmem:[%s501 + $0x628] sm:$0xff] %v5963
      %6214 = vst [vmem:[%s501 + $0x630] sm:$0xff] %v5965
      %6215 = vst [vmem:[%s501 + $0x638] sm:$0xff] %v5967
      %6216 = vst [vmem:[%s501 + $0x640] sm:$0xff] %v5969
      %6217 = vst [vmem:[%s501 + $0x648] sm:$0xff] %v5971
      %6218 = vst [vmem:[%s501 + $0x650] sm:$0xff] %v5973
      %6219 = vst [vmem:[%s501 + $0x658] sm:$0xff] %v5975
      %6220 = vst [vmem:[%s501 + $0x660] sm:$0xff] %v5977
      %6221 = vst [vmem:[%s501 + $0x668] sm:$0xff] %v5979
      %6222 = vst [vmem:[%s501 + $0x670] sm:$0xff] %v5981
      %6223 = vst [vmem:[%s501 + $0x678] sm:$0xff] %v5983
      %6224 = vst [vmem:[%s501 + $0x680] sm:$0xff] %v5985
      %6225 = vst [vmem:[%s501 + $0x688] sm:$0xff] %v5987
      %6226 = vst [vmem:[%s501 + $0x690] sm:$0xff] %v5989
      %6227 = vst [vmem:[%s501 + $0x698] sm:$0xff] %v5991
      %6228 = vst [vmem:[%s501 + $0x6a0] sm:$0xff] %v5993
      %6229 = vst [vmem:[%s501 + $0x6a8] sm:$0xff] %v5995
      %6230 = vst [vmem:[%s501 + $0x6b0] sm:$0xff] %v5997
      %6231 = vst [vmem:[%s501 + $0x6b8] sm:$0xff] %v5999
      %6232 = vst [vmem:[%s501 + $0x6c0] sm:$0xff] %v6001
      %6233 = vst [vmem:[%s501 + $0x6c8] sm:$0xff] %v6003
      %6234 = vst [vmem:[%s501 + $0x6d0] sm:$0xff] %v6005
      %6235 = vst [vmem:[%s501 + $0x6d8] sm:$0xff] %v6007
      %6236 = vst [vmem:[%s501 + $0x6e0] sm:$0xff] %v6009
      %6237 = vst [vmem:[%s501 + $0x6e8] sm:$0xff] %v6011
      %6238 = vst [vmem:[%s501 + $0x6f0] sm:$0xff] %v6013
      %6239 = vst [vmem:[%s501 + $0x6f8] sm:$0xff] %v6015
      %s6240 = smul.u32 32, %s26
      %p6241 = scmp.lt.s32.totalorder %s6240, 63
      %s6242 = scalar_select %p6241, %s6240, 63
      %s6243 = smul.addr %s6242, 7
      %s6244 = smul.addr %s6243, 8
      %s6245 = scalar_lea.vmem %s15, %s6244
      // Predicated region
      $region81: #{forward.1} parent=79 // pred_check
        %p6246 = pneg %p364
      $region82: #{forward.1} parent=79 // pred_check_branch
        %6248 = sbr.rel (%p6246) target = $region84
      $region83: #{forward.1} parent=79 // pred_region
        %s6249 = smul.u32 32, %s26
      $region84: #{forward.1} parent=79 // pred_fallthru
        _
    $region80: #{forward.1} parent=5 // pred_fallthru
      _
    %p6250 = scmp.le.s32.totalorder 2, %s21
    // Predicated region
    $region85: #{forward.1} parent=5 // pred_check
      %p6251 = pneg %p6250
    $region86: #{forward.1} parent=5 // pred_check_branch
      %6253 = sbr.rel (%p6251) target = $region88
    $region87: #{forward.1} parent=5 // pred_region
      %s6254 = ssub.s32 %s21, 2
      // Predicated region
      $region89: #{forward.1} parent=87 // pred_check
        %p6255 = pneg %p370
      $region90: #{forward.1} parent=87 // pred_check_branch
        %6257 = sbr.rel (%p6255) target = $region92
      $region91: #{forward.1} parent=87 // pred_region
        %s6258 = smul.u32 32, %s27
        %p6259 = scmp.lt.s32.totalorder %s6258, 63
        %s6260 = scalar_select %p6259, %s6258, 63
        %s6261 = smul.addr %s6260, 7
        %s6262 = smul.addr %s6261, 8
        %s6263 = scalar_lea.vmem %s15, %s6262
      $region92: #{forward.1} parent=87 // pred_fallthru
        _
    $region88: #{forward.1} parent=5 // pred_fallthru
      _
  $region6: #{forward.1} parent=0 // loop_footer
    %s25 = sadd.s32 1, %s21
  $region7: #{forward.1} parent=0 // loop_footer_branch
    %20 = sbr.rel target = $region3
  $region8: #{forward.1} parent=0 // loop_exit
    _

</llo_original>
